<compile_context>
chip_gen: v5e
topology: v5e:2x2
jax: 0.10.0
libtpu: 0.0.40
codegen_flags: <defaults>
</compile_context>

<pallas_src>
import functools

import jax
import jax.numpy as jnp
from jax.experimental import pallas as pl
from jax.experimental.pallas import tpu as pltpu


VMEM = pltpu.MemorySpace.VMEM
SMEM = pltpu.MemorySpace.SMEM


def _kld(mu, logvar):
    return -0.5 * jnp.sum(1.0 + logvar - mu * mu - jnp.exp(logvar))


# ----------------------------------------------------------------------------
# Fused forward kernel (grid=()): whole sequence + all weights resident in
# VMEM, time loop unrolled in-kernel.
# ----------------------------------------------------------------------------
def _mfm_kernel(x_ref, w_ref, recon_ref, y_ref, kld_ref, hs_ref,
                *, t, n, layout, dm):
    f32 = jnp.float32
    H = dm['H']                                    # zl+za+zv+dh_l+dh_a+dh_v
    HD = dm['HD']                                  # (fy+fl)+(fy+fa)+(fy+fv)
    enc_h = dm['zl'] + dm['za'] + dm['zv']
    mem_dim = dm['mem']
    zy_dim = dm['zy']

    def W(name):                                   # static view into the slab
        ro, r, c = layout[name]
        return w_ref[pl.ds(ro, r), pl.ds(0, c)]

    def mm(a, b):
        return jnp.dot(a, b, preferred_element_type=f32)

    # ---- weights that live across the unrolled time loop (load once) ----
    w_hh = W('w_hh')
    a11w, a12w, a21w, a22w = W('a11w'), W('a12w'), W('a21w'), W('a22w')
    g1w, g2w = W('g1w'), W('g2w')
    bc = lambda b: jnp.broadcast_to(b, (n, b.shape[1]))     # hoisted broadcast
    a11b, a12b, a21b, a22b = map(bc, (W('a11b'), W('a12b'),
                                      W('a21b'), W('a22b')))
    g1b, g2b = bc(W('g1b')), bc(W('g2b'))

    # ---- hoisted input projection for all 6 LSTMs (3 encoders + 3 MFN) ----
    xp = mm(x_ref[...], W('w_in')) + W('b_lstm')            # (t*n, 4H)

    h = jnp.zeros((n, H), f32)
    c = jnp.zeros((n, H), f32)
    mem = jnp.zeros((n, mem_dim), f32)

    # t is small & static -> fully unrolled serial recurrence.
    for i in range(t):
        gates = xp[i * n:(i + 1) * n, :] + mm(h, w_hh)
        i_g = jax.nn.sigmoid(gates[:, 0 * H:1 * H])
        f_g = jax.nn.sigmoid(gates[:, 1 * H:2 * H])
        g_g = jnp.tanh(gates[:, 2 * H:3 * H])
        o_g = jax.nn.sigmoid(gates[:, 3 * H:4 * H])
        c_prev_mfn = c[:, enc_h:]
        c = f_g * c + i_g * g_g
        h = o_g * jnp.tanh(c)
        # MFN attention / memory update (windowsize = 2).
        c_star = jnp.concatenate([c_prev_mfn, c[:, enc_h:]], axis=1)
        att_h = jnp.maximum(mm(c_star, a11w) + a11b, 0.0)
        attention = jax.nn.softmax(mm(att_h, a12w) + a12b, axis=1)
        attended = attention * c_star
        chat_h = jnp.maximum(mm(attended, a21w) + a21b, 0.0)
        c_hat = jnp.tanh(mm(chat_h, a22w) + a22b)
        both = jnp.concatenate([attended, mem], axis=1)
        gh = jnp.maximum(mm(both, g1w) + g1b, 0.0)          # gamma1|gamma2 fused
        gammas = jax.nn.sigmoid(mm(gh, g2w) + g2b)
        mem = gammas[:, :mem_dim] * mem + gammas[:, mem_dim:] * c_hat

    # ---- encoder heads (3 merged) + MFN head + KLD ----
    z_last = mm(h[:, :enc_h], W('enc_fc1_w')) + W('enc_fc1_b')
    zlv = mm(z_last, W('zlv_w')) + W('zlv_b')               # [zl,za,zv | logvars]
    z_enc, lv_enc = zlv[:, :enc_h], zlv[:, enc_h:]

    last_hs = jnp.concatenate([h[:, enc_h:], mem], axis=1)  # [h_l,h_a,h_v,mem]
    mzy = mm(last_hs, W('mzy_w')) + W('mzy_b')              # [zy | logvar_zy]
    zy, lv_zy = mzy[:, :zy_dim], mzy[:, zy_dim:]

    kld_ref[0] = _kld(z_enc, lv_enc) + _kld(zy, lv_zy)

    # ---- z -> f two-layer ReLU MLPs (l, a, v, y merged block-diagonally) ----
    z_all = jnp.concatenate([z_enc, zy], axis=1)
    f1 = jnp.maximum(mm(z_all, W('f1_w')) + W('f1_b'), 0.0)
    f_all = jnp.maximum(mm(f1, W('f2_w')) + W('f2_b'), 0.0)  # [fl,fa,fv,fy]
    fl0 = dm['fl']
    fa0 = fl0 + dm['fa']
    fv0 = fa0 + dm['fv']
    fl, fa, fv, fy = (f_all[:, :fl0], f_all[:, fl0:fa0],
                      f_all[:, fa0:fv0], f_all[:, fv0:])

    # ---- fy -> y head ----
    y_h = jnp.maximum(mm(fy, W('y1_w')) + W('y1_b'), 0.0)
    y_ref[...] = mm(y_h, W('y2_w')) + W('y2_b')

    # ---- 3 decoders, merged block-diagonal recurrence ----
    hT = jnp.concatenate([fy, fl, fy, fa, fy, fv], axis=1)  # (n, HD)
    w_dec0, w_decr = W('dec_w0'), W('dec_wr')
    b_dec = bc(W('dec_b'))
    dh = jnp.zeros((n, HD), f32)
    dc = jnp.zeros((n, HD), f32)
    for i in range(t):
        inp, w_step = (hT, w_dec0) if i == 0 else (dh, w_decr)
        gates = mm(inp, w_step) + b_dec
        i_g = jax.nn.sigmoid(gates[:, 0 * HD:1 * HD])
        f_g = jax.nn.sigmoid(gates[:, 1 * HD:2 * HD])
        g_g = jnp.tanh(gates[:, 2 * HD:3 * HD])
        o_g = jax.nn.sigmoid(gates[:, 3 * HD:4 * HD])
        dc = f_g * dc + i_g * g_g
        dh = o_g * jnp.tanh(dc)
        hs_ref[pl.ds(i * n, n), :] = dh          # VMEM scratch (hoisted out-fc)
    # One matmul + one dense store for all timesteps / all 3 modalities.
    recon_ref[...] = mm(hs_ref[...], W('dec_out_w')) + W('dec_out_b')


# ----------------------------------------------------------------------------
# Host wrapper: one pallas_call, reshape/split reconstructions outside.
# ----------------------------------------------------------------------------
def mfm_kl_forward(packed, layout, sdims, x):
    t, n, d_total = x.shape
    x2 = x.reshape(t * n, d_total)               # free metadata reshape in XLA
    kernel = functools.partial(_mfm_kernel, t=t, n=n, layout=layout, dm=sdims)
    recon, y_hat, kld = pl.pallas_call(
        kernel,
        out_shape=(jax.ShapeDtypeStruct((t * n, d_total), jnp.float32),
                   jax.ShapeDtypeStruct((n, sdims['out_dim']), jnp.float32),
                   jax.ShapeDtypeStruct((1,), jnp.float32)),
        in_specs=[pl.BlockSpec(memory_space=VMEM),
                  pl.BlockSpec(memory_space=VMEM)],
        out_specs=(pl.BlockSpec(memory_space=VMEM),
                   pl.BlockSpec(memory_space=VMEM),
                   pl.BlockSpec(memory_space=SMEM)),
        scratch_shapes=[pltpu.VMEM((t * n, sdims['HD']), jnp.float32)],
    )(x2, packed)
    recon = recon.reshape(t, n, d_total)
    d_l, d_a = sdims['d_l'], sdims['d_a']
    decoded = [recon[:, :, :d_l],
               recon[:, :, d_l:d_l + d_a],
               recon[:, :, d_l + d_a:],
               y_hat]
    kld_loss = kld[0]
    missing_loss = 0.0
    return decoded, kld_loss, missing_loss


# ----------------------------------------------------------------------------
# Host-side weight packing.
# ----------------------------------------------------------------------------
def _block_diag(mats):
    rows = sum(m.shape[0] for m in mats)
    cols = sum(m.shape[1] for m in mats)
    out = jnp.zeros((rows, cols), jnp.float32)
    r = c = 0
    for m in mats:
        out = out.at[r:r + m.shape[0], c:c + m.shape[1]].set(m)
        r += m.shape[0]
        c += m.shape[1]
    return out


def _pack_lstm_bank(lstms, in_slices, d_total):
    """Merge LSTMCells into one block-diag recurrence, gate-major columns
    [i_all | f_all | g_all | o_all]; state layout follows `lstms` order."""
    h_sizes = [w.shape[1] // 4 for (w, _) in lstms]
    H = sum(h_sizes)
    w_in = jnp.zeros((d_total, 4 * H), jnp.float32)
    w_hh = jnp.zeros((H, 4 * H), jnp.float32)
    bias = jnp.zeros((1, 4 * H), jnp.float32)
    hoff = 0
    for (w, b), (c0, dk), hk in zip(lstms, in_slices, h_sizes):
        w_ih, w_hh_k = w[:dk], w[dk:]
        for g in range(4):
            col = g * H + hoff
            w_in = w_in.at[c0:c0 + dk, col:col + hk].set(
                w_ih[:, g * hk:(g + 1) * hk])
            w_hh = w_hh.at[hoff:hoff + hk, col:col + hk].set(
                w_hh_k[:, g * hk:(g + 1) * hk])
            bias = bias.at[:, col:col + hk].set(b[:, g * hk:(g + 1) * hk])
        hoff += hk
    return w_in, w_hh, bias, H, h_sizes


def _pack_dec_bank(lstms):
    """Merge decoder LSTMCells.  Because input_t == h_{t-1} for t>0,
    W_ih + W_hh is pre-summed for the recurrent path; W_ih alone is kept for
    step 0 (which is fed hT with h=c=0)."""
    h_sizes = [w.shape[1] // 4 for (w, _) in lstms]
    HD = sum(h_sizes)
    w0 = jnp.zeros((HD, 4 * HD), jnp.float32)
    wr = jnp.zeros((HD, 4 * HD), jnp.float32)
    bias = jnp.zeros((1, 4 * HD), jnp.float32)
    off = 0
    for (w, b), hk in zip(lstms, h_sizes):
        w_ih, w_hh = w[:hk], w[hk:]
        w_sum = w_ih + w_hh
        for g in range(4):
            col = g * HD + off
            w0 = w0.at[off:off + hk, col:col + hk].set(
                w_ih[:, g * hk:(g + 1) * hk])
            wr = wr.at[off:off + hk, col:col + hk].set(
                w_sum[:, g * hk:(g + 1) * hk])
            bias = bias.at[:, col:col + hk].set(b[:, g * hk:(g + 1) * hk])
        off += hk
    return w0, wr, bias, HD, h_sizes


def _round_up(x, m):
    return ((x + m - 1) // m) * m


def _pack_slab(named):
    """Pack 2D matrices into one (rows, lanes) f32 slab: 8-aligned row
    offsets, shared lane width.  Returns (slab, {name: (row_off, r, c)})."""
    layout = {}
    row, max_c = 0, 0
    for name, arr in named:
        r, c = arr.shape
        layout[name] = (row, r, c)
        row += _round_up(r, 8)
        max_c = max(max_c, c)
    slab = jnp.zeros((_round_up(row, 8), _round_up(max_c, 128)), jnp.float32)
    for name, arr in named:
        ro, r, c = layout[name]
        slab = slab.at[ro:ro + r, 0:c].set(arr.astype(jnp.float32))
    return slab, layout


def pack_params(params):
    dims = params['dims']
    d_l, d_a, d_v = dims['d_l'], dims['d_a'], dims['d_v']
    d_total = d_l + d_a + d_v
    enc_l, enc_a, enc_v = params['enc_l'], params['enc_a'], params['enc_v']
    mfn = params['mfn']

    # 6-way LSTM bank, state order [enc_l, enc_a, enc_v, mfn_l, mfn_a, mfn_v].
    lstms = [enc_l[0], enc_a[0], enc_v[0],
             mfn['lstm_l'], mfn['lstm_a'], mfn['lstm_v']]
    in_slices = [(0, d_l), (d_l, d_a), (d_l + d_a, d_v)] * 2
    w_in, w_hh, b_lstm, H, h_sizes = _pack_lstm_bank(lstms, in_slices, d_total)
    zl, za, zv = h_sizes[:3]

    # Encoder heads: fc1, then [z | logvar] in one matmul (3 encoders merged).
    enc_fc1_w = _block_diag([enc_l[1][0], enc_a[1][0], enc_v[1][0]])
    enc_fc1_b = jnp.concatenate([enc_l[1][1], enc_a[1][1], enc_v[1][1]], axis=1)
    zlv_w = jnp.concatenate(
        [_block_diag([enc_l[2][0], enc_a[2][0], enc_v[2][0]]),
         _block_diag([enc_l[3][0], enc_a[3][0], enc_v[3][0]])], axis=1)
    zlv_b = jnp.concatenate([enc_l[2][1], enc_a[2][1], enc_v[2][1],
                             enc_l[3][1], enc_a[3][1], enc_v[3][1]], axis=1)

    # MFN head: [zy | logvar_zy] in one matmul.
    mzy_w = jnp.concatenate([mfn['zy_fc'][0], mfn['logvarzy_fc'][0]], axis=1)
    mzy_b = jnp.concatenate([mfn['zy_fc'][1], mfn['logvarzy_fc'][1]], axis=1)

    # z->f MLPs (l, a, v, y merged block-diagonally).
    f1_w = _block_diag([enc_l[4][0], enc_a[4][0], enc_v[4][0],
                        mfn['zy_to_fy_fc1'][0]])
    f1_b = jnp.concatenate([enc_l[4][1], enc_a[4][1], enc_v[4][1],
                            mfn['zy_to_fy_fc1'][1]], axis=1)
    f2_w = _block_diag([enc_l[5][0], enc_a[5][0], enc_v[5][0],
                        mfn['zy_to_fy_fc2'][0]])
    f2_b = jnp.concatenate([enc_l[5][1], enc_a[5][1], enc_v[5][1],
                            mfn['zy_to_fy_fc2'][1]], axis=1)

    # gamma1 / gamma2 read the same input -> merge their fc1s / fc2s.
    g1_w = jnp.concatenate([mfn['gamma1_fc1'][0], mfn['gamma2_fc1'][0]], axis=1)
    g1_b = jnp.concatenate([mfn['gamma1_fc1'][1], mfn['gamma2_fc1'][1]], axis=1)
    g2_w = _block_diag([mfn['gamma1_fc2'][0], mfn['gamma2_fc2'][0]])
    g2_b = jnp.concatenate([mfn['gamma1_fc2'][1], mfn['gamma2_fc2'][1]], axis=1)

    # Decoders (block-diag bank) + their output fcs (block-diag, lane-dense).
    dec_lstms = [params['dec_l'][0], params['dec_a'][0], params['dec_v'][0]]
    dec_w0, dec_wr, dec_b, HD, _ = _pack_dec_bank(dec_lstms)
    dec_out_w = _block_diag([params['dec_l'][1][0], params['dec_a'][1][0],
                             params['dec_v'][1][0]])
    dec_out_b = jnp.concatenate([params['dec_l'][1][1], params['dec_a'][1][1],
                                 params['dec_v'][1][1]], axis=1)

    named = [
        ('w_in', w_in), ('w_hh', w_hh), ('b_lstm', b_lstm),
        ('a11w', mfn['att1_fc1'][0]), ('a11b', mfn['att1_fc1'][1]),
        ('a12w', mfn['att1_fc2'][0]), ('a12b', mfn['att1_fc2'][1]),
        ('a21w', mfn['att2_fc1'][0]), ('a21b', mfn['att2_fc1'][1]),
        ('a22w', mfn['att2_fc2'][0]), ('a22b', mfn['att2_fc2'][1]),
        ('g1w', g1_w), ('g1b', g1_b), ('g2w', g2_w), ('g2b', g2_b),
        ('enc_fc1_w', enc_fc1_w), ('enc_fc1_b', enc_fc1_b),
        ('zlv_w', zlv_w), ('zlv_b', zlv_b),
        ('mzy_w', mzy_w), ('mzy_b', mzy_b),
        ('f1_w', f1_w), ('f1_b', f1_b), ('f2_w', f2_w), ('f2_b', f2_b),
        ('y1_w', mfn['fy_to_y_fc1'][0]), ('y1_b', mfn['fy_to_y_fc1'][1]),
        ('y2_w', mfn['fy_to_y_fc2'][0]), ('y2_b', mfn['fy_to_y_fc2'][1]),
        ('dec_w0', dec_w0), ('dec_wr', dec_wr), ('dec_b', dec_b),
        ('dec_out_w', dec_out_w), ('dec_out_b', dec_out_b),
    ]
    slab, layout = _pack_slab(named)

    sdims = dict(
        d_l=d_l, d_a=d_a, d_v=d_v,
        zl=zl, za=za, zv=zv, zy=mfn['zy_fc'][0].shape[1],
        mem=mfn['gamma1_fc2'][0].shape[1],
        fl=enc_l[5][0].shape[1], fa=enc_a[5][0].shape[1],
        fv=enc_v[5][0].shape[1], fy=mfn['zy_to_fy_fc2'][0].shape[1],
        out_dim=mfn['fy_to_y_fc2'][0].shape[1],
        H=H, HD=HD)
    return slab, layout, sdims


# ----------------------------------------------------------------------------
# Parameter initialization (deterministic, synthetic; PyTorch-style layers,
# LSTMCell weights kept in fused [W_ih ; W_hh] / combined-bias layout).
# ----------------------------------------------------------------------------
def _init_linear(key, d_in, d_out, scale=0.1):
    k1, k2 = jax.random.split(key)
    w = scale * jax.random.normal(k1, (d_in, d_out), jnp.float32)
    b = scale * jax.random.normal(k2, (1, d_out), jnp.float32)
    return w, b


def _init_lstm(key, d_in, hdim, scale=0.1):
    k1, k2 = jax.random.split(key)
    w = scale * jax.random.normal(k1, (d_in + hdim, 4 * hdim), jnp.float32)
    b = scale * jax.random.normal(k2, (1, 4 * hdim), jnp.float32)
    return w, b


def init_params(key, *, d_l, d_a, d_v, dh_l, dh_a, dh_v, mem_dim,
                zy, zl, za, zv, fy, fl, fa, fv,
                h_att1, h_att2, h_g1, h_g2, out_dim):
    keys = iter(jax.random.split(key, 64))
    nk = lambda: next(keys)
    total_h = dh_l + dh_a + dh_v
    att_in = 2 * total_h                      # windowsize = 2
    gamma_in = att_in + mem_dim
    last_mfn = total_h + mem_dim

    def enc(d_in, z_dim, f_dim):
        return (_init_lstm(nk(), d_in, z_dim),      # encoderLSTM.lstm
                _init_linear(nk(), z_dim, z_dim),   # encoderLSTM.fc1
                _init_linear(nk(), z_dim, z_dim),   # last_to_z*_fc1
                _init_linear(nk(), z_dim, z_dim),   # last_to_logvarz*_fc1
                _init_linear(nk(), z_dim, f_dim),   # z*_to_f*_fc1
                _init_linear(nk(), f_dim, f_dim))   # z*_to_f*_fc2

    def dec(hdim, d_out):
        return (_init_lstm(nk(), hdim, hdim),       # decoderLSTM.lstm
                _init_linear(nk(), hdim, d_out))    # decoderLSTM.fc1

    return {
        'dims': dict(d_l=d_l, d_a=d_a, d_v=d_v,
                     dh_l=dh_l, dh_a=dh_a, dh_v=dh_v),
        'enc_l': enc(d_l, zl, fl),
        'enc_a': enc(d_a, za, fa),
        'enc_v': enc(d_v, zv, fv),
        'mfn': {
            'lstm_l': _init_lstm(nk(), d_l, dh_l),
            'lstm_a': _init_lstm(nk(), d_a, dh_a),
            'lstm_v': _init_lstm(nk(), d_v, dh_v),
            'att1_fc1': _init_linear(nk(), att_in, h_att1),
            'att1_fc2': _init_linear(nk(), h_att1, att_in),
            'att2_fc1': _init_linear(nk(), att_in, h_att2),
            'att2_fc2': _init_linear(nk(), h_att2, mem_dim),
            'gamma1_fc1': _init_linear(nk(), gamma_in, h_g1),
            'gamma1_fc2': _init_linear(nk(), h_g1, mem_dim),
            'gamma2_fc1': _init_linear(nk(), gamma_in, h_g2),
            'gamma2_fc2': _init_linear(nk(), h_g2, mem_dim),
            'zy_fc': _init_linear(nk(), last_mfn, zy),
            'logvarzy_fc': _init_linear(nk(), last_mfn, zy),
            'zy_to_fy_fc1': _init_linear(nk(), zy, fy),
            'zy_to_fy_fc2': _init_linear(nk(), fy, fy),
            'fy_to_y_fc1': _init_linear(nk(), fy, fy),
            'fy_to_y_fc2': _init_linear(nk(), fy, out_dim),
        },
        'dec_l': dec(fy + fl, d_l),
        'dec_a': dec(fy + fa, d_a),
        'dec_v': dec(fy + fv, d_v),
    }


if __name__ == "__main__":
    # Small shapes: t=8 timesteps, n=2 batch, d_l=d_a=d_v=4, dh*=8, mem=8,
    # z*=f*=16, output_dim=4.
    t, n = 8, 2
    d_l = d_a = d_v = 4
    cfg = dict(d_l=d_l, d_a=d_a, d_v=d_v,
               dh_l=8, dh_a=8, dh_v=8, mem_dim=8,
               zy=16, zl=16, za=16, zv=16,
               fy=16, fl=16, fa=16, fv=16,
               h_att1=16, h_att2=16, h_g1=16, h_g2=16, out_dim=4)

    root = jax.random.PRNGKey(0)
    k_params, k_input = jax.random.split(root)
    params = init_params(k_params, **cfg)
    packed, layout, sdims = pack_params(params)
    x = jax.random.normal(k_input, (t, n, d_l + d_a + d_v), jnp.float32)

    decoded, kld_loss, missing_loss = mfm_kl_forward(packed, layout, sdims, x)
    jax.block_until_ready((decoded, kld_loss))
    print("KERNEL_OK")
</pallas_src>

<mosaic_0001>
module attributes {stable_mosaic.version = 11 : i64} {
  func.func @_mfm_kernel(%arg0: memref<16x12xf32, #tpu.memory_space<vmem>>, %arg1: memref<1008x384xf32, #tpu.memory_space<vmem>>, %arg2: memref<16x12xf32, #tpu.memory_space<vmem>>, %arg3: memref<2x4xf32, #tpu.memory_space<vmem>>, %arg4: memref<1xf32, #tpu.memory_space<smem>>, %arg5: memref<16x96xf32, #tpu.memory_space<vmem>>) attributes {dimension_semantics = [], scalar_prefetch = 0 : i64, scratch_operands = 1 : i64, tpu.core_type = #tpu.core_type<tc>} {
    %c16 = arith.constant 16 : index
    %c0 = arith.constant 0 : index
    %0 = vector.load %arg1[%c16, %c0] : memref<1008x384xf32, #tpu.memory_space<vmem>>, vector<72x288xf32>
    %c96 = arith.constant 96 : index
    %c0_0 = arith.constant 0 : index
    %1 = vector.load %arg1[%c96, %c0_0] : memref<1008x384xf32, #tpu.memory_space<vmem>>, vector<48x16xf32>
    %c152 = arith.constant 152 : index
    %c0_1 = arith.constant 0 : index
    %2 = vector.load %arg1[%c152, %c0_1] : memref<1008x384xf32, #tpu.memory_space<vmem>>, vector<16x48xf32>
    %c176 = arith.constant 176 : index
    %c0_2 = arith.constant 0 : index
    %3 = vector.load %arg1[%c176, %c0_2] : memref<1008x384xf32, #tpu.memory_space<vmem>>, vector<48x16xf32>
    %c232 = arith.constant 232 : index
    %c0_3 = arith.constant 0 : index
    %4 = vector.load %arg1[%c232, %c0_3] : memref<1008x384xf32, #tpu.memory_space<vmem>>, vector<16x8xf32>
    %c256 = arith.constant 256 : index
    %c0_4 = arith.constant 0 : index
    %5 = vector.load %arg1[%c256, %c0_4] : memref<1008x384xf32, #tpu.memory_space<vmem>>, vector<56x32xf32>
    %c320 = arith.constant 320 : index
    %c0_5 = arith.constant 0 : index
    %6 = vector.load %arg1[%c320, %c0_5] : memref<1008x384xf32, #tpu.memory_space<vmem>>, vector<32x16xf32>
    %c144 = arith.constant 144 : index
    %c0_6 = arith.constant 0 : index
    %7 = vector.load %arg1[%c144, %c0_6] : memref<1008x384xf32, #tpu.memory_space<vmem>>, vector<1x16xf32>
    %c168 = arith.constant 168 : index
    %c0_7 = arith.constant 0 : index
    %8 = vector.load %arg1[%c168, %c0_7] : memref<1008x384xf32, #tpu.memory_space<vmem>>, vector<1x48xf32>
    %c224 = arith.constant 224 : index
    %c0_8 = arith.constant 0 : index
    %9 = vector.load %arg1[%c224, %c0_8] : memref<1008x384xf32, #tpu.memory_space<vmem>>, vector<1x16xf32>
    %c248 = arith.constant 248 : index
    %c0_9 = arith.constant 0 : index
    %10 = vector.load %arg1[%c248, %c0_9] : memref<1008x384xf32, #tpu.memory_space<vmem>>, vector<1x8xf32>
    %11 = vector.shape_cast %7 : vector<1x16xf32> to vector<1x16xf32>
    %12 = vector.broadcast %11 : vector<1x16xf32> to vector<2x16xf32>
    %13 = vector.shape_cast %8 : vector<1x48xf32> to vector<1x48xf32>
    %14 = vector.broadcast %13 : vector<1x48xf32> to vector<2x48xf32>
    %15 = vector.shape_cast %9 : vector<1x16xf32> to vector<1x16xf32>
    %16 = vector.broadcast %15 : vector<1x16xf32> to vector<2x16xf32>
    %17 = vector.shape_cast %10 : vector<1x8xf32> to vector<1x8xf32>
    %18 = vector.broadcast %17 : vector<1x8xf32> to vector<2x8xf32>
    %c312 = arith.constant 312 : index
    %c0_10 = arith.constant 0 : index
    %19 = vector.load %arg1[%c312, %c0_10] : memref<1008x384xf32, #tpu.memory_space<vmem>>, vector<1x32xf32>
    %20 = vector.shape_cast %19 : vector<1x32xf32> to vector<1x32xf32>
    %21 = vector.broadcast %20 : vector<1x32xf32> to vector<2x32xf32>
    %c352 = arith.constant 352 : index
    %c0_11 = arith.constant 0 : index
    %22 = vector.load %arg1[%c352, %c0_11] : memref<1008x384xf32, #tpu.memory_space<vmem>>, vector<1x16xf32>
    %23 = vector.shape_cast %22 : vector<1x16xf32> to vector<1x16xf32>
    %24 = vector.broadcast %23 : vector<1x16xf32> to vector<2x16xf32>
    %c0_12 = arith.constant 0 : index
    %c0_13 = arith.constant 0 : index
    %25 = vector.load %arg0[%c0_12, %c0_13] : memref<16x12xf32, #tpu.memory_space<vmem>>, vector<16x12xf32>
    %c0_14 = arith.constant 0 : index
    %c0_15 = arith.constant 0 : index
    %26 = vector.load %arg1[%c0_14, %c0_15] : memref<1008x384xf32, #tpu.memory_space<vmem>>, vector<12x288xf32>
    %cst = arith.constant dense<0.000000e+00> : vector<16x288xf32>
    %27 = tpu.matmul %25, %26, %cst {dimension_numbers = #tpu.dot_dimension_numbers<[1], [0], [0], [1], [0, 0, 1, 1], [], []>} : vector<16x12xf32>, vector<12x288xf32>, vector<16x288xf32> -> vector<16x288xf32>
    %c88 = arith.constant 88 : index
    %c0_16 = arith.constant 0 : index
    %28 = vector.load %arg1[%c88, %c0_16] : memref<1008x384xf32, #tpu.memory_space<vmem>>, vector<1x288xf32>
    %29 = vector.broadcast %28 : vector<1x288xf32> to vector<16x288xf32>
    %30 = arith.addf %27, %29 : vector<16x288xf32>
    %cst_17 = arith.constant 0.000000e+00 : f32
    %31 = vector.broadcast %cst_17 : f32 to vector<2x72xf32>
    %cst_18 = arith.constant 0.000000e+00 : f32
    %32 = vector.broadcast %cst_18 : f32 to vector<2x72xf32>
    %cst_19 = arith.constant 0.000000e+00 : f32
    %33 = vector.broadcast %cst_19 : f32 to vector<2x8xf32>
    %34 = vector.extract_strided_slice %30 {offsets = [0, 0], sizes = [2, 288], strides = [1, 1]} : vector<16x288xf32> to vector<2x288xf32>
    %cst_20 = arith.constant dense<0.000000e+00> : vector<2x288xf32>
    %35 = tpu.matmul %31, %0, %cst_20 {dimension_numbers = #tpu.dot_dimension_numbers<[1], [0], [0], [1], [0, 0, 1, 1], [], []>} : vector<2x72xf32>, vector<72x288xf32>, vector<2x288xf32> -> vector<2x288xf32>
    %36 = arith.addf %34, %35 : vector<2x288xf32>
    %37 = vector.extract_strided_slice %36 {offsets = [0, 0], sizes = [2, 72], strides = [1, 1]} : vector<2x288xf32> to vector<2x72xf32>
    %38 = arith.negf %37 : vector<2x72xf32>
    %39 = math.exp %38 : vector<2x72xf32>
    %cst_21 = arith.constant 1.000000e+00 : f32
    %40 = vector.broadcast %cst_21 : f32 to vector<2x72xf32>
    %41 = arith.addf %40, %39 : vector<2x72xf32>
    %42 = arith.divf %40, %41 : vector<2x72xf32>
    %43 = vector.extract_strided_slice %36 {offsets = [0, 72], sizes = [2, 72], strides = [1, 1]} : vector<2x288xf32> to vector<2x72xf32>
    %44 = arith.negf %43 : vector<2x72xf32>
    %45 = math.exp %44 : vector<2x72xf32>
    %cst_22 = arith.constant 1.000000e+00 : f32
    %46 = vector.broadcast %cst_22 : f32 to vector<2x72xf32>
    %47 = arith.addf %46, %45 : vector<2x72xf32>
    %48 = arith.divf %46, %47 : vector<2x72xf32>
    %49 = vector.extract_strided_slice %36 {offsets = [0, 144], sizes = [2, 72], strides = [1, 1]} : vector<2x288xf32> to vector<2x72xf32>
    %50 = math.tanh %49 : vector<2x72xf32>
    %51 = vector.extract_strided_slice %36 {offsets = [0, 216], sizes = [2, 72], strides = [1, 1]} : vector<2x288xf32> to vector<2x72xf32>
    %52 = arith.negf %51 : vector<2x72xf32>
    %53 = math.exp %52 : vector<2x72xf32>
    %cst_23 = arith.constant 1.000000e+00 : f32
    %54 = vector.broadcast %cst_23 : f32 to vector<2x72xf32>
    %55 = arith.addf %54, %53 : vector<2x72xf32>
    %56 = arith.divf %54, %55 : vector<2x72xf32>
    %57 = vector.extract_strided_slice %32 {offsets = [0, 48], sizes = [2, 24], strides = [1, 1]} : vector<2x72xf32> to vector<2x24xf32>
    %58 = arith.mulf %48, %32 : vector<2x72xf32>
    %59 = arith.mulf %42, %50 : vector<2x72xf32>
    %60 = arith.addf %58, %59 : vector<2x72xf32>
    %61 = math.tanh %60 : vector<2x72xf32>
    %62 = arith.mulf %56, %61 : vector<2x72xf32>
    %63 = vector.extract_strided_slice %60 {offsets = [0, 48], sizes = [2, 24], strides = [1, 1]} : vector<2x72xf32> to vector<2x24xf32>
    %64 = tpu.concatenate %57, %63 in 1 : vector<2x24xf32>, vector<2x24xf32> -> vector<2x48xf32>
    %cst_24 = arith.constant dense<0.000000e+00> : vector<2x16xf32>
    %65 = tpu.matmul %64, %1, %cst_24 {dimension_numbers = #tpu.dot_dimension_numbers<[1], [0], [0], [1], [0, 0, 1, 1], [], []>} : vector<2x48xf32>, vector<48x16xf32>, vector<2x16xf32> -> vector<2x16xf32>
    %66 = arith.addf %65, %12 : vector<2x16xf32>
    %cst_25 = arith.constant 0.000000e+00 : f32
    %67 = vector.broadcast %cst_25 : f32 to vector<2x16xf32>
    %68 = arith.maximumf %66, %67 : vector<2x16xf32>
    %cst_26 = arith.constant dense<0.000000e+00> : vector<2x48xf32>
    %69 = tpu.matmul %68, %2, %cst_26 {dimension_numbers = #tpu.dot_dimension_numbers<[1], [0], [0], [1], [0, 0, 1, 1], [], []>} : vector<2x16xf32>, vector<16x48xf32>, vector<2x48xf32> -> vector<2x48xf32>
    %70 = arith.addf %69, %14 : vector<2x48xf32>
    %cst_27 = arith.constant dense<0xFF800000> : vector<2xf32>
    %71 = vector.multi_reduction <maximumf>, %70, %cst_27 [1] : vector<2x48xf32> to vector<2xf32>
    %cst_28 = arith.constant 0xFF800000 : f32
    %72 = vector.broadcast %cst_28 : f32 to vector<2xf32>
    %73 = arith.maximumf %72, %71 : vector<2xf32>
    %74 = vector.shape_cast %73 : vector<2xf32> to vector<2x1xf32>
    %75 = vector.broadcast %74 : vector<2x1xf32> to vector<2x48xf32>
    %76 = arith.subf %70, %75 : vector<2x48xf32>
    %77 = math.exp %76 : vector<2x48xf32>
    %cst_29 = arith.constant dense<0.000000e+00> : vector<2xf32>
    %78 = vector.multi_reduction <add>, %77, %cst_29 [1] : vector<2x48xf32> to vector<2xf32>
    %79 = vector.shape_cast %78 : vector<2xf32> to vector<2x1xf32>
    %80 = vector.broadcast %79 : vector<2x1xf32> to vector<2x48xf32>
    %81 = arith.divf %77, %80 : vector<2x48xf32>
    %82 = arith.mulf %81, %64 : vector<2x48xf32>
    %cst_30 = arith.constant dense<0.000000e+00> : vector<2x16xf32>
    %83 = tpu.matmul %82, %3, %cst_30 {dimension_numbers = #tpu.dot_dimension_numbers<[1], [0], [0], [1], [0, 0, 1, 1], [], []>} : vector<2x48xf32>, vector<48x16xf32>, vector<2x16xf32> -> vector<2x16xf32>
    %84 = arith.addf %83, %16 : vector<2x16xf32>
    %cst_31 = arith.constant 0.000000e+00 : f32
    %85 = vector.broadcast %cst_31 : f32 to vector<2x16xf32>
    %86 = arith.maximumf %84, %85 : vector<2x16xf32>
    %cst_32 = arith.constant dense<0.000000e+00> : vector<2x8xf32>
    %87 = tpu.matmul %86, %4, %cst_32 {dimension_numbers = #tpu.dot_dimension_numbers<[1], [0], [0], [1], [0, 0, 1, 1], [], []>} : vector<2x16xf32>, vector<16x8xf32>, vector<2x8xf32> -> vector<2x8xf32>
    %88 = arith.addf %87, %18 : vector<2x8xf32>
    %89 = math.tanh %88 : vector<2x8xf32>
    %90 = tpu.concatenate %82, %33 in 1 : vector<2x48xf32>, vector<2x8xf32> -> vector<2x56xf32>
    %cst_33 = arith.constant dense<0.000000e+00> : vector<2x32xf32>
    %91 = tpu.matmul %90, %5, %cst_33 {dimension_numbers = #tpu.dot_dimension_numbers<[1], [0], [0], [1], [0, 0, 1, 1], [], []>} : vector<2x56xf32>, vector<56x32xf32>, vector<2x32xf32> -> vector<2x32xf32>
    %92 = arith.addf %91, %21 : vector<2x32xf32>
    %cst_34 = arith.constant 0.000000e+00 : f32
    %93 = vector.broadcast %cst_34 : f32 to vector<2x32xf32>
    %94 = arith.maximumf %92, %93 : vector<2x32xf32>
    %cst_35 = arith.constant dense<0.000000e+00> : vector<2x16xf32>
    %95 = tpu.matmul %94, %6, %cst_35 {dimension_numbers = #tpu.dot_dimension_numbers<[1], [0], [0], [1], [0, 0, 1, 1], [], []>} : vector<2x32xf32>, vector<32x16xf32>, vector<2x16xf32> -> vector<2x16xf32>
    %96 = arith.addf %95, %24 : vector<2x16xf32>
    %97 = arith.negf %96 : vector<2x16xf32>
    %98 = math.exp %97 : vector<2x16xf32>
    %cst_36 = arith.constant 1.000000e+00 : f32
    %99 = vector.broadcast %cst_36 : f32 to vector<2x16xf32>
    %100 = arith.addf %99, %98 : vector<2x16xf32>
    %101 = arith.divf %99, %100 : vector<2x16xf32>
    %102 = vector.extract_strided_slice %101 {offsets = [0, 0], sizes = [2, 8], strides = [1, 1]} : vector<2x16xf32> to vector<2x8xf32>
    %103 = arith.mulf %102, %33 : vector<2x8xf32>
    %104 = vector.extract_strided_slice %101 {offsets = [0, 8], sizes = [2, 8], strides = [1, 1]} : vector<2x16xf32> to vector<2x8xf32>
    %105 = arith.mulf %104, %89 : vector<2x8xf32>
    %106 = arith.addf %103, %105 : vector<2x8xf32>
    %107 = vector.extract_strided_slice %30 {offsets = [2, 0], sizes = [2, 288], strides = [1, 1]} : vector<16x288xf32> to vector<2x288xf32>
    %cst_37 = arith.constant dense<0.000000e+00> : vector<2x288xf32>
    %108 = tpu.matmul %62, %0, %cst_37 {dimension_numbers = #tpu.dot_dimension_numbers<[1], [0], [0], [1], [0, 0, 1, 1], [], []>} : vector<2x72xf32>, vector<72x288xf32>, vector<2x288xf32> -> vector<2x288xf32>
    %109 = arith.addf %107, %108 : vector<2x288xf32>
    %110 = vector.extract_strided_slice %109 {offsets = [0, 0], sizes = [2, 72], strides = [1, 1]} : vector<2x288xf32> to vector<2x72xf32>
    %111 = arith.negf %110 : vector<2x72xf32>
    %112 = math.exp %111 : vector<2x72xf32>
    %cst_38 = arith.constant 1.000000e+00 : f32
    %113 = vector.broadcast %cst_38 : f32 to vector<2x72xf32>
    %114 = arith.addf %113, %112 : vector<2x72xf32>
    %115 = arith.divf %113, %114 : vector<2x72xf32>
    %116 = vector.extract_strided_slice %109 {offsets = [0, 72], sizes = [2, 72], strides = [1, 1]} : vector<2x288xf32> to vector<2x72xf32>
    %117 = arith.negf %116 : vector<2x72xf32>
    %118 = math.exp %117 : vector<2x72xf32>
    %cst_39 = arith.constant 1.000000e+00 : f32
    %119 = vector.broadcast %cst_39 : f32 to vector<2x72xf32>
    %120 = arith.addf %119, %118 : vector<2x72xf32>
    %121 = arith.divf %119, %120 : vector<2x72xf32>
    %122 = vector.extract_strided_slice %109 {offsets = [0, 144], sizes = [2, 72], strides = [1, 1]} : vector<2x288xf32> to vector<2x72xf32>
    %123 = math.tanh %122 : vector<2x72xf32>
    %124 = vector.extract_strided_slice %109 {offsets = [0, 216], sizes = [2, 72], strides = [1, 1]} : vector<2x288xf32> to vector<2x72xf32>
    %125 = arith.negf %124 : vector<2x72xf32>
    %126 = math.exp %125 : vector<2x72xf32>
    %cst_40 = arith.constant 1.000000e+00 : f32
    %127 = vector.broadcast %cst_40 : f32 to vector<2x72xf32>
    %128 = arith.addf %127, %126 : vector<2x72xf32>
    %129 = arith.divf %127, %128 : vector<2x72xf32>
    %130 = vector.extract_strided_slice %60 {offsets = [0, 48], sizes = [2, 24], strides = [1, 1]} : vector<2x72xf32> to vector<2x24xf32>
    %131 = arith.mulf %121, %60 : vector<2x72xf32>
    %132 = arith.mulf %115, %123 : vector<2x72xf32>
    %133 = arith.addf %131, %132 : vector<2x72xf32>
    %134 = math.tanh %133 : vector<2x72xf32>
    %135 = arith.mulf %129, %134 : vector<2x72xf32>
    %136 = vector.extract_strided_slice %133 {offsets = [0, 48], sizes = [2, 24], strides = [1, 1]} : vector<2x72xf32> to vector<2x24xf32>
    %137 = tpu.concatenate %130, %136 in 1 : vector<2x24xf32>, vector<2x24xf32> -> vector<2x48xf32>
    %cst_41 = arith.constant dense<0.000000e+00> : vector<2x16xf32>
    %138 = tpu.matmul %137, %1, %cst_41 {dimension_numbers = #tpu.dot_dimension_numbers<[1], [0], [0], [1], [0, 0, 1, 1], [], []>} : vector<2x48xf32>, vector<48x16xf32>, vector<2x16xf32> -> vector<2x16xf32>
    %139 = arith.addf %138, %12 : vector<2x16xf32>
    %cst_42 = arith.constant 0.000000e+00 : f32
    %140 = vector.broadcast %cst_42 : f32 to vector<2x16xf32>
    %141 = arith.maximumf %139, %140 : vector<2x16xf32>
    %cst_43 = arith.constant dense<0.000000e+00> : vector<2x48xf32>
    %142 = tpu.matmul %141, %2, %cst_43 {dimension_numbers = #tpu.dot_dimension_numbers<[1], [0], [0], [1], [0, 0, 1, 1], [], []>} : vector<2x16xf32>, vector<16x48xf32>, vector<2x48xf32> -> vector<2x48xf32>
    %143 = arith.addf %142, %14 : vector<2x48xf32>
    %cst_44 = arith.constant dense<0xFF800000> : vector<2xf32>
    %144 = vector.multi_reduction <maximumf>, %143, %cst_44 [1] : vector<2x48xf32> to vector<2xf32>
    %cst_45 = arith.constant 0xFF800000 : f32
    %145 = vector.broadcast %cst_45 : f32 to vector<2xf32>
    %146 = arith.maximumf %145, %144 : vector<2xf32>
    %147 = vector.shape_cast %146 : vector<2xf32> to vector<2x1xf32>
    %148 = vector.broadcast %147 : vector<2x1xf32> to vector<2x48xf32>
    %149 = arith.subf %143, %148 : vector<2x48xf32>
    %150 = math.exp %149 : vector<2x48xf32>
    %cst_46 = arith.constant dense<0.000000e+00> : vector<2xf32>
    %151 = vector.multi_reduction <add>, %150, %cst_46 [1] : vector<2x48xf32> to vector<2xf32>
    %152 = vector.shape_cast %151 : vector<2xf32> to vector<2x1xf32>
    %153 = vector.broadcast %152 : vector<2x1xf32> to vector<2x48xf32>
    %154 = arith.divf %150, %153 : vector<2x48xf32>
    %155 = arith.mulf %154, %137 : vector<2x48xf32>
    %cst_47 = arith.constant dense<0.000000e+00> : vector<2x16xf32>
    %156 = tpu.matmul %155, %3, %cst_47 {dimension_numbers = #tpu.dot_dimension_numbers<[1], [0], [0], [1], [0, 0, 1, 1], [], []>} : vector<2x48xf32>, vector<48x16xf32>, vector<2x16xf32> -> vector<2x16xf32>
    %157 = arith.addf %156, %16 : vector<2x16xf32>
    %cst_48 = arith.constant 0.000000e+00 : f32
    %158 = vector.broadcast %cst_48 : f32 to vector<2x16xf32>
    %159 = arith.maximumf %157, %158 : vector<2x16xf32>
    %cst_49 = arith.constant dense<0.000000e+00> : vector<2x8xf32>
    %160 = tpu.matmul %159, %4, %cst_49 {dimension_numbers = #tpu.dot_dimension_numbers<[1], [0], [0], [1], [0, 0, 1, 1], [], []>} : vector<2x16xf32>, vector<16x8xf32>, vector<2x8xf32> -> vector<2x8xf32>
    %161 = arith.addf %160, %18 : vector<2x8xf32>
    %162 = math.tanh %161 : vector<2x8xf32>
    %163 = tpu.concatenate %155, %106 in 1 : vector<2x48xf32>, vector<2x8xf32> -> vector<2x56xf32>
    %cst_50 = arith.constant dense<0.000000e+00> : vector<2x32xf32>
    %164 = tpu.matmul %163, %5, %cst_50 {dimension_numbers = #tpu.dot_dimension_numbers<[1], [0], [0], [1], [0, 0, 1, 1], [], []>} : vector<2x56xf32>, vector<56x32xf32>, vector<2x32xf32> -> vector<2x32xf32>
    %165 = arith.addf %164, %21 : vector<2x32xf32>
    %cst_51 = arith.constant 0.000000e+00 : f32
    %166 = vector.broadcast %cst_51 : f32 to vector<2x32xf32>
    %167 = arith.maximumf %165, %166 : vector<2x32xf32>
    %cst_52 = arith.constant dense<0.000000e+00> : vector<2x16xf32>
    %168 = tpu.matmul %167, %6, %cst_52 {dimension_numbers = #tpu.dot_dimension_numbers<[1], [0], [0], [1], [0, 0, 1, 1], [], []>} : vector<2x32xf32>, vector<32x16xf32>, vector<2x16xf32> -> vector<2x16xf32>
    %169 = arith.addf %168, %24 : vector<2x16xf32>
    %170 = arith.negf %169 : vector<2x16xf32>
    %171 = math.exp %170 : vector<2x16xf32>
    %cst_53 = arith.constant 1.000000e+00 : f32
    %172 = vector.broadcast %cst_53 : f32 to vector<2x16xf32>
    %173 = arith.addf %172, %171 : vector<2x16xf32>
    %174 = arith.divf %172, %173 : vector<2x16xf32>
    %175 = vector.extract_strided_slice %174 {offsets = [0, 0], sizes = [2, 8], strides = [1, 1]} : vector<2x16xf32> to vector<2x8xf32>
    %176 = arith.mulf %175, %106 : vector<2x8xf32>
    %177 = vector.extract_strided_slice %174 {offsets = [0, 8], sizes = [2, 8], strides = [1, 1]} : vector<2x16xf32> to vector<2x8xf32>
    %178 = arith.mulf %177, %162 : vector<2x8xf32>
    %179 = arith.addf %176, %178 : vector<2x8xf32>
    %180 = vector.extract_strided_slice %30 {offsets = [4, 0], sizes = [2, 288], strides = [1, 1]} : vector<16x288xf32> to vector<2x288xf32>
    %cst_54 = arith.constant dense<0.000000e+00> : vector<2x288xf32>
    %181 = tpu.matmul %135, %0, %cst_54 {dimension_numbers = #tpu.dot_dimension_numbers<[1], [0], [0], [1], [0, 0, 1, 1], [], []>} : vector<2x72xf32>, vector<72x288xf32>, vector<2x288xf32> -> vector<2x288xf32>
    %182 = arith.addf %180, %181 : vector<2x288xf32>
    %183 = vector.extract_strided_slice %182 {offsets = [0, 0], sizes = [2, 72], strides = [1, 1]} : vector<2x288xf32> to vector<2x72xf32>
    %184 = arith.negf %183 : vector<2x72xf32>
    %185 = math.exp %184 : vector<2x72xf32>
    %cst_55 = arith.constant 1.000000e+00 : f32
    %186 = vector.broadcast %cst_55 : f32 to vector<2x72xf32>
    %187 = arith.addf %186, %185 : vector<2x72xf32>
    %188 = arith.divf %186, %187 : vector<2x72xf32>
    %189 = vector.extract_strided_slice %182 {offsets = [0, 72], sizes = [2, 72], strides = [1, 1]} : vector<2x288xf32> to vector<2x72xf32>
    %190 = arith.negf %189 : vector<2x72xf32>
    %191 = math.exp %190 : vector<2x72xf32>
    %cst_56 = arith.constant 1.000000e+00 : f32
    %192 = vector.broadcast %cst_56 : f32 to vector<2x72xf32>
    %193 = arith.addf %192, %191 : vector<2x72xf32>
    %194 = arith.divf %192, %193 : vector<2x72xf32>
    %195 = vector.extract_strided_slice %182 {offsets = [0, 144], sizes = [2, 72], strides = [1, 1]} : vector<2x288xf32> to vector<2x72xf32>
    %196 = math.tanh %195 : vector<2x72xf32>
    %197 = vector.extract_strided_slice %182 {offsets = [0, 216], sizes = [2, 72], strides = [1, 1]} : vector<2x288xf32> to vector<2x72xf32>
    %198 = arith.negf %197 : vector<2x72xf32>
    %199 = math.exp %198 : vector<2x72xf32>
    %cst_57 = arith.constant 1.000000e+00 : f32
    %200 = vector.broadcast %cst_57 : f32 to vector<2x72xf32>
    %201 = arith.addf %200, %199 : vector<2x72xf32>
    %202 = arith.divf %200, %201 : vector<2x72xf32>
    %203 = vector.extract_strided_slice %133 {offsets = [0, 48], sizes = [2, 24], strides = [1, 1]} : vector<2x72xf32> to vector<2x24xf32>
    %204 = arith.mulf %194, %133 : vector<2x72xf32>
    %205 = arith.mulf %188, %196 : vector<2x72xf32>
    %206 = arith.addf %204, %205 : vector<2x72xf32>
    %207 = math.tanh %206 : vector<2x72xf32>
    %208 = arith.mulf %202, %207 : vector<2x72xf32>
    %209 = vector.extract_strided_slice %206 {offsets = [0, 48], sizes = [2, 24], strides = [1, 1]} : vector<2x72xf32> to vector<2x24xf32>
    %210 = tpu.concatenate %203, %209 in 1 : vector<2x24xf32>, vector<2x24xf32> -> vector<2x48xf32>
    %cst_58 = arith.constant dense<0.000000e+00> : vector<2x16xf32>
    %211 = tpu.matmul %210, %1, %cst_58 {dimension_numbers = #tpu.dot_dimension_numbers<[1], [0], [0], [1], [0, 0, 1, 1], [], []>} : vector<2x48xf32>, vector<48x16xf32>, vector<2x16xf32> -> vector<2x16xf32>
    %212 = arith.addf %211, %12 : vector<2x16xf32>
    %cst_59 = arith.constant 0.000000e+00 : f32
    %213 = vector.broadcast %cst_59 : f32 to vector<2x16xf32>
    %214 = arith.maximumf %212, %213 : vector<2x16xf32>
    %cst_60 = arith.constant dense<0.000000e+00> : vector<2x48xf32>
    %215 = tpu.matmul %214, %2, %cst_60 {dimension_numbers = #tpu.dot_dimension_numbers<[1], [0], [0], [1], [0, 0, 1, 1], [], []>} : vector<2x16xf32>, vector<16x48xf32>, vector<2x48xf32> -> vector<2x48xf32>
    %216 = arith.addf %215, %14 : vector<2x48xf32>
    %cst_61 = arith.constant dense<0xFF800000> : vector<2xf32>
    %217 = vector.multi_reduction <maximumf>, %216, %cst_61 [1] : vector<2x48xf32> to vector<2xf32>
    %cst_62 = arith.constant 0xFF800000 : f32
    %218 = vector.broadcast %cst_62 : f32 to vector<2xf32>
    %219 = arith.maximumf %218, %217 : vector<2xf32>
    %220 = vector.shape_cast %219 : vector<2xf32> to vector<2x1xf32>
    %221 = vector.broadcast %220 : vector<2x1xf32> to vector<2x48xf32>
    %222 = arith.subf %216, %221 : vector<2x48xf32>
    %223 = math.exp %222 : vector<2x48xf32>
    %cst_63 = arith.constant dense<0.000000e+00> : vector<2xf32>
    %224 = vector.multi_reduction <add>, %223, %cst_63 [1] : vector<2x48xf32> to vector<2xf32>
    %225 = vector.shape_cast %224 : vector<2xf32> to vector<2x1xf32>
    %226 = vector.broadcast %225 : vector<2x1xf32> to vector<2x48xf32>
    %227 = arith.divf %223, %226 : vector<2x48xf32>
    %228 = arith.mulf %227, %210 : vector<2x48xf32>
    %cst_64 = arith.constant dense<0.000000e+00> : vector<2x16xf32>
    %229 = tpu.matmul %228, %3, %cst_64 {dimension_numbers = #tpu.dot_dimension_numbers<[1], [0], [0], [1], [0, 0, 1, 1], [], []>} : vector<2x48xf32>, vector<48x16xf32>, vector<2x16xf32> -> vector<2x16xf32>
    %230 = arith.addf %229, %16 : vector<2x16xf32>
    %cst_65 = arith.constant 0.000000e+00 : f32
    %231 = vector.broadcast %cst_65 : f32 to vector<2x16xf32>
    %232 = arith.maximumf %230, %231 : vector<2x16xf32>
    %cst_66 = arith.constant dense<0.000000e+00> : vector<2x8xf32>
    %233 = tpu.matmul %232, %4, %cst_66 {dimension_numbers = #tpu.dot_dimension_numbers<[1], [0], [0], [1], [0, 0, 1, 1], [], []>} : vector<2x16xf32>, vector<16x8xf32>, vector<2x8xf32> -> vector<2x8xf32>
    %234 = arith.addf %233, %18 : vector<2x8xf32>
    %235 = math.tanh %234 : vector<2x8xf32>
    %236 = tpu.concatenate %228, %179 in 1 : vector<2x48xf32>, vector<2x8xf32> -> vector<2x56xf32>
    %cst_67 = arith.constant dense<0.000000e+00> : vector<2x32xf32>
    %237 = tpu.matmul %236, %5, %cst_67 {dimension_numbers = #tpu.dot_dimension_numbers<[1], [0], [0], [1], [0, 0, 1, 1], [], []>} : vector<2x56xf32>, vector<56x32xf32>, vector<2x32xf32> -> vector<2x32xf32>
    %238 = arith.addf %237, %21 : vector<2x32xf32>
    %cst_68 = arith.constant 0.000000e+00 : f32
    %239 = vector.broadcast %cst_68 : f32 to vector<2x32xf32>
    %240 = arith.maximumf %238, %239 : vector<2x32xf32>
    %cst_69 = arith.constant dense<0.000000e+00> : vector<2x16xf32>
    %241 = tpu.matmul %240, %6, %cst_69 {dimension_numbers = #tpu.dot_dimension_numbers<[1], [0], [0], [1], [0, 0, 1, 1], [], []>} : vector<2x32xf32>, vector<32x16xf32>, vector<2x16xf32> -> vector<2x16xf32>
    %242 = arith.addf %241, %24 : vector<2x16xf32>
    %243 = arith.negf %242 : vector<2x16xf32>
    %244 = math.exp %243 : vector<2x16xf32>
    %cst_70 = arith.constant 1.000000e+00 : f32
    %245 = vector.broadcast %cst_70 : f32 to vector<2x16xf32>
    %246 = arith.addf %245, %244 : vector<2x16xf32>
    %247 = arith.divf %245, %246 : vector<2x16xf32>
    %248 = vector.extract_strided_slice %247 {offsets = [0, 0], sizes = [2, 8], strides = [1, 1]} : vector<2x16xf32> to vector<2x8xf32>
    %249 = arith.mulf %248, %179 : vector<2x8xf32>
    %250 = vector.extract_strided_slice %247 {offsets = [0, 8], sizes = [2, 8], strides = [1, 1]} : vector<2x16xf32> to vector<2x8xf32>
    %251 = arith.mulf %250, %235 : vector<2x8xf32>
    %252 = arith.addf %249, %251 : vector<2x8xf32>
    %253 = vector.extract_strided_slice %30 {offsets = [6, 0], sizes = [2, 288], strides = [1, 1]} : vector<16x288xf32> to vector<2x288xf32>
    %cst_71 = arith.constant dense<0.000000e+00> : vector<2x288xf32>
    %254 = tpu.matmul %208, %0, %cst_71 {dimension_numbers = #tpu.dot_dimension_numbers<[1], [0], [0], [1], [0, 0, 1, 1], [], []>} : vector<2x72xf32>, vector<72x288xf32>, vector<2x288xf32> -> vector<2x288xf32>
    %255 = arith.addf %253, %254 : vector<2x288xf32>
    %256 = vector.extract_strided_slice %255 {offsets = [0, 0], sizes = [2, 72], strides = [1, 1]} : vector<2x288xf32> to vector<2x72xf32>
    %257 = arith.negf %256 : vector<2x72xf32>
    %258 = math.exp %257 : vector<2x72xf32>
    %cst_72 = arith.constant 1.000000e+00 : f32
    %259 = vector.broadcast %cst_72 : f32 to vector<2x72xf32>
    %260 = arith.addf %259, %258 : vector<2x72xf32>
    %261 = arith.divf %259, %260 : vector<2x72xf32>
    %262 = vector.extract_strided_slice %255 {offsets = [0, 72], sizes = [2, 72], strides = [1, 1]} : vector<2x288xf32> to vector<2x72xf32>
    %263 = arith.negf %262 : vector<2x72xf32>
    %264 = math.exp %263 : vector<2x72xf32>
    %cst_73 = arith.constant 1.000000e+00 : f32
    %265 = vector.broadcast %cst_73 : f32 to vector<2x72xf32>
    %266 = arith.addf %265, %264 : vector<2x72xf32>
    %267 = arith.divf %265, %266 : vector<2x72xf32>
    %268 = vector.extract_strided_slice %255 {offsets = [0, 144], sizes = [2, 72], strides = [1, 1]} : vector<2x288xf32> to vector<2x72xf32>
    %269 = math.tanh %268 : vector<2x72xf32>
    %270 = vector.extract_strided_slice %255 {offsets = [0, 216], sizes = [2, 72], strides = [1, 1]} : vector<2x288xf32> to vector<2x72xf32>
    %271 = arith.negf %270 : vector<2x72xf32>
    %272 = math.exp %271 : vector<2x72xf32>
    %cst_74 = arith.constant 1.000000e+00 : f32
    %273 = vector.broadcast %cst_74 : f32 to vector<2x72xf32>
    %274 = arith.addf %273, %272 : vector<2x72xf32>
    %275 = arith.divf %273, %274 : vector<2x72xf32>
    %276 = vector.extract_strided_slice %206 {offsets = [0, 48], sizes = [2, 24], strides = [1, 1]} : vector<2x72xf32> to vector<2x24xf32>
    %277 = arith.mulf %267, %206 : vector<2x72xf32>
    %278 = arith.mulf %261, %269 : vector<2x72xf32>
    %279 = arith.addf %277, %278 : vector<2x72xf32>
    %280 = math.tanh %279 : vector<2x72xf32>
    %281 = arith.mulf %275, %280 : vector<2x72xf32>
    %282 = vector.extract_strided_slice %279 {offsets = [0, 48], sizes = [2, 24], strides = [1, 1]} : vector<2x72xf32> to vector<2x24xf32>
    %283 = tpu.concatenate %276, %282 in 1 : vector<2x24xf32>, vector<2x24xf32> -> vector<2x48xf32>
    %cst_75 = arith.constant dense<0.000000e+00> : vector<2x16xf32>
    %284 = tpu.matmul %283, %1, %cst_75 {dimension_numbers = #tpu.dot_dimension_numbers<[1], [0], [0], [1], [0, 0, 1, 1], [], []>} : vector<2x48xf32>, vector<48x16xf32>, vector<2x16xf32> -> vector<2x16xf32>
    %285 = arith.addf %284, %12 : vector<2x16xf32>
    %cst_76 = arith.constant 0.000000e+00 : f32
    %286 = vector.broadcast %cst_76 : f32 to vector<2x16xf32>
    %287 = arith.maximumf %285, %286 : vector<2x16xf32>
    %cst_77 = arith.constant dense<0.000000e+00> : vector<2x48xf32>
    %288 = tpu.matmul %287, %2, %cst_77 {dimension_numbers = #tpu.dot_dimension_numbers<[1], [0], [0], [1], [0, 0, 1, 1], [], []>} : vector<2x16xf32>, vector<16x48xf32>, vector<2x48xf32> -> vector<2x48xf32>
    %289 = arith.addf %288, %14 : vector<2x48xf32>
    %cst_78 = arith.constant dense<0xFF800000> : vector<2xf32>
    %290 = vector.multi_reduction <maximumf>, %289, %cst_78 [1] : vector<2x48xf32> to vector<2xf32>
    %cst_79 = arith.constant 0xFF800000 : f32
    %291 = vector.broadcast %cst_79 : f32 to vector<2xf32>
    %292 = arith.maximumf %291, %290 : vector<2xf32>
    %293 = vector.shape_cast %292 : vector<2xf32> to vector<2x1xf32>
    %294 = vector.broadcast %293 : vector<2x1xf32> to vector<2x48xf32>
    %295 = arith.subf %289, %294 : vector<2x48xf32>
    %296 = math.exp %295 : vector<2x48xf32>
    %cst_80 = arith.constant dense<0.000000e+00> : vector<2xf32>
    %297 = vector.multi_reduction <add>, %296, %cst_80 [1] : vector<2x48xf32> to vector<2xf32>
    %298 = vector.shape_cast %297 : vector<2xf32> to vector<2x1xf32>
    %299 = vector.broadcast %298 : vector<2x1xf32> to vector<2x48xf32>
    %300 = arith.divf %296, %299 : vector<2x48xf32>
    %301 = arith.mulf %300, %283 : vector<2x48xf32>
    %cst_81 = arith.constant dense<0.000000e+00> : vector<2x16xf32>
    %302 = tpu.matmul %301, %3, %cst_81 {dimension_numbers = #tpu.dot_dimension_numbers<[1], [0], [0], [1], [0, 0, 1, 1], [], []>} : vector<2x48xf32>, vector<48x16xf32>, vector<2x16xf32> -> vector<2x16xf32>
    %303 = arith.addf %302, %16 : vector<2x16xf32>
    %cst_82 = arith.constant 0.000000e+00 : f32
    %304 = vector.broadcast %cst_82 : f32 to vector<2x16xf32>
    %305 = arith.maximumf %303, %304 : vector<2x16xf32>
    %cst_83 = arith.constant dense<0.000000e+00> : vector<2x8xf32>
    %306 = tpu.matmul %305, %4, %cst_83 {dimension_numbers = #tpu.dot_dimension_numbers<[1], [0], [0], [1], [0, 0, 1, 1], [], []>} : vector<2x16xf32>, vector<16x8xf32>, vector<2x8xf32> -> vector<2x8xf32>
    %307 = arith.addf %306, %18 : vector<2x8xf32>
    %308 = math.tanh %307 : vector<2x8xf32>
    %309 = tpu.concatenate %301, %252 in 1 : vector<2x48xf32>, vector<2x8xf32> -> vector<2x56xf32>
    %cst_84 = arith.constant dense<0.000000e+00> : vector<2x32xf32>
    %310 = tpu.matmul %309, %5, %cst_84 {dimension_numbers = #tpu.dot_dimension_numbers<[1], [0], [0], [1], [0, 0, 1, 1], [], []>} : vector<2x56xf32>, vector<56x32xf32>, vector<2x32xf32> -> vector<2x32xf32>
    %311 = arith.addf %310, %21 : vector<2x32xf32>
    %cst_85 = arith.constant 0.000000e+00 : f32
    %312 = vector.broadcast %cst_85 : f32 to vector<2x32xf32>
    %313 = arith.maximumf %311, %312 : vector<2x32xf32>
    %cst_86 = arith.constant dense<0.000000e+00> : vector<2x16xf32>
    %314 = tpu.matmul %313, %6, %cst_86 {dimension_numbers = #tpu.dot_dimension_numbers<[1], [0], [0], [1], [0, 0, 1, 1], [], []>} : vector<2x32xf32>, vector<32x16xf32>, vector<2x16xf32> -> vector<2x16xf32>
    %315 = arith.addf %314, %24 : vector<2x16xf32>
    %316 = arith.negf %315 : vector<2x16xf32>
    %317 = math.exp %316 : vector<2x16xf32>
    %cst_87 = arith.constant 1.000000e+00 : f32
    %318 = vector.broadcast %cst_87 : f32 to vector<2x16xf32>
    %319 = arith.addf %318, %317 : vector<2x16xf32>
    %320 = arith.divf %318, %319 : vector<2x16xf32>
    %321 = vector.extract_strided_slice %320 {offsets = [0, 0], sizes = [2, 8], strides = [1, 1]} : vector<2x16xf32> to vector<2x8xf32>
    %322 = arith.mulf %321, %252 : vector<2x8xf32>
    %323 = vector.extract_strided_slice %320 {offsets = [0, 8], sizes = [2, 8], strides = [1, 1]} : vector<2x16xf32> to vector<2x8xf32>
    %324 = arith.mulf %323, %308 : vector<2x8xf32>
    %325 = arith.addf %322, %324 : vector<2x8xf32>
    %326 = vector.extract_strided_slice %30 {offsets = [8, 0], sizes = [2, 288], strides = [1, 1]} : vector<16x288xf32> to vector<2x288xf32>
    %cst_88 = arith.constant dense<0.000000e+00> : vector<2x288xf32>
    %327 = tpu.matmul %281, %0, %cst_88 {dimension_numbers = #tpu.dot_dimension_numbers<[1], [0], [0], [1], [0, 0, 1, 1], [], []>} : vector<2x72xf32>, vector<72x288xf32>, vector<2x288xf32> -> vector<2x288xf32>
    %328 = arith.addf %326, %327 : vector<2x288xf32>
    %329 = vector.extract_strided_slice %328 {offsets = [0, 0], sizes = [2, 72], strides = [1, 1]} : vector<2x288xf32> to vector<2x72xf32>
    %330 = arith.negf %329 : vector<2x72xf32>
    %331 = math.exp %330 : vector<2x72xf32>
    %cst_89 = arith.constant 1.000000e+00 : f32
    %332 = vector.broadcast %cst_89 : f32 to vector<2x72xf32>
    %333 = arith.addf %332, %331 : vector<2x72xf32>
    %334 = arith.divf %332, %333 : vector<2x72xf32>
    %335 = vector.extract_strided_slice %328 {offsets = [0, 72], sizes = [2, 72], strides = [1, 1]} : vector<2x288xf32> to vector<2x72xf32>
    %336 = arith.negf %335 : vector<2x72xf32>
    %337 = math.exp %336 : vector<2x72xf32>
    %cst_90 = arith.constant 1.000000e+00 : f32
    %338 = vector.broadcast %cst_90 : f32 to vector<2x72xf32>
    %339 = arith.addf %338, %337 : vector<2x72xf32>
    %340 = arith.divf %338, %339 : vector<2x72xf32>
    %341 = vector.extract_strided_slice %328 {offsets = [0, 144], sizes = [2, 72], strides = [1, 1]} : vector<2x288xf32> to vector<2x72xf32>
    %342 = math.tanh %341 : vector<2x72xf32>
    %343 = vector.extract_strided_slice %328 {offsets = [0, 216], sizes = [2, 72], strides = [1, 1]} : vector<2x288xf32> to vector<2x72xf32>
    %344 = arith.negf %343 : vector<2x72xf32>
    %345 = math.exp %344 : vector<2x72xf32>
    %cst_91 = arith.constant 1.000000e+00 : f32
    %346 = vector.broadcast %cst_91 : f32 to vector<2x72xf32>
    %347 = arith.addf %346, %345 : vector<2x72xf32>
    %348 = arith.divf %346, %347 : vector<2x72xf32>
    %349 = vector.extract_strided_slice %279 {offsets = [0, 48], sizes = [2, 24], strides = [1, 1]} : vector<2x72xf32> to vector<2x24xf32>
    %350 = arith.mulf %340, %279 : vector<2x72xf32>
    %351 = arith.mulf %334, %342 : vector<2x72xf32>
    %352 = arith.addf %350, %351 : vector<2x72xf32>
    %353 = math.tanh %352 : vector<2x72xf32>
    %354 = arith.mulf %348, %353 : vector<2x72xf32>
    %355 = vector.extract_strided_slice %352 {offsets = [0, 48], sizes = [2, 24], strides = [1, 1]} : vector<2x72xf32> to vector<2x24xf32>
    %356 = tpu.concatenate %349, %355 in 1 : vector<2x24xf32>, vector<2x24xf32> -> vector<2x48xf32>
    %cst_92 = arith.constant dense<0.000000e+00> : vector<2x16xf32>
    %357 = tpu.matmul %356, %1, %cst_92 {dimension_numbers = #tpu.dot_dimension_numbers<[1], [0], [0], [1], [0, 0, 1, 1], [], []>} : vector<2x48xf32>, vector<48x16xf32>, vector<2x16xf32> -> vector<2x16xf32>
    %358 = arith.addf %357, %12 : vector<2x16xf32>
    %cst_93 = arith.constant 0.000000e+00 : f32
    %359 = vector.broadcast %cst_93 : f32 to vector<2x16xf32>
    %360 = arith.maximumf %358, %359 : vector<2x16xf32>
    %cst_94 = arith.constant dense<0.000000e+00> : vector<2x48xf32>
    %361 = tpu.matmul %360, %2, %cst_94 {dimension_numbers = #tpu.dot_dimension_numbers<[1], [0], [0], [1], [0, 0, 1, 1], [], []>} : vector<2x16xf32>, vector<16x48xf32>, vector<2x48xf32> -> vector<2x48xf32>
    %362 = arith.addf %361, %14 : vector<2x48xf32>
    %cst_95 = arith.constant dense<0xFF800000> : vector<2xf32>
    %363 = vector.multi_reduction <maximumf>, %362, %cst_95 [1] : vector<2x48xf32> to vector<2xf32>
    %cst_96 = arith.constant 0xFF800000 : f32
    %364 = vector.broadcast %cst_96 : f32 to vector<2xf32>
    %365 = arith.maximumf %364, %363 : vector<2xf32>
    %366 = vector.shape_cast %365 : vector<2xf32> to vector<2x1xf32>
    %367 = vector.broadcast %366 : vector<2x1xf32> to vector<2x48xf32>
    %368 = arith.subf %362, %367 : vector<2x48xf32>
    %369 = math.exp %368 : vector<2x48xf32>
    %cst_97 = arith.constant dense<0.000000e+00> : vector<2xf32>
    %370 = vector.multi_reduction <add>, %369, %cst_97 [1] : vector<2x48xf32> to vector<2xf32>
    %371 = vector.shape_cast %370 : vector<2xf32> to vector<2x1xf32>
    %372 = vector.broadcast %371 : vector<2x1xf32> to vector<2x48xf32>
    %373 = arith.divf %369, %372 : vector<2x48xf32>
    %374 = arith.mulf %373, %356 : vector<2x48xf32>
    %cst_98 = arith.constant dense<0.000000e+00> : vector<2x16xf32>
    %375 = tpu.matmul %374, %3, %cst_98 {dimension_numbers = #tpu.dot_dimension_numbers<[1], [0], [0], [1], [0, 0, 1, 1], [], []>} : vector<2x48xf32>, vector<48x16xf32>, vector<2x16xf32> -> vector<2x16xf32>
    %376 = arith.addf %375, %16 : vector<2x16xf32>
    %cst_99 = arith.constant 0.000000e+00 : f32
    %377 = vector.broadcast %cst_99 : f32 to vector<2x16xf32>
    %378 = arith.maximumf %376, %377 : vector<2x16xf32>
    %cst_100 = arith.constant dense<0.000000e+00> : vector<2x8xf32>
    %379 = tpu.matmul %378, %4, %cst_100 {dimension_numbers = #tpu.dot_dimension_numbers<[1], [0], [0], [1], [0, 0, 1, 1], [], []>} : vector<2x16xf32>, vector<16x8xf32>, vector<2x8xf32> -> vector<2x8xf32>
    %380 = arith.addf %379, %18 : vector<2x8xf32>
    %381 = math.tanh %380 : vector<2x8xf32>
    %382 = tpu.concatenate %374, %325 in 1 : vector<2x48xf32>, vector<2x8xf32> -> vector<2x56xf32>
    %cst_101 = arith.constant dense<0.000000e+00> : vector<2x32xf32>
    %383 = tpu.matmul %382, %5, %cst_101 {dimension_numbers = #tpu.dot_dimension_numbers<[1], [0], [0], [1], [0, 0, 1, 1], [], []>} : vector<2x56xf32>, vector<56x32xf32>, vector<2x32xf32> -> vector<2x32xf32>
    %384 = arith.addf %383, %21 : vector<2x32xf32>
    %cst_102 = arith.constant 0.000000e+00 : f32
    %385 = vector.broadcast %cst_102 : f32 to vector<2x32xf32>
    %386 = arith.maximumf %384, %385 : vector<2x32xf32>
    %cst_103 = arith.constant dense<0.000000e+00> : vector<2x16xf32>
    %387 = tpu.matmul %386, %6, %cst_103 {dimension_numbers = #tpu.dot_dimension_numbers<[1], [0], [0], [1], [0, 0, 1, 1], [], []>} : vector<2x32xf32>, vector<32x16xf32>, vector<2x16xf32> -> vector<2x16xf32>
    %388 = arith.addf %387, %24 : vector<2x16xf32>
    %389 = arith.negf %388 : vector<2x16xf32>
    %390 = math.exp %389 : vector<2x16xf32>
    %cst_104 = arith.constant 1.000000e+00 : f32
    %391 = vector.broadcast %cst_104 : f32 to vector<2x16xf32>
    %392 = arith.addf %391, %390 : vector<2x16xf32>
    %393 = arith.divf %391, %392 : vector<2x16xf32>
    %394 = vector.extract_strided_slice %393 {offsets = [0, 0], sizes = [2, 8], strides = [1, 1]} : vector<2x16xf32> to vector<2x8xf32>
    %395 = arith.mulf %394, %325 : vector<2x8xf32>
    %396 = vector.extract_strided_slice %393 {offsets = [0, 8], sizes = [2, 8], strides = [1, 1]} : vector<2x16xf32> to vector<2x8xf32>
    %397 = arith.mulf %396, %381 : vector<2x8xf32>
    %398 = arith.addf %395, %397 : vector<2x8xf32>
    %399 = vector.extract_strided_slice %30 {offsets = [10, 0], sizes = [2, 288], strides = [1, 1]} : vector<16x288xf32> to vector<2x288xf32>
    %cst_105 = arith.constant dense<0.000000e+00> : vector<2x288xf32>
    %400 = tpu.matmul %354, %0, %cst_105 {dimension_numbers = #tpu.dot_dimension_numbers<[1], [0], [0], [1], [0, 0, 1, 1], [], []>} : vector<2x72xf32>, vector<72x288xf32>, vector<2x288xf32> -> vector<2x288xf32>
    %401 = arith.addf %399, %400 : vector<2x288xf32>
    %402 = vector.extract_strided_slice %401 {offsets = [0, 0], sizes = [2, 72], strides = [1, 1]} : vector<2x288xf32> to vector<2x72xf32>
    %403 = arith.negf %402 : vector<2x72xf32>
    %404 = math.exp %403 : vector<2x72xf32>
    %cst_106 = arith.constant 1.000000e+00 : f32
    %405 = vector.broadcast %cst_106 : f32 to vector<2x72xf32>
    %406 = arith.addf %405, %404 : vector<2x72xf32>
    %407 = arith.divf %405, %406 : vector<2x72xf32>
    %408 = vector.extract_strided_slice %401 {offsets = [0, 72], sizes = [2, 72], strides = [1, 1]} : vector<2x288xf32> to vector<2x72xf32>
    %409 = arith.negf %408 : vector<2x72xf32>
    %410 = math.exp %409 : vector<2x72xf32>
    %cst_107 = arith.constant 1.000000e+00 : f32
    %411 = vector.broadcast %cst_107 : f32 to vector<2x72xf32>
    %412 = arith.addf %411, %410 : vector<2x72xf32>
    %413 = arith.divf %411, %412 : vector<2x72xf32>
    %414 = vector.extract_strided_slice %401 {offsets = [0, 144], sizes = [2, 72], strides = [1, 1]} : vector<2x288xf32> to vector<2x72xf32>
    %415 = math.tanh %414 : vector<2x72xf32>
    %416 = vector.extract_strided_slice %401 {offsets = [0, 216], sizes = [2, 72], strides = [1, 1]} : vector<2x288xf32> to vector<2x72xf32>
    %417 = arith.negf %416 : vector<2x72xf32>
    %418 = math.exp %417 : vector<2x72xf32>
    %cst_108 = arith.constant 1.000000e+00 : f32
    %419 = vector.broadcast %cst_108 : f32 to vector<2x72xf32>
    %420 = arith.addf %419, %418 : vector<2x72xf32>
    %421 = arith.divf %419, %420 : vector<2x72xf32>
    %422 = vector.extract_strided_slice %352 {offsets = [0, 48], sizes = [2, 24], strides = [1, 1]} : vector<2x72xf32> to vector<2x24xf32>
    %423 = arith.mulf %413, %352 : vector<2x72xf32>
    %424 = arith.mulf %407, %415 : vector<2x72xf32>
    %425 = arith.addf %423, %424 : vector<2x72xf32>
    %426 = math.tanh %425 : vector<2x72xf32>
    %427 = arith.mulf %421, %426 : vector<2x72xf32>
    %428 = vector.extract_strided_slice %425 {offsets = [0, 48], sizes = [2, 24], strides = [1, 1]} : vector<2x72xf32> to vector<2x24xf32>
    %429 = tpu.concatenate %422, %428 in 1 : vector<2x24xf32>, vector<2x24xf32> -> vector<2x48xf32>
    %cst_109 = arith.constant dense<0.000000e+00> : vector<2x16xf32>
    %430 = tpu.matmul %429, %1, %cst_109 {dimension_numbers = #tpu.dot_dimension_numbers<[1], [0], [0], [1], [0, 0, 1, 1], [], []>} : vector<2x48xf32>, vector<48x16xf32>, vector<2x16xf32> -> vector<2x16xf32>
    %431 = arith.addf %430, %12 : vector<2x16xf32>
    %cst_110 = arith.constant 0.000000e+00 : f32
    %432 = vector.broadcast %cst_110 : f32 to vector<2x16xf32>
    %433 = arith.maximumf %431, %432 : vector<2x16xf32>
    %cst_111 = arith.constant dense<0.000000e+00> : vector<2x48xf32>
    %434 = tpu.matmul %433, %2, %cst_111 {dimension_numbers = #tpu.dot_dimension_numbers<[1], [0], [0], [1], [0, 0, 1, 1], [], []>} : vector<2x16xf32>, vector<16x48xf32>, vector<2x48xf32> -> vector<2x48xf32>
    %435 = arith.addf %434, %14 : vector<2x48xf32>
    %cst_112 = arith.constant dense<0xFF800000> : vector<2xf32>
    %436 = vector.multi_reduction <maximumf>, %435, %cst_112 [1] : vector<2x48xf32> to vector<2xf32>
    %cst_113 = arith.constant 0xFF800000 : f32
    %437 = vector.broadcast %cst_113 : f32 to vector<2xf32>
    %438 = arith.maximumf %437, %436 : vector<2xf32>
    %439 = vector.shape_cast %438 : vector<2xf32> to vector<2x1xf32>
    %440 = vector.broadcast %439 : vector<2x1xf32> to vector<2x48xf32>
    %441 = arith.subf %435, %440 : vector<2x48xf32>
    %442 = math.exp %441 : vector<2x48xf32>
    %cst_114 = arith.constant dense<0.000000e+00> : vector<2xf32>
    %443 = vector.multi_reduction <add>, %442, %cst_114 [1] : vector<2x48xf32> to vector<2xf32>
    %444 = vector.shape_cast %443 : vector<2xf32> to vector<2x1xf32>
    %445 = vector.broadcast %444 : vector<2x1xf32> to vector<2x48xf32>
    %446 = arith.divf %442, %445 : vector<2x48xf32>
    %447 = arith.mulf %446, %429 : vector<2x48xf32>
    %cst_115 = arith.constant dense<0.000000e+00> : vector<2x16xf32>
    %448 = tpu.matmul %447, %3, %cst_115 {dimension_numbers = #tpu.dot_dimension_numbers<[1], [0], [0], [1], [0, 0, 1, 1], [], []>} : vector<2x48xf32>, vector<48x16xf32>, vector<2x16xf32> -> vector<2x16xf32>
    %449 = arith.addf %448, %16 : vector<2x16xf32>
    %cst_116 = arith.constant 0.000000e+00 : f32
    %450 = vector.broadcast %cst_116 : f32 to vector<2x16xf32>
    %451 = arith.maximumf %449, %450 : vector<2x16xf32>
    %cst_117 = arith.constant dense<0.000000e+00> : vector<2x8xf32>
    %452 = tpu.matmul %451, %4, %cst_117 {dimension_numbers = #tpu.dot_dimension_numbers<[1], [0], [0], [1], [0, 0, 1, 1], [], []>} : vector<2x16xf32>, vector<16x8xf32>, vector<2x8xf32> -> vector<2x8xf32>
    %453 = arith.addf %452, %18 : vector<2x8xf32>
    %454 = math.tanh %453 : vector<2x8xf32>
    %455 = tpu.concatenate %447, %398 in 1 : vector<2x48xf32>, vector<2x8xf32> -> vector<2x56xf32>
    %cst_118 = arith.constant dense<0.000000e+00> : vector<2x32xf32>
    %456 = tpu.matmul %455, %5, %cst_118 {dimension_numbers = #tpu.dot_dimension_numbers<[1], [0], [0], [1], [0, 0, 1, 1], [], []>} : vector<2x56xf32>, vector<56x32xf32>, vector<2x32xf32> -> vector<2x32xf32>
    %457 = arith.addf %456, %21 : vector<2x32xf32>
    %cst_119 = arith.constant 0.000000e+00 : f32
    %458 = vector.broadcast %cst_119 : f32 to vector<2x32xf32>
    %459 = arith.maximumf %457, %458 : vector<2x32xf32>
    %cst_120 = arith.constant dense<0.000000e+00> : vector<2x16xf32>
    %460 = tpu.matmul %459, %6, %cst_120 {dimension_numbers = #tpu.dot_dimension_numbers<[1], [0], [0], [1], [0, 0, 1, 1], [], []>} : vector<2x32xf32>, vector<32x16xf32>, vector<2x16xf32> -> vector<2x16xf32>
    %461 = arith.addf %460, %24 : vector<2x16xf32>
    %462 = arith.negf %461 : vector<2x16xf32>
    %463 = math.exp %462 : vector<2x16xf32>
    %cst_121 = arith.constant 1.000000e+00 : f32
    %464 = vector.broadcast %cst_121 : f32 to vector<2x16xf32>
    %465 = arith.addf %464, %463 : vector<2x16xf32>
    %466 = arith.divf %464, %465 : vector<2x16xf32>
    %467 = vector.extract_strided_slice %466 {offsets = [0, 0], sizes = [2, 8], strides = [1, 1]} : vector<2x16xf32> to vector<2x8xf32>
    %468 = arith.mulf %467, %398 : vector<2x8xf32>
    %469 = vector.extract_strided_slice %466 {offsets = [0, 8], sizes = [2, 8], strides = [1, 1]} : vector<2x16xf32> to vector<2x8xf32>
    %470 = arith.mulf %469, %454 : vector<2x8xf32>
    %471 = arith.addf %468, %470 : vector<2x8xf32>
    %472 = vector.extract_strided_slice %30 {offsets = [12, 0], sizes = [2, 288], strides = [1, 1]} : vector<16x288xf32> to vector<2x288xf32>
    %cst_122 = arith.constant dense<0.000000e+00> : vector<2x288xf32>
    %473 = tpu.matmul %427, %0, %cst_122 {dimension_numbers = #tpu.dot_dimension_numbers<[1], [0], [0], [1], [0, 0, 1, 1], [], []>} : vector<2x72xf32>, vector<72x288xf32>, vector<2x288xf32> -> vector<2x288xf32>
    %474 = arith.addf %472, %473 : vector<2x288xf32>
    %475 = vector.extract_strided_slice %474 {offsets = [0, 0], sizes = [2, 72], strides = [1, 1]} : vector<2x288xf32> to vector<2x72xf32>
    %476 = arith.negf %475 : vector<2x72xf32>
    %477 = math.exp %476 : vector<2x72xf32>
    %cst_123 = arith.constant 1.000000e+00 : f32
    %478 = vector.broadcast %cst_123 : f32 to vector<2x72xf32>
    %479 = arith.addf %478, %477 : vector<2x72xf32>
    %480 = arith.divf %478, %479 : vector<2x72xf32>
    %481 = vector.extract_strided_slice %474 {offsets = [0, 72], sizes = [2, 72], strides = [1, 1]} : vector<2x288xf32> to vector<2x72xf32>
    %482 = arith.negf %481 : vector<2x72xf32>
    %483 = math.exp %482 : vector<2x72xf32>
    %cst_124 = arith.constant 1.000000e+00 : f32
    %484 = vector.broadcast %cst_124 : f32 to vector<2x72xf32>
    %485 = arith.addf %484, %483 : vector<2x72xf32>
    %486 = arith.divf %484, %485 : vector<2x72xf32>
    %487 = vector.extract_strided_slice %474 {offsets = [0, 144], sizes = [2, 72], strides = [1, 1]} : vector<2x288xf32> to vector<2x72xf32>
    %488 = math.tanh %487 : vector<2x72xf32>
    %489 = vector.extract_strided_slice %474 {offsets = [0, 216], sizes = [2, 72], strides = [1, 1]} : vector<2x288xf32> to vector<2x72xf32>
    %490 = arith.negf %489 : vector<2x72xf32>
    %491 = math.exp %490 : vector<2x72xf32>
    %cst_125 = arith.constant 1.000000e+00 : f32
    %492 = vector.broadcast %cst_125 : f32 to vector<2x72xf32>
    %493 = arith.addf %492, %491 : vector<2x72xf32>
    %494 = arith.divf %492, %493 : vector<2x72xf32>
    %495 = vector.extract_strided_slice %425 {offsets = [0, 48], sizes = [2, 24], strides = [1, 1]} : vector<2x72xf32> to vector<2x24xf32>
    %496 = arith.mulf %486, %425 : vector<2x72xf32>
    %497 = arith.mulf %480, %488 : vector<2x72xf32>
    %498 = arith.addf %496, %497 : vector<2x72xf32>
    %499 = math.tanh %498 : vector<2x72xf32>
    %500 = arith.mulf %494, %499 : vector<2x72xf32>
    %501 = vector.extract_strided_slice %498 {offsets = [0, 48], sizes = [2, 24], strides = [1, 1]} : vector<2x72xf32> to vector<2x24xf32>
    %502 = tpu.concatenate %495, %501 in 1 : vector<2x24xf32>, vector<2x24xf32> -> vector<2x48xf32>
    %cst_126 = arith.constant dense<0.000000e+00> : vector<2x16xf32>
    %503 = tpu.matmul %502, %1, %cst_126 {dimension_numbers = #tpu.dot_dimension_numbers<[1], [0], [0], [1], [0, 0, 1, 1], [], []>} : vector<2x48xf32>, vector<48x16xf32>, vector<2x16xf32> -> vector<2x16xf32>
    %504 = arith.addf %503, %12 : vector<2x16xf32>
    %cst_127 = arith.constant 0.000000e+00 : f32
    %505 = vector.broadcast %cst_127 : f32 to vector<2x16xf32>
    %506 = arith.maximumf %504, %505 : vector<2x16xf32>
    %cst_128 = arith.constant dense<0.000000e+00> : vector<2x48xf32>
    %507 = tpu.matmul %506, %2, %cst_128 {dimension_numbers = #tpu.dot_dimension_numbers<[1], [0], [0], [1], [0, 0, 1, 1], [], []>} : vector<2x16xf32>, vector<16x48xf32>, vector<2x48xf32> -> vector<2x48xf32>
    %508 = arith.addf %507, %14 : vector<2x48xf32>
    %cst_129 = arith.constant dense<0xFF800000> : vector<2xf32>
    %509 = vector.multi_reduction <maximumf>, %508, %cst_129 [1] : vector<2x48xf32> to vector<2xf32>
    %cst_130 = arith.constant 0xFF800000 : f32
    %510 = vector.broadcast %cst_130 : f32 to vector<2xf32>
    %511 = arith.maximumf %510, %509 : vector<2xf32>
    %512 = vector.shape_cast %511 : vector<2xf32> to vector<2x1xf32>
    %513 = vector.broadcast %512 : vector<2x1xf32> to vector<2x48xf32>
    %514 = arith.subf %508, %513 : vector<2x48xf32>
    %515 = math.exp %514 : vector<2x48xf32>
    %cst_131 = arith.constant dense<0.000000e+00> : vector<2xf32>
    %516 = vector.multi_reduction <add>, %515, %cst_131 [1] : vector<2x48xf32> to vector<2xf32>
    %517 = vector.shape_cast %516 : vector<2xf32> to vector<2x1xf32>
    %518 = vector.broadcast %517 : vector<2x1xf32> to vector<2x48xf32>
    %519 = arith.divf %515, %518 : vector<2x48xf32>
    %520 = arith.mulf %519, %502 : vector<2x48xf32>
    %cst_132 = arith.constant dense<0.000000e+00> : vector<2x16xf32>
    %521 = tpu.matmul %520, %3, %cst_132 {dimension_numbers = #tpu.dot_dimension_numbers<[1], [0], [0], [1], [0, 0, 1, 1], [], []>} : vector<2x48xf32>, vector<48x16xf32>, vector<2x16xf32> -> vector<2x16xf32>
    %522 = arith.addf %521, %16 : vector<2x16xf32>
    %cst_133 = arith.constant 0.000000e+00 : f32
    %523 = vector.broadcast %cst_133 : f32 to vector<2x16xf32>
    %524 = arith.maximumf %522, %523 : vector<2x16xf32>
    %cst_134 = arith.constant dense<0.000000e+00> : vector<2x8xf32>
    %525 = tpu.matmul %524, %4, %cst_134 {dimension_numbers = #tpu.dot_dimension_numbers<[1], [0], [0], [1], [0, 0, 1, 1], [], []>} : vector<2x16xf32>, vector<16x8xf32>, vector<2x8xf32> -> vector<2x8xf32>
    %526 = arith.addf %525, %18 : vector<2x8xf32>
    %527 = math.tanh %526 : vector<2x8xf32>
    %528 = tpu.concatenate %520, %471 in 1 : vector<2x48xf32>, vector<2x8xf32> -> vector<2x56xf32>
    %cst_135 = arith.constant dense<0.000000e+00> : vector<2x32xf32>
    %529 = tpu.matmul %528, %5, %cst_135 {dimension_numbers = #tpu.dot_dimension_numbers<[1], [0], [0], [1], [0, 0, 1, 1], [], []>} : vector<2x56xf32>, vector<56x32xf32>, vector<2x32xf32> -> vector<2x32xf32>
    %530 = arith.addf %529, %21 : vector<2x32xf32>
    %cst_136 = arith.constant 0.000000e+00 : f32
    %531 = vector.broadcast %cst_136 : f32 to vector<2x32xf32>
    %532 = arith.maximumf %530, %531 : vector<2x32xf32>
    %cst_137 = arith.constant dense<0.000000e+00> : vector<2x16xf32>
    %533 = tpu.matmul %532, %6, %cst_137 {dimension_numbers = #tpu.dot_dimension_numbers<[1], [0], [0], [1], [0, 0, 1, 1], [], []>} : vector<2x32xf32>, vector<32x16xf32>, vector<2x16xf32> -> vector<2x16xf32>
    %534 = arith.addf %533, %24 : vector<2x16xf32>
    %535 = arith.negf %534 : vector<2x16xf32>
    %536 = math.exp %535 : vector<2x16xf32>
    %cst_138 = arith.constant 1.000000e+00 : f32
    %537 = vector.broadcast %cst_138 : f32 to vector<2x16xf32>
    %538 = arith.addf %537, %536 : vector<2x16xf32>
    %539 = arith.divf %537, %538 : vector<2x16xf32>
    %540 = vector.extract_strided_slice %539 {offsets = [0, 0], sizes = [2, 8], strides = [1, 1]} : vector<2x16xf32> to vector<2x8xf32>
    %541 = arith.mulf %540, %471 : vector<2x8xf32>
    %542 = vector.extract_strided_slice %539 {offsets = [0, 8], sizes = [2, 8], strides = [1, 1]} : vector<2x16xf32> to vector<2x8xf32>
    %543 = arith.mulf %542, %527 : vector<2x8xf32>
    %544 = arith.addf %541, %543 : vector<2x8xf32>
    %545 = vector.extract_strided_slice %30 {offsets = [14, 0], sizes = [2, 288], strides = [1, 1]} : vector<16x288xf32> to vector<2x288xf32>
    %cst_139 = arith.constant dense<0.000000e+00> : vector<2x288xf32>
    %546 = tpu.matmul %500, %0, %cst_139 {dimension_numbers = #tpu.dot_dimension_numbers<[1], [0], [0], [1], [0, 0, 1, 1], [], []>} : vector<2x72xf32>, vector<72x288xf32>, vector<2x288xf32> -> vector<2x288xf32>
    %547 = arith.addf %545, %546 : vector<2x288xf32>
    %548 = vector.extract_strided_slice %547 {offsets = [0, 0], sizes = [2, 72], strides = [1, 1]} : vector<2x288xf32> to vector<2x72xf32>
    %549 = arith.negf %548 : vector<2x72xf32>
    %550 = math.exp %549 : vector<2x72xf32>
    %cst_140 = arith.constant 1.000000e+00 : f32
    %551 = vector.broadcast %cst_140 : f32 to vector<2x72xf32>
    %552 = arith.addf %551, %550 : vector<2x72xf32>
    %553 = arith.divf %551, %552 : vector<2x72xf32>
    %554 = vector.extract_strided_slice %547 {offsets = [0, 72], sizes = [2, 72], strides = [1, 1]} : vector<2x288xf32> to vector<2x72xf32>
    %555 = arith.negf %554 : vector<2x72xf32>
    %556 = math.exp %555 : vector<2x72xf32>
    %cst_141 = arith.constant 1.000000e+00 : f32
    %557 = vector.broadcast %cst_141 : f32 to vector<2x72xf32>
    %558 = arith.addf %557, %556 : vector<2x72xf32>
    %559 = arith.divf %557, %558 : vector<2x72xf32>
    %560 = vector.extract_strided_slice %547 {offsets = [0, 144], sizes = [2, 72], strides = [1, 1]} : vector<2x288xf32> to vector<2x72xf32>
    %561 = math.tanh %560 : vector<2x72xf32>
    %562 = vector.extract_strided_slice %547 {offsets = [0, 216], sizes = [2, 72], strides = [1, 1]} : vector<2x288xf32> to vector<2x72xf32>
    %563 = arith.negf %562 : vector<2x72xf32>
    %564 = math.exp %563 : vector<2x72xf32>
    %cst_142 = arith.constant 1.000000e+00 : f32
    %565 = vector.broadcast %cst_142 : f32 to vector<2x72xf32>
    %566 = arith.addf %565, %564 : vector<2x72xf32>
    %567 = arith.divf %565, %566 : vector<2x72xf32>
    %568 = vector.extract_strided_slice %498 {offsets = [0, 48], sizes = [2, 24], strides = [1, 1]} : vector<2x72xf32> to vector<2x24xf32>
    %569 = arith.mulf %559, %498 : vector<2x72xf32>
    %570 = arith.mulf %553, %561 : vector<2x72xf32>
    %571 = arith.addf %569, %570 : vector<2x72xf32>
    %572 = math.tanh %571 : vector<2x72xf32>
    %573 = arith.mulf %567, %572 : vector<2x72xf32>
    %574 = vector.extract_strided_slice %571 {offsets = [0, 48], sizes = [2, 24], strides = [1, 1]} : vector<2x72xf32> to vector<2x24xf32>
    %575 = tpu.concatenate %568, %574 in 1 : vector<2x24xf32>, vector<2x24xf32> -> vector<2x48xf32>
    %cst_143 = arith.constant dense<0.000000e+00> : vector<2x16xf32>
    %576 = tpu.matmul %575, %1, %cst_143 {dimension_numbers = #tpu.dot_dimension_numbers<[1], [0], [0], [1], [0, 0, 1, 1], [], []>} : vector<2x48xf32>, vector<48x16xf32>, vector<2x16xf32> -> vector<2x16xf32>
    %577 = arith.addf %576, %12 : vector<2x16xf32>
    %cst_144 = arith.constant 0.000000e+00 : f32
    %578 = vector.broadcast %cst_144 : f32 to vector<2x16xf32>
    %579 = arith.maximumf %577, %578 : vector<2x16xf32>
    %cst_145 = arith.constant dense<0.000000e+00> : vector<2x48xf32>
    %580 = tpu.matmul %579, %2, %cst_145 {dimension_numbers = #tpu.dot_dimension_numbers<[1], [0], [0], [1], [0, 0, 1, 1], [], []>} : vector<2x16xf32>, vector<16x48xf32>, vector<2x48xf32> -> vector<2x48xf32>
    %581 = arith.addf %580, %14 : vector<2x48xf32>
    %cst_146 = arith.constant dense<0xFF800000> : vector<2xf32>
    %582 = vector.multi_reduction <maximumf>, %581, %cst_146 [1] : vector<2x48xf32> to vector<2xf32>
    %cst_147 = arith.constant 0xFF800000 : f32
    %583 = vector.broadcast %cst_147 : f32 to vector<2xf32>
    %584 = arith.maximumf %583, %582 : vector<2xf32>
    %585 = vector.shape_cast %584 : vector<2xf32> to vector<2x1xf32>
    %586 = vector.broadcast %585 : vector<2x1xf32> to vector<2x48xf32>
    %587 = arith.subf %581, %586 : vector<2x48xf32>
    %588 = math.exp %587 : vector<2x48xf32>
    %cst_148 = arith.constant dense<0.000000e+00> : vector<2xf32>
    %589 = vector.multi_reduction <add>, %588, %cst_148 [1] : vector<2x48xf32> to vector<2xf32>
    %590 = vector.shape_cast %589 : vector<2xf32> to vector<2x1xf32>
    %591 = vector.broadcast %590 : vector<2x1xf32> to vector<2x48xf32>
    %592 = arith.divf %588, %591 : vector<2x48xf32>
    %593 = arith.mulf %592, %575 : vector<2x48xf32>
    %cst_149 = arith.constant dense<0.000000e+00> : vector<2x16xf32>
    %594 = tpu.matmul %593, %3, %cst_149 {dimension_numbers = #tpu.dot_dimension_numbers<[1], [0], [0], [1], [0, 0, 1, 1], [], []>} : vector<2x48xf32>, vector<48x16xf32>, vector<2x16xf32> -> vector<2x16xf32>
    %595 = arith.addf %594, %16 : vector<2x16xf32>
    %cst_150 = arith.constant 0.000000e+00 : f32
    %596 = vector.broadcast %cst_150 : f32 to vector<2x16xf32>
    %597 = arith.maximumf %595, %596 : vector<2x16xf32>
    %cst_151 = arith.constant dense<0.000000e+00> : vector<2x8xf32>
    %598 = tpu.matmul %597, %4, %cst_151 {dimension_numbers = #tpu.dot_dimension_numbers<[1], [0], [0], [1], [0, 0, 1, 1], [], []>} : vector<2x16xf32>, vector<16x8xf32>, vector<2x8xf32> -> vector<2x8xf32>
    %599 = arith.addf %598, %18 : vector<2x8xf32>
    %600 = math.tanh %599 : vector<2x8xf32>
    %601 = tpu.concatenate %593, %544 in 1 : vector<2x48xf32>, vector<2x8xf32> -> vector<2x56xf32>
    %cst_152 = arith.constant dense<0.000000e+00> : vector<2x32xf32>
    %602 = tpu.matmul %601, %5, %cst_152 {dimension_numbers = #tpu.dot_dimension_numbers<[1], [0], [0], [1], [0, 0, 1, 1], [], []>} : vector<2x56xf32>, vector<56x32xf32>, vector<2x32xf32> -> vector<2x32xf32>
    %603 = arith.addf %602, %21 : vector<2x32xf32>
    %cst_153 = arith.constant 0.000000e+00 : f32
    %604 = vector.broadcast %cst_153 : f32 to vector<2x32xf32>
    %605 = arith.maximumf %603, %604 : vector<2x32xf32>
    %cst_154 = arith.constant dense<0.000000e+00> : vector<2x16xf32>
    %606 = tpu.matmul %605, %6, %cst_154 {dimension_numbers = #tpu.dot_dimension_numbers<[1], [0], [0], [1], [0, 0, 1, 1], [], []>} : vector<2x32xf32>, vector<32x16xf32>, vector<2x16xf32> -> vector<2x16xf32>
    %607 = arith.addf %606, %24 : vector<2x16xf32>
    %608 = arith.negf %607 : vector<2x16xf32>
    %609 = math.exp %608 : vector<2x16xf32>
    %cst_155 = arith.constant 1.000000e+00 : f32
    %610 = vector.broadcast %cst_155 : f32 to vector<2x16xf32>
    %611 = arith.addf %610, %609 : vector<2x16xf32>
    %612 = arith.divf %610, %611 : vector<2x16xf32>
    %613 = vector.extract_strided_slice %612 {offsets = [0, 0], sizes = [2, 8], strides = [1, 1]} : vector<2x16xf32> to vector<2x8xf32>
    %614 = arith.mulf %613, %544 : vector<2x8xf32>
    %615 = vector.extract_strided_slice %612 {offsets = [0, 8], sizes = [2, 8], strides = [1, 1]} : vector<2x16xf32> to vector<2x8xf32>
    %616 = arith.mulf %615, %600 : vector<2x8xf32>
    %617 = arith.addf %614, %616 : vector<2x8xf32>
    %618 = vector.extract_strided_slice %573 {offsets = [0, 0], sizes = [2, 48], strides = [1, 1]} : vector<2x72xf32> to vector<2x48xf32>
    %c360 = arith.constant 360 : index
    %c0_156 = arith.constant 0 : index
    %619 = vector.load %arg1[%c360, %c0_156] : memref<1008x384xf32, #tpu.memory_space<vmem>>, vector<48x48xf32>
    %cst_157 = arith.constant dense<0.000000e+00> : vector<2x48xf32>
    %620 = tpu.matmul %618, %619, %cst_157 {dimension_numbers = #tpu.dot_dimension_numbers<[1], [0], [0], [1], [0, 0, 1, 1], [], []>} : vector<2x48xf32>, vector<48x48xf32>, vector<2x48xf32> -> vector<2x48xf32>
    %c408 = arith.constant 408 : index
    %c0_158 = arith.constant 0 : index
    %621 = vector.load %arg1[%c408, %c0_158] : memref<1008x384xf32, #tpu.memory_space<vmem>>, vector<1x48xf32>
    %622 = vector.broadcast %621 : vector<1x48xf32> to vector<2x48xf32>
    %623 = arith.addf %620, %622 : vector<2x48xf32>
    %c416 = arith.constant 416 : index
    %c0_159 = arith.constant 0 : index
    %624 = vector.load %arg1[%c416, %c0_159] : memref<1008x384xf32, #tpu.memory_space<vmem>>, vector<48x96xf32>
    %cst_160 = arith.constant dense<0.000000e+00> : vector<2x96xf32>
    %625 = tpu.matmul %623, %624, %cst_160 {dimension_numbers = #tpu.dot_dimension_numbers<[1], [0], [0], [1], [0, 0, 1, 1], [], []>} : vector<2x48xf32>, vector<48x96xf32>, vector<2x96xf32> -> vector<2x96xf32>
    %c464 = arith.constant 464 : index
    %c0_161 = arith.constant 0 : index
    %626 = vector.load %arg1[%c464, %c0_161] : memref<1008x384xf32, #tpu.memory_space<vmem>>, vector<1x96xf32>
    %627 = vector.broadcast %626 : vector<1x96xf32> to vector<2x96xf32>
    %628 = arith.addf %625, %627 : vector<2x96xf32>
    %629 = vector.extract_strided_slice %628 {offsets = [0, 0], sizes = [2, 48], strides = [1, 1]} : vector<2x96xf32> to vector<2x48xf32>
    %630 = vector.extract_strided_slice %628 {offsets = [0, 48], sizes = [2, 48], strides = [1, 1]} : vector<2x96xf32> to vector<2x48xf32>
    %631 = vector.extract_strided_slice %573 {offsets = [0, 48], sizes = [2, 24], strides = [1, 1]} : vector<2x72xf32> to vector<2x24xf32>
    %632 = tpu.concatenate %631, %617 in 1 : vector<2x24xf32>, vector<2x8xf32> -> vector<2x32xf32>
    %c472 = arith.constant 472 : index
    %c0_162 = arith.constant 0 : index
    %633 = vector.load %arg1[%c472, %c0_162] : memref<1008x384xf32, #tpu.memory_space<vmem>>, vector<32x32xf32>
    %cst_163 = arith.constant dense<0.000000e+00> : vector<2x32xf32>
    %634 = tpu.matmul %632, %633, %cst_163 {dimension_numbers = #tpu.dot_dimension_numbers<[1], [0], [0], [1], [0, 0, 1, 1], [], []>} : vector<2x32xf32>, vector<32x32xf32>, vector<2x32xf32> -> vector<2x32xf32>
    %c504 = arith.constant 504 : index
    %c0_164 = arith.constant 0 : index
    %635 = vector.load %arg1[%c504, %c0_164] : memref<1008x384xf32, #tpu.memory_space<vmem>>, vector<1x32xf32>
    %636 = vector.broadcast %635 : vector<1x32xf32> to vector<2x32xf32>
    %637 = arith.addf %634, %636 : vector<2x32xf32>
    %638 = vector.extract_strided_slice %637 {offsets = [0, 0], sizes = [2, 16], strides = [1, 1]} : vector<2x32xf32> to vector<2x16xf32>
    %639 = vector.extract_strided_slice %637 {offsets = [0, 16], sizes = [2, 16], strides = [1, 1]} : vector<2x32xf32> to vector<2x16xf32>
    %cst_165 = arith.constant 1.000000e+00 : f32
    %640 = vector.broadcast %cst_165 : f32 to vector<2x48xf32>
    %641 = arith.addf %640, %630 : vector<2x48xf32>
    %642 = arith.mulf %629, %629 : vector<2x48xf32>
    %643 = arith.subf %641, %642 : vector<2x48xf32>
    %644 = math.exp %630 : vector<2x48xf32>
    %645 = arith.subf %643, %644 : vector<2x48xf32>
    %646 = vector.shape_cast %645 : vector<2x48xf32> to vector<1x2x48xf32>
    %cst_166 = arith.constant dense<0.000000e+00> : vector<1xf32>
    %647 = vector.multi_reduction <add>, %646, %cst_166 [1, 2] : vector<1x2x48xf32> to vector<1xf32>
    %648 = vector.shape_cast %647 : vector<1xf32> to vector<1x1x1xf32>
    %649 = vector.extract %648[0, 0, 0] : f32 from vector<1x1x1xf32>
    %cst_167 = arith.constant -5.000000e-01 : f32
    %650 = arith.mulf %cst_167, %649 : f32
    %cst_168 = arith.constant 1.000000e+00 : f32
    %651 = vector.broadcast %cst_168 : f32 to vector<2x16xf32>
    %652 = arith.addf %651, %639 : vector<2x16xf32>
    %653 = arith.mulf %638, %638 : vector<2x16xf32>
    %654 = arith.subf %652, %653 : vector<2x16xf32>
    %655 = math.exp %639 : vector<2x16xf32>
    %656 = arith.subf %654, %655 : vector<2x16xf32>
    %657 = vector.shape_cast %656 : vector<2x16xf32> to vector<1x2x16xf32>
    %cst_169 = arith.constant dense<0.000000e+00> : vector<1xf32>
    %658 = vector.multi_reduction <add>, %657, %cst_169 [1, 2] : vector<1x2x16xf32> to vector<1xf32>
    %659 = vector.shape_cast %658 : vector<1xf32> to vector<1x1x1xf32>
    %660 = vector.extract %659[0, 0, 0] : f32 from vector<1x1x1xf32>
    %cst_170 = arith.constant -5.000000e-01 : f32
    %661 = arith.mulf %cst_170, %660 : f32
    %662 = arith.addf %650, %661 : f32
    %c0_171 = arith.constant 0 : index
    %663 = memref.load %arg4[%c0_171] : memref<1xf32, #tpu.memory_space<smem>>
    memref.store %662, %arg4[%c0_171] : memref<1xf32, #tpu.memory_space<smem>>
    %664 = tpu.concatenate %629, %638 in 1 : vector<2x48xf32>, vector<2x16xf32> -> vector<2x64xf32>
    %c512 = arith.constant 512 : index
    %c0_172 = arith.constant 0 : index
    %665 = vector.load %arg1[%c512, %c0_172] : memref<1008x384xf32, #tpu.memory_space<vmem>>, vector<64x64xf32>
    %cst_173 = arith.constant dense<0.000000e+00> : vector<2x64xf32>
    %666 = tpu.matmul %664, %665, %cst_173 {dimension_numbers = #tpu.dot_dimension_numbers<[1], [0], [0], [1], [0, 0, 1, 1], [], []>} : vector<2x64xf32>, vector<64x64xf32>, vector<2x64xf32> -> vector<2x64xf32>
    %c576 = arith.constant 576 : index
    %c0_174 = arith.constant 0 : index
    %667 = vector.load %arg1[%c576, %c0_174] : memref<1008x384xf32, #tpu.memory_space<vmem>>, vector<1x64xf32>
    %668 = vector.broadcast %667 : vector<1x64xf32> to vector<2x64xf32>
    %669 = arith.addf %666, %668 : vector<2x64xf32>
    %cst_175 = arith.constant 0.000000e+00 : f32
    %670 = vector.broadcast %cst_175 : f32 to vector<2x64xf32>
    %671 = arith.maximumf %669, %670 : vector<2x64xf32>
    %c584 = arith.constant 584 : index
    %c0_176 = arith.constant 0 : index
    %672 = vector.load %arg1[%c584, %c0_176] : memref<1008x384xf32, #tpu.memory_space<vmem>>, vector<64x64xf32>
    %cst_177 = arith.constant dense<0.000000e+00> : vector<2x64xf32>
    %673 = tpu.matmul %671, %672, %cst_177 {dimension_numbers = #tpu.dot_dimension_numbers<[1], [0], [0], [1], [0, 0, 1, 1], [], []>} : vector<2x64xf32>, vector<64x64xf32>, vector<2x64xf32> -> vector<2x64xf32>
    %c648 = arith.constant 648 : index
    %c0_178 = arith.constant 0 : index
    %674 = vector.load %arg1[%c648, %c0_178] : memref<1008x384xf32, #tpu.memory_space<vmem>>, vector<1x64xf32>
    %675 = vector.broadcast %674 : vector<1x64xf32> to vector<2x64xf32>
    %676 = arith.addf %673, %675 : vector<2x64xf32>
    %cst_179 = arith.constant 0.000000e+00 : f32
    %677 = vector.broadcast %cst_179 : f32 to vector<2x64xf32>
    %678 = arith.maximumf %676, %677 : vector<2x64xf32>
    %679 = vector.extract_strided_slice %678 {offsets = [0, 0], sizes = [2, 16], strides = [1, 1]} : vector<2x64xf32> to vector<2x16xf32>
    %680 = vector.extract_strided_slice %678 {offsets = [0, 16], sizes = [2, 16], strides = [1, 1]} : vector<2x64xf32> to vector<2x16xf32>
    %681 = vector.extract_strided_slice %678 {offsets = [0, 32], sizes = [2, 16], strides = [1, 1]} : vector<2x64xf32> to vector<2x16xf32>
    %682 = vector.extract_strided_slice %678 {offsets = [0, 48], sizes = [2, 16], strides = [1, 1]} : vector<2x64xf32> to vector<2x16xf32>
    %c656 = arith.constant 656 : index
    %c0_180 = arith.constant 0 : index
    %683 = vector.load %arg1[%c656, %c0_180] : memref<1008x384xf32, #tpu.memory_space<vmem>>, vector<16x16xf32>
    %cst_181 = arith.constant dense<0.000000e+00> : vector<2x16xf32>
    %684 = tpu.matmul %682, %683, %cst_181 {dimension_numbers = #tpu.dot_dimension_numbers<[1], [0], [0], [1], [0, 0, 1, 1], [], []>} : vector<2x16xf32>, vector<16x16xf32>, vector<2x16xf32> -> vector<2x16xf32>
    %c672 = arith.constant 672 : index
    %c0_182 = arith.constant 0 : index
    %685 = vector.load %arg1[%c672, %c0_182] : memref<1008x384xf32, #tpu.memory_space<vmem>>, vector<1x16xf32>
    %686 = vector.broadcast %685 : vector<1x16xf32> to vector<2x16xf32>
    %687 = arith.addf %684, %686 : vector<2x16xf32>
    %cst_183 = arith.constant 0.000000e+00 : f32
    %688 = vector.broadcast %cst_183 : f32 to vector<2x16xf32>
    %689 = arith.maximumf %687, %688 : vector<2x16xf32>
    %c680 = arith.constant 680 : index
    %c0_184 = arith.constant 0 : index
    %690 = vector.load %arg1[%c680, %c0_184] : memref<1008x384xf32, #tpu.memory_space<vmem>>, vector<16x4xf32>
    %cst_185 = arith.constant dense<0.000000e+00> : vector<2x4xf32>
    %691 = tpu.matmul %689, %690, %cst_185 {dimension_numbers = #tpu.dot_dimension_numbers<[1], [0], [0], [1], [0, 0, 1, 1], [], []>} : vector<2x16xf32>, vector<16x4xf32>, vector<2x4xf32> -> vector<2x4xf32>
    %c696 = arith.constant 696 : index
    %c0_186 = arith.constant 0 : index
    %692 = vector.load %arg1[%c696, %c0_186] : memref<1008x384xf32, #tpu.memory_space<vmem>>, vector<1x4xf32>
    %693 = vector.broadcast %692 : vector<1x4xf32> to vector<2x4xf32>
    %694 = arith.addf %691, %693 : vector<2x4xf32>
    %c0_187 = arith.constant 0 : index
    %c0_188 = arith.constant 0 : index
    %695 = vector.load %arg3[%c0_187, %c0_188] : memref<2x4xf32, #tpu.memory_space<vmem>>, vector<2x4xf32>
    tpu.vector_store %arg3[%c0_187, %c0_188], %694 {strides = array<i32>} : memref<2x4xf32, #tpu.memory_space<vmem>>, vector<2x4xf32>,
    %696 = tpu.concatenate %682, %679, %682, %680, %682, %681 in 1 : vector<2x16xf32>, vector<2x16xf32>, vector<2x16xf32>, vector<2x16xf32>, vector<2x16xf32>, vector<2x16xf32> -> vector<2x96xf32>
    %c704 = arith.constant 704 : index
    %c0_189 = arith.constant 0 : index
    %697 = vector.load %arg1[%c704, %c0_189] : memref<1008x384xf32, #tpu.memory_space<vmem>>, vector<96x384xf32>
    %c800 = arith.constant 800 : index
    %c0_190 = arith.constant 0 : index
    %698 = vector.load %arg1[%c800, %c0_190] : memref<1008x384xf32, #tpu.memory_space<vmem>>, vector<96x384xf32>
    %c896 = arith.constant 896 : index
    %c0_191 = arith.constant 0 : index
    %699 = vector.load %arg1[%c896, %c0_191] : memref<1008x384xf32, #tpu.memory_space<vmem>>, vector<1x384xf32>
    %700 = vector.shape_cast %699 : vector<1x384xf32> to vector<1x384xf32>
    %701 = vector.broadcast %700 : vector<1x384xf32> to vector<2x384xf32>
    %cst_192 = arith.constant 0.000000e+00 : f32
    %702 = vector.broadcast %cst_192 : f32 to vector<2x96xf32>
    %cst_193 = arith.constant dense<0.000000e+00> : vector<2x384xf32>
    %703 = tpu.matmul %696, %697, %cst_193 {dimension_numbers = #tpu.dot_dimension_numbers<[1], [0], [0], [1], [0, 0, 1, 1], [], []>} : vector<2x96xf32>, vector<96x384xf32>, vector<2x384xf32> -> vector<2x384xf32>
    %704 = arith.addf %703, %701 : vector<2x384xf32>
    %705 = vector.extract_strided_slice %704 {offsets = [0, 0], sizes = [2, 96], strides = [1, 1]} : vector<2x384xf32> to vector<2x96xf32>
    %706 = arith.negf %705 : vector<2x96xf32>
    %707 = math.exp %706 : vector<2x96xf32>
    %cst_194 = arith.constant 1.000000e+00 : f32
    %708 = vector.broadcast %cst_194 : f32 to vector<2x96xf32>
    %709 = arith.addf %708, %707 : vector<2x96xf32>
    %710 = arith.divf %708, %709 : vector<2x96xf32>
    %711 = vector.extract_strided_slice %704 {offsets = [0, 96], sizes = [2, 96], strides = [1, 1]} : vector<2x384xf32> to vector<2x96xf32>
    %712 = arith.negf %711 : vector<2x96xf32>
    %713 = math.exp %712 : vector<2x96xf32>
    %cst_195 = arith.constant 1.000000e+00 : f32
    %714 = vector.broadcast %cst_195 : f32 to vector<2x96xf32>
    %715 = arith.addf %714, %713 : vector<2x96xf32>
    %716 = arith.divf %714, %715 : vector<2x96xf32>
    %717 = vector.extract_strided_slice %704 {offsets = [0, 192], sizes = [2, 96], strides = [1, 1]} : vector<2x384xf32> to vector<2x96xf32>
    %718 = math.tanh %717 : vector<2x96xf32>
    %719 = vector.extract_strided_slice %704 {offsets = [0, 288], sizes = [2, 96], strides = [1, 1]} : vector<2x384xf32> to vector<2x96xf32>
    %720 = arith.negf %719 : vector<2x96xf32>
    %721 = math.exp %720 : vector<2x96xf32>
    %cst_196 = arith.constant 1.000000e+00 : f32
    %722 = vector.broadcast %cst_196 : f32 to vector<2x96xf32>
    %723 = arith.addf %722, %721 : vector<2x96xf32>
    %724 = arith.divf %722, %723 : vector<2x96xf32>
    %725 = arith.mulf %716, %702 : vector<2x96xf32>
    %726 = arith.mulf %710, %718 : vector<2x96xf32>
    %727 = arith.addf %725, %726 : vector<2x96xf32>
    %728 = math.tanh %727 : vector<2x96xf32>
    %729 = arith.mulf %724, %728 : vector<2x96xf32>
    %c0_197 = arith.constant 0 : index
    %c0_198 = arith.constant 0 : index
    %730 = vector.load %arg5[%c0_197, %c0_198] : memref<16x96xf32, #tpu.memory_space<vmem>>, vector<2x96xf32>
    tpu.vector_store %arg5[%c0_197, %c0_198], %729 {strides = array<i32>} : memref<16x96xf32, #tpu.memory_space<vmem>>, vector<2x96xf32>,
    %cst_199 = arith.constant dense<0.000000e+00> : vector<2x384xf32>
    %731 = tpu.matmul %729, %698, %cst_199 {dimension_numbers = #tpu.dot_dimension_numbers<[1], [0], [0], [1], [0, 0, 1, 1], [], []>} : vector<2x96xf32>, vector<96x384xf32>, vector<2x384xf32> -> vector<2x384xf32>
    %732 = arith.addf %731, %701 : vector<2x384xf32>
    %733 = vector.extract_strided_slice %732 {offsets = [0, 0], sizes = [2, 96], strides = [1, 1]} : vector<2x384xf32> to vector<2x96xf32>
    %734 = arith.negf %733 : vector<2x96xf32>
    %735 = math.exp %734 : vector<2x96xf32>
    %cst_200 = arith.constant 1.000000e+00 : f32
    %736 = vector.broadcast %cst_200 : f32 to vector<2x96xf32>
    %737 = arith.addf %736, %735 : vector<2x96xf32>
    %738 = arith.divf %736, %737 : vector<2x96xf32>
    %739 = vector.extract_strided_slice %732 {offsets = [0, 96], sizes = [2, 96], strides = [1, 1]} : vector<2x384xf32> to vector<2x96xf32>
    %740 = arith.negf %739 : vector<2x96xf32>
    %741 = math.exp %740 : vector<2x96xf32>
    %cst_201 = arith.constant 1.000000e+00 : f32
    %742 = vector.broadcast %cst_201 : f32 to vector<2x96xf32>
    %743 = arith.addf %742, %741 : vector<2x96xf32>
    %744 = arith.divf %742, %743 : vector<2x96xf32>
    %745 = vector.extract_strided_slice %732 {offsets = [0, 192], sizes = [2, 96], strides = [1, 1]} : vector<2x384xf32> to vector<2x96xf32>
    %746 = math.tanh %745 : vector<2x96xf32>
    %747 = vector.extract_strided_slice %732 {offsets = [0, 288], sizes = [2, 96], strides = [1, 1]} : vector<2x384xf32> to vector<2x96xf32>
    %748 = arith.negf %747 : vector<2x96xf32>
    %749 = math.exp %748 : vector<2x96xf32>
    %cst_202 = arith.constant 1.000000e+00 : f32
    %750 = vector.broadcast %cst_202 : f32 to vector<2x96xf32>
    %751 = arith.addf %750, %749 : vector<2x96xf32>
    %752 = arith.divf %750, %751 : vector<2x96xf32>
    %753 = arith.mulf %744, %727 : vector<2x96xf32>
    %754 = arith.mulf %738, %746 : vector<2x96xf32>
    %755 = arith.addf %753, %754 : vector<2x96xf32>
    %756 = math.tanh %755 : vector<2x96xf32>
    %757 = arith.mulf %752, %756 : vector<2x96xf32>
    %c2 = arith.constant 2 : index
    %c0_203 = arith.constant 0 : index
    %758 = vector.load %arg5[%c2, %c0_203] : memref<16x96xf32, #tpu.memory_space<vmem>>, vector<2x96xf32>
    tpu.vector_store %arg5[%c2, %c0_203], %757 {strides = array<i32>} : memref<16x96xf32, #tpu.memory_space<vmem>>, vector<2x96xf32>,
    %cst_204 = arith.constant dense<0.000000e+00> : vector<2x384xf32>
    %759 = tpu.matmul %757, %698, %cst_204 {dimension_numbers = #tpu.dot_dimension_numbers<[1], [0], [0], [1], [0, 0, 1, 1], [], []>} : vector<2x96xf32>, vector<96x384xf32>, vector<2x384xf32> -> vector<2x384xf32>
    %760 = arith.addf %759, %701 : vector<2x384xf32>
    %761 = vector.extract_strided_slice %760 {offsets = [0, 0], sizes = [2, 96], strides = [1, 1]} : vector<2x384xf32> to vector<2x96xf32>
    %762 = arith.negf %761 : vector<2x96xf32>
    %763 = math.exp %762 : vector<2x96xf32>
    %cst_205 = arith.constant 1.000000e+00 : f32
    %764 = vector.broadcast %cst_205 : f32 to vector<2x96xf32>
    %765 = arith.addf %764, %763 : vector<2x96xf32>
    %766 = arith.divf %764, %765 : vector<2x96xf32>
    %767 = vector.extract_strided_slice %760 {offsets = [0, 96], sizes = [2, 96], strides = [1, 1]} : vector<2x384xf32> to vector<2x96xf32>
    %768 = arith.negf %767 : vector<2x96xf32>
    %769 = math.exp %768 : vector<2x96xf32>
    %cst_206 = arith.constant 1.000000e+00 : f32
    %770 = vector.broadcast %cst_206 : f32 to vector<2x96xf32>
    %771 = arith.addf %770, %769 : vector<2x96xf32>
    %772 = arith.divf %770, %771 : vector<2x96xf32>
    %773 = vector.extract_strided_slice %760 {offsets = [0, 192], sizes = [2, 96], strides = [1, 1]} : vector<2x384xf32> to vector<2x96xf32>
    %774 = math.tanh %773 : vector<2x96xf32>
    %775 = vector.extract_strided_slice %760 {offsets = [0, 288], sizes = [2, 96], strides = [1, 1]} : vector<2x384xf32> to vector<2x96xf32>
    %776 = arith.negf %775 : vector<2x96xf32>
    %777 = math.exp %776 : vector<2x96xf32>
    %cst_207 = arith.constant 1.000000e+00 : f32
    %778 = vector.broadcast %cst_207 : f32 to vector<2x96xf32>
    %779 = arith.addf %778, %777 : vector<2x96xf32>
    %780 = arith.divf %778, %779 : vector<2x96xf32>
    %781 = arith.mulf %772, %755 : vector<2x96xf32>
    %782 = arith.mulf %766, %774 : vector<2x96xf32>
    %783 = arith.addf %781, %782 : vector<2x96xf32>
    %784 = math.tanh %783 : vector<2x96xf32>
    %785 = arith.mulf %780, %784 : vector<2x96xf32>
    %c4 = arith.constant 4 : index
    %c0_208 = arith.constant 0 : index
    %786 = vector.load %arg5[%c4, %c0_208] : memref<16x96xf32, #tpu.memory_space<vmem>>, vector<2x96xf32>
    tpu.vector_store %arg5[%c4, %c0_208], %785 {strides = array<i32>} : memref<16x96xf32, #tpu.memory_space<vmem>>, vector<2x96xf32>,
    %cst_209 = arith.constant dense<0.000000e+00> : vector<2x384xf32>
    %787 = tpu.matmul %785, %698, %cst_209 {dimension_numbers = #tpu.dot_dimension_numbers<[1], [0], [0], [1], [0, 0, 1, 1], [], []>} : vector<2x96xf32>, vector<96x384xf32>, vector<2x384xf32> -> vector<2x384xf32>
    %788 = arith.addf %787, %701 : vector<2x384xf32>
    %789 = vector.extract_strided_slice %788 {offsets = [0, 0], sizes = [2, 96], strides = [1, 1]} : vector<2x384xf32> to vector<2x96xf32>
    %790 = arith.negf %789 : vector<2x96xf32>
    %791 = math.exp %790 : vector<2x96xf32>
    %cst_210 = arith.constant 1.000000e+00 : f32
    %792 = vector.broadcast %cst_210 : f32 to vector<2x96xf32>
    %793 = arith.addf %792, %791 : vector<2x96xf32>
    %794 = arith.divf %792, %793 : vector<2x96xf32>
    %795 = vector.extract_strided_slice %788 {offsets = [0, 96], sizes = [2, 96], strides = [1, 1]} : vector<2x384xf32> to vector<2x96xf32>
    %796 = arith.negf %795 : vector<2x96xf32>
    %797 = math.exp %796 : vector<2x96xf32>
    %cst_211 = arith.constant 1.000000e+00 : f32
    %798 = vector.broadcast %cst_211 : f32 to vector<2x96xf32>
    %799 = arith.addf %798, %797 : vector<2x96xf32>
    %800 = arith.divf %798, %799 : vector<2x96xf32>
    %801 = vector.extract_strided_slice %788 {offsets = [0, 192], sizes = [2, 96], strides = [1, 1]} : vector<2x384xf32> to vector<2x96xf32>
    %802 = math.tanh %801 : vector<2x96xf32>
    %803 = vector.extract_strided_slice %788 {offsets = [0, 288], sizes = [2, 96], strides = [1, 1]} : vector<2x384xf32> to vector<2x96xf32>
    %804 = arith.negf %803 : vector<2x96xf32>
    %805 = math.exp %804 : vector<2x96xf32>
    %cst_212 = arith.constant 1.000000e+00 : f32
    %806 = vector.broadcast %cst_212 : f32 to vector<2x96xf32>
    %807 = arith.addf %806, %805 : vector<2x96xf32>
    %808 = arith.divf %806, %807 : vector<2x96xf32>
    %809 = arith.mulf %800, %783 : vector<2x96xf32>
    %810 = arith.mulf %794, %802 : vector<2x96xf32>
    %811 = arith.addf %809, %810 : vector<2x96xf32>
    %812 = math.tanh %811 : vector<2x96xf32>
    %813 = arith.mulf %808, %812 : vector<2x96xf32>
    %c6 = arith.constant 6 : index
    %c0_213 = arith.constant 0 : index
    %814 = vector.load %arg5[%c6, %c0_213] : memref<16x96xf32, #tpu.memory_space<vmem>>, vector<2x96xf32>
    tpu.vector_store %arg5[%c6, %c0_213], %813 {strides = array<i32>} : memref<16x96xf32, #tpu.memory_space<vmem>>, vector<2x96xf32>,
    %cst_214 = arith.constant dense<0.000000e+00> : vector<2x384xf32>
    %815 = tpu.matmul %813, %698, %cst_214 {dimension_numbers = #tpu.dot_dimension_numbers<[1], [0], [0], [1], [0, 0, 1, 1], [], []>} : vector<2x96xf32>, vector<96x384xf32>, vector<2x384xf32> -> vector<2x384xf32>
    %816 = arith.addf %815, %701 : vector<2x384xf32>
    %817 = vector.extract_strided_slice %816 {offsets = [0, 0], sizes = [2, 96], strides = [1, 1]} : vector<2x384xf32> to vector<2x96xf32>
    %818 = arith.negf %817 : vector<2x96xf32>
    %819 = math.exp %818 : vector<2x96xf32>
    %cst_215 = arith.constant 1.000000e+00 : f32
    %820 = vector.broadcast %cst_215 : f32 to vector<2x96xf32>
    %821 = arith.addf %820, %819 : vector<2x96xf32>
    %822 = arith.divf %820, %821 : vector<2x96xf32>
    %823 = vector.extract_strided_slice %816 {offsets = [0, 96], sizes = [2, 96], strides = [1, 1]} : vector<2x384xf32> to vector<2x96xf32>
    %824 = arith.negf %823 : vector<2x96xf32>
    %825 = math.exp %824 : vector<2x96xf32>
    %cst_216 = arith.constant 1.000000e+00 : f32
    %826 = vector.broadcast %cst_216 : f32 to vector<2x96xf32>
    %827 = arith.addf %826, %825 : vector<2x96xf32>
    %828 = arith.divf %826, %827 : vector<2x96xf32>
    %829 = vector.extract_strided_slice %816 {offsets = [0, 192], sizes = [2, 96], strides = [1, 1]} : vector<2x384xf32> to vector<2x96xf32>
    %830 = math.tanh %829 : vector<2x96xf32>
    %831 = vector.extract_strided_slice %816 {offsets = [0, 288], sizes = [2, 96], strides = [1, 1]} : vector<2x384xf32> to vector<2x96xf32>
    %832 = arith.negf %831 : vector<2x96xf32>
    %833 = math.exp %832 : vector<2x96xf32>
    %cst_217 = arith.constant 1.000000e+00 : f32
    %834 = vector.broadcast %cst_217 : f32 to vector<2x96xf32>
    %835 = arith.addf %834, %833 : vector<2x96xf32>
    %836 = arith.divf %834, %835 : vector<2x96xf32>
    %837 = arith.mulf %828, %811 : vector<2x96xf32>
    %838 = arith.mulf %822, %830 : vector<2x96xf32>
    %839 = arith.addf %837, %838 : vector<2x96xf32>
    %840 = math.tanh %839 : vector<2x96xf32>
    %841 = arith.mulf %836, %840 : vector<2x96xf32>
    %c8 = arith.constant 8 : index
    %c0_218 = arith.constant 0 : index
    %842 = vector.load %arg5[%c8, %c0_218] : memref<16x96xf32, #tpu.memory_space<vmem>>, vector<2x96xf32>
    tpu.vector_store %arg5[%c8, %c0_218], %841 {strides = array<i32>} : memref<16x96xf32, #tpu.memory_space<vmem>>, vector<2x96xf32>,
    %cst_219 = arith.constant dense<0.000000e+00> : vector<2x384xf32>
    %843 = tpu.matmul %841, %698, %cst_219 {dimension_numbers = #tpu.dot_dimension_numbers<[1], [0], [0], [1], [0, 0, 1, 1], [], []>} : vector<2x96xf32>, vector<96x384xf32>, vector<2x384xf32> -> vector<2x384xf32>
    %844 = arith.addf %843, %701 : vector<2x384xf32>
    %845 = vector.extract_strided_slice %844 {offsets = [0, 0], sizes = [2, 96], strides = [1, 1]} : vector<2x384xf32> to vector<2x96xf32>
    %846 = arith.negf %845 : vector<2x96xf32>
    %847 = math.exp %846 : vector<2x96xf32>
    %cst_220 = arith.constant 1.000000e+00 : f32
    %848 = vector.broadcast %cst_220 : f32 to vector<2x96xf32>
    %849 = arith.addf %848, %847 : vector<2x96xf32>
    %850 = arith.divf %848, %849 : vector<2x96xf32>
    %851 = vector.extract_strided_slice %844 {offsets = [0, 96], sizes = [2, 96], strides = [1, 1]} : vector<2x384xf32> to vector<2x96xf32>
    %852 = arith.negf %851 : vector<2x96xf32>
    %853 = math.exp %852 : vector<2x96xf32>
    %cst_221 = arith.constant 1.000000e+00 : f32
    %854 = vector.broadcast %cst_221 : f32 to vector<2x96xf32>
    %855 = arith.addf %854, %853 : vector<2x96xf32>
    %856 = arith.divf %854, %855 : vector<2x96xf32>
    %857 = vector.extract_strided_slice %844 {offsets = [0, 192], sizes = [2, 96], strides = [1, 1]} : vector<2x384xf32> to vector<2x96xf32>
    %858 = math.tanh %857 : vector<2x96xf32>
    %859 = vector.extract_strided_slice %844 {offsets = [0, 288], sizes = [2, 96], strides = [1, 1]} : vector<2x384xf32> to vector<2x96xf32>
    %860 = arith.negf %859 : vector<2x96xf32>
    %861 = math.exp %860 : vector<2x96xf32>
    %cst_222 = arith.constant 1.000000e+00 : f32
    %862 = vector.broadcast %cst_222 : f32 to vector<2x96xf32>
    %863 = arith.addf %862, %861 : vector<2x96xf32>
    %864 = arith.divf %862, %863 : vector<2x96xf32>
    %865 = arith.mulf %856, %839 : vector<2x96xf32>
    %866 = arith.mulf %850, %858 : vector<2x96xf32>
    %867 = arith.addf %865, %866 : vector<2x96xf32>
    %868 = math.tanh %867 : vector<2x96xf32>
    %869 = arith.mulf %864, %868 : vector<2x96xf32>
    %c10 = arith.constant 10 : index
    %c0_223 = arith.constant 0 : index
    %870 = vector.load %arg5[%c10, %c0_223] : memref<16x96xf32, #tpu.memory_space<vmem>>, vector<2x96xf32>
    tpu.vector_store %arg5[%c10, %c0_223], %869 {strides = array<i32>} : memref<16x96xf32, #tpu.memory_space<vmem>>, vector<2x96xf32>,
    %cst_224 = arith.constant dense<0.000000e+00> : vector<2x384xf32>
    %871 = tpu.matmul %869, %698, %cst_224 {dimension_numbers = #tpu.dot_dimension_numbers<[1], [0], [0], [1], [0, 0, 1, 1], [], []>} : vector<2x96xf32>, vector<96x384xf32>, vector<2x384xf32> -> vector<2x384xf32>
    %872 = arith.addf %871, %701 : vector<2x384xf32>
    %873 = vector.extract_strided_slice %872 {offsets = [0, 0], sizes = [2, 96], strides = [1, 1]} : vector<2x384xf32> to vector<2x96xf32>
    %874 = arith.negf %873 : vector<2x96xf32>
    %875 = math.exp %874 : vector<2x96xf32>
    %cst_225 = arith.constant 1.000000e+00 : f32
    %876 = vector.broadcast %cst_225 : f32 to vector<2x96xf32>
    %877 = arith.addf %876, %875 : vector<2x96xf32>
    %878 = arith.divf %876, %877 : vector<2x96xf32>
    %879 = vector.extract_strided_slice %872 {offsets = [0, 96], sizes = [2, 96], strides = [1, 1]} : vector<2x384xf32> to vector<2x96xf32>
    %880 = arith.negf %879 : vector<2x96xf32>
    %881 = math.exp %880 : vector<2x96xf32>
    %cst_226 = arith.constant 1.000000e+00 : f32
    %882 = vector.broadcast %cst_226 : f32 to vector<2x96xf32>
    %883 = arith.addf %882, %881 : vector<2x96xf32>
    %884 = arith.divf %882, %883 : vector<2x96xf32>
    %885 = vector.extract_strided_slice %872 {offsets = [0, 192], sizes = [2, 96], strides = [1, 1]} : vector<2x384xf32> to vector<2x96xf32>
    %886 = math.tanh %885 : vector<2x96xf32>
    %887 = vector.extract_strided_slice %872 {offsets = [0, 288], sizes = [2, 96], strides = [1, 1]} : vector<2x384xf32> to vector<2x96xf32>
    %888 = arith.negf %887 : vector<2x96xf32>
    %889 = math.exp %888 : vector<2x96xf32>
    %cst_227 = arith.constant 1.000000e+00 : f32
    %890 = vector.broadcast %cst_227 : f32 to vector<2x96xf32>
    %891 = arith.addf %890, %889 : vector<2x96xf32>
    %892 = arith.divf %890, %891 : vector<2x96xf32>
    %893 = arith.mulf %884, %867 : vector<2x96xf32>
    %894 = arith.mulf %878, %886 : vector<2x96xf32>
    %895 = arith.addf %893, %894 : vector<2x96xf32>
    %896 = math.tanh %895 : vector<2x96xf32>
    %897 = arith.mulf %892, %896 : vector<2x96xf32>
    %c12 = arith.constant 12 : index
    %c0_228 = arith.constant 0 : index
    %898 = vector.load %arg5[%c12, %c0_228] : memref<16x96xf32, #tpu.memory_space<vmem>>, vector<2x96xf32>
    tpu.vector_store %arg5[%c12, %c0_228], %897 {strides = array<i32>} : memref<16x96xf32, #tpu.memory_space<vmem>>, vector<2x96xf32>,
    %cst_229 = arith.constant dense<0.000000e+00> : vector<2x384xf32>
    %899 = tpu.matmul %897, %698, %cst_229 {dimension_numbers = #tpu.dot_dimension_numbers<[1], [0], [0], [1], [0, 0, 1, 1], [], []>} : vector<2x96xf32>, vector<96x384xf32>, vector<2x384xf32> -> vector<2x384xf32>
    %900 = arith.addf %899, %701 : vector<2x384xf32>
    %901 = vector.extract_strided_slice %900 {offsets = [0, 0], sizes = [2, 96], strides = [1, 1]} : vector<2x384xf32> to vector<2x96xf32>
    %902 = arith.negf %901 : vector<2x96xf32>
    %903 = math.exp %902 : vector<2x96xf32>
    %cst_230 = arith.constant 1.000000e+00 : f32
    %904 = vector.broadcast %cst_230 : f32 to vector<2x96xf32>
    %905 = arith.addf %904, %903 : vector<2x96xf32>
    %906 = arith.divf %904, %905 : vector<2x96xf32>
    %907 = vector.extract_strided_slice %900 {offsets = [0, 96], sizes = [2, 96], strides = [1, 1]} : vector<2x384xf32> to vector<2x96xf32>
    %908 = arith.negf %907 : vector<2x96xf32>
    %909 = math.exp %908 : vector<2x96xf32>
    %cst_231 = arith.constant 1.000000e+00 : f32
    %910 = vector.broadcast %cst_231 : f32 to vector<2x96xf32>
    %911 = arith.addf %910, %909 : vector<2x96xf32>
    %912 = arith.divf %910, %911 : vector<2x96xf32>
    %913 = vector.extract_strided_slice %900 {offsets = [0, 192], sizes = [2, 96], strides = [1, 1]} : vector<2x384xf32> to vector<2x96xf32>
    %914 = math.tanh %913 : vector<2x96xf32>
    %915 = vector.extract_strided_slice %900 {offsets = [0, 288], sizes = [2, 96], strides = [1, 1]} : vector<2x384xf32> to vector<2x96xf32>
    %916 = arith.negf %915 : vector<2x96xf32>
    %917 = math.exp %916 : vector<2x96xf32>
    %cst_232 = arith.constant 1.000000e+00 : f32
    %918 = vector.broadcast %cst_232 : f32 to vector<2x96xf32>
    %919 = arith.addf %918, %917 : vector<2x96xf32>
    %920 = arith.divf %918, %919 : vector<2x96xf32>
    %921 = arith.mulf %912, %895 : vector<2x96xf32>
    %922 = arith.mulf %906, %914 : vector<2x96xf32>
    %923 = arith.addf %921, %922 : vector<2x96xf32>
    %924 = math.tanh %923 : vector<2x96xf32>
    %925 = arith.mulf %920, %924 : vector<2x96xf32>
    %c14 = arith.constant 14 : index
    %c0_233 = arith.constant 0 : index
    %926 = vector.load %arg5[%c14, %c0_233] : memref<16x96xf32, #tpu.memory_space<vmem>>, vector<2x96xf32>
    tpu.vector_store %arg5[%c14, %c0_233], %925 {strides = array<i32>} : memref<16x96xf32, #tpu.memory_space<vmem>>, vector<2x96xf32>,
    %c0_234 = arith.constant 0 : index
    %c0_235 = arith.constant 0 : index
    %927 = vector.load %arg5[%c0_234, %c0_235] : memref<16x96xf32, #tpu.memory_space<vmem>>, vector<16x96xf32>
    %c904 = arith.constant 904 : index
    %c0_236 = arith.constant 0 : index
    %928 = vector.load %arg1[%c904, %c0_236] : memref<1008x384xf32, #tpu.memory_space<vmem>>, vector<96x12xf32>
    %cst_237 = arith.constant dense<0.000000e+00> : vector<16x12xf32>
    %929 = tpu.matmul %927, %928, %cst_237 {dimension_numbers = #tpu.dot_dimension_numbers<[1], [0], [0], [1], [0, 0, 1, 1], [], []>} : vector<16x96xf32>, vector<96x12xf32>, vector<16x12xf32> -> vector<16x12xf32>
    %c1000 = arith.constant 1000 : index
    %c0_238 = arith.constant 0 : index
    %930 = vector.load %arg1[%c1000, %c0_238] : memref<1008x384xf32, #tpu.memory_space<vmem>>, vector<1x12xf32>
    %931 = vector.broadcast %930 : vector<1x12xf32> to vector<16x12xf32>
    %932 = arith.addf %929, %931 : vector<16x12xf32>
    %c0_239 = arith.constant 0 : index
    %c0_240 = arith.constant 0 : index
    %933 = vector.load %arg2[%c0_239, %c0_240] : memref<16x12xf32, #tpu.memory_space<vmem>>, vector<16x12xf32>
    tpu.vector_store %arg2[%c0_239, %c0_240], %932 {strides = array<i32>} : memref<16x12xf32, #tpu.memory_space<vmem>>, vector<16x12xf32>,
    return
  }
}

</mosaic_0001>

<llo_original>
// kernel: tpu_custom_call.1
$region0: #{tpu_custom_call.1}
  #allocation0 [shape = 'u32[]', space=smem, size = 0x4, offset = 0x4, fixed_abs, tag = 'smem constant byte address 0x4 - core index']
  #allocation1 [shape = 'u32[72,128]{1,0:T(1,128)}', space=vmem, size = 0x9000, scoped, tag = 'internal scratch']
  #allocation2 [shape = 'f32[16,96]{1,0:T(8,128)}', space=vmem, size = 0x2000, scoped, tag = 'scratch operand']
  %s0 = inlined_call_operand.hbm [shape: f32[16,12], index: 0, kind: input, shape index: {}]
  %s1 = inlined_call_operand.hbm [shape: f32[1008,384], index: 1, kind: input, shape index: {}]
  %s2 = inlined_call_operand.hbm [shape: f32[16,12], index: 2, kind: output, shape index: {0}]
  %s3 = inlined_call_operand.hbm [shape: f32[2,4], index: 3, kind: output, shape index: {1}]
  %s4 = inlined_call_operand.hbm [shape: f32[1], index: 4, kind: output, shape index: {2}]
  %5 = xla_tuple %s2, %s3, %s4
  %s6 = sld [smem:[#allocation0]]
  $region42: #{tpu_custom_call.1} parent=0
    _
  %s8 = ssub.s32 1, %s6
  %s9 = scalar_select 0, %s8, %s6
  $region1: #{tpu_custom_call.1} parent=0
    #allocation3 [shape = 'u8[8192]{0}', space=vmem, size = 0x2000, scoped, tag = 'input window, operand 0, single buffered']
    #allocation4 [shape = 's32[1]{0}', space=sflag, size = 0x4, scoped, tag = 'scoped memory for tpu_custom_call.1']
    #allocation5 [shape = 's32[1]{0}', space=sflag, size = 0x4, scoped, tag = 'scoped memory for tpu_custom_call.1']
    #allocation6 [shape = 's32[1]{0}', space=sflag, size = 0x4, scoped, tag = 'scoped memory for tpu_custom_call.1']
    #allocation7 [shape = 'u8[1548288]{0}', space=vmem, size = 0x17a000, scoped, tag = 'input window, operand 1, single buffered']
    #allocation8 [shape = 's32[1]{0}', space=sflag, size = 0x4, scoped, tag = 'scoped memory for tpu_custom_call.1']
    #allocation9 [shape = 'u8[8192]{0}', space=vmem, size = 0x2000, scoped, tag = 'output window, operand 0, single buffered']
    #allocation10 [shape = 'u8[1024]{0}', space=vmem, size = 0x400, scoped, tag = 'output window, operand 1, single buffered']
    #allocation11 [shape = 's32[1]{0}', space=sflag, size = 0x4, scoped, tag = 'scoped memory for tpu_custom_call.1']
    #allocation12 [shape = 'u8[512]{0}', space=smem, size = 0x200, scoped, tag = 'output window, operand 2, single buffered']
    %10 = vsyncpa [#allocation4], 0
    %11 = vsyncpa [#allocation8], 0
    %12 = vsyncpa [#allocation5], 0
    %13 = vsyncpa [#allocation11], 0
    %14 = vsyncpa [#allocation6], 0
    // Predicated region
    $region2: #{tpu_custom_call.1} parent=1 // pred_check
      _
    $region3: #{tpu_custom_call.1} parent=1 // pred_check_branch
      %16 = sbr.rel (0) target = $region5
    $region4: #{tpu_custom_call.1} parent=1 // pred_region
      %18 = vsyncadd [#allocation4], 0
      %s19 = sshll.u32 %s0, 4
      %s20 = int_to_ptr.hbm [resolvable:$true] %s19
      %s21 = sshll.u32 [#allocation3], 4
      %s22 = int_to_ptr.vmem [resolvable:$true] %s21
      %27 = dma.hbm_to_vmem [thread:$0]  %s20, 256, %s22, [#allocation4], 128, 128, 8
    $region5: #{tpu_custom_call.1} parent=1 // pred_fallthru
      _
    // Predicated region
    $region6: #{tpu_custom_call.1} parent=1 // pred_check
      _
    $region7: #{tpu_custom_call.1} parent=1 // pred_check_branch
      %29 = sbr.rel (0) target = $region9
    $region8: #{tpu_custom_call.1} parent=1 // pred_region
      %31 = vsyncadd [#allocation8], 0
      %s32 = sshll.u32 %s1, 4
      %s33 = int_to_ptr.hbm [resolvable:$true] %s32
      %s34 = sshll.u32 [#allocation7], 4
      %s35 = int_to_ptr.vmem [resolvable:$true] %s34
      %40 = dma.hbm_to_vmem [thread:$0]  %s33, 48384, %s35, [#allocation8], 384, 384, 24
    $region9: #{tpu_custom_call.1} parent=1 // pred_fallthru
      _
    // Predicated region
    $region10: #{tpu_custom_call.1} parent=1 // pred_check
      _
    $region11: #{tpu_custom_call.1} parent=1 // pred_check_branch
      %42 = sbr.rel (0) target = $region13
    $region12: #{tpu_custom_call.1} parent=1 // pred_region
      %44 = dma.done [#allocation4], 256
    $region13: #{tpu_custom_call.1} parent=1 // pred_fallthru
      _
    // Predicated region
    $region14: #{tpu_custom_call.1} parent=1 // pred_check
      _
    $region15: #{tpu_custom_call.1} parent=1 // pred_check_branch
      %46 = sbr.rel (0) target = $region17
    $region16: #{tpu_custom_call.1} parent=1 // pred_region
      %48 = dma.done [#allocation8], 48384
    $region17: #{tpu_custom_call.1} parent=1 // pred_fallthru
      _
    %v49 = vld [vmem:[#allocation7 + $0x30] sm:$0xff]
    %v50 = vld [vmem:[#allocation7 + $0x38] sm:$0xff]
    %v51 = vld [vmem:[#allocation7 + $0x40] sm:$0xff]
    %v52 = vld [vmem:[#allocation7 + $0x48] sm:$0xff]
    %v53 = vld [vmem:[#allocation7 + $0x50] sm:$0xff]
    %v54 = vld [vmem:[#allocation7 + $0x58] sm:$0xff]
    %v55 = vld [vmem:[#allocation7 + $0x60] sm:$0xff]
    %v56 = vld [vmem:[#allocation7 + $0x68] sm:$0xff]
    %v57 = vld [vmem:[#allocation7 + $0x70] sm:$0xff]
    %v58 = vld [vmem:[#allocation7 + $0x78] sm:$0xff]
    %v59 = vld [vmem:[#allocation7 + $0x80] sm:$0xff]
    %v60 = vld [vmem:[#allocation7 + $0x88] sm:$0xff]
    %v61 = vld [vmem:[#allocation7 + $0x90] sm:$0xff]
    %v62 = vld [vmem:[#allocation7 + $0x98] sm:$0xff]
    %v63 = vld [vmem:[#allocation7 + $0xa0] sm:$0xff]
    %v64 = vld [vmem:[#allocation7 + $0xa8] sm:$0xff]
    %v65 = vld [vmem:[#allocation7 + $0xb0] sm:$0xff]
    %v66 = vld [vmem:[#allocation7 + $0xb8] sm:$0xff]
    %v67 = vld [vmem:[#allocation7 + $0xc0] sm:$0xff]
    %v68 = vld [vmem:[#allocation7 + $0xc8] sm:$0xff]
    %v69 = vld [vmem:[#allocation7 + $0xd0] sm:$0xff]
    %v70 = vld [vmem:[#allocation7 + $0xd8] sm:$0xff]
    %v71 = vld [vmem:[#allocation7 + $0xe0] sm:$0xff]
    %v72 = vld [vmem:[#allocation7 + $0xe8] sm:$0xff]
    %v73 = vld [vmem:[#allocation7 + $0xf0] sm:$0xff]
    %v74 = vld [vmem:[#allocation7 + $0xf8] sm:$0xff]
    %v75 = vld [vmem:[#allocation7 + $0x100] sm:$0xff]
    %v76 = vld [vmem:[#allocation7 + $0x120] sm:$0xff]
    %v77 = vld [vmem:[#allocation7 + $0x138] sm:$0xff]
    %v78 = vld [vmem:[#allocation7 + $0x150] sm:$0xff]
    %v79 = vld [vmem:[#allocation7 + $0x168] sm:$0xff]
    %v80 = vld [vmem:[#allocation7 + $0x180] sm:$0xff]
    %v81 = vld [vmem:[#allocation7 + $0x198] sm:$0xff]
    %v82 = vld [vmem:[#allocation7 + $0x1c8] sm:$0xff]
    %v83 = vld [vmem:[#allocation7 + $0x1e0] sm:$0xff]
    %v84 = vld [vmem:[#allocation7 + $0x210] sm:$0xff]
    %v85 = vld [vmem:[#allocation7 + $0x228] sm:$0xff]
    %v86 = vld [vmem:[#allocation7 + $0x240] sm:$0xff]
    %v87 = vld [vmem:[#allocation7 + $0x258] sm:$0xff]
    %v88 = vld [vmem:[#allocation7 + $0x270] sm:$0xff]
    %v89 = vld [vmem:[#allocation7 + $0x288] sm:$0xff]
    %v90 = vld [vmem:[#allocation7 + $0x2b8] sm:$0xff]
    %v91 = vld [vmem:[#allocation7 + $0x2d0] sm:$0xff]
    %v92 = vld [vmem:[#allocation7 + $0x300] sm:$0xff]
    %v93 = vld [vmem:[#allocation7 + $0x318] sm:$0xff]
    %v94 = vld [vmem:[#allocation7 + $0x330] sm:$0xff]
    %v95 = vld [vmem:[#allocation7 + $0x348] sm:$0xff]
    %v96 = vld [vmem:[#allocation7 + $0x360] sm:$0xff]
    %v97 = vld [vmem:[#allocation7 + $0x378] sm:$0xff]
    %v98 = vld [vmem:[#allocation7 + $0x390] sm:$0xff]
    %v99 = vld [vmem:[#allocation7 + $0x3c0] sm:$0xff]
    %v100 = vld [vmem:[#allocation7 + $0x3d8] sm:$0xff]
    %v101 = vld [vmem:[#allocation7 + $0x3f0] sm:$0xff]
    %v102 = vld [vmem:[#allocation7 + $0x408] sm:$0xff]
    %v103 = vld [vmem:[#allocation7 + $0x1b0] ss:$0 sm:$0xff]
    %v104 = vld [vmem:[#allocation7 + $0x1f8] ss:$0 sm:$0xff]
    %v105 = vld [vmem:[#allocation7 + $0x2a0] ss:$0 sm:$0xff]
    %v106 = vld [vmem:[#allocation7 + $0x2e8] ss:$0 sm:$0xff]
    %v107 = vld [vmem:[#allocation7 + $0x3a8] ss:$0 sm:$0xff]
    %v108 = vld [vmem:[#allocation7 + $0x420] ss:$0 sm:$0xff]
    %v109 = vld [vmem:[#allocation3] sm:$0xff]
    %v110 = vld [vmem:[#allocation3 + $0x8] sm:$0xff]
    %v111 = vld [vmem:[#allocation7] sm:$0xff]
    %v112 = vld [vmem:[#allocation7 + $0x8] sm:$0xff]
    %v113 = vld [vmem:[#allocation7 + $0x10] sm:$0xff]
    %v114 = vld [vmem:[#allocation7 + $0x18] sm:$0xf]
    %v115 = vld [vmem:[#allocation7 + $0x20] sm:$0xf]
    %v116 = vld [vmem:[#allocation7 + $0x28] sm:$0xf]
    %s117 = scalar_lea.vmem [#allocation7], 264
    %v118 = vld [vmem:[%s117] ss:$8 sm:$0x7]
    %v120 = vperm.slane %v118, 0
    %v121 = vperm.slane %v118, 1
    %v122 = vperm.slane %v118, 2
    %vm126 = vcmask 97280
    %v128 = vsel %vm126, %v109, 0
    %v131 = vsel %vm126, %v110, 0
    %vm133 = vcmask 1043456
    %v135 = vsel %vm133, %v114, 0
    %v138 = vsel %vm133, %v115, 0
    %v141 = vsel %vm133, %v116, 0
    %143 = vmatpush.msra.mxu0 0.0
    %144 = vmatpush.msra.mxu0 0.0
    %145 = vmatpush.msra.mxu0 0.0
    %146 = vmatpush.msra.mxu0 0.0
    %147 = vmatpush.msra.mxu0 0.0
    %148 = vmatpush.msra.mxu0 0.0
    %149 = vmatpush.msra.mxu0 0.0
    %150 = vmatpush.msra.mxu0 0.0
    %151 = vmatpush.msra.mxu0 0.0
    %152 = vmatpush.msra.mxu0 0.0
    %153 = vmatpush.msra.mxu0 0.0
    %154 = vmatpush.msra.mxu0 0.0
    %155 = vmatpush.msra.mxu0 0.0
    %156 = vmatpush.msra.mxu0 0.0
    %157 = vmatpush.msra.mxu0 %v135
    %158 = vmatpush.msra.mxu0 %v111
    %159 = vmatmul.f32.gmra.mxu0 %v128
    %v160 = vpop.f32.mrf.mxu0
    %v161 = vadd.f32 %v120, %v160
    %162 = vmatmul.f32.gmra.mxu0 %v131
    %v163 = vpop.f32.mrf.mxu0
    %v164 = vadd.f32 %v120, %v163
    %165 = vdwg.mxu0
    %166 = vmatpush.msra.mxu0 0.0
    %167 = vmatpush.msra.mxu0 0.0
    %168 = vmatpush.msra.mxu0 0.0
    %169 = vmatpush.msra.mxu0 0.0
    %170 = vmatpush.msra.mxu0 0.0
    %171 = vmatpush.msra.mxu0 0.0
    %172 = vmatpush.msra.mxu0 0.0
    %173 = vmatpush.msra.mxu0 0.0
    %174 = vmatpush.msra.mxu0 0.0
    %175 = vmatpush.msra.mxu0 0.0
    %176 = vmatpush.msra.mxu0 0.0
    %177 = vmatpush.msra.mxu0 0.0
    %178 = vmatpush.msra.mxu0 0.0
    %179 = vmatpush.msra.mxu0 0.0
    %180 = vmatpush.msra.mxu0 %v138
    %181 = vmatpush.msra.mxu0 %v112
    %182 = vmatmul.f32.gmra.mxu0 %v128
    %v183 = vpop.f32.mrf.mxu0
    %v184 = vadd.f32 %v121, %v183
    %185 = vmatmul.f32.gmra.mxu0 %v131
    %v186 = vpop.f32.mrf.mxu0
    %v187 = vadd.f32 %v121, %v186
    %188 = vdwg.mxu0
    %189 = vmatpush.msra.mxu0 0.0
    %190 = vmatpush.msra.mxu0 0.0
    %191 = vmatpush.msra.mxu0 0.0
    %192 = vmatpush.msra.mxu0 0.0
    %193 = vmatpush.msra.mxu0 0.0
    %194 = vmatpush.msra.mxu0 0.0
    %195 = vmatpush.msra.mxu0 0.0
    %196 = vmatpush.msra.mxu0 0.0
    %197 = vmatpush.msra.mxu0 0.0
    %198 = vmatpush.msra.mxu0 0.0
    %199 = vmatpush.msra.mxu0 0.0
    %200 = vmatpush.msra.mxu0 0.0
    %201 = vmatpush.msra.mxu0 0.0
    %202 = vmatpush.msra.mxu0 0.0
    %203 = vmatpush.msra.mxu0 %v141
    %204 = vmatpush.msra.mxu0 %v113
    %205 = vmatmul.f32.gmra.mxu0 %v128
    %v206 = vpop.f32.mrf.mxu0
    %v207 = vadd.f32 %v122, %v206
    %208 = vmatmul.f32.gmra.mxu0 %v131
    %v209 = vpop.f32.mrf.mxu0
    %v210 = vadd.f32 %v122, %v209
    %211 = vdwg.mxu0
    %vm212 = vcmask 588800
    %v214 = vsel %vm212, 0.0, 0
    %216 = vmatpush.msra.mxu0 0.0
    %217 = vmatpush.msra.mxu0 0.0
    %218 = vmatpush.msra.mxu0 0.0
    %219 = vmatpush.msra.mxu0 0.0
    %220 = vmatpush.msra.mxu0 0.0
    %221 = vmatpush.msra.mxu0 0.0
    %222 = vmatpush.msra.mxu0 0.0
    %223 = vmatpush.msra.mxu0 %v73
    %224 = vmatpush.msra.mxu0 %v70
    %225 = vmatpush.msra.mxu0 %v67
    %226 = vmatpush.msra.mxu0 %v64
    %227 = vmatpush.msra.mxu0 %v61
    %228 = vmatpush.msra.mxu0 %v58
    %229 = vmatpush.msra.mxu0 %v55
    %230 = vmatpush.msra.mxu0 %v52
    %231 = vmatpush.msra.mxu0 %v49
    %232 = vmatmul.f32.gmra.mxu0 %v214
    %v233 = vpop.f32.mrf.mxu0
    %v234 = vadd.f32 0.0, %v233
    %235 = vdwg.mxu0
    %236 = vmatpush.msra.mxu0 0.0
    %237 = vmatpush.msra.mxu0 0.0
    %238 = vmatpush.msra.mxu0 0.0
    %239 = vmatpush.msra.mxu0 0.0
    %240 = vmatpush.msra.mxu0 0.0
    %241 = vmatpush.msra.mxu0 0.0
    %242 = vmatpush.msra.mxu0 0.0
    %243 = vmatpush.msra.mxu0 %v74
    %244 = vmatpush.msra.mxu0 %v71
    %245 = vmatpush.msra.mxu0 %v68
    %246 = vmatpush.msra.mxu0 %v65
    %247 = vmatpush.msra.mxu0 %v62
    %248 = vmatpush.msra.mxu0 %v59
    %249 = vmatpush.msra.mxu0 %v56
    %250 = vmatpush.msra.mxu0 %v53
    %251 = vmatpush.msra.mxu0 %v50
    %252 = vmatmul.f32.gmra.mxu0 %v214
    %v253 = vpop.f32.mrf.mxu0
    %v254 = vadd.f32 0.0, %v253
    %255 = vdwg.mxu0
    %256 = vmatpush.msra.mxu0 0.0
    %257 = vmatpush.msra.mxu0 0.0
    %258 = vmatpush.msra.mxu0 0.0
    %259 = vmatpush.msra.mxu0 0.0
    %260 = vmatpush.msra.mxu0 0.0
    %261 = vmatpush.msra.mxu0 0.0
    %262 = vmatpush.msra.mxu0 0.0
    %263 = vmatpush.msra.mxu0 %v75
    %264 = vmatpush.msra.mxu0 %v72
    %265 = vmatpush.msra.mxu0 %v69
    %266 = vmatpush.msra.mxu0 %v66
    %267 = vmatpush.msra.mxu0 %v63
    %268 = vmatpush.msra.mxu0 %v60
    %269 = vmatpush.msra.mxu0 %v57
    %270 = vmatpush.msra.mxu0 %v54
    %271 = vmatpush.msra.mxu0 %v51
    %272 = vmatmul.f32.gmra.mxu0 %v214
    %v273 = vpop.f32.mrf.mxu0
    %v274 = vadd.f32 0.0, %v273
    %275 = vdwg.mxu0
    %v276 = vadd.f32 %v161, %v234
    %v277 = vadd.f32 %v184, %v254
    %v278 = vadd.f32 %v207, %v274
    %v279 = vxor.u32 %v276, 2147483648
    %v280 = vmul.f32 %v279, 1.442695
    %v281 = vpow.pop %v280
    %v282 = vadd.f32 %v281, 1.0
    %v283 = vrcp.pop %v282
    %v284 = vmul.f32 %v282, %v283
    %v285 = vsub.f32 1.0, %v284
    %v286 = vmul.f32 %v283, %v285
    %v287 = vadd.f32 %v283, %v286
    %vm288 = vweird.f32 %v282
    %vm289 = vweird.f32 %v283
    %vm290 = vmor %vm288, %vm289
    %v291 = vsel %vm290, %v283, %v287
    %v292 = vand.u32 2147483647, %v282
    %vm293 = vcmp.eq.f32.partialorder %v292, 8.507059e+37
    %v294 = vand.u32 %v282, 2147483648
    %v295 = vor.u32 1.1754944e-38, %v294
    %v296 = vsel %vm293, %v295, %v291
    %v297 = vmul.f32 1.0, %v296
    %v298 = vxor.u32 %v277, 2147483648
    %v299 = vmul.f32 %v298, 1.442695
    %v300 = vpow.pop %v299
    %v301 = vadd.f32 %v300, 1.0
    %v302 = vrcp.pop %v301
    %v303 = vmul.f32 %v301, %v302
    %v304 = vsub.f32 1.0, %v303
    %v305 = vmul.f32 %v302, %v304
    %v306 = vadd.f32 %v302, %v305
    %vm307 = vweird.f32 %v301
    %vm308 = vweird.f32 %v302
    %vm309 = vmor %vm307, %vm308
    %v310 = vsel %vm309, %v302, %v306
    %v311 = vand.u32 2147483647, %v301
    %vm312 = vcmp.eq.f32.partialorder %v311, 8.507059e+37
    %v313 = vand.u32 %v301, 2147483648
    %v314 = vor.u32 1.1754944e-38, %v313
    %v315 = vsel %vm312, %v314, %v310
    %v316 = vmul.f32 1.0, %v315
    %v317 = vtanh.pop %v277
    %v318 = vxor.u32 %v278, 2147483648
    %v319 = vmul.f32 %v318, 1.442695
    %v320 = vpow.pop %v319
    %v321 = vadd.f32 %v320, 1.0
    %v322 = vrcp.pop %v321
    %v323 = vmul.f32 %v321, %v322
    %v324 = vsub.f32 1.0, %v323
    %v325 = vmul.f32 %v322, %v324
    %v326 = vadd.f32 %v322, %v325
    %vm327 = vweird.f32 %v321
    %vm328 = vweird.f32 %v322
    %vm329 = vmor %vm327, %vm328
    %v330 = vsel %vm329, %v322, %v326
    %v331 = vand.u32 2147483647, %v321
    %vm332 = vcmp.eq.f32.partialorder %v331, 8.507059e+37
    %v333 = vand.u32 %v321, 2147483648
    %v334 = vor.u32 1.1754944e-38, %v333
    %v335 = vsel %vm332, %v334, %v330
    %v336 = vmul.f32 1.0, %v335
    %v337 = vmul.f32 %v297, 0.0
    %v338 = vmul.f32 %v316, 0.0
    %340 = vrot.lane.b32.xlu0 %v317, 112
    %v341 = vpop.permute.xlu0 %340
    %v343 = vmul.f32 %v297, %v341
    %345 = vrot.lane.b32.xlu0 %v343, 72
    %v346 = vpop.permute.xlu0 %345
    %v348 = vadd.f32 %v337, %v346
    %v349 = vadd.f32 %v338, %v346
    %v350 = vtanh.pop %v348
    %v351 = vtanh.pop %v349
    %354 = vrot.lane.b32.xlu0 %v350, 16
    %v355 = vpop.permute.xlu0 %354
    %356 = vrot.lane.b32.xlu0 %v351, 16
    %v357 = vpop.permute.xlu0 %356
    %vm358 = vcmask 130048
    %v359 = vsel %vm358, %v355, %v357
    %v362 = vmul.f32 %v316, %v355
    %v363 = vmul.f32 %v336, %v359
    %366 = vrot.lane.b32.xlu0 %v348, 32
    %v367 = vpop.permute.xlu0 %366
    %368 = vrot.lane.b32.xlu0 %v349, 32
    %v369 = vpop.permute.xlu0 %368
    %vm370 = vcmask 261120
    %v371 = vsel %vm370, %v367, %v369
    %vm373 = vcmask 195584
    %v374 = vsel %vm373, 0.0, %v371
    %vm375 = vcmask 392192
    %v377 = vsel %vm375, %v374, 0
    %379 = vmatpush.msra.mxu0 0.0
    %380 = vmatpush.msra.mxu0 0.0
    %381 = vmatpush.msra.mxu0 0.0
    %382 = vmatpush.msra.mxu0 0.0
    %383 = vmatpush.msra.mxu0 0.0
    %384 = vmatpush.msra.mxu0 0.0
    %385 = vmatpush.msra.mxu0 0.0
    %386 = vmatpush.msra.mxu0 0.0
    %387 = vmatpush.msra.mxu0 0.0
    %388 = vmatpush.msra.mxu0 0.0
    %389 = vmatpush.msra.mxu0 %v81
    %390 = vmatpush.msra.mxu0 %v80
    %391 = vmatpush.msra.mxu0 %v79
    %392 = vmatpush.msra.mxu0 %v78
    %393 = vmatpush.msra.mxu0 %v77
    %394 = vmatpush.msra.mxu0 %v76
    %395 = vmatmul.f32.gmra.mxu0 %v377
    %v396 = vpop.f32.mrf.mxu0
    %v397 = vadd.f32 %v103, %v396
    %398 = vdwg.mxu0
    %v399 = vmax.f32 %v397, 0.0
    %v401 = vsel %vm358, %v399, 0
    %403 = vmatpush.msra.mxu0 0.0
    %404 = vmatpush.msra.mxu0 0.0
    %405 = vmatpush.msra.mxu0 0.0
    %406 = vmatpush.msra.mxu0 0.0
    %407 = vmatpush.msra.mxu0 0.0
    %408 = vmatpush.msra.mxu0 0.0
    %409 = vmatpush.msra.mxu0 0.0
    %410 = vmatpush.msra.mxu0 0.0
    %411 = vmatpush.msra.mxu0 0.0
    %412 = vmatpush.msra.mxu0 0.0
    %413 = vmatpush.msra.mxu0 0.0
    %414 = vmatpush.msra.mxu0 0.0
    %415 = vmatpush.msra.mxu0 0.0
    %416 = vmatpush.msra.mxu0 0.0
    %417 = vmatpush.msra.mxu0 %v83
    %418 = vmatpush.msra.mxu0 %v82
    %419 = vmatmul.f32.gmra.mxu0 %v401
    %v420 = vpop.f32.mrf.mxu0
    %v421 = vadd.f32 %v104, %v420
    %422 = vdwg.mxu0
    %vm423 = vcmask 386048
    %v424 = vsel %vm423, %v421, -inf
    %425 = vmax.xlane.f32.xlu0 %v424
    %v426 = vpop.xlane.xlu0 %425
    %v427 = vsub.f32 %v421, %v426
    %v428 = vmul.f32 %v427, 1.442695
    %v429 = vpow.pop %v428
    %v430 = vsel %vm423, %v429, 0.0
    %431 = vadd.xlane.f32.xlu0 %v430
    %v432 = vpop.xlane.xlu0 %431
    %v433 = vrcp.pop %v432
    %v434 = vmul.f32 %v432, %v433
    %v435 = vsub.f32 1.0, %v434
    %v436 = vmul.f32 %v433, %v435
    %v437 = vadd.f32 %v433, %v436
    %vm438 = vweird.f32 %v432
    %vm439 = vweird.f32 %v433
    %vm440 = vmor %vm438, %vm439
    %v441 = vsel %vm440, %v433, %v437
    %v442 = vand.u32 2147483647, %v432
    %vm443 = vcmp.eq.f32.partialorder %v442, 8.507059e+37
    %v444 = vand.u32 %v432, 2147483648
    %v445 = vor.u32 1.1754944e-38, %v444
    %v446 = vsel %vm443, %v445, %v441
    %v447 = vmul.f32 %v429, %v446
    %v448 = vmul.f32 %v447, %v374
    %v450 = vsel %vm375, %v448, 0
    %452 = vmatpush.msra.mxu0 0.0
    %453 = vmatpush.msra.mxu0 0.0
    %454 = vmatpush.msra.mxu0 0.0
    %455 = vmatpush.msra.mxu0 0.0
    %456 = vmatpush.msra.mxu0 0.0
    %457 = vmatpush.msra.mxu0 0.0
    %458 = vmatpush.msra.mxu0 0.0
    %459 = vmatpush.msra.mxu0 0.0
    %460 = vmatpush.msra.mxu0 0.0
    %461 = vmatpush.msra.mxu0 0.0
    %462 = vmatpush.msra.mxu0 %v89
    %463 = vmatpush.msra.mxu0 %v88
    %464 = vmatpush.msra.mxu0 %v87
    %465 = vmatpush.msra.mxu0 %v86
    %466 = vmatpush.msra.mxu0 %v85
    %467 = vmatpush.msra.mxu0 %v84
    %468 = vmatmul.f32.gmra.mxu0 %v450
    %v469 = vpop.f32.mrf.mxu0
    %v470 = vadd.f32 %v105, %v469
    %471 = vdwg.mxu0
    %v472 = vmax.f32 %v470, 0.0
    %v474 = vsel %vm358, %v472, 0
    %476 = vmatpush.msra.mxu0 0.0
    %477 = vmatpush.msra.mxu0 0.0
    %478 = vmatpush.msra.mxu0 0.0
    %479 = vmatpush.msra.mxu0 0.0
    %480 = vmatpush.msra.mxu0 0.0
    %481 = vmatpush.msra.mxu0 0.0
    %482 = vmatpush.msra.mxu0 0.0
    %483 = vmatpush.msra.mxu0 0.0
    %484 = vmatpush.msra.mxu0 0.0
    %485 = vmatpush.msra.mxu0 0.0
    %486 = vmatpush.msra.mxu0 0.0
    %487 = vmatpush.msra.mxu0 0.0
    %488 = vmatpush.msra.mxu0 0.0
    %489 = vmatpush.msra.mxu0 0.0
    %490 = vmatpush.msra.mxu0 %v91
    %491 = vmatpush.msra.mxu0 %v90
    %492 = vmatmul.f32.gmra.mxu0 %v474
    %v493 = vpop.f32.mrf.mxu0
    %v494 = vadd.f32 %v106, %v493
    %495 = vdwg.mxu0
    %v496 = vtanh.pop %v494
    %v497 = vsel %vm375, %v448, 0.0
    %vm498 = vcmask 457728
    %v500 = vsel %vm498, %v497, 0
    %502 = vmatpush.msra.mxu0 0.0
    %503 = vmatpush.msra.mxu0 0.0
    %504 = vmatpush.msra.mxu0 0.0
    %505 = vmatpush.msra.mxu0 0.0
    %506 = vmatpush.msra.mxu0 0.0
    %507 = vmatpush.msra.mxu0 0.0
    %508 = vmatpush.msra.mxu0 0.0
    %509 = vmatpush.msra.mxu0 0.0
    %510 = vmatpush.msra.mxu0 0.0
    %511 = vmatpush.msra.mxu0 %v98
    %512 = vmatpush.msra.mxu0 %v97
    %513 = vmatpush.msra.mxu0 %v96
    %514 = vmatpush.msra.mxu0 %v95
    %515 = vmatpush.msra.mxu0 %v94
    %516 = vmatpush.msra.mxu0 %v93
    %517 = vmatpush.msra.mxu0 %v92
    %518 = vmatmul.f32.gmra.mxu0 %v500
    %v519 = vpop.f32.mrf.mxu0
    %v520 = vadd.f32 %v107, %v519
    %521 = vdwg.mxu0
    %v522 = vmax.f32 %v520, 0.0
    %v524 = vsel %vm370, %v522, 0
    %526 = vmatpush.msra.mxu0 0.0
    %527 = vmatpush.msra.mxu0 0.0
    %528 = vmatpush.msra.mxu0 0.0
    %529 = vmatpush.msra.mxu0 0.0
    %530 = vmatpush.msra.mxu0 0.0
    %531 = vmatpush.msra.mxu0 0.0
    %532 = vmatpush.msra.mxu0 0.0
    %533 = vmatpush.msra.mxu0 0.0
    %534 = vmatpush.msra.mxu0 0.0
    %535 = vmatpush.msra.mxu0 0.0
    %536 = vmatpush.msra.mxu0 0.0
    %537 = vmatpush.msra.mxu0 0.0
    %538 = vmatpush.msra.mxu0 %v102
    %539 = vmatpush.msra.mxu0 %v101
    %540 = vmatpush.msra.mxu0 %v100
    %541 = vmatpush.msra.mxu0 %v99
    %542 = vmatmul.f32.gmra.mxu0 %v524
    %v543 = vpop.f32.mrf.mxu0
    %v544 = vadd.f32 %v108, %v543
    %545 = vdwg.mxu0
    %v546 = vxor.u32 %v544, 2147483648
    %v547 = vmul.f32 %v546, 1.442695
    %v548 = vpow.pop %v547
    %v549 = vadd.f32 %v548, 1.0
    %v550 = vrcp.pop %v549
    %v551 = vmul.f32 %v549, %v550
    %v552 = vsub.f32 1.0, %v551
    %v553 = vmul.f32 %v550, %v552
    %v554 = vadd.f32 %v550, %v553
    %vm555 = vweird.f32 %v549
    %vm556 = vweird.f32 %v550
    %vm557 = vmor %vm555, %vm556
    %v558 = vsel %vm557, %v550, %v554
    %v559 = vand.u32 2147483647, %v549
    %vm560 = vcmp.eq.f32.partialorder %v559, 8.507059e+37
    %v561 = vand.u32 %v549, 2147483648
    %v562 = vor.u32 1.1754944e-38, %v561
    %v563 = vsel %vm560, %v562, %v558
    %v564 = vmul.f32 1.0, %v563
    %v565 = vmul.f32 %v564, 0.0
    %567 = vrot.lane.b32.xlu0 %v496, 8
    %v568 = vpop.permute.xlu0 %567
    %v570 = vmul.f32 %v564, %v568
    %572 = vrot.lane.b32.xlu0 %v570, 120
    %v573 = vpop.permute.xlu0 %572
    %v575 = vadd.f32 %v565, %v573
    %578 = vrot.lane.b32.xlu0 %v362, 40
    %v579 = vpop.permute.xlu0 %578
    %580 = vrot.lane.b32.xlu0 %v363, 40
    %v581 = vpop.permute.xlu0 %580
    %vm582 = vcmask 326656
    %v583 = vsel %vm582, %v579, %v581
    %v584 = vsel %vm212, %v583, 0
    %586 = vmatpush.msra.mxu0 0.0
    %587 = vmatpush.msra.mxu0 0.0
    %588 = vmatpush.msra.mxu0 0.0
    %589 = vmatpush.msra.mxu0 0.0
    %590 = vmatpush.msra.mxu0 0.0
    %591 = vmatpush.msra.mxu0 0.0
    %592 = vmatpush.msra.mxu0 0.0
    %593 = vmatpush.msra.mxu0 %v73
    %594 = vmatpush.msra.mxu0 %v70
    %595 = vmatpush.msra.mxu0 %v67
    %596 = vmatpush.msra.mxu0 %v64
    %597 = vmatpush.msra.mxu0 %v61
    %598 = vmatpush.msra.mxu0 %v58
    %599 = vmatpush.msra.mxu0 %v55
    %600 = vmatpush.msra.mxu0 %v52
    %601 = vmatpush.msra.mxu0 %v49
    %602 = vmatmul.f32.gmra.mxu0 %v584
    %v603 = vpop.f32.mrf.mxu0
    %v604 = vadd.f32 0.0, %v603
    %605 = vdwg.mxu0
    %606 = vmatpush.msra.mxu0 0.0
    %607 = vmatpush.msra.mxu0 0.0
    %608 = vmatpush.msra.mxu0 0.0
    %609 = vmatpush.msra.mxu0 0.0
    %610 = vmatpush.msra.mxu0 0.0
    %611 = vmatpush.msra.mxu0 0.0
    %612 = vmatpush.msra.mxu0 0.0
    %613 = vmatpush.msra.mxu0 %v74
    %614 = vmatpush.msra.mxu0 %v71
    %615 = vmatpush.msra.mxu0 %v68
    %616 = vmatpush.msra.mxu0 %v65
    %617 = vmatpush.msra.mxu0 %v62
    %618 = vmatpush.msra.mxu0 %v59
    %619 = vmatpush.msra.mxu0 %v56
    %620 = vmatpush.msra.mxu0 %v53
    %621 = vmatpush.msra.mxu0 %v50
    %622 = vmatmul.f32.gmra.mxu0 %v584
    %v623 = vpop.f32.mrf.mxu0
    %v624 = vadd.f32 0.0, %v623
    %625 = vdwg.mxu0
    %626 = vmatpush.msra.mxu0 0.0
    %627 = vmatpush.msra.mxu0 0.0
    %628 = vmatpush.msra.mxu0 0.0
    %629 = vmatpush.msra.mxu0 0.0
    %630 = vmatpush.msra.mxu0 0.0
    %631 = vmatpush.msra.mxu0 0.0
    %632 = vmatpush.msra.mxu0 0.0
    %633 = vmatpush.msra.mxu0 %v75
    %634 = vmatpush.msra.mxu0 %v72
    %635 = vmatpush.msra.mxu0 %v69
    %636 = vmatpush.msra.mxu0 %v66
    %637 = vmatpush.msra.mxu0 %v63
    %638 = vmatpush.msra.mxu0 %v60
    %639 = vmatpush.msra.mxu0 %v57
    %640 = vmatpush.msra.mxu0 %v54
    %641 = vmatpush.msra.mxu0 %v51
    %642 = vmatmul.f32.gmra.mxu0 %v584
    %v643 = vpop.f32.mrf.mxu0
    %v644 = vadd.f32 0.0, %v643
    %645 = vdwg.mxu0
    %v649 = vrot.slane %v604, 6
    %v650 = vrot.slane %v624, 6
    %v651 = vrot.slane %v644, 6
    %v655 = vadd.f32 %v161, %v649
    %v656 = vadd.f32 %v184, %v650
    %v657 = vadd.f32 %v207, %v651
    %v658 = vxor.u32 %v655, 2147483648
    %v659 = vmul.f32 %v658, 1.442695
    %v660 = vpow.pop %v659
    %v661 = vadd.f32 %v660, 1.0
    %v662 = vrcp.pop %v661
    %v663 = vmul.f32 %v661, %v662
    %v664 = vsub.f32 1.0, %v663
    %v665 = vmul.f32 %v662, %v664
    %v666 = vadd.f32 %v662, %v665
    %vm667 = vweird.f32 %v661
    %vm668 = vweird.f32 %v662
    %vm669 = vmor %vm667, %vm668
    %v670 = vsel %vm669, %v662, %v666
    %v671 = vand.u32 2147483647, %v661
    %vm672 = vcmp.eq.f32.partialorder %v671, 8.507059e+37
    %v673 = vand.u32 %v661, 2147483648
    %v674 = vor.u32 1.1754944e-38, %v673
    %v675 = vsel %vm672, %v674, %v670
    %v676 = vmul.f32 1.0, %v675
    %v677 = vxor.u32 %v656, 2147483648
    %v678 = vmul.f32 %v677, 1.442695
    %v679 = vpow.pop %v678
    %v680 = vadd.f32 %v679, 1.0
    %v681 = vrcp.pop %v680
    %v682 = vmul.f32 %v680, %v681
    %v683 = vsub.f32 1.0, %v682
    %v684 = vmul.f32 %v681, %v683
    %v685 = vadd.f32 %v681, %v684
    %vm686 = vweird.f32 %v680
    %vm687 = vweird.f32 %v681
    %vm688 = vmor %vm686, %vm687
    %v689 = vsel %vm688, %v681, %v685
    %v690 = vand.u32 2147483647, %v680
    %vm691 = vcmp.eq.f32.partialorder %v690, 8.507059e+37
    %v692 = vand.u32 %v680, 2147483648
    %v693 = vor.u32 1.1754944e-38, %v692
    %v694 = vsel %vm691, %v693, %v689
    %v695 = vmul.f32 1.0, %v694
    %v696 = vtanh.pop %v656
    %v697 = vxor.u32 %v657, 2147483648
    %v698 = vmul.f32 %v697, 1.442695
    %v699 = vpow.pop %v698
    %v700 = vadd.f32 %v699, 1.0
    %v701 = vrcp.pop %v700
    %v702 = vmul.f32 %v700, %v701
    %v703 = vsub.f32 1.0, %v702
    %v704 = vmul.f32 %v701, %v703
    %v705 = vadd.f32 %v701, %v704
    %vm706 = vweird.f32 %v700
    %vm707 = vweird.f32 %v701
    %vm708 = vmor %vm706, %vm707
    %v709 = vsel %vm708, %v701, %v705
    %v710 = vand.u32 2147483647, %v700
    %vm711 = vcmp.eq.f32.partialorder %v710, 8.507059e+37
    %v712 = vand.u32 %v700, 2147483648
    %v713 = vor.u32 1.1754944e-38, %v712
    %v714 = vsel %vm711, %v713, %v709
    %v715 = vmul.f32 1.0, %v714
    %v716 = vrot.slane %v348, 6
    %v717 = vrot.slane %v349, 6
    %v720 = vmul.f32 %v676, %v716
    %v721 = vmul.f32 %v695, %v717
    %723 = vrot.lane.b32.xlu0 %v696, 112
    %v724 = vpop.permute.xlu0 %723
    %v726 = vmul.f32 %v676, %v724
    %728 = vrot.lane.b32.xlu0 %v726, 72
    %v729 = vpop.permute.xlu0 %728
    %v731 = vadd.f32 %v720, %v729
    %v732 = vadd.f32 %v721, %v729
    %v733 = vtanh.pop %v731
    %v734 = vtanh.pop %v732
    %737 = vrot.lane.b32.xlu0 %v733, 16
    %v738 = vpop.permute.xlu0 %737
    %739 = vrot.lane.b32.xlu0 %v734, 16
    %v740 = vpop.permute.xlu0 %739
    %v741 = vsel %vm358, %v738, %v740
    %v744 = vmul.f32 %v695, %v738
    %v745 = vmul.f32 %v715, %v741
    %746 = vrot.lane.b32.xlu0 %v348, 8
    %v747 = vpop.permute.xlu0 %746
    %748 = vrot.lane.b32.xlu0 %v349, 8
    %v749 = vpop.permute.xlu0 %748
    %vm750 = vcmask 64512
    %v751 = vsel %vm750, %v747, %v749
    %v755 = vrot.slane %v731, 2
    %v756 = vrot.slane %v732, 2
    %757 = vrot.lane.b32.xlu0 %v755, 32
    %v758 = vpop.permute.xlu0 %757
    %759 = vrot.lane.b32.xlu0 %v756, 32
    %v760 = vpop.permute.xlu0 %759
    %v761 = vsel %vm370, %v758, %v760
    %v763 = vsel %vm373, %v751, %v761
    %v765 = vsel %vm375, %v763, 0
    %767 = vmatpush.msra.mxu0 0.0
    %768 = vmatpush.msra.mxu0 0.0
    %769 = vmatpush.msra.mxu0 0.0
    %770 = vmatpush.msra.mxu0 0.0
    %771 = vmatpush.msra.mxu0 0.0
    %772 = vmatpush.msra.mxu0 0.0
    %773 = vmatpush.msra.mxu0 0.0
    %774 = vmatpush.msra.mxu0 0.0
    %775 = vmatpush.msra.mxu0 0.0
    %776 = vmatpush.msra.mxu0 0.0
    %777 = vmatpush.msra.mxu0 %v81
    %778 = vmatpush.msra.mxu0 %v80
    %779 = vmatpush.msra.mxu0 %v79
    %780 = vmatpush.msra.mxu0 %v78
    %781 = vmatpush.msra.mxu0 %v77
    %782 = vmatpush.msra.mxu0 %v76
    %783 = vmatmul.f32.gmra.mxu0 %v765
    %v784 = vpop.f32.mrf.mxu0
    %v785 = vadd.f32 %v103, %v784
    %786 = vdwg.mxu0
    %v787 = vmax.f32 %v785, 0.0
    %v789 = vsel %vm358, %v787, 0
    %791 = vmatpush.msra.mxu0 0.0
    %792 = vmatpush.msra.mxu0 0.0
    %793 = vmatpush.msra.mxu0 0.0
    %794 = vmatpush.msra.mxu0 0.0
    %795 = vmatpush.msra.mxu0 0.0
    %796 = vmatpush.msra.mxu0 0.0
    %797 = vmatpush.msra.mxu0 0.0
    %798 = vmatpush.msra.mxu0 0.0
    %799 = vmatpush.msra.mxu0 0.0
    %800 = vmatpush.msra.mxu0 0.0
    %801 = vmatpush.msra.mxu0 0.0
    %802 = vmatpush.msra.mxu0 0.0
    %803 = vmatpush.msra.mxu0 0.0
    %804 = vmatpush.msra.mxu0 0.0
    %805 = vmatpush.msra.mxu0 %v83
    %806 = vmatpush.msra.mxu0 %v82
    %807 = vmatmul.f32.gmra.mxu0 %v789
    %v808 = vpop.f32.mrf.mxu0
    %v809 = vadd.f32 %v104, %v808
    %810 = vdwg.mxu0
    %v811 = vsel %vm423, %v809, -inf
    %812 = vmax.xlane.f32.xlu0 %v811
    %v813 = vpop.xlane.xlu0 %812
    %v814 = vsub.f32 %v809, %v813
    %v815 = vmul.f32 %v814, 1.442695
    %v816 = vpow.pop %v815
    %v817 = vsel %vm423, %v816, 0.0
    %818 = vadd.xlane.f32.xlu0 %v817
    %v819 = vpop.xlane.xlu0 %818
    %v820 = vrcp.pop %v819
    %v821 = vmul.f32 %v819, %v820
    %v822 = vsub.f32 1.0, %v821
    %v823 = vmul.f32 %v820, %v822
    %v824 = vadd.f32 %v820, %v823
    %vm825 = vweird.f32 %v819
    %vm826 = vweird.f32 %v820
    %vm827 = vmor %vm825, %vm826
    %v828 = vsel %vm827, %v820, %v824
    %v829 = vand.u32 2147483647, %v819
    %vm830 = vcmp.eq.f32.partialorder %v829, 8.507059e+37
    %v831 = vand.u32 %v819, 2147483648
    %v832 = vor.u32 1.1754944e-38, %v831
    %v833 = vsel %vm830, %v832, %v828
    %v834 = vmul.f32 %v816, %v833
    %v835 = vmul.f32 %v834, %v763
    %v837 = vsel %vm375, %v835, 0
    %839 = vmatpush.msra.mxu0 0.0
    %840 = vmatpush.msra.mxu0 0.0
    %841 = vmatpush.msra.mxu0 0.0
    %842 = vmatpush.msra.mxu0 0.0
    %843 = vmatpush.msra.mxu0 0.0
    %844 = vmatpush.msra.mxu0 0.0
    %845 = vmatpush.msra.mxu0 0.0
    %846 = vmatpush.msra.mxu0 0.0
    %847 = vmatpush.msra.mxu0 0.0
    %848 = vmatpush.msra.mxu0 0.0
    %849 = vmatpush.msra.mxu0 %v89
    %850 = vmatpush.msra.mxu0 %v88
    %851 = vmatpush.msra.mxu0 %v87
    %852 = vmatpush.msra.mxu0 %v86
    %853 = vmatpush.msra.mxu0 %v85
    %854 = vmatpush.msra.mxu0 %v84
    %855 = vmatmul.f32.gmra.mxu0 %v837
    %v856 = vpop.f32.mrf.mxu0
    %v857 = vadd.f32 %v105, %v856
    %858 = vdwg.mxu0
    %v859 = vmax.f32 %v857, 0.0
    %v861 = vsel %vm358, %v859, 0
    %863 = vmatpush.msra.mxu0 0.0
    %864 = vmatpush.msra.mxu0 0.0
    %865 = vmatpush.msra.mxu0 0.0
    %866 = vmatpush.msra.mxu0 0.0
    %867 = vmatpush.msra.mxu0 0.0
    %868 = vmatpush.msra.mxu0 0.0
    %869 = vmatpush.msra.mxu0 0.0
    %870 = vmatpush.msra.mxu0 0.0
    %871 = vmatpush.msra.mxu0 0.0
    %872 = vmatpush.msra.mxu0 0.0
    %873 = vmatpush.msra.mxu0 0.0
    %874 = vmatpush.msra.mxu0 0.0
    %875 = vmatpush.msra.mxu0 0.0
    %876 = vmatpush.msra.mxu0 0.0
    %877 = vmatpush.msra.mxu0 %v91
    %878 = vmatpush.msra.mxu0 %v90
    %879 = vmatmul.f32.gmra.mxu0 %v861
    %v880 = vpop.f32.mrf.mxu0
    %v881 = vadd.f32 %v106, %v880
    %882 = vdwg.mxu0
    %v883 = vtanh.pop %v881
    %885 = vrot.lane.b32.xlu0 %v575, 48
    %v886 = vpop.permute.xlu0 %885
    %v888 = vsel %vm375, %v835, %v886
    %v890 = vsel %vm498, %v888, 0
    %892 = vmatpush.msra.mxu0 0.0
    %893 = vmatpush.msra.mxu0 0.0
    %894 = vmatpush.msra.mxu0 0.0
    %895 = vmatpush.msra.mxu0 0.0
    %896 = vmatpush.msra.mxu0 0.0
    %897 = vmatpush.msra.mxu0 0.0
    %898 = vmatpush.msra.mxu0 0.0
    %899 = vmatpush.msra.mxu0 0.0
    %900 = vmatpush.msra.mxu0 0.0
    %901 = vmatpush.msra.mxu0 %v98
    %902 = vmatpush.msra.mxu0 %v97
    %903 = vmatpush.msra.mxu0 %v96
    %904 = vmatpush.msra.mxu0 %v95
    %905 = vmatpush.msra.mxu0 %v94
    %906 = vmatpush.msra.mxu0 %v93
    %907 = vmatpush.msra.mxu0 %v92
    %908 = vmatmul.f32.gmra.mxu0 %v890
    %v909 = vpop.f32.mrf.mxu0
    %v910 = vadd.f32 %v107, %v909
    %911 = vdwg.mxu0
    %v912 = vmax.f32 %v910, 0.0
    %v914 = vsel %vm370, %v912, 0
    %916 = vmatpush.msra.mxu0 0.0
    %917 = vmatpush.msra.mxu0 0.0
    %918 = vmatpush.msra.mxu0 0.0
    %919 = vmatpush.msra.mxu0 0.0
    %920 = vmatpush.msra.mxu0 0.0
    %921 = vmatpush.msra.mxu0 0.0
    %922 = vmatpush.msra.mxu0 0.0
    %923 = vmatpush.msra.mxu0 0.0
    %924 = vmatpush.msra.mxu0 0.0
    %925 = vmatpush.msra.mxu0 0.0
    %926 = vmatpush.msra.mxu0 0.0
    %927 = vmatpush.msra.mxu0 0.0
    %928 = vmatpush.msra.mxu0 %v102
    %929 = vmatpush.msra.mxu0 %v101
    %930 = vmatpush.msra.mxu0 %v100
    %931 = vmatpush.msra.mxu0 %v99
    %932 = vmatmul.f32.gmra.mxu0 %v914
    %v933 = vpop.f32.mrf.mxu0
    %v934 = vadd.f32 %v108, %v933
    %935 = vdwg.mxu0
    %v936 = vxor.u32 %v934, 2147483648
    %v937 = vmul.f32 %v936, 1.442695
    %v938 = vpow.pop %v937
    %v939 = vadd.f32 %v938, 1.0
    %v940 = vrcp.pop %v939
    %v941 = vmul.f32 %v939, %v940
    %v942 = vsub.f32 1.0, %v941
    %v943 = vmul.f32 %v940, %v942
    %v944 = vadd.f32 %v940, %v943
    %vm945 = vweird.f32 %v939
    %vm946 = vweird.f32 %v940
    %vm947 = vmor %vm945, %vm946
    %v948 = vsel %vm947, %v940, %v944
    %v949 = vand.u32 2147483647, %v939
    %vm950 = vcmp.eq.f32.partialorder %v949, 8.507059e+37
    %v951 = vand.u32 %v939, 2147483648
    %v952 = vor.u32 1.1754944e-38, %v951
    %v953 = vsel %vm950, %v952, %v948
    %v954 = vmul.f32 1.0, %v953
    %v955 = vmul.f32 %v954, %v575
    %957 = vrot.lane.b32.xlu0 %v883, 8
    %v958 = vpop.permute.xlu0 %957
    %v960 = vmul.f32 %v954, %v958
    %962 = vrot.lane.b32.xlu0 %v960, 120
    %v963 = vpop.permute.xlu0 %962
    %v965 = vadd.f32 %v955, %v963
    %v968 = vrot.slane %v744, 2
    %v969 = vrot.slane %v745, 2
    %970 = vrot.lane.b32.xlu0 %v968, 40
    %v971 = vpop.permute.xlu0 %970
    %972 = vrot.lane.b32.xlu0 %v969, 40
    %v973 = vpop.permute.xlu0 %972
    %v974 = vsel %vm582, %v971, %v973
    %v975 = vsel %vm212, %v974, 0
    %977 = vmatpush.msra.mxu0 0.0
    %978 = vmatpush.msra.mxu0 0.0
    %979 = vmatpush.msra.mxu0 0.0
    %980 = vmatpush.msra.mxu0 0.0
    %981 = vmatpush.msra.mxu0 0.0
    %982 = vmatpush.msra.mxu0 0.0
    %983 = vmatpush.msra.mxu0 0.0
    %984 = vmatpush.msra.mxu0 %v73
    %985 = vmatpush.msra.mxu0 %v70
    %986 = vmatpush.msra.mxu0 %v67
    %987 = vmatpush.msra.mxu0 %v64
    %988 = vmatpush.msra.mxu0 %v61
    %989 = vmatpush.msra.mxu0 %v58
    %990 = vmatpush.msra.mxu0 %v55
    %991 = vmatpush.msra.mxu0 %v52
    %992 = vmatpush.msra.mxu0 %v49
    %993 = vmatmul.f32.gmra.mxu0 %v975
    %v994 = vpop.f32.mrf.mxu0
    %v995 = vadd.f32 0.0, %v994
    %996 = vdwg.mxu0
    %997 = vmatpush.msra.mxu0 0.0
    %998 = vmatpush.msra.mxu0 0.0
    %999 = vmatpush.msra.mxu0 0.0
    %1000 = vmatpush.msra.mxu0 0.0
    %1001 = vmatpush.msra.mxu0 0.0
    %1002 = vmatpush.msra.mxu0 0.0
    %1003 = vmatpush.msra.mxu0 0.0
    %1004 = vmatpush.msra.mxu0 %v74
    %1005 = vmatpush.msra.mxu0 %v71
    %1006 = vmatpush.msra.mxu0 %v68
    %1007 = vmatpush.msra.mxu0 %v65
    %1008 = vmatpush.msra.mxu0 %v62
    %1009 = vmatpush.msra.mxu0 %v59
    %1010 = vmatpush.msra.mxu0 %v56
    %1011 = vmatpush.msra.mxu0 %v53
    %1012 = vmatpush.msra.mxu0 %v50
    %1013 = vmatmul.f32.gmra.mxu0 %v975
    %v1014 = vpop.f32.mrf.mxu0
    %v1015 = vadd.f32 0.0, %v1014
    %1016 = vdwg.mxu0
    %1017 = vmatpush.msra.mxu0 0.0
    %1018 = vmatpush.msra.mxu0 0.0
    %1019 = vmatpush.msra.mxu0 0.0
    %1020 = vmatpush.msra.mxu0 0.0
    %1021 = vmatpush.msra.mxu0 0.0
    %1022 = vmatpush.msra.mxu0 0.0
    %1023 = vmatpush.msra.mxu0 0.0
    %1024 = vmatpush.msra.mxu0 %v75
    %1025 = vmatpush.msra.mxu0 %v72
    %1026 = vmatpush.msra.mxu0 %v69
    %1027 = vmatpush.msra.mxu0 %v66
    %1028 = vmatpush.msra.mxu0 %v63
    %1029 = vmatpush.msra.mxu0 %v60
    %1030 = vmatpush.msra.mxu0 %v57
    %1031 = vmatpush.msra.mxu0 %v54
    %1032 = vmatpush.msra.mxu0 %v51
    %1033 = vmatmul.f32.gmra.mxu0 %v975
    %v1034 = vpop.f32.mrf.mxu0
    %v1035 = vadd.f32 0.0, %v1034
    %1036 = vdwg.mxu0
    %v1040 = vrot.slane %v995, 4
    %v1041 = vrot.slane %v1015, 4
    %v1042 = vrot.slane %v1035, 4
    %v1046 = vadd.f32 %v161, %v1040
    %v1047 = vadd.f32 %v184, %v1041
    %v1048 = vadd.f32 %v207, %v1042
    %v1049 = vxor.u32 %v1046, 2147483648
    %v1050 = vmul.f32 %v1049, 1.442695
    %v1051 = vpow.pop %v1050
    %v1052 = vadd.f32 %v1051, 1.0
    %v1053 = vrcp.pop %v1052
    %v1054 = vmul.f32 %v1052, %v1053
    %v1055 = vsub.f32 1.0, %v1054
    %v1056 = vmul.f32 %v1053, %v1055
    %v1057 = vadd.f32 %v1053, %v1056
    %vm1058 = vweird.f32 %v1052
    %vm1059 = vweird.f32 %v1053
    %vm1060 = vmor %vm1058, %vm1059
    %v1061 = vsel %vm1060, %v1053, %v1057
    %v1062 = vand.u32 2147483647, %v1052
    %vm1063 = vcmp.eq.f32.partialorder %v1062, 8.507059e+37
    %v1064 = vand.u32 %v1052, 2147483648
    %v1065 = vor.u32 1.1754944e-38, %v1064
    %v1066 = vsel %vm1063, %v1065, %v1061
    %v1067 = vmul.f32 1.0, %v1066
    %v1068 = vxor.u32 %v1047, 2147483648
    %v1069 = vmul.f32 %v1068, 1.442695
    %v1070 = vpow.pop %v1069
    %v1071 = vadd.f32 %v1070, 1.0
    %v1072 = vrcp.pop %v1071
    %v1073 = vmul.f32 %v1071, %v1072
    %v1074 = vsub.f32 1.0, %v1073
    %v1075 = vmul.f32 %v1072, %v1074
    %v1076 = vadd.f32 %v1072, %v1075
    %vm1077 = vweird.f32 %v1071
    %vm1078 = vweird.f32 %v1072
    %vm1079 = vmor %vm1077, %vm1078
    %v1080 = vsel %vm1079, %v1072, %v1076
    %v1081 = vand.u32 2147483647, %v1071
    %vm1082 = vcmp.eq.f32.partialorder %v1081, 8.507059e+37
    %v1083 = vand.u32 %v1071, 2147483648
    %v1084 = vor.u32 1.1754944e-38, %v1083
    %v1085 = vsel %vm1082, %v1084, %v1080
    %v1086 = vmul.f32 1.0, %v1085
    %v1087 = vtanh.pop %v1047
    %v1088 = vxor.u32 %v1048, 2147483648
    %v1089 = vmul.f32 %v1088, 1.442695
    %v1090 = vpow.pop %v1089
    %v1091 = vadd.f32 %v1090, 1.0
    %v1092 = vrcp.pop %v1091
    %v1093 = vmul.f32 %v1091, %v1092
    %v1094 = vsub.f32 1.0, %v1093
    %v1095 = vmul.f32 %v1092, %v1094
    %v1096 = vadd.f32 %v1092, %v1095
    %vm1097 = vweird.f32 %v1091
    %vm1098 = vweird.f32 %v1092
    %vm1099 = vmor %vm1097, %vm1098
    %v1100 = vsel %vm1099, %v1092, %v1096
    %v1101 = vand.u32 2147483647, %v1091
    %vm1102 = vcmp.eq.f32.partialorder %v1101, 8.507059e+37
    %v1103 = vand.u32 %v1091, 2147483648
    %v1104 = vor.u32 1.1754944e-38, %v1103
    %v1105 = vsel %vm1102, %v1104, %v1100
    %v1106 = vmul.f32 1.0, %v1105
    %v1107 = vrot.slane %v731, 6
    %v1108 = vrot.slane %v732, 6
    %v1111 = vmul.f32 %v1067, %v1107
    %v1112 = vmul.f32 %v1086, %v1108
    %1114 = vrot.lane.b32.xlu0 %v1087, 112
    %v1115 = vpop.permute.xlu0 %1114
    %v1117 = vmul.f32 %v1067, %v1115
    %1119 = vrot.lane.b32.xlu0 %v1117, 72
    %v1120 = vpop.permute.xlu0 %1119
    %v1122 = vadd.f32 %v1111, %v1120
    %v1123 = vadd.f32 %v1112, %v1120
    %v1124 = vtanh.pop %v1122
    %v1125 = vtanh.pop %v1123
    %1128 = vrot.lane.b32.xlu0 %v1124, 16
    %v1129 = vpop.permute.xlu0 %1128
    %1130 = vrot.lane.b32.xlu0 %v1125, 16
    %v1131 = vpop.permute.xlu0 %1130
    %v1132 = vsel %vm358, %v1129, %v1131
    %v1135 = vmul.f32 %v1086, %v1129
    %v1136 = vmul.f32 %v1106, %v1132
    %1137 = vrot.lane.b32.xlu0 %v731, 8
    %v1138 = vpop.permute.xlu0 %1137
    %1139 = vrot.lane.b32.xlu0 %v732, 8
    %v1140 = vpop.permute.xlu0 %1139
    %v1141 = vsel %vm750, %v1138, %v1140
    %v1145 = vrot.slane %v1122, 2
    %v1146 = vrot.slane %v1123, 2
    %1147 = vrot.lane.b32.xlu0 %v1145, 32
    %v1148 = vpop.permute.xlu0 %1147
    %1149 = vrot.lane.b32.xlu0 %v1146, 32
    %v1150 = vpop.permute.xlu0 %1149
    %v1151 = vsel %vm370, %v1148, %v1150
    %v1153 = vsel %vm373, %v1141, %v1151
    %v1155 = vrot.slane %v1153, 2
    %v1156 = vsel %vm375, %v1155, 0
    %1158 = vmatpush.msra.mxu0 0.0
    %1159 = vmatpush.msra.mxu0 0.0
    %1160 = vmatpush.msra.mxu0 0.0
    %1161 = vmatpush.msra.mxu0 0.0
    %1162 = vmatpush.msra.mxu0 0.0
    %1163 = vmatpush.msra.mxu0 0.0
    %1164 = vmatpush.msra.mxu0 0.0
    %1165 = vmatpush.msra.mxu0 0.0
    %1166 = vmatpush.msra.mxu0 0.0
    %1167 = vmatpush.msra.mxu0 0.0
    %1168 = vmatpush.msra.mxu0 %v81
    %1169 = vmatpush.msra.mxu0 %v80
    %1170 = vmatpush.msra.mxu0 %v79
    %1171 = vmatpush.msra.mxu0 %v78
    %1172 = vmatpush.msra.mxu0 %v77
    %1173 = vmatpush.msra.mxu0 %v76
    %1174 = vmatmul.f32.gmra.mxu0 %v1156
    %v1175 = vpop.f32.mrf.mxu0
    %v1176 = vadd.f32 %v103, %v1175
    %1177 = vdwg.mxu0
    %v1178 = vmax.f32 %v1176, 0.0
    %v1180 = vsel %vm358, %v1178, 0
    %1182 = vmatpush.msra.mxu0 0.0
    %1183 = vmatpush.msra.mxu0 0.0
    %1184 = vmatpush.msra.mxu0 0.0
    %1185 = vmatpush.msra.mxu0 0.0
    %1186 = vmatpush.msra.mxu0 0.0
    %1187 = vmatpush.msra.mxu0 0.0
    %1188 = vmatpush.msra.mxu0 0.0
    %1189 = vmatpush.msra.mxu0 0.0
    %1190 = vmatpush.msra.mxu0 0.0
    %1191 = vmatpush.msra.mxu0 0.0
    %1192 = vmatpush.msra.mxu0 0.0
    %1193 = vmatpush.msra.mxu0 0.0
    %1194 = vmatpush.msra.mxu0 0.0
    %1195 = vmatpush.msra.mxu0 0.0
    %1196 = vmatpush.msra.mxu0 %v83
    %1197 = vmatpush.msra.mxu0 %v82
    %1198 = vmatmul.f32.gmra.mxu0 %v1180
    %v1199 = vpop.f32.mrf.mxu0
    %v1200 = vadd.f32 %v104, %v1199
    %1201 = vdwg.mxu0
    %v1202 = vsel %vm423, %v1200, -inf
    %1203 = vmax.xlane.f32.xlu0 %v1202
    %v1204 = vpop.xlane.xlu0 %1203
    %v1205 = vsub.f32 %v1200, %v1204
    %v1206 = vmul.f32 %v1205, 1.442695
    %v1207 = vpow.pop %v1206
    %v1208 = vsel %vm423, %v1207, 0.0
    %1209 = vadd.xlane.f32.xlu0 %v1208
    %v1210 = vpop.xlane.xlu0 %1209
    %v1211 = vrcp.pop %v1210
    %v1212 = vmul.f32 %v1210, %v1211
    %v1213 = vsub.f32 1.0, %v1212
    %v1214 = vmul.f32 %v1211, %v1213
    %v1215 = vadd.f32 %v1211, %v1214
    %vm1216 = vweird.f32 %v1210
    %vm1217 = vweird.f32 %v1211
    %vm1218 = vmor %vm1216, %vm1217
    %v1219 = vsel %vm1218, %v1211, %v1215
    %v1220 = vand.u32 2147483647, %v1210
    %vm1221 = vcmp.eq.f32.partialorder %v1220, 8.507059e+37
    %v1222 = vand.u32 %v1210, 2147483648
    %v1223 = vor.u32 1.1754944e-38, %v1222
    %v1224 = vsel %vm1221, %v1223, %v1219
    %v1225 = vmul.f32 %v1207, %v1224
    %v1227 = vmul.f32 %v1225, %v1155
    %v1229 = vsel %vm375, %v1227, 0
    %1231 = vmatpush.msra.mxu0 0.0
    %1232 = vmatpush.msra.mxu0 0.0
    %1233 = vmatpush.msra.mxu0 0.0
    %1234 = vmatpush.msra.mxu0 0.0
    %1235 = vmatpush.msra.mxu0 0.0
    %1236 = vmatpush.msra.mxu0 0.0
    %1237 = vmatpush.msra.mxu0 0.0
    %1238 = vmatpush.msra.mxu0 0.0
    %1239 = vmatpush.msra.mxu0 0.0
    %1240 = vmatpush.msra.mxu0 0.0
    %1241 = vmatpush.msra.mxu0 %v89
    %1242 = vmatpush.msra.mxu0 %v88
    %1243 = vmatpush.msra.mxu0 %v87
    %1244 = vmatpush.msra.mxu0 %v86
    %1245 = vmatpush.msra.mxu0 %v85
    %1246 = vmatpush.msra.mxu0 %v84
    %1247 = vmatmul.f32.gmra.mxu0 %v1229
    %v1248 = vpop.f32.mrf.mxu0
    %v1249 = vadd.f32 %v105, %v1248
    %1250 = vdwg.mxu0
    %v1251 = vmax.f32 %v1249, 0.0
    %v1253 = vsel %vm358, %v1251, 0
    %1255 = vmatpush.msra.mxu0 0.0
    %1256 = vmatpush.msra.mxu0 0.0
    %1257 = vmatpush.msra.mxu0 0.0
    %1258 = vmatpush.msra.mxu0 0.0
    %1259 = vmatpush.msra.mxu0 0.0
    %1260 = vmatpush.msra.mxu0 0.0
    %1261 = vmatpush.msra.mxu0 0.0
    %1262 = vmatpush.msra.mxu0 0.0
    %1263 = vmatpush.msra.mxu0 0.0
    %1264 = vmatpush.msra.mxu0 0.0
    %1265 = vmatpush.msra.mxu0 0.0
    %1266 = vmatpush.msra.mxu0 0.0
    %1267 = vmatpush.msra.mxu0 0.0
    %1268 = vmatpush.msra.mxu0 0.0
    %1269 = vmatpush.msra.mxu0 %v91
    %1270 = vmatpush.msra.mxu0 %v90
    %1271 = vmatmul.f32.gmra.mxu0 %v1253
    %v1272 = vpop.f32.mrf.mxu0
    %v1273 = vadd.f32 %v106, %v1272
    %1274 = vdwg.mxu0
    %v1275 = vtanh.pop %v1273
    %1277 = vrot.lane.b32.xlu0 %v965, 48
    %v1278 = vpop.permute.xlu0 %1277
    %v1280 = vsel %vm375, %v1227, %v1278
    %v1282 = vsel %vm498, %v1280, 0
    %1284 = vmatpush.msra.mxu0 0.0
    %1285 = vmatpush.msra.mxu0 0.0
    %1286 = vmatpush.msra.mxu0 0.0
    %1287 = vmatpush.msra.mxu0 0.0
    %1288 = vmatpush.msra.mxu0 0.0
    %1289 = vmatpush.msra.mxu0 0.0
    %1290 = vmatpush.msra.mxu0 0.0
    %1291 = vmatpush.msra.mxu0 0.0
    %1292 = vmatpush.msra.mxu0 0.0
    %1293 = vmatpush.msra.mxu0 %v98
    %1294 = vmatpush.msra.mxu0 %v97
    %1295 = vmatpush.msra.mxu0 %v96
    %1296 = vmatpush.msra.mxu0 %v95
    %1297 = vmatpush.msra.mxu0 %v94
    %1298 = vmatpush.msra.mxu0 %v93
    %1299 = vmatpush.msra.mxu0 %v92
    %1300 = vmatmul.f32.gmra.mxu0 %v1282
    %v1301 = vpop.f32.mrf.mxu0
    %v1302 = vadd.f32 %v107, %v1301
    %1303 = vdwg.mxu0
    %v1304 = vmax.f32 %v1302, 0.0
    %v1306 = vsel %vm370, %v1304, 0
    %1308 = vmatpush.msra.mxu0 0.0
    %1309 = vmatpush.msra.mxu0 0.0
    %1310 = vmatpush.msra.mxu0 0.0
    %1311 = vmatpush.msra.mxu0 0.0
    %1312 = vmatpush.msra.mxu0 0.0
    %1313 = vmatpush.msra.mxu0 0.0
    %1314 = vmatpush.msra.mxu0 0.0
    %1315 = vmatpush.msra.mxu0 0.0
    %1316 = vmatpush.msra.mxu0 0.0
    %1317 = vmatpush.msra.mxu0 0.0
    %1318 = vmatpush.msra.mxu0 0.0
    %1319 = vmatpush.msra.mxu0 0.0
    %1320 = vmatpush.msra.mxu0 %v102
    %1321 = vmatpush.msra.mxu0 %v101
    %1322 = vmatpush.msra.mxu0 %v100
    %1323 = vmatpush.msra.mxu0 %v99
    %1324 = vmatmul.f32.gmra.mxu0 %v1306
    %v1325 = vpop.f32.mrf.mxu0
    %v1326 = vadd.f32 %v108, %v1325
    %1327 = vdwg.mxu0
    %v1328 = vxor.u32 %v1326, 2147483648
    %v1329 = vmul.f32 %v1328, 1.442695
    %v1330 = vpow.pop %v1329
    %v1331 = vadd.f32 %v1330, 1.0
    %v1332 = vrcp.pop %v1331
    %v1333 = vmul.f32 %v1331, %v1332
    %v1334 = vsub.f32 1.0, %v1333
    %v1335 = vmul.f32 %v1332, %v1334
    %v1336 = vadd.f32 %v1332, %v1335
    %vm1337 = vweird.f32 %v1331
    %vm1338 = vweird.f32 %v1332
    %vm1339 = vmor %vm1337, %vm1338
    %v1340 = vsel %vm1339, %v1332, %v1336
    %v1341 = vand.u32 2147483647, %v1331
    %vm1342 = vcmp.eq.f32.partialorder %v1341, 8.507059e+37
    %v1343 = vand.u32 %v1331, 2147483648
    %v1344 = vor.u32 1.1754944e-38, %v1343
    %v1345 = vsel %vm1342, %v1344, %v1340
    %v1346 = vmul.f32 1.0, %v1345
    %v1347 = vmul.f32 %v1346, %v965
    %1349 = vrot.lane.b32.xlu0 %v1275, 8
    %v1350 = vpop.permute.xlu0 %1349
    %v1352 = vmul.f32 %v1346, %v1350
    %1354 = vrot.lane.b32.xlu0 %v1352, 120
    %v1355 = vpop.permute.xlu0 %1354
    %v1357 = vadd.f32 %v1347, %v1355
    %v1360 = vrot.slane %v1135, 4
    %v1361 = vrot.slane %v1136, 4
    %1362 = vrot.lane.b32.xlu0 %v1360, 40
    %v1363 = vpop.permute.xlu0 %1362
    %1364 = vrot.lane.b32.xlu0 %v1361, 40
    %v1365 = vpop.permute.xlu0 %1364
    %v1366 = vsel %vm582, %v1363, %v1365
    %v1367 = vsel %vm212, %v1366, 0
    %1369 = vmatpush.msra.mxu0 0.0
    %1370 = vmatpush.msra.mxu0 0.0
    %1371 = vmatpush.msra.mxu0 0.0
    %1372 = vmatpush.msra.mxu0 0.0
    %1373 = vmatpush.msra.mxu0 0.0
    %1374 = vmatpush.msra.mxu0 0.0
    %1375 = vmatpush.msra.mxu0 0.0
    %1376 = vmatpush.msra.mxu0 %v73
    %1377 = vmatpush.msra.mxu0 %v70
    %1378 = vmatpush.msra.mxu0 %v67
    %1379 = vmatpush.msra.mxu0 %v64
    %1380 = vmatpush.msra.mxu0 %v61
    %1381 = vmatpush.msra.mxu0 %v58
    %1382 = vmatpush.msra.mxu0 %v55
    %1383 = vmatpush.msra.mxu0 %v52
    %1384 = vmatpush.msra.mxu0 %v49
    %1385 = vmatmul.f32.gmra.mxu0 %v1367
    %v1386 = vpop.f32.mrf.mxu0
    %v1387 = vadd.f32 0.0, %v1386
    %1388 = vdwg.mxu0
    %1389 = vmatpush.msra.mxu0 0.0
    %1390 = vmatpush.msra.mxu0 0.0
    %1391 = vmatpush.msra.mxu0 0.0
    %1392 = vmatpush.msra.mxu0 0.0
    %1393 = vmatpush.msra.mxu0 0.0
    %1394 = vmatpush.msra.mxu0 0.0
    %1395 = vmatpush.msra.mxu0 0.0
    %1396 = vmatpush.msra.mxu0 %v74
    %1397 = vmatpush.msra.mxu0 %v71
    %1398 = vmatpush.msra.mxu0 %v68
    %1399 = vmatpush.msra.mxu0 %v65
    %1400 = vmatpush.msra.mxu0 %v62
    %1401 = vmatpush.msra.mxu0 %v59
    %1402 = vmatpush.msra.mxu0 %v56
    %1403 = vmatpush.msra.mxu0 %v53
    %1404 = vmatpush.msra.mxu0 %v50
    %1405 = vmatmul.f32.gmra.mxu0 %v1367
    %v1406 = vpop.f32.mrf.mxu0
    %v1407 = vadd.f32 0.0, %v1406
    %1408 = vdwg.mxu0
    %1409 = vmatpush.msra.mxu0 0.0
    %1410 = vmatpush.msra.mxu0 0.0
    %1411 = vmatpush.msra.mxu0 0.0
    %1412 = vmatpush.msra.mxu0 0.0
    %1413 = vmatpush.msra.mxu0 0.0
    %1414 = vmatpush.msra.mxu0 0.0
    %1415 = vmatpush.msra.mxu0 0.0
    %1416 = vmatpush.msra.mxu0 %v75
    %1417 = vmatpush.msra.mxu0 %v72
    %1418 = vmatpush.msra.mxu0 %v69
    %1419 = vmatpush.msra.mxu0 %v66
    %1420 = vmatpush.msra.mxu0 %v63
    %1421 = vmatpush.msra.mxu0 %v60
    %1422 = vmatpush.msra.mxu0 %v57
    %1423 = vmatpush.msra.mxu0 %v54
    %1424 = vmatpush.msra.mxu0 %v51
    %1425 = vmatmul.f32.gmra.mxu0 %v1367
    %v1426 = vpop.f32.mrf.mxu0
    %v1427 = vadd.f32 0.0, %v1426
    %1428 = vdwg.mxu0
    %v1432 = vrot.slane %v1387, 2
    %v1433 = vrot.slane %v1407, 2
    %v1434 = vrot.slane %v1427, 2
    %v1438 = vadd.f32 %v161, %v1432
    %v1439 = vadd.f32 %v184, %v1433
    %v1440 = vadd.f32 %v207, %v1434
    %v1441 = vxor.u32 %v1438, 2147483648
    %v1442 = vmul.f32 %v1441, 1.442695
    %v1443 = vpow.pop %v1442
    %v1444 = vadd.f32 %v1443, 1.0
    %v1445 = vrcp.pop %v1444
    %v1446 = vmul.f32 %v1444, %v1445
    %v1447 = vsub.f32 1.0, %v1446
    %v1448 = vmul.f32 %v1445, %v1447
    %v1449 = vadd.f32 %v1445, %v1448
    %vm1450 = vweird.f32 %v1444
    %vm1451 = vweird.f32 %v1445
    %vm1452 = vmor %vm1450, %vm1451
    %v1453 = vsel %vm1452, %v1445, %v1449
    %v1454 = vand.u32 2147483647, %v1444
    %vm1455 = vcmp.eq.f32.partialorder %v1454, 8.507059e+37
    %v1456 = vand.u32 %v1444, 2147483648
    %v1457 = vor.u32 1.1754944e-38, %v1456
    %v1458 = vsel %vm1455, %v1457, %v1453
    %v1459 = vmul.f32 1.0, %v1458
    %v1460 = vxor.u32 %v1439, 2147483648
    %v1461 = vmul.f32 %v1460, 1.442695
    %v1462 = vpow.pop %v1461
    %v1463 = vadd.f32 %v1462, 1.0
    %v1464 = vrcp.pop %v1463
    %v1465 = vmul.f32 %v1463, %v1464
    %v1466 = vsub.f32 1.0, %v1465
    %v1467 = vmul.f32 %v1464, %v1466
    %v1468 = vadd.f32 %v1464, %v1467
    %vm1469 = vweird.f32 %v1463
    %vm1470 = vweird.f32 %v1464
    %vm1471 = vmor %vm1469, %vm1470
    %v1472 = vsel %vm1471, %v1464, %v1468
    %v1473 = vand.u32 2147483647, %v1463
    %vm1474 = vcmp.eq.f32.partialorder %v1473, 8.507059e+37
    %v1475 = vand.u32 %v1463, 2147483648
    %v1476 = vor.u32 1.1754944e-38, %v1475
    %v1477 = vsel %vm1474, %v1476, %v1472
    %v1478 = vmul.f32 1.0, %v1477
    %v1479 = vtanh.pop %v1439
    %v1480 = vxor.u32 %v1440, 2147483648
    %v1481 = vmul.f32 %v1480, 1.442695
    %v1482 = vpow.pop %v1481
    %v1483 = vadd.f32 %v1482, 1.0
    %v1484 = vrcp.pop %v1483
    %v1485 = vmul.f32 %v1483, %v1484
    %v1486 = vsub.f32 1.0, %v1485
    %v1487 = vmul.f32 %v1484, %v1486
    %v1488 = vadd.f32 %v1484, %v1487
    %vm1489 = vweird.f32 %v1483
    %vm1490 = vweird.f32 %v1484
    %vm1491 = vmor %vm1489, %vm1490
    %v1492 = vsel %vm1491, %v1484, %v1488
    %v1493 = vand.u32 2147483647, %v1483
    %vm1494 = vcmp.eq.f32.partialorder %v1493, 8.507059e+37
    %v1495 = vand.u32 %v1483, 2147483648
    %v1496 = vor.u32 1.1754944e-38, %v1495
    %v1497 = vsel %vm1494, %v1496, %v1492
    %v1498 = vmul.f32 1.0, %v1497
    %v1499 = vrot.slane %v1122, 6
    %v1500 = vrot.slane %v1123, 6
    %v1503 = vmul.f32 %v1459, %v1499
    %v1504 = vmul.f32 %v1478, %v1500
    %1506 = vrot.lane.b32.xlu0 %v1479, 112
    %v1507 = vpop.permute.xlu0 %1506
    %v1509 = vmul.f32 %v1459, %v1507
    %1511 = vrot.lane.b32.xlu0 %v1509, 72
    %v1512 = vpop.permute.xlu0 %1511
    %v1514 = vadd.f32 %v1503, %v1512
    %v1515 = vadd.f32 %v1504, %v1512
    %v1516 = vtanh.pop %v1514
    %v1517 = vtanh.pop %v1515
    %1520 = vrot.lane.b32.xlu0 %v1516, 16
    %v1521 = vpop.permute.xlu0 %1520
    %1522 = vrot.lane.b32.xlu0 %v1517, 16
    %v1523 = vpop.permute.xlu0 %1522
    %v1524 = vsel %vm358, %v1521, %v1523
    %v1527 = vmul.f32 %v1478, %v1521
    %v1528 = vmul.f32 %v1498, %v1524
    %1529 = vrot.lane.b32.xlu0 %v1122, 8
    %v1530 = vpop.permute.xlu0 %1529
    %1531 = vrot.lane.b32.xlu0 %v1123, 8
    %v1532 = vpop.permute.xlu0 %1531
    %v1533 = vsel %vm750, %v1530, %v1532
    %v1537 = vrot.slane %v1514, 2
    %v1538 = vrot.slane %v1515, 2
    %1539 = vrot.lane.b32.xlu0 %v1537, 32
    %v1540 = vpop.permute.xlu0 %1539
    %1541 = vrot.lane.b32.xlu0 %v1538, 32
    %v1542 = vpop.permute.xlu0 %1541
    %v1543 = vsel %vm370, %v1540, %v1542
    %v1545 = vsel %vm373, %v1533, %v1543
    %v1547 = vrot.slane %v1545, 4
    %v1548 = vsel %vm375, %v1547, 0
    %1550 = vmatpush.msra.mxu0 0.0
    %1551 = vmatpush.msra.mxu0 0.0
    %1552 = vmatpush.msra.mxu0 0.0
    %1553 = vmatpush.msra.mxu0 0.0
    %1554 = vmatpush.msra.mxu0 0.0
    %1555 = vmatpush.msra.mxu0 0.0
    %1556 = vmatpush.msra.mxu0 0.0
    %1557 = vmatpush.msra.mxu0 0.0
    %1558 = vmatpush.msra.mxu0 0.0
    %1559 = vmatpush.msra.mxu0 0.0
    %1560 = vmatpush.msra.mxu0 %v81
    %1561 = vmatpush.msra.mxu0 %v80
    %1562 = vmatpush.msra.mxu0 %v79
    %1563 = vmatpush.msra.mxu0 %v78
    %1564 = vmatpush.msra.mxu0 %v77
    %1565 = vmatpush.msra.mxu0 %v76
    %1566 = vmatmul.f32.gmra.mxu0 %v1548
    %v1567 = vpop.f32.mrf.mxu0
    %v1568 = vadd.f32 %v103, %v1567
    %1569 = vdwg.mxu0
    %v1570 = vmax.f32 %v1568, 0.0
    %v1572 = vsel %vm358, %v1570, 0
    %1574 = vmatpush.msra.mxu0 0.0
    %1575 = vmatpush.msra.mxu0 0.0
    %1576 = vmatpush.msra.mxu0 0.0
    %1577 = vmatpush.msra.mxu0 0.0
    %1578 = vmatpush.msra.mxu0 0.0
    %1579 = vmatpush.msra.mxu0 0.0
    %1580 = vmatpush.msra.mxu0 0.0
    %1581 = vmatpush.msra.mxu0 0.0
    %1582 = vmatpush.msra.mxu0 0.0
    %1583 = vmatpush.msra.mxu0 0.0
    %1584 = vmatpush.msra.mxu0 0.0
    %1585 = vmatpush.msra.mxu0 0.0
    %1586 = vmatpush.msra.mxu0 0.0
    %1587 = vmatpush.msra.mxu0 0.0
    %1588 = vmatpush.msra.mxu0 %v83
    %1589 = vmatpush.msra.mxu0 %v82
    %1590 = vmatmul.f32.gmra.mxu0 %v1572
    %v1591 = vpop.f32.mrf.mxu0
    %v1592 = vadd.f32 %v104, %v1591
    %1593 = vdwg.mxu0
    %v1594 = vsel %vm423, %v1592, -inf
    %1595 = vmax.xlane.f32.xlu0 %v1594
    %v1596 = vpop.xlane.xlu0 %1595
    %v1597 = vsub.f32 %v1592, %v1596
    %v1598 = vmul.f32 %v1597, 1.442695
    %v1599 = vpow.pop %v1598
    %v1600 = vsel %vm423, %v1599, 0.0
    %1601 = vadd.xlane.f32.xlu0 %v1600
    %v1602 = vpop.xlane.xlu0 %1601
    %v1603 = vrcp.pop %v1602
    %v1604 = vmul.f32 %v1602, %v1603
    %v1605 = vsub.f32 1.0, %v1604
    %v1606 = vmul.f32 %v1603, %v1605
    %v1607 = vadd.f32 %v1603, %v1606
    %vm1608 = vweird.f32 %v1602
    %vm1609 = vweird.f32 %v1603
    %vm1610 = vmor %vm1608, %vm1609
    %v1611 = vsel %vm1610, %v1603, %v1607
    %v1612 = vand.u32 2147483647, %v1602
    %vm1613 = vcmp.eq.f32.partialorder %v1612, 8.507059e+37
    %v1614 = vand.u32 %v1602, 2147483648
    %v1615 = vor.u32 1.1754944e-38, %v1614
    %v1616 = vsel %vm1613, %v1615, %v1611
    %v1617 = vmul.f32 %v1599, %v1616
    %v1619 = vmul.f32 %v1617, %v1547
    %v1621 = vsel %vm375, %v1619, 0
    %1623 = vmatpush.msra.mxu0 0.0
    %1624 = vmatpush.msra.mxu0 0.0
    %1625 = vmatpush.msra.mxu0 0.0
    %1626 = vmatpush.msra.mxu0 0.0
    %1627 = vmatpush.msra.mxu0 0.0
    %1628 = vmatpush.msra.mxu0 0.0
    %1629 = vmatpush.msra.mxu0 0.0
    %1630 = vmatpush.msra.mxu0 0.0
    %1631 = vmatpush.msra.mxu0 0.0
    %1632 = vmatpush.msra.mxu0 0.0
    %1633 = vmatpush.msra.mxu0 %v89
    %1634 = vmatpush.msra.mxu0 %v88
    %1635 = vmatpush.msra.mxu0 %v87
    %1636 = vmatpush.msra.mxu0 %v86
    %1637 = vmatpush.msra.mxu0 %v85
    %1638 = vmatpush.msra.mxu0 %v84
    %1639 = vmatmul.f32.gmra.mxu0 %v1621
    %v1640 = vpop.f32.mrf.mxu0
    %v1641 = vadd.f32 %v105, %v1640
    %1642 = vdwg.mxu0
    %v1643 = vmax.f32 %v1641, 0.0
    %v1645 = vsel %vm358, %v1643, 0
    %1647 = vmatpush.msra.mxu0 0.0
    %1648 = vmatpush.msra.mxu0 0.0
    %1649 = vmatpush.msra.mxu0 0.0
    %1650 = vmatpush.msra.mxu0 0.0
    %1651 = vmatpush.msra.mxu0 0.0
    %1652 = vmatpush.msra.mxu0 0.0
    %1653 = vmatpush.msra.mxu0 0.0
    %1654 = vmatpush.msra.mxu0 0.0
    %1655 = vmatpush.msra.mxu0 0.0
    %1656 = vmatpush.msra.mxu0 0.0
    %1657 = vmatpush.msra.mxu0 0.0
    %1658 = vmatpush.msra.mxu0 0.0
    %1659 = vmatpush.msra.mxu0 0.0
    %1660 = vmatpush.msra.mxu0 0.0
    %1661 = vmatpush.msra.mxu0 %v91
    %1662 = vmatpush.msra.mxu0 %v90
    %1663 = vmatmul.f32.gmra.mxu0 %v1645
    %v1664 = vpop.f32.mrf.mxu0
    %v1665 = vadd.f32 %v106, %v1664
    %1666 = vdwg.mxu0
    %v1667 = vtanh.pop %v1665
    %1669 = vrot.lane.b32.xlu0 %v1357, 48
    %v1670 = vpop.permute.xlu0 %1669
    %v1672 = vsel %vm375, %v1619, %v1670
    %v1674 = vsel %vm498, %v1672, 0
    %1676 = vmatpush.msra.mxu0 0.0
    %1677 = vmatpush.msra.mxu0 0.0
    %1678 = vmatpush.msra.mxu0 0.0
    %1679 = vmatpush.msra.mxu0 0.0
    %1680 = vmatpush.msra.mxu0 0.0
    %1681 = vmatpush.msra.mxu0 0.0
    %1682 = vmatpush.msra.mxu0 0.0
    %1683 = vmatpush.msra.mxu0 0.0
    %1684 = vmatpush.msra.mxu0 0.0
    %1685 = vmatpush.msra.mxu0 %v98
    %1686 = vmatpush.msra.mxu0 %v97
    %1687 = vmatpush.msra.mxu0 %v96
    %1688 = vmatpush.msra.mxu0 %v95
    %1689 = vmatpush.msra.mxu0 %v94
    %1690 = vmatpush.msra.mxu0 %v93
    %1691 = vmatpush.msra.mxu0 %v92
    %1692 = vmatmul.f32.gmra.mxu0 %v1674
    %v1693 = vpop.f32.mrf.mxu0
    %v1694 = vadd.f32 %v107, %v1693
    %1695 = vdwg.mxu0
    %v1696 = vmax.f32 %v1694, 0.0
    %v1698 = vsel %vm370, %v1696, 0
    %1700 = vmatpush.msra.mxu0 0.0
    %1701 = vmatpush.msra.mxu0 0.0
    %1702 = vmatpush.msra.mxu0 0.0
    %1703 = vmatpush.msra.mxu0 0.0
    %1704 = vmatpush.msra.mxu0 0.0
    %1705 = vmatpush.msra.mxu0 0.0
    %1706 = vmatpush.msra.mxu0 0.0
    %1707 = vmatpush.msra.mxu0 0.0
    %1708 = vmatpush.msra.mxu0 0.0
    %1709 = vmatpush.msra.mxu0 0.0
    %1710 = vmatpush.msra.mxu0 0.0
    %1711 = vmatpush.msra.mxu0 0.0
    %1712 = vmatpush.msra.mxu0 %v102
    %1713 = vmatpush.msra.mxu0 %v101
    %1714 = vmatpush.msra.mxu0 %v100
    %1715 = vmatpush.msra.mxu0 %v99
    %1716 = vmatmul.f32.gmra.mxu0 %v1698
    %v1717 = vpop.f32.mrf.mxu0
    %v1718 = vadd.f32 %v108, %v1717
    %1719 = vdwg.mxu0
    %v1720 = vxor.u32 %v1718, 2147483648
    %v1721 = vmul.f32 %v1720, 1.442695
    %v1722 = vpow.pop %v1721
    %v1723 = vadd.f32 %v1722, 1.0
    %v1724 = vrcp.pop %v1723
    %v1725 = vmul.f32 %v1723, %v1724
    %v1726 = vsub.f32 1.0, %v1725
    %v1727 = vmul.f32 %v1724, %v1726
    %v1728 = vadd.f32 %v1724, %v1727
    %vm1729 = vweird.f32 %v1723
    %vm1730 = vweird.f32 %v1724
    %vm1731 = vmor %vm1729, %vm1730
    %v1732 = vsel %vm1731, %v1724, %v1728
    %v1733 = vand.u32 2147483647, %v1723
    %vm1734 = vcmp.eq.f32.partialorder %v1733, 8.507059e+37
    %v1735 = vand.u32 %v1723, 2147483648
    %v1736 = vor.u32 1.1754944e-38, %v1735
    %v1737 = vsel %vm1734, %v1736, %v1732
    %v1738 = vmul.f32 1.0, %v1737
    %v1739 = vmul.f32 %v1738, %v1357
    %1741 = vrot.lane.b32.xlu0 %v1667, 8
    %v1742 = vpop.permute.xlu0 %1741
    %v1744 = vmul.f32 %v1738, %v1742
    %1746 = vrot.lane.b32.xlu0 %v1744, 120
    %v1747 = vpop.permute.xlu0 %1746
    %v1749 = vadd.f32 %v1739, %v1747
    %v1752 = vrot.slane %v1527, 6
    %v1753 = vrot.slane %v1528, 6
    %1754 = vrot.lane.b32.xlu0 %v1752, 40
    %v1755 = vpop.permute.xlu0 %1754
    %1756 = vrot.lane.b32.xlu0 %v1753, 40
    %v1757 = vpop.permute.xlu0 %1756
    %v1758 = vsel %vm582, %v1755, %v1757
    %v1759 = vsel %vm212, %v1758, 0
    %1761 = vmatpush.msra.mxu0 0.0
    %1762 = vmatpush.msra.mxu0 0.0
    %1763 = vmatpush.msra.mxu0 0.0
    %1764 = vmatpush.msra.mxu0 0.0
    %1765 = vmatpush.msra.mxu0 0.0
    %1766 = vmatpush.msra.mxu0 0.0
    %1767 = vmatpush.msra.mxu0 0.0
    %1768 = vmatpush.msra.mxu0 %v73
    %1769 = vmatpush.msra.mxu0 %v70
    %1770 = vmatpush.msra.mxu0 %v67
    %1771 = vmatpush.msra.mxu0 %v64
    %1772 = vmatpush.msra.mxu0 %v61
    %1773 = vmatpush.msra.mxu0 %v58
    %1774 = vmatpush.msra.mxu0 %v55
    %1775 = vmatpush.msra.mxu0 %v52
    %1776 = vmatpush.msra.mxu0 %v49
    %1777 = vmatmul.f32.gmra.mxu0 %v1759
    %v1778 = vpop.f32.mrf.mxu0
    %v1779 = vadd.f32 0.0, %v1778
    %1780 = vdwg.mxu0
    %1781 = vmatpush.msra.mxu0 0.0
    %1782 = vmatpush.msra.mxu0 0.0
    %1783 = vmatpush.msra.mxu0 0.0
    %1784 = vmatpush.msra.mxu0 0.0
    %1785 = vmatpush.msra.mxu0 0.0
    %1786 = vmatpush.msra.mxu0 0.0
    %1787 = vmatpush.msra.mxu0 0.0
    %1788 = vmatpush.msra.mxu0 %v74
    %1789 = vmatpush.msra.mxu0 %v71
    %1790 = vmatpush.msra.mxu0 %v68
    %1791 = vmatpush.msra.mxu0 %v65
    %1792 = vmatpush.msra.mxu0 %v62
    %1793 = vmatpush.msra.mxu0 %v59
    %1794 = vmatpush.msra.mxu0 %v56
    %1795 = vmatpush.msra.mxu0 %v53
    %1796 = vmatpush.msra.mxu0 %v50
    %1797 = vmatmul.f32.gmra.mxu0 %v1759
    %v1798 = vpop.f32.mrf.mxu0
    %v1799 = vadd.f32 0.0, %v1798
    %1800 = vdwg.mxu0
    %1801 = vmatpush.msra.mxu0 0.0
    %1802 = vmatpush.msra.mxu0 0.0
    %1803 = vmatpush.msra.mxu0 0.0
    %1804 = vmatpush.msra.mxu0 0.0
    %1805 = vmatpush.msra.mxu0 0.0
    %1806 = vmatpush.msra.mxu0 0.0
    %1807 = vmatpush.msra.mxu0 0.0
    %1808 = vmatpush.msra.mxu0 %v75
    %1809 = vmatpush.msra.mxu0 %v72
    %1810 = vmatpush.msra.mxu0 %v69
    %1811 = vmatpush.msra.mxu0 %v66
    %1812 = vmatpush.msra.mxu0 %v63
    %1813 = vmatpush.msra.mxu0 %v60
    %1814 = vmatpush.msra.mxu0 %v57
    %1815 = vmatpush.msra.mxu0 %v54
    %1816 = vmatpush.msra.mxu0 %v51
    %1817 = vmatmul.f32.gmra.mxu0 %v1759
    %v1818 = vpop.f32.mrf.mxu0
    %v1819 = vadd.f32 0.0, %v1818
    %1820 = vdwg.mxu0
    %v1821 = vadd.f32 %v164, %v1779
    %v1822 = vadd.f32 %v187, %v1799
    %v1823 = vadd.f32 %v210, %v1819
    %v1824 = vxor.u32 %v1821, 2147483648
    %v1825 = vmul.f32 %v1824, 1.442695
    %v1826 = vpow.pop %v1825
    %v1827 = vadd.f32 %v1826, 1.0
    %v1828 = vrcp.pop %v1827
    %v1829 = vmul.f32 %v1827, %v1828
    %v1830 = vsub.f32 1.0, %v1829
    %v1831 = vmul.f32 %v1828, %v1830
    %v1832 = vadd.f32 %v1828, %v1831
    %vm1833 = vweird.f32 %v1827
    %vm1834 = vweird.f32 %v1828
    %vm1835 = vmor %vm1833, %vm1834
    %v1836 = vsel %vm1835, %v1828, %v1832
    %v1837 = vand.u32 2147483647, %v1827
    %vm1838 = vcmp.eq.f32.partialorder %v1837, 8.507059e+37
    %v1839 = vand.u32 %v1827, 2147483648
    %v1840 = vor.u32 1.1754944e-38, %v1839
    %v1841 = vsel %vm1838, %v1840, %v1836
    %v1842 = vmul.f32 1.0, %v1841
    %v1843 = vxor.u32 %v1822, 2147483648
    %v1844 = vmul.f32 %v1843, 1.442695
    %v1845 = vpow.pop %v1844
    %v1846 = vadd.f32 %v1845, 1.0
    %v1847 = vrcp.pop %v1846
    %v1848 = vmul.f32 %v1846, %v1847
    %v1849 = vsub.f32 1.0, %v1848
    %v1850 = vmul.f32 %v1847, %v1849
    %v1851 = vadd.f32 %v1847, %v1850
    %vm1852 = vweird.f32 %v1846
    %vm1853 = vweird.f32 %v1847
    %vm1854 = vmor %vm1852, %vm1853
    %v1855 = vsel %vm1854, %v1847, %v1851
    %v1856 = vand.u32 2147483647, %v1846
    %vm1857 = vcmp.eq.f32.partialorder %v1856, 8.507059e+37
    %v1858 = vand.u32 %v1846, 2147483648
    %v1859 = vor.u32 1.1754944e-38, %v1858
    %v1860 = vsel %vm1857, %v1859, %v1855
    %v1861 = vmul.f32 1.0, %v1860
    %v1862 = vtanh.pop %v1822
    %v1863 = vxor.u32 %v1823, 2147483648
    %v1864 = vmul.f32 %v1863, 1.442695
    %v1865 = vpow.pop %v1864
    %v1866 = vadd.f32 %v1865, 1.0
    %v1867 = vrcp.pop %v1866
    %v1868 = vmul.f32 %v1866, %v1867
    %v1869 = vsub.f32 1.0, %v1868
    %v1870 = vmul.f32 %v1867, %v1869
    %v1871 = vadd.f32 %v1867, %v1870
    %vm1872 = vweird.f32 %v1866
    %vm1873 = vweird.f32 %v1867
    %vm1874 = vmor %vm1872, %vm1873
    %v1875 = vsel %vm1874, %v1867, %v1871
    %v1876 = vand.u32 2147483647, %v1866
    %vm1877 = vcmp.eq.f32.partialorder %v1876, 8.507059e+37
    %v1878 = vand.u32 %v1866, 2147483648
    %v1879 = vor.u32 1.1754944e-38, %v1878
    %v1880 = vsel %vm1877, %v1879, %v1875
    %v1881 = vmul.f32 1.0, %v1880
    %v1882 = vrot.slane %v1514, 6
    %v1883 = vrot.slane %v1515, 6
    %v1886 = vmul.f32 %v1842, %v1882
    %v1887 = vmul.f32 %v1861, %v1883
    %1889 = vrot.lane.b32.xlu0 %v1862, 112
    %v1890 = vpop.permute.xlu0 %1889
    %v1892 = vmul.f32 %v1842, %v1890
    %1894 = vrot.lane.b32.xlu0 %v1892, 72
    %v1895 = vpop.permute.xlu0 %1894
    %v1897 = vadd.f32 %v1886, %v1895
    %v1898 = vadd.f32 %v1887, %v1895
    %v1899 = vtanh.pop %v1897
    %v1900 = vtanh.pop %v1898
    %1903 = vrot.lane.b32.xlu0 %v1899, 16
    %v1904 = vpop.permute.xlu0 %1903
    %1905 = vrot.lane.b32.xlu0 %v1900, 16
    %v1906 = vpop.permute.xlu0 %1905
    %v1907 = vsel %vm358, %v1904, %v1906
    %v1910 = vmul.f32 %v1861, %v1904
    %v1911 = vmul.f32 %v1881, %v1907
    %1912 = vrot.lane.b32.xlu0 %v1514, 8
    %v1913 = vpop.permute.xlu0 %1912
    %1914 = vrot.lane.b32.xlu0 %v1515, 8
    %v1915 = vpop.permute.xlu0 %1914
    %v1916 = vsel %vm750, %v1913, %v1915
    %v1920 = vrot.slane %v1897, 2
    %v1921 = vrot.slane %v1898, 2
    %1922 = vrot.lane.b32.xlu0 %v1920, 32
    %v1923 = vpop.permute.xlu0 %1922
    %1924 = vrot.lane.b32.xlu0 %v1921, 32
    %v1925 = vpop.permute.xlu0 %1924
    %v1926 = vsel %vm370, %v1923, %v1925
    %v1928 = vsel %vm373, %v1916, %v1926
    %v1930 = vrot.slane %v1928, 6
    %v1931 = vsel %vm375, %v1930, 0
    %1933 = vmatpush.msra.mxu0 0.0
    %1934 = vmatpush.msra.mxu0 0.0
    %1935 = vmatpush.msra.mxu0 0.0
    %1936 = vmatpush.msra.mxu0 0.0
    %1937 = vmatpush.msra.mxu0 0.0
    %1938 = vmatpush.msra.mxu0 0.0
    %1939 = vmatpush.msra.mxu0 0.0
    %1940 = vmatpush.msra.mxu0 0.0
    %1941 = vmatpush.msra.mxu0 0.0
    %1942 = vmatpush.msra.mxu0 0.0
    %1943 = vmatpush.msra.mxu0 %v81
    %1944 = vmatpush.msra.mxu0 %v80
    %1945 = vmatpush.msra.mxu0 %v79
    %1946 = vmatpush.msra.mxu0 %v78
    %1947 = vmatpush.msra.mxu0 %v77
    %1948 = vmatpush.msra.mxu0 %v76
    %1949 = vmatmul.f32.gmra.mxu0 %v1931
    %v1950 = vpop.f32.mrf.mxu0
    %v1951 = vadd.f32 %v103, %v1950
    %1952 = vdwg.mxu0
    %v1953 = vmax.f32 %v1951, 0.0
    %v1955 = vsel %vm358, %v1953, 0
    %1957 = vmatpush.msra.mxu0 0.0
    %1958 = vmatpush.msra.mxu0 0.0
    %1959 = vmatpush.msra.mxu0 0.0
    %1960 = vmatpush.msra.mxu0 0.0
    %1961 = vmatpush.msra.mxu0 0.0
    %1962 = vmatpush.msra.mxu0 0.0
    %1963 = vmatpush.msra.mxu0 0.0
    %1964 = vmatpush.msra.mxu0 0.0
    %1965 = vmatpush.msra.mxu0 0.0
    %1966 = vmatpush.msra.mxu0 0.0
    %1967 = vmatpush.msra.mxu0 0.0
    %1968 = vmatpush.msra.mxu0 0.0
    %1969 = vmatpush.msra.mxu0 0.0
    %1970 = vmatpush.msra.mxu0 0.0
    %1971 = vmatpush.msra.mxu0 %v83
    %1972 = vmatpush.msra.mxu0 %v82
    %1973 = vmatmul.f32.gmra.mxu0 %v1955
    %v1974 = vpop.f32.mrf.mxu0
    %v1975 = vadd.f32 %v104, %v1974
    %1976 = vdwg.mxu0
    %v1977 = vsel %vm423, %v1975, -inf
    %1978 = vmax.xlane.f32.xlu0 %v1977
    %v1979 = vpop.xlane.xlu0 %1978
    %v1980 = vsub.f32 %v1975, %v1979
    %v1981 = vmul.f32 %v1980, 1.442695
    %v1982 = vpow.pop %v1981
    %v1983 = vsel %vm423, %v1982, 0.0
    %1984 = vadd.xlane.f32.xlu0 %v1983
    %v1985 = vpop.xlane.xlu0 %1984
    %v1986 = vrcp.pop %v1985
    %v1987 = vmul.f32 %v1985, %v1986
    %v1988 = vsub.f32 1.0, %v1987
    %v1989 = vmul.f32 %v1986, %v1988
    %v1990 = vadd.f32 %v1986, %v1989
    %vm1991 = vweird.f32 %v1985
    %vm1992 = vweird.f32 %v1986
    %vm1993 = vmor %vm1991, %vm1992
    %v1994 = vsel %vm1993, %v1986, %v1990
    %v1995 = vand.u32 2147483647, %v1985
    %vm1996 = vcmp.eq.f32.partialorder %v1995, 8.507059e+37
    %v1997 = vand.u32 %v1985, 2147483648
    %v1998 = vor.u32 1.1754944e-38, %v1997
    %v1999 = vsel %vm1996, %v1998, %v1994
    %v2000 = vmul.f32 %v1982, %v1999
    %v2002 = vmul.f32 %v2000, %v1930
    %v2004 = vsel %vm375, %v2002, 0
    %2006 = vmatpush.msra.mxu0 0.0
    %2007 = vmatpush.msra.mxu0 0.0
    %2008 = vmatpush.msra.mxu0 0.0
    %2009 = vmatpush.msra.mxu0 0.0
    %2010 = vmatpush.msra.mxu0 0.0
    %2011 = vmatpush.msra.mxu0 0.0
    %2012 = vmatpush.msra.mxu0 0.0
    %2013 = vmatpush.msra.mxu0 0.0
    %2014 = vmatpush.msra.mxu0 0.0
    %2015 = vmatpush.msra.mxu0 0.0
    %2016 = vmatpush.msra.mxu0 %v89
    %2017 = vmatpush.msra.mxu0 %v88
    %2018 = vmatpush.msra.mxu0 %v87
    %2019 = vmatpush.msra.mxu0 %v86
    %2020 = vmatpush.msra.mxu0 %v85
    %2021 = vmatpush.msra.mxu0 %v84
    %2022 = vmatmul.f32.gmra.mxu0 %v2004
    %v2023 = vpop.f32.mrf.mxu0
    %v2024 = vadd.f32 %v105, %v2023
    %2025 = vdwg.mxu0
    %v2026 = vmax.f32 %v2024, 0.0
    %v2028 = vsel %vm358, %v2026, 0
    %2030 = vmatpush.msra.mxu0 0.0
    %2031 = vmatpush.msra.mxu0 0.0
    %2032 = vmatpush.msra.mxu0 0.0
    %2033 = vmatpush.msra.mxu0 0.0
    %2034 = vmatpush.msra.mxu0 0.0
    %2035 = vmatpush.msra.mxu0 0.0
    %2036 = vmatpush.msra.mxu0 0.0
    %2037 = vmatpush.msra.mxu0 0.0
    %2038 = vmatpush.msra.mxu0 0.0
    %2039 = vmatpush.msra.mxu0 0.0
    %2040 = vmatpush.msra.mxu0 0.0
    %2041 = vmatpush.msra.mxu0 0.0
    %2042 = vmatpush.msra.mxu0 0.0
    %2043 = vmatpush.msra.mxu0 0.0
    %2044 = vmatpush.msra.mxu0 %v91
    %2045 = vmatpush.msra.mxu0 %v90
    %2046 = vmatmul.f32.gmra.mxu0 %v2028
    %v2047 = vpop.f32.mrf.mxu0
    %v2048 = vadd.f32 %v106, %v2047
    %2049 = vdwg.mxu0
    %v2050 = vtanh.pop %v2048
    %2052 = vrot.lane.b32.xlu0 %v1749, 48
    %v2053 = vpop.permute.xlu0 %2052
    %v2055 = vsel %vm375, %v2002, %v2053
    %v2057 = vsel %vm498, %v2055, 0
    %2059 = vmatpush.msra.mxu0 0.0
    %2060 = vmatpush.msra.mxu0 0.0
    %2061 = vmatpush.msra.mxu0 0.0
    %2062 = vmatpush.msra.mxu0 0.0
    %2063 = vmatpush.msra.mxu0 0.0
    %2064 = vmatpush.msra.mxu0 0.0
    %2065 = vmatpush.msra.mxu0 0.0
    %2066 = vmatpush.msra.mxu0 0.0
    %2067 = vmatpush.msra.mxu0 0.0
    %2068 = vmatpush.msra.mxu0 %v98
    %2069 = vmatpush.msra.mxu0 %v97
    %2070 = vmatpush.msra.mxu0 %v96
    %2071 = vmatpush.msra.mxu0 %v95
    %2072 = vmatpush.msra.mxu0 %v94
    %2073 = vmatpush.msra.mxu0 %v93
    %2074 = vmatpush.msra.mxu0 %v92
    %2075 = vmatmul.f32.gmra.mxu0 %v2057
    %v2076 = vpop.f32.mrf.mxu0
    %v2077 = vadd.f32 %v107, %v2076
    %2078 = vdwg.mxu0
    %v2079 = vmax.f32 %v2077, 0.0
    %v2081 = vsel %vm370, %v2079, 0
    %2083 = vmatpush.msra.mxu0 0.0
    %2084 = vmatpush.msra.mxu0 0.0
    %2085 = vmatpush.msra.mxu0 0.0
    %2086 = vmatpush.msra.mxu0 0.0
    %2087 = vmatpush.msra.mxu0 0.0
    %2088 = vmatpush.msra.mxu0 0.0
    %2089 = vmatpush.msra.mxu0 0.0
    %2090 = vmatpush.msra.mxu0 0.0
    %2091 = vmatpush.msra.mxu0 0.0
    %2092 = vmatpush.msra.mxu0 0.0
    %2093 = vmatpush.msra.mxu0 0.0
    %2094 = vmatpush.msra.mxu0 0.0
    %2095 = vmatpush.msra.mxu0 %v102
    %2096 = vmatpush.msra.mxu0 %v101
    %2097 = vmatpush.msra.mxu0 %v100
    %2098 = vmatpush.msra.mxu0 %v99
    %2099 = vmatmul.f32.gmra.mxu0 %v2081
    %v2100 = vpop.f32.mrf.mxu0
    %v2101 = vadd.f32 %v108, %v2100
    %2102 = vdwg.mxu0
    %v2103 = vxor.u32 %v2101, 2147483648
    %v2104 = vmul.f32 %v2103, 1.442695
    %v2105 = vpow.pop %v2104
    %v2106 = vadd.f32 %v2105, 1.0
    %v2107 = vrcp.pop %v2106
    %v2108 = vmul.f32 %v2106, %v2107
    %v2109 = vsub.f32 1.0, %v2108
    %v2110 = vmul.f32 %v2107, %v2109
    %v2111 = vadd.f32 %v2107, %v2110
    %vm2112 = vweird.f32 %v2106
    %vm2113 = vweird.f32 %v2107
    %vm2114 = vmor %vm2112, %vm2113
    %v2115 = vsel %vm2114, %v2107, %v2111
    %v2116 = vand.u32 2147483647, %v2106
    %vm2117 = vcmp.eq.f32.partialorder %v2116, 8.507059e+37
    %v2118 = vand.u32 %v2106, 2147483648
    %v2119 = vor.u32 1.1754944e-38, %v2118
    %v2120 = vsel %vm2117, %v2119, %v2115
    %v2121 = vmul.f32 1.0, %v2120
    %v2122 = vmul.f32 %v2121, %v1749
    %2124 = vrot.lane.b32.xlu0 %v2050, 8
    %v2125 = vpop.permute.xlu0 %2124
    %v2127 = vmul.f32 %v2121, %v2125
    %2129 = vrot.lane.b32.xlu0 %v2127, 120
    %v2130 = vpop.permute.xlu0 %2129
    %v2132 = vadd.f32 %v2122, %v2130
    %2135 = vrot.lane.b32.xlu0 %v1910, 40
    %v2136 = vpop.permute.xlu0 %2135
    %2137 = vrot.lane.b32.xlu0 %v1911, 40
    %v2138 = vpop.permute.xlu0 %2137
    %v2139 = vsel %vm582, %v2136, %v2138
    %v2140 = vsel %vm212, %v2139, 0
    %2142 = vmatpush.msra.mxu0 0.0
    %2143 = vmatpush.msra.mxu0 0.0
    %2144 = vmatpush.msra.mxu0 0.0
    %2145 = vmatpush.msra.mxu0 0.0
    %2146 = vmatpush.msra.mxu0 0.0
    %2147 = vmatpush.msra.mxu0 0.0
    %2148 = vmatpush.msra.mxu0 0.0
    %2149 = vmatpush.msra.mxu0 %v73
    %2150 = vmatpush.msra.mxu0 %v70
    %2151 = vmatpush.msra.mxu0 %v67
    %2152 = vmatpush.msra.mxu0 %v64
    %2153 = vmatpush.msra.mxu0 %v61
    %2154 = vmatpush.msra.mxu0 %v58
    %2155 = vmatpush.msra.mxu0 %v55
    %2156 = vmatpush.msra.mxu0 %v52
    %2157 = vmatpush.msra.mxu0 %v49
    %2158 = vmatmul.f32.gmra.mxu0 %v2140
    %v2159 = vpop.f32.mrf.mxu0
    %v2160 = vadd.f32 0.0, %v2159
    %2161 = vdwg.mxu0
    %2162 = vmatpush.msra.mxu0 0.0
    %2163 = vmatpush.msra.mxu0 0.0
    %2164 = vmatpush.msra.mxu0 0.0
    %2165 = vmatpush.msra.mxu0 0.0
    %2166 = vmatpush.msra.mxu0 0.0
    %2167 = vmatpush.msra.mxu0 0.0
    %2168 = vmatpush.msra.mxu0 0.0
    %2169 = vmatpush.msra.mxu0 %v74
    %2170 = vmatpush.msra.mxu0 %v71
    %2171 = vmatpush.msra.mxu0 %v68
    %2172 = vmatpush.msra.mxu0 %v65
    %2173 = vmatpush.msra.mxu0 %v62
    %2174 = vmatpush.msra.mxu0 %v59
    %2175 = vmatpush.msra.mxu0 %v56
    %2176 = vmatpush.msra.mxu0 %v53
    %2177 = vmatpush.msra.mxu0 %v50
    %2178 = vmatmul.f32.gmra.mxu0 %v2140
    %v2179 = vpop.f32.mrf.mxu0
    %v2180 = vadd.f32 0.0, %v2179
    %2181 = vdwg.mxu0
    %2182 = vmatpush.msra.mxu0 0.0
    %2183 = vmatpush.msra.mxu0 0.0
    %2184 = vmatpush.msra.mxu0 0.0
    %2185 = vmatpush.msra.mxu0 0.0
    %2186 = vmatpush.msra.mxu0 0.0
    %2187 = vmatpush.msra.mxu0 0.0
    %2188 = vmatpush.msra.mxu0 0.0
    %2189 = vmatpush.msra.mxu0 %v75
    %2190 = vmatpush.msra.mxu0 %v72
    %2191 = vmatpush.msra.mxu0 %v69
    %2192 = vmatpush.msra.mxu0 %v66
    %2193 = vmatpush.msra.mxu0 %v63
    %2194 = vmatpush.msra.mxu0 %v60
    %2195 = vmatpush.msra.mxu0 %v57
    %2196 = vmatpush.msra.mxu0 %v54
    %2197 = vmatpush.msra.mxu0 %v51
    %2198 = vmatmul.f32.gmra.mxu0 %v2140
    %v2199 = vpop.f32.mrf.mxu0
    %v2200 = vadd.f32 0.0, %v2199
    %2201 = vdwg.mxu0
    %v2205 = vrot.slane %v2160, 6
    %v2206 = vrot.slane %v2180, 6
    %v2207 = vrot.slane %v2200, 6
    %v2211 = vadd.f32 %v164, %v2205
    %v2212 = vadd.f32 %v187, %v2206
    %v2213 = vadd.f32 %v210, %v2207
    %v2214 = vxor.u32 %v2211, 2147483648
    %v2215 = vmul.f32 %v2214, 1.442695
    %v2216 = vpow.pop %v2215
    %v2217 = vadd.f32 %v2216, 1.0
    %v2218 = vrcp.pop %v2217
    %v2219 = vmul.f32 %v2217, %v2218
    %v2220 = vsub.f32 1.0, %v2219
    %v2221 = vmul.f32 %v2218, %v2220
    %v2222 = vadd.f32 %v2218, %v2221
    %vm2223 = vweird.f32 %v2217
    %vm2224 = vweird.f32 %v2218
    %vm2225 = vmor %vm2223, %vm2224
    %v2226 = vsel %vm2225, %v2218, %v2222
    %v2227 = vand.u32 2147483647, %v2217
    %vm2228 = vcmp.eq.f32.partialorder %v2227, 8.507059e+37
    %v2229 = vand.u32 %v2217, 2147483648
    %v2230 = vor.u32 1.1754944e-38, %v2229
    %v2231 = vsel %vm2228, %v2230, %v2226
    %v2232 = vmul.f32 1.0, %v2231
    %v2233 = vxor.u32 %v2212, 2147483648
    %v2234 = vmul.f32 %v2233, 1.442695
    %v2235 = vpow.pop %v2234
    %v2236 = vadd.f32 %v2235, 1.0
    %v2237 = vrcp.pop %v2236
    %v2238 = vmul.f32 %v2236, %v2237
    %v2239 = vsub.f32 1.0, %v2238
    %v2240 = vmul.f32 %v2237, %v2239
    %v2241 = vadd.f32 %v2237, %v2240
    %vm2242 = vweird.f32 %v2236
    %vm2243 = vweird.f32 %v2237
    %vm2244 = vmor %vm2242, %vm2243
    %v2245 = vsel %vm2244, %v2237, %v2241
    %v2246 = vand.u32 2147483647, %v2236
    %vm2247 = vcmp.eq.f32.partialorder %v2246, 8.507059e+37
    %v2248 = vand.u32 %v2236, 2147483648
    %v2249 = vor.u32 1.1754944e-38, %v2248
    %v2250 = vsel %vm2247, %v2249, %v2245
    %v2251 = vmul.f32 1.0, %v2250
    %v2252 = vtanh.pop %v2212
    %v2253 = vxor.u32 %v2213, 2147483648
    %v2254 = vmul.f32 %v2253, 1.442695
    %v2255 = vpow.pop %v2254
    %v2256 = vadd.f32 %v2255, 1.0
    %v2257 = vrcp.pop %v2256
    %v2258 = vmul.f32 %v2256, %v2257
    %v2259 = vsub.f32 1.0, %v2258
    %v2260 = vmul.f32 %v2257, %v2259
    %v2261 = vadd.f32 %v2257, %v2260
    %vm2262 = vweird.f32 %v2256
    %vm2263 = vweird.f32 %v2257
    %vm2264 = vmor %vm2262, %vm2263
    %v2265 = vsel %vm2264, %v2257, %v2261
    %v2266 = vand.u32 2147483647, %v2256
    %vm2267 = vcmp.eq.f32.partialorder %v2266, 8.507059e+37
    %v2268 = vand.u32 %v2256, 2147483648
    %v2269 = vor.u32 1.1754944e-38, %v2268
    %v2270 = vsel %vm2267, %v2269, %v2265
    %v2271 = vmul.f32 1.0, %v2270
    %v2272 = vrot.slane %v1897, 6
    %v2273 = vrot.slane %v1898, 6
    %v2276 = vmul.f32 %v2232, %v2272
    %v2277 = vmul.f32 %v2251, %v2273
    %2279 = vrot.lane.b32.xlu0 %v2252, 112
    %v2280 = vpop.permute.xlu0 %2279
    %v2282 = vmul.f32 %v2232, %v2280
    %2284 = vrot.lane.b32.xlu0 %v2282, 72
    %v2285 = vpop.permute.xlu0 %2284
    %v2287 = vadd.f32 %v2276, %v2285
    %v2288 = vadd.f32 %v2277, %v2285
    %v2289 = vtanh.pop %v2287
    %v2290 = vtanh.pop %v2288
    %2293 = vrot.lane.b32.xlu0 %v2289, 16
    %v2294 = vpop.permute.xlu0 %2293
    %2295 = vrot.lane.b32.xlu0 %v2290, 16
    %v2296 = vpop.permute.xlu0 %2295
    %v2297 = vsel %vm358, %v2294, %v2296
    %v2300 = vmul.f32 %v2251, %v2294
    %v2301 = vmul.f32 %v2271, %v2297
    %2302 = vrot.lane.b32.xlu0 %v1897, 8
    %v2303 = vpop.permute.xlu0 %2302
    %2304 = vrot.lane.b32.xlu0 %v1898, 8
    %v2305 = vpop.permute.xlu0 %2304
    %v2306 = vsel %vm750, %v2303, %v2305
    %v2310 = vrot.slane %v2287, 2
    %v2311 = vrot.slane %v2288, 2
    %2312 = vrot.lane.b32.xlu0 %v2310, 32
    %v2313 = vpop.permute.xlu0 %2312
    %2314 = vrot.lane.b32.xlu0 %v2311, 32
    %v2315 = vpop.permute.xlu0 %2314
    %v2316 = vsel %vm370, %v2313, %v2315
    %v2318 = vsel %vm373, %v2306, %v2316
    %v2320 = vsel %vm375, %v2318, 0
    %2322 = vmatpush.msra.mxu0 0.0
    %2323 = vmatpush.msra.mxu0 0.0
    %2324 = vmatpush.msra.mxu0 0.0
    %2325 = vmatpush.msra.mxu0 0.0
    %2326 = vmatpush.msra.mxu0 0.0
    %2327 = vmatpush.msra.mxu0 0.0
    %2328 = vmatpush.msra.mxu0 0.0
    %2329 = vmatpush.msra.mxu0 0.0
    %2330 = vmatpush.msra.mxu0 0.0
    %2331 = vmatpush.msra.mxu0 0.0
    %2332 = vmatpush.msra.mxu0 %v81
    %2333 = vmatpush.msra.mxu0 %v80
    %2334 = vmatpush.msra.mxu0 %v79
    %2335 = vmatpush.msra.mxu0 %v78
    %2336 = vmatpush.msra.mxu0 %v77
    %2337 = vmatpush.msra.mxu0 %v76
    %2338 = vmatmul.f32.gmra.mxu0 %v2320
    %v2339 = vpop.f32.mrf.mxu0
    %v2340 = vadd.f32 %v103, %v2339
    %2341 = vdwg.mxu0
    %v2342 = vmax.f32 %v2340, 0.0
    %v2344 = vsel %vm358, %v2342, 0
    %2346 = vmatpush.msra.mxu0 0.0
    %2347 = vmatpush.msra.mxu0 0.0
    %2348 = vmatpush.msra.mxu0 0.0
    %2349 = vmatpush.msra.mxu0 0.0
    %2350 = vmatpush.msra.mxu0 0.0
    %2351 = vmatpush.msra.mxu0 0.0
    %2352 = vmatpush.msra.mxu0 0.0
    %2353 = vmatpush.msra.mxu0 0.0
    %2354 = vmatpush.msra.mxu0 0.0
    %2355 = vmatpush.msra.mxu0 0.0
    %2356 = vmatpush.msra.mxu0 0.0
    %2357 = vmatpush.msra.mxu0 0.0
    %2358 = vmatpush.msra.mxu0 0.0
    %2359 = vmatpush.msra.mxu0 0.0
    %2360 = vmatpush.msra.mxu0 %v83
    %2361 = vmatpush.msra.mxu0 %v82
    %2362 = vmatmul.f32.gmra.mxu0 %v2344
    %v2363 = vpop.f32.mrf.mxu0
    %v2364 = vadd.f32 %v104, %v2363
    %2365 = vdwg.mxu0
    %v2366 = vsel %vm423, %v2364, -inf
    %2367 = vmax.xlane.f32.xlu0 %v2366
    %v2368 = vpop.xlane.xlu0 %2367
    %v2369 = vsub.f32 %v2364, %v2368
    %v2370 = vmul.f32 %v2369, 1.442695
    %v2371 = vpow.pop %v2370
    %v2372 = vsel %vm423, %v2371, 0.0
    %2373 = vadd.xlane.f32.xlu0 %v2372
    %v2374 = vpop.xlane.xlu0 %2373
    %v2375 = vrcp.pop %v2374
    %v2376 = vmul.f32 %v2374, %v2375
    %v2377 = vsub.f32 1.0, %v2376
    %v2378 = vmul.f32 %v2375, %v2377
    %v2379 = vadd.f32 %v2375, %v2378
    %vm2380 = vweird.f32 %v2374
    %vm2381 = vweird.f32 %v2375
    %vm2382 = vmor %vm2380, %vm2381
    %v2383 = vsel %vm2382, %v2375, %v2379
    %v2384 = vand.u32 2147483647, %v2374
    %vm2385 = vcmp.eq.f32.partialorder %v2384, 8.507059e+37
    %v2386 = vand.u32 %v2374, 2147483648
    %v2387 = vor.u32 1.1754944e-38, %v2386
    %v2388 = vsel %vm2385, %v2387, %v2383
    %v2389 = vmul.f32 %v2371, %v2388
    %v2390 = vmul.f32 %v2389, %v2318
    %v2392 = vsel %vm375, %v2390, 0
    %2394 = vmatpush.msra.mxu0 0.0
    %2395 = vmatpush.msra.mxu0 0.0
    %2396 = vmatpush.msra.mxu0 0.0
    %2397 = vmatpush.msra.mxu0 0.0
    %2398 = vmatpush.msra.mxu0 0.0
    %2399 = vmatpush.msra.mxu0 0.0
    %2400 = vmatpush.msra.mxu0 0.0
    %2401 = vmatpush.msra.mxu0 0.0
    %2402 = vmatpush.msra.mxu0 0.0
    %2403 = vmatpush.msra.mxu0 0.0
    %2404 = vmatpush.msra.mxu0 %v89
    %2405 = vmatpush.msra.mxu0 %v88
    %2406 = vmatpush.msra.mxu0 %v87
    %2407 = vmatpush.msra.mxu0 %v86
    %2408 = vmatpush.msra.mxu0 %v85
    %2409 = vmatpush.msra.mxu0 %v84
    %2410 = vmatmul.f32.gmra.mxu0 %v2392
    %v2411 = vpop.f32.mrf.mxu0
    %v2412 = vadd.f32 %v105, %v2411
    %2413 = vdwg.mxu0
    %v2414 = vmax.f32 %v2412, 0.0
    %v2416 = vsel %vm358, %v2414, 0
    %2418 = vmatpush.msra.mxu0 0.0
    %2419 = vmatpush.msra.mxu0 0.0
    %2420 = vmatpush.msra.mxu0 0.0
    %2421 = vmatpush.msra.mxu0 0.0
    %2422 = vmatpush.msra.mxu0 0.0
    %2423 = vmatpush.msra.mxu0 0.0
    %2424 = vmatpush.msra.mxu0 0.0
    %2425 = vmatpush.msra.mxu0 0.0
    %2426 = vmatpush.msra.mxu0 0.0
    %2427 = vmatpush.msra.mxu0 0.0
    %2428 = vmatpush.msra.mxu0 0.0
    %2429 = vmatpush.msra.mxu0 0.0
    %2430 = vmatpush.msra.mxu0 0.0
    %2431 = vmatpush.msra.mxu0 0.0
    %2432 = vmatpush.msra.mxu0 %v91
    %2433 = vmatpush.msra.mxu0 %v90
    %2434 = vmatmul.f32.gmra.mxu0 %v2416
    %v2435 = vpop.f32.mrf.mxu0
    %v2436 = vadd.f32 %v106, %v2435
    %2437 = vdwg.mxu0
    %v2438 = vtanh.pop %v2436
    %2440 = vrot.lane.b32.xlu0 %v2132, 48
    %v2441 = vpop.permute.xlu0 %2440
    %v2443 = vsel %vm375, %v2390, %v2441
    %v2445 = vsel %vm498, %v2443, 0
    %2447 = vmatpush.msra.mxu0 0.0
    %2448 = vmatpush.msra.mxu0 0.0
    %2449 = vmatpush.msra.mxu0 0.0
    %2450 = vmatpush.msra.mxu0 0.0
    %2451 = vmatpush.msra.mxu0 0.0
    %2452 = vmatpush.msra.mxu0 0.0
    %2453 = vmatpush.msra.mxu0 0.0
    %2454 = vmatpush.msra.mxu0 0.0
    %2455 = vmatpush.msra.mxu0 0.0
    %2456 = vmatpush.msra.mxu0 %v98
    %2457 = vmatpush.msra.mxu0 %v97
    %2458 = vmatpush.msra.mxu0 %v96
    %2459 = vmatpush.msra.mxu0 %v95
    %2460 = vmatpush.msra.mxu0 %v94
    %2461 = vmatpush.msra.mxu0 %v93
    %2462 = vmatpush.msra.mxu0 %v92
    %2463 = vmatmul.f32.gmra.mxu0 %v2445
    %v2464 = vpop.f32.mrf.mxu0
    %v2465 = vadd.f32 %v107, %v2464
    %2466 = vdwg.mxu0
    %v2467 = vmax.f32 %v2465, 0.0
    %v2469 = vsel %vm370, %v2467, 0
    %2471 = vmatpush.msra.mxu0 0.0
    %2472 = vmatpush.msra.mxu0 0.0
    %2473 = vmatpush.msra.mxu0 0.0
    %2474 = vmatpush.msra.mxu0 0.0
    %2475 = vmatpush.msra.mxu0 0.0
    %2476 = vmatpush.msra.mxu0 0.0
    %2477 = vmatpush.msra.mxu0 0.0
    %2478 = vmatpush.msra.mxu0 0.0
    %2479 = vmatpush.msra.mxu0 0.0
    %2480 = vmatpush.msra.mxu0 0.0
    %2481 = vmatpush.msra.mxu0 0.0
    %2482 = vmatpush.msra.mxu0 0.0
    %2483 = vmatpush.msra.mxu0 %v102
    %2484 = vmatpush.msra.mxu0 %v101
    %2485 = vmatpush.msra.mxu0 %v100
    %2486 = vmatpush.msra.mxu0 %v99
    %2487 = vmatmul.f32.gmra.mxu0 %v2469
    %v2488 = vpop.f32.mrf.mxu0
    %v2489 = vadd.f32 %v108, %v2488
    %2490 = vdwg.mxu0
    %v2491 = vxor.u32 %v2489, 2147483648
    %v2492 = vmul.f32 %v2491, 1.442695
    %v2493 = vpow.pop %v2492
    %v2494 = vadd.f32 %v2493, 1.0
    %v2495 = vrcp.pop %v2494
    %v2496 = vmul.f32 %v2494, %v2495
    %v2497 = vsub.f32 1.0, %v2496
    %v2498 = vmul.f32 %v2495, %v2497
    %v2499 = vadd.f32 %v2495, %v2498
    %vm2500 = vweird.f32 %v2494
    %vm2501 = vweird.f32 %v2495
    %vm2502 = vmor %vm2500, %vm2501
    %v2503 = vsel %vm2502, %v2495, %v2499
    %v2504 = vand.u32 2147483647, %v2494
    %vm2505 = vcmp.eq.f32.partialorder %v2504, 8.507059e+37
    %v2506 = vand.u32 %v2494, 2147483648
    %v2507 = vor.u32 1.1754944e-38, %v2506
    %v2508 = vsel %vm2505, %v2507, %v2503
    %v2509 = vmul.f32 1.0, %v2508
    %v2510 = vmul.f32 %v2509, %v2132
    %2512 = vrot.lane.b32.xlu0 %v2438, 8
    %v2513 = vpop.permute.xlu0 %2512
    %v2515 = vmul.f32 %v2509, %v2513
    %2517 = vrot.lane.b32.xlu0 %v2515, 120
    %v2518 = vpop.permute.xlu0 %2517
    %v2520 = vadd.f32 %v2510, %v2518
    %v2523 = vrot.slane %v2300, 2
    %v2524 = vrot.slane %v2301, 2
    %2525 = vrot.lane.b32.xlu0 %v2523, 40
    %v2526 = vpop.permute.xlu0 %2525
    %2527 = vrot.lane.b32.xlu0 %v2524, 40
    %v2528 = vpop.permute.xlu0 %2527
    %v2529 = vsel %vm582, %v2526, %v2528
    %v2530 = vsel %vm212, %v2529, 0
    %2532 = vmatpush.msra.mxu0 0.0
    %2533 = vmatpush.msra.mxu0 0.0
    %2534 = vmatpush.msra.mxu0 0.0
    %2535 = vmatpush.msra.mxu0 0.0
    %2536 = vmatpush.msra.mxu0 0.0
    %2537 = vmatpush.msra.mxu0 0.0
    %2538 = vmatpush.msra.mxu0 0.0
    %2539 = vmatpush.msra.mxu0 %v73
    %2540 = vmatpush.msra.mxu0 %v70
    %2541 = vmatpush.msra.mxu0 %v67
    %2542 = vmatpush.msra.mxu0 %v64
    %2543 = vmatpush.msra.mxu0 %v61
    %2544 = vmatpush.msra.mxu0 %v58
    %2545 = vmatpush.msra.mxu0 %v55
    %2546 = vmatpush.msra.mxu0 %v52
    %2547 = vmatpush.msra.mxu0 %v49
    %2548 = vmatmul.f32.gmra.mxu0 %v2530
    %v2549 = vpop.f32.mrf.mxu0
    %v2550 = vadd.f32 0.0, %v2549
    %2551 = vdwg.mxu0
    %2552 = vmatpush.msra.mxu0 0.0
    %2553 = vmatpush.msra.mxu0 0.0
    %2554 = vmatpush.msra.mxu0 0.0
    %2555 = vmatpush.msra.mxu0 0.0
    %2556 = vmatpush.msra.mxu0 0.0
    %2557 = vmatpush.msra.mxu0 0.0
    %2558 = vmatpush.msra.mxu0 0.0
    %2559 = vmatpush.msra.mxu0 %v74
    %2560 = vmatpush.msra.mxu0 %v71
    %2561 = vmatpush.msra.mxu0 %v68
    %2562 = vmatpush.msra.mxu0 %v65
    %2563 = vmatpush.msra.mxu0 %v62
    %2564 = vmatpush.msra.mxu0 %v59
    %2565 = vmatpush.msra.mxu0 %v56
    %2566 = vmatpush.msra.mxu0 %v53
    %2567 = vmatpush.msra.mxu0 %v50
    %2568 = vmatmul.f32.gmra.mxu0 %v2530
    %v2569 = vpop.f32.mrf.mxu0
    %v2570 = vadd.f32 0.0, %v2569
    %2571 = vdwg.mxu0
    %2572 = vmatpush.msra.mxu0 0.0
    %2573 = vmatpush.msra.mxu0 0.0
    %2574 = vmatpush.msra.mxu0 0.0
    %2575 = vmatpush.msra.mxu0 0.0
    %2576 = vmatpush.msra.mxu0 0.0
    %2577 = vmatpush.msra.mxu0 0.0
    %2578 = vmatpush.msra.mxu0 0.0
    %2579 = vmatpush.msra.mxu0 %v75
    %2580 = vmatpush.msra.mxu0 %v72
    %2581 = vmatpush.msra.mxu0 %v69
    %2582 = vmatpush.msra.mxu0 %v66
    %2583 = vmatpush.msra.mxu0 %v63
    %2584 = vmatpush.msra.mxu0 %v60
    %2585 = vmatpush.msra.mxu0 %v57
    %2586 = vmatpush.msra.mxu0 %v54
    %2587 = vmatpush.msra.mxu0 %v51
    %2588 = vmatmul.f32.gmra.mxu0 %v2530
    %v2589 = vpop.f32.mrf.mxu0
    %v2590 = vadd.f32 0.0, %v2589
    %2591 = vdwg.mxu0
    %v2595 = vrot.slane %v2550, 4
    %v2596 = vrot.slane %v2570, 4
    %v2597 = vrot.slane %v2590, 4
    %v2601 = vadd.f32 %v164, %v2595
    %v2602 = vadd.f32 %v187, %v2596
    %v2603 = vadd.f32 %v210, %v2597
    %v2604 = vxor.u32 %v2601, 2147483648
    %v2605 = vmul.f32 %v2604, 1.442695
    %v2606 = vpow.pop %v2605
    %v2607 = vadd.f32 %v2606, 1.0
    %v2608 = vrcp.pop %v2607
    %v2609 = vmul.f32 %v2607, %v2608
    %v2610 = vsub.f32 1.0, %v2609
    %v2611 = vmul.f32 %v2608, %v2610
    %v2612 = vadd.f32 %v2608, %v2611
    %vm2613 = vweird.f32 %v2607
    %vm2614 = vweird.f32 %v2608
    %vm2615 = vmor %vm2613, %vm2614
    %v2616 = vsel %vm2615, %v2608, %v2612
    %v2617 = vand.u32 2147483647, %v2607
    %vm2618 = vcmp.eq.f32.partialorder %v2617, 8.507059e+37
    %v2619 = vand.u32 %v2607, 2147483648
    %v2620 = vor.u32 1.1754944e-38, %v2619
    %v2621 = vsel %vm2618, %v2620, %v2616
    %v2622 = vmul.f32 1.0, %v2621
    %v2623 = vxor.u32 %v2602, 2147483648
    %v2624 = vmul.f32 %v2623, 1.442695
    %v2625 = vpow.pop %v2624
    %v2626 = vadd.f32 %v2625, 1.0
    %v2627 = vrcp.pop %v2626
    %v2628 = vmul.f32 %v2626, %v2627
    %v2629 = vsub.f32 1.0, %v2628
    %v2630 = vmul.f32 %v2627, %v2629
    %v2631 = vadd.f32 %v2627, %v2630
    %vm2632 = vweird.f32 %v2626
    %vm2633 = vweird.f32 %v2627
    %vm2634 = vmor %vm2632, %vm2633
    %v2635 = vsel %vm2634, %v2627, %v2631
    %v2636 = vand.u32 2147483647, %v2626
    %vm2637 = vcmp.eq.f32.partialorder %v2636, 8.507059e+37
    %v2638 = vand.u32 %v2626, 2147483648
    %v2639 = vor.u32 1.1754944e-38, %v2638
    %v2640 = vsel %vm2637, %v2639, %v2635
    %v2641 = vmul.f32 1.0, %v2640
    %v2642 = vtanh.pop %v2602
    %v2643 = vxor.u32 %v2603, 2147483648
    %v2644 = vmul.f32 %v2643, 1.442695
    %v2645 = vpow.pop %v2644
    %v2646 = vadd.f32 %v2645, 1.0
    %v2647 = vrcp.pop %v2646
    %v2648 = vmul.f32 %v2646, %v2647
    %v2649 = vsub.f32 1.0, %v2648
    %v2650 = vmul.f32 %v2647, %v2649
    %v2651 = vadd.f32 %v2647, %v2650
    %vm2652 = vweird.f32 %v2646
    %vm2653 = vweird.f32 %v2647
    %vm2654 = vmor %vm2652, %vm2653
    %v2655 = vsel %vm2654, %v2647, %v2651
    %v2656 = vand.u32 2147483647, %v2646
    %vm2657 = vcmp.eq.f32.partialorder %v2656, 8.507059e+37
    %v2658 = vand.u32 %v2646, 2147483648
    %v2659 = vor.u32 1.1754944e-38, %v2658
    %v2660 = vsel %vm2657, %v2659, %v2655
    %v2661 = vmul.f32 1.0, %v2660
    %v2662 = vrot.slane %v2287, 6
    %v2663 = vrot.slane %v2288, 6
    %v2666 = vmul.f32 %v2622, %v2662
    %v2667 = vmul.f32 %v2641, %v2663
    %2669 = vrot.lane.b32.xlu0 %v2642, 112
    %v2670 = vpop.permute.xlu0 %2669
    %v2672 = vmul.f32 %v2622, %v2670
    %2674 = vrot.lane.b32.xlu0 %v2672, 72
    %v2675 = vpop.permute.xlu0 %2674
    %v2677 = vadd.f32 %v2666, %v2675
    %v2678 = vadd.f32 %v2667, %v2675
    %v2679 = vtanh.pop %v2677
    %v2680 = vtanh.pop %v2678
    %2683 = vrot.lane.b32.xlu0 %v2679, 16
    %v2684 = vpop.permute.xlu0 %2683
    %2685 = vrot.lane.b32.xlu0 %v2680, 16
    %v2686 = vpop.permute.xlu0 %2685
    %v2687 = vsel %vm358, %v2684, %v2686
    %v2690 = vmul.f32 %v2641, %v2684
    %v2691 = vmul.f32 %v2661, %v2687
    %2692 = vrot.lane.b32.xlu0 %v2287, 8
    %v2693 = vpop.permute.xlu0 %2692
    %2694 = vrot.lane.b32.xlu0 %v2288, 8
    %v2695 = vpop.permute.xlu0 %2694
    %v2696 = vsel %vm750, %v2693, %v2695
    %v2700 = vrot.slane %v2677, 2
    %v2701 = vrot.slane %v2678, 2
    %2702 = vrot.lane.b32.xlu0 %v2700, 32
    %v2703 = vpop.permute.xlu0 %2702
    %2704 = vrot.lane.b32.xlu0 %v2701, 32
    %v2705 = vpop.permute.xlu0 %2704
    %v2706 = vsel %vm370, %v2703, %v2705
    %v2708 = vsel %vm373, %v2696, %v2706
    %v2710 = vrot.slane %v2708, 2
    %v2711 = vsel %vm375, %v2710, 0
    %2713 = vmatpush.msra.mxu0 0.0
    %2714 = vmatpush.msra.mxu0 0.0
    %2715 = vmatpush.msra.mxu0 0.0
    %2716 = vmatpush.msra.mxu0 0.0
    %2717 = vmatpush.msra.mxu0 0.0
    %2718 = vmatpush.msra.mxu0 0.0
    %2719 = vmatpush.msra.mxu0 0.0
    %2720 = vmatpush.msra.mxu0 0.0
    %2721 = vmatpush.msra.mxu0 0.0
    %2722 = vmatpush.msra.mxu0 0.0
    %2723 = vmatpush.msra.mxu0 %v81
    %2724 = vmatpush.msra.mxu0 %v80
    %2725 = vmatpush.msra.mxu0 %v79
    %2726 = vmatpush.msra.mxu0 %v78
    %2727 = vmatpush.msra.mxu0 %v77
    %2728 = vmatpush.msra.mxu0 %v76
    %2729 = vmatmul.f32.gmra.mxu0 %v2711
    %v2730 = vpop.f32.mrf.mxu0
    %v2731 = vadd.f32 %v103, %v2730
    %2732 = vdwg.mxu0
    %v2733 = vmax.f32 %v2731, 0.0
    %v2735 = vsel %vm358, %v2733, 0
    %2737 = vmatpush.msra.mxu0 0.0
    %2738 = vmatpush.msra.mxu0 0.0
    %2739 = vmatpush.msra.mxu0 0.0
    %2740 = vmatpush.msra.mxu0 0.0
    %2741 = vmatpush.msra.mxu0 0.0
    %2742 = vmatpush.msra.mxu0 0.0
    %2743 = vmatpush.msra.mxu0 0.0
    %2744 = vmatpush.msra.mxu0 0.0
    %2745 = vmatpush.msra.mxu0 0.0
    %2746 = vmatpush.msra.mxu0 0.0
    %2747 = vmatpush.msra.mxu0 0.0
    %2748 = vmatpush.msra.mxu0 0.0
    %2749 = vmatpush.msra.mxu0 0.0
    %2750 = vmatpush.msra.mxu0 0.0
    %2751 = vmatpush.msra.mxu0 %v83
    %2752 = vmatpush.msra.mxu0 %v82
    %2753 = vmatmul.f32.gmra.mxu0 %v2735
    %v2754 = vpop.f32.mrf.mxu0
    %v2755 = vadd.f32 %v104, %v2754
    %2756 = vdwg.mxu0
    %v2757 = vsel %vm423, %v2755, -inf
    %2758 = vmax.xlane.f32.xlu0 %v2757
    %v2759 = vpop.xlane.xlu0 %2758
    %v2760 = vsub.f32 %v2755, %v2759
    %v2761 = vmul.f32 %v2760, 1.442695
    %v2762 = vpow.pop %v2761
    %v2763 = vsel %vm423, %v2762, 0.0
    %2764 = vadd.xlane.f32.xlu0 %v2763
    %v2765 = vpop.xlane.xlu0 %2764
    %v2766 = vrcp.pop %v2765
    %v2767 = vmul.f32 %v2765, %v2766
    %v2768 = vsub.f32 1.0, %v2767
    %v2769 = vmul.f32 %v2766, %v2768
    %v2770 = vadd.f32 %v2766, %v2769
    %vm2771 = vweird.f32 %v2765
    %vm2772 = vweird.f32 %v2766
    %vm2773 = vmor %vm2771, %vm2772
    %v2774 = vsel %vm2773, %v2766, %v2770
    %v2775 = vand.u32 2147483647, %v2765
    %vm2776 = vcmp.eq.f32.partialorder %v2775, 8.507059e+37
    %v2777 = vand.u32 %v2765, 2147483648
    %v2778 = vor.u32 1.1754944e-38, %v2777
    %v2779 = vsel %vm2776, %v2778, %v2774
    %v2780 = vmul.f32 %v2762, %v2779
    %v2782 = vmul.f32 %v2780, %v2710
    %v2784 = vsel %vm375, %v2782, 0
    %2786 = vmatpush.msra.mxu0 0.0
    %2787 = vmatpush.msra.mxu0 0.0
    %2788 = vmatpush.msra.mxu0 0.0
    %2789 = vmatpush.msra.mxu0 0.0
    %2790 = vmatpush.msra.mxu0 0.0
    %2791 = vmatpush.msra.mxu0 0.0
    %2792 = vmatpush.msra.mxu0 0.0
    %2793 = vmatpush.msra.mxu0 0.0
    %2794 = vmatpush.msra.mxu0 0.0
    %2795 = vmatpush.msra.mxu0 0.0
    %2796 = vmatpush.msra.mxu0 %v89
    %2797 = vmatpush.msra.mxu0 %v88
    %2798 = vmatpush.msra.mxu0 %v87
    %2799 = vmatpush.msra.mxu0 %v86
    %2800 = vmatpush.msra.mxu0 %v85
    %2801 = vmatpush.msra.mxu0 %v84
    %2802 = vmatmul.f32.gmra.mxu0 %v2784
    %v2803 = vpop.f32.mrf.mxu0
    %v2804 = vadd.f32 %v105, %v2803
    %2805 = vdwg.mxu0
    %v2806 = vmax.f32 %v2804, 0.0
    %v2808 = vsel %vm358, %v2806, 0
    %2810 = vmatpush.msra.mxu0 0.0
    %2811 = vmatpush.msra.mxu0 0.0
    %2812 = vmatpush.msra.mxu0 0.0
    %2813 = vmatpush.msra.mxu0 0.0
    %2814 = vmatpush.msra.mxu0 0.0
    %2815 = vmatpush.msra.mxu0 0.0
    %2816 = vmatpush.msra.mxu0 0.0
    %2817 = vmatpush.msra.mxu0 0.0
    %2818 = vmatpush.msra.mxu0 0.0
    %2819 = vmatpush.msra.mxu0 0.0
    %2820 = vmatpush.msra.mxu0 0.0
    %2821 = vmatpush.msra.mxu0 0.0
    %2822 = vmatpush.msra.mxu0 0.0
    %2823 = vmatpush.msra.mxu0 0.0
    %2824 = vmatpush.msra.mxu0 %v91
    %2825 = vmatpush.msra.mxu0 %v90
    %2826 = vmatmul.f32.gmra.mxu0 %v2808
    %v2827 = vpop.f32.mrf.mxu0
    %v2828 = vadd.f32 %v106, %v2827
    %2829 = vdwg.mxu0
    %v2830 = vtanh.pop %v2828
    %2832 = vrot.lane.b32.xlu0 %v2520, 48
    %v2833 = vpop.permute.xlu0 %2832
    %v2835 = vsel %vm375, %v2782, %v2833
    %v2837 = vsel %vm498, %v2835, 0
    %2839 = vmatpush.msra.mxu0 0.0
    %2840 = vmatpush.msra.mxu0 0.0
    %2841 = vmatpush.msra.mxu0 0.0
    %2842 = vmatpush.msra.mxu0 0.0
    %2843 = vmatpush.msra.mxu0 0.0
    %2844 = vmatpush.msra.mxu0 0.0
    %2845 = vmatpush.msra.mxu0 0.0
    %2846 = vmatpush.msra.mxu0 0.0
    %2847 = vmatpush.msra.mxu0 0.0
    %2848 = vmatpush.msra.mxu0 %v98
    %2849 = vmatpush.msra.mxu0 %v97
    %2850 = vmatpush.msra.mxu0 %v96
    %2851 = vmatpush.msra.mxu0 %v95
    %2852 = vmatpush.msra.mxu0 %v94
    %2853 = vmatpush.msra.mxu0 %v93
    %2854 = vmatpush.msra.mxu0 %v92
    %2855 = vmatmul.f32.gmra.mxu0 %v2837
    %v2856 = vpop.f32.mrf.mxu0
    %v2857 = vadd.f32 %v107, %v2856
    %2858 = vdwg.mxu0
    %v2859 = vmax.f32 %v2857, 0.0
    %v2861 = vsel %vm370, %v2859, 0
    %2863 = vmatpush.msra.mxu0 0.0
    %2864 = vmatpush.msra.mxu0 0.0
    %2865 = vmatpush.msra.mxu0 0.0
    %2866 = vmatpush.msra.mxu0 0.0
    %2867 = vmatpush.msra.mxu0 0.0
    %2868 = vmatpush.msra.mxu0 0.0
    %2869 = vmatpush.msra.mxu0 0.0
    %2870 = vmatpush.msra.mxu0 0.0
    %2871 = vmatpush.msra.mxu0 0.0
    %2872 = vmatpush.msra.mxu0 0.0
    %2873 = vmatpush.msra.mxu0 0.0
    %2874 = vmatpush.msra.mxu0 0.0
    %2875 = vmatpush.msra.mxu0 %v102
    %2876 = vmatpush.msra.mxu0 %v101
    %2877 = vmatpush.msra.mxu0 %v100
    %2878 = vmatpush.msra.mxu0 %v99
    %2879 = vmatmul.f32.gmra.mxu0 %v2861
    %v2880 = vpop.f32.mrf.mxu0
    %v2881 = vadd.f32 %v108, %v2880
    %2882 = vdwg.mxu0
    %v2883 = vxor.u32 %v2881, 2147483648
    %v2884 = vmul.f32 %v2883, 1.442695
    %v2885 = vpow.pop %v2884
    %v2886 = vadd.f32 %v2885, 1.0
    %v2887 = vrcp.pop %v2886
    %v2888 = vmul.f32 %v2886, %v2887
    %v2889 = vsub.f32 1.0, %v2888
    %v2890 = vmul.f32 %v2887, %v2889
    %v2891 = vadd.f32 %v2887, %v2890
    %vm2892 = vweird.f32 %v2886
    %vm2893 = vweird.f32 %v2887
    %vm2894 = vmor %vm2892, %vm2893
    %v2895 = vsel %vm2894, %v2887, %v2891
    %v2896 = vand.u32 2147483647, %v2886
    %vm2897 = vcmp.eq.f32.partialorder %v2896, 8.507059e+37
    %v2898 = vand.u32 %v2886, 2147483648
    %v2899 = vor.u32 1.1754944e-38, %v2898
    %v2900 = vsel %vm2897, %v2899, %v2895
    %v2901 = vmul.f32 1.0, %v2900
    %v2902 = vmul.f32 %v2901, %v2520
    %2904 = vrot.lane.b32.xlu0 %v2830, 8
    %v2905 = vpop.permute.xlu0 %2904
    %v2907 = vmul.f32 %v2901, %v2905
    %2909 = vrot.lane.b32.xlu0 %v2907, 120
    %v2910 = vpop.permute.xlu0 %2909
    %v2912 = vadd.f32 %v2902, %v2910
    %v2915 = vrot.slane %v2690, 4
    %v2916 = vrot.slane %v2691, 4
    %2917 = vrot.lane.b32.xlu0 %v2915, 40
    %v2918 = vpop.permute.xlu0 %2917
    %2919 = vrot.lane.b32.xlu0 %v2916, 40
    %v2920 = vpop.permute.xlu0 %2919
    %v2921 = vsel %vm582, %v2918, %v2920
    %v2922 = vsel %vm212, %v2921, 0
    %2924 = vmatpush.msra.mxu0 0.0
    %2925 = vmatpush.msra.mxu0 0.0
    %2926 = vmatpush.msra.mxu0 0.0
    %2927 = vmatpush.msra.mxu0 0.0
    %2928 = vmatpush.msra.mxu0 0.0
    %2929 = vmatpush.msra.mxu0 0.0
    %2930 = vmatpush.msra.mxu0 0.0
    %2931 = vmatpush.msra.mxu0 %v73
    %2932 = vmatpush.msra.mxu0 %v70
    %2933 = vmatpush.msra.mxu0 %v67
    %2934 = vmatpush.msra.mxu0 %v64
    %2935 = vmatpush.msra.mxu0 %v61
    %2936 = vmatpush.msra.mxu0 %v58
    %2937 = vmatpush.msra.mxu0 %v55
    %2938 = vmatpush.msra.mxu0 %v52
    %2939 = vmatpush.msra.mxu0 %v49
    %2940 = vmatmul.f32.gmra.mxu0 %v2922
    %v2941 = vpop.f32.mrf.mxu0
    %v2942 = vadd.f32 0.0, %v2941
    %2943 = vdwg.mxu0
    %2944 = vmatpush.msra.mxu0 0.0
    %2945 = vmatpush.msra.mxu0 0.0
    %2946 = vmatpush.msra.mxu0 0.0
    %2947 = vmatpush.msra.mxu0 0.0
    %2948 = vmatpush.msra.mxu0 0.0
    %2949 = vmatpush.msra.mxu0 0.0
    %2950 = vmatpush.msra.mxu0 0.0
    %2951 = vmatpush.msra.mxu0 %v74
    %2952 = vmatpush.msra.mxu0 %v71
    %2953 = vmatpush.msra.mxu0 %v68
    %2954 = vmatpush.msra.mxu0 %v65
    %2955 = vmatpush.msra.mxu0 %v62
    %2956 = vmatpush.msra.mxu0 %v59
    %2957 = vmatpush.msra.mxu0 %v56
    %2958 = vmatpush.msra.mxu0 %v53
    %2959 = vmatpush.msra.mxu0 %v50
    %2960 = vmatmul.f32.gmra.mxu0 %v2922
    %v2961 = vpop.f32.mrf.mxu0
    %v2962 = vadd.f32 0.0, %v2961
    %2963 = vdwg.mxu0
    %2964 = vmatpush.msra.mxu0 0.0
    %2965 = vmatpush.msra.mxu0 0.0
    %2966 = vmatpush.msra.mxu0 0.0
    %2967 = vmatpush.msra.mxu0 0.0
    %2968 = vmatpush.msra.mxu0 0.0
    %2969 = vmatpush.msra.mxu0 0.0
    %2970 = vmatpush.msra.mxu0 0.0
    %2971 = vmatpush.msra.mxu0 %v75
    %2972 = vmatpush.msra.mxu0 %v72
    %2973 = vmatpush.msra.mxu0 %v69
    %2974 = vmatpush.msra.mxu0 %v66
    %2975 = vmatpush.msra.mxu0 %v63
    %2976 = vmatpush.msra.mxu0 %v60
    %2977 = vmatpush.msra.mxu0 %v57
    %2978 = vmatpush.msra.mxu0 %v54
    %2979 = vmatpush.msra.mxu0 %v51
    %2980 = vmatmul.f32.gmra.mxu0 %v2922
    %v2981 = vpop.f32.mrf.mxu0
    %v2982 = vadd.f32 0.0, %v2981
    %2983 = vdwg.mxu0
    %v2987 = vrot.slane %v2942, 2
    %v2988 = vrot.slane %v2962, 2
    %v2989 = vrot.slane %v2982, 2
    %v2993 = vadd.f32 %v164, %v2987
    %v2994 = vadd.f32 %v187, %v2988
    %v2995 = vadd.f32 %v210, %v2989
    %v2996 = vxor.u32 %v2993, 2147483648
    %v2997 = vmul.f32 %v2996, 1.442695
    %v2998 = vpow.pop %v2997
    %v2999 = vadd.f32 %v2998, 1.0
    %v3000 = vrcp.pop %v2999
    %v3001 = vmul.f32 %v2999, %v3000
    %v3002 = vsub.f32 1.0, %v3001
    %v3003 = vmul.f32 %v3000, %v3002
    %v3004 = vadd.f32 %v3000, %v3003
    %vm3005 = vweird.f32 %v2999
    %vm3006 = vweird.f32 %v3000
    %vm3007 = vmor %vm3005, %vm3006
    %v3008 = vsel %vm3007, %v3000, %v3004
    %v3009 = vand.u32 2147483647, %v2999
    %vm3010 = vcmp.eq.f32.partialorder %v3009, 8.507059e+37
    %v3011 = vand.u32 %v2999, 2147483648
    %v3012 = vor.u32 1.1754944e-38, %v3011
    %v3013 = vsel %vm3010, %v3012, %v3008
    %v3014 = vmul.f32 1.0, %v3013
    %v3015 = vxor.u32 %v2994, 2147483648
    %v3016 = vmul.f32 %v3015, 1.442695
    %v3017 = vpow.pop %v3016
    %v3018 = vadd.f32 %v3017, 1.0
    %v3019 = vrcp.pop %v3018
    %v3020 = vmul.f32 %v3018, %v3019
    %v3021 = vsub.f32 1.0, %v3020
    %v3022 = vmul.f32 %v3019, %v3021
    %v3023 = vadd.f32 %v3019, %v3022
    %vm3024 = vweird.f32 %v3018
    %vm3025 = vweird.f32 %v3019
    %vm3026 = vmor %vm3024, %vm3025
    %v3027 = vsel %vm3026, %v3019, %v3023
    %v3028 = vand.u32 2147483647, %v3018
    %vm3029 = vcmp.eq.f32.partialorder %v3028, 8.507059e+37
    %v3030 = vand.u32 %v3018, 2147483648
    %v3031 = vor.u32 1.1754944e-38, %v3030
    %v3032 = vsel %vm3029, %v3031, %v3027
    %v3033 = vmul.f32 1.0, %v3032
    %v3034 = vtanh.pop %v2994
    %v3035 = vxor.u32 %v2995, 2147483648
    %v3036 = vmul.f32 %v3035, 1.442695
    %v3037 = vpow.pop %v3036
    %v3038 = vadd.f32 %v3037, 1.0
    %v3039 = vrcp.pop %v3038
    %v3040 = vmul.f32 %v3038, %v3039
    %v3041 = vsub.f32 1.0, %v3040
    %v3042 = vmul.f32 %v3039, %v3041
    %v3043 = vadd.f32 %v3039, %v3042
    %vm3044 = vweird.f32 %v3038
    %vm3045 = vweird.f32 %v3039
    %vm3046 = vmor %vm3044, %vm3045
    %v3047 = vsel %vm3046, %v3039, %v3043
    %v3048 = vand.u32 2147483647, %v3038
    %vm3049 = vcmp.eq.f32.partialorder %v3048, 8.507059e+37
    %v3050 = vand.u32 %v3038, 2147483648
    %v3051 = vor.u32 1.1754944e-38, %v3050
    %v3052 = vsel %vm3049, %v3051, %v3047
    %v3053 = vmul.f32 1.0, %v3052
    %v3054 = vrot.slane %v2677, 6
    %v3055 = vrot.slane %v2678, 6
    %v3058 = vmul.f32 %v3014, %v3054
    %v3059 = vmul.f32 %v3033, %v3055
    %3061 = vrot.lane.b32.xlu0 %v3034, 112
    %v3062 = vpop.permute.xlu0 %3061
    %v3064 = vmul.f32 %v3014, %v3062
    %3066 = vrot.lane.b32.xlu0 %v3064, 72
    %v3067 = vpop.permute.xlu0 %3066
    %v3069 = vadd.f32 %v3058, %v3067
    %v3070 = vadd.f32 %v3059, %v3067
    %v3071 = vtanh.pop %v3069
    %v3072 = vtanh.pop %v3070
    %3075 = vrot.lane.b32.xlu0 %v3071, 16
    %v3076 = vpop.permute.xlu0 %3075
    %3077 = vrot.lane.b32.xlu0 %v3072, 16
    %v3078 = vpop.permute.xlu0 %3077
    %v3079 = vsel %vm358, %v3076, %v3078
    %v3082 = vmul.f32 %v3033, %v3076
    %v3083 = vmul.f32 %v3053, %v3079
    %3084 = vrot.lane.b32.xlu0 %v2677, 8
    %v3085 = vpop.permute.xlu0 %3084
    %3086 = vrot.lane.b32.xlu0 %v2678, 8
    %v3087 = vpop.permute.xlu0 %3086
    %v3088 = vsel %vm750, %v3085, %v3087
    %v3092 = vrot.slane %v3069, 2
    %v3093 = vrot.slane %v3070, 2
    %3094 = vrot.lane.b32.xlu0 %v3092, 32
    %v3095 = vpop.permute.xlu0 %3094
    %3096 = vrot.lane.b32.xlu0 %v3093, 32
    %v3097 = vpop.permute.xlu0 %3096
    %v3098 = vsel %vm370, %v3095, %v3097
    %v3100 = vsel %vm373, %v3088, %v3098
    %v3102 = vrot.slane %v3100, 4
    %v3103 = vsel %vm375, %v3102, 0
    %3105 = vmatpush.msra.mxu0 0.0
    %3106 = vmatpush.msra.mxu0 0.0
    %3107 = vmatpush.msra.mxu0 0.0
    %3108 = vmatpush.msra.mxu0 0.0
    %3109 = vmatpush.msra.mxu0 0.0
    %3110 = vmatpush.msra.mxu0 0.0
    %3111 = vmatpush.msra.mxu0 0.0
    %3112 = vmatpush.msra.mxu0 0.0
    %3113 = vmatpush.msra.mxu0 0.0
    %3114 = vmatpush.msra.mxu0 0.0
    %3115 = vmatpush.msra.mxu0 %v81
    %3116 = vmatpush.msra.mxu0 %v80
    %3117 = vmatpush.msra.mxu0 %v79
    %3118 = vmatpush.msra.mxu0 %v78
    %3119 = vmatpush.msra.mxu0 %v77
    %3120 = vmatpush.msra.mxu0 %v76
    %3121 = vmatmul.f32.gmra.mxu0 %v3103
    %v3122 = vpop.f32.mrf.mxu0
    %v3123 = vadd.f32 %v103, %v3122
    %3124 = vdwg.mxu0
    %v3125 = vmax.f32 %v3123, 0.0
    %v3127 = vsel %vm358, %v3125, 0
    %3129 = vmatpush.msra.mxu0 0.0
    %3130 = vmatpush.msra.mxu0 0.0
    %3131 = vmatpush.msra.mxu0 0.0
    %3132 = vmatpush.msra.mxu0 0.0
    %3133 = vmatpush.msra.mxu0 0.0
    %3134 = vmatpush.msra.mxu0 0.0
    %3135 = vmatpush.msra.mxu0 0.0
    %3136 = vmatpush.msra.mxu0 0.0
    %3137 = vmatpush.msra.mxu0 0.0
    %3138 = vmatpush.msra.mxu0 0.0
    %3139 = vmatpush.msra.mxu0 0.0
    %3140 = vmatpush.msra.mxu0 0.0
    %3141 = vmatpush.msra.mxu0 0.0
    %3142 = vmatpush.msra.mxu0 0.0
    %3143 = vmatpush.msra.mxu0 %v83
    %3144 = vmatpush.msra.mxu0 %v82
    %3145 = vmatmul.f32.gmra.mxu0 %v3127
    %v3146 = vpop.f32.mrf.mxu0
    %v3147 = vadd.f32 %v104, %v3146
    %3148 = vdwg.mxu0
    %v3149 = vsel %vm423, %v3147, -inf
    %3150 = vmax.xlane.f32.xlu0 %v3149
    %v3151 = vpop.xlane.xlu0 %3150
    %v3152 = vsub.f32 %v3147, %v3151
    %v3153 = vmul.f32 %v3152, 1.442695
    %v3154 = vpow.pop %v3153
    %v3155 = vsel %vm423, %v3154, 0.0
    %3156 = vadd.xlane.f32.xlu0 %v3155
    %v3157 = vpop.xlane.xlu0 %3156
    %v3158 = vrcp.pop %v3157
    %v3159 = vmul.f32 %v3157, %v3158
    %v3160 = vsub.f32 1.0, %v3159
    %v3161 = vmul.f32 %v3158, %v3160
    %v3162 = vadd.f32 %v3158, %v3161
    %vm3163 = vweird.f32 %v3157
    %vm3164 = vweird.f32 %v3158
    %vm3165 = vmor %vm3163, %vm3164
    %v3166 = vsel %vm3165, %v3158, %v3162
    %v3167 = vand.u32 2147483647, %v3157
    %vm3168 = vcmp.eq.f32.partialorder %v3167, 8.507059e+37
    %v3169 = vand.u32 %v3157, 2147483648
    %v3170 = vor.u32 1.1754944e-38, %v3169
    %v3171 = vsel %vm3168, %v3170, %v3166
    %v3172 = vmul.f32 %v3154, %v3171
    %v3174 = vmul.f32 %v3172, %v3102
    %v3176 = vsel %vm375, %v3174, 0
    %3178 = vmatpush.msra.mxu0 0.0
    %3179 = vmatpush.msra.mxu0 0.0
    %3180 = vmatpush.msra.mxu0 0.0
    %3181 = vmatpush.msra.mxu0 0.0
    %3182 = vmatpush.msra.mxu0 0.0
    %3183 = vmatpush.msra.mxu0 0.0
    %3184 = vmatpush.msra.mxu0 0.0
    %3185 = vmatpush.msra.mxu0 0.0
    %3186 = vmatpush.msra.mxu0 0.0
    %3187 = vmatpush.msra.mxu0 0.0
    %3188 = vmatpush.msra.mxu0 %v89
    %3189 = vmatpush.msra.mxu0 %v88
    %3190 = vmatpush.msra.mxu0 %v87
    %3191 = vmatpush.msra.mxu0 %v86
    %3192 = vmatpush.msra.mxu0 %v85
    %3193 = vmatpush.msra.mxu0 %v84
    %3194 = vmatmul.f32.gmra.mxu0 %v3176
    %v3195 = vpop.f32.mrf.mxu0
    %v3196 = vadd.f32 %v105, %v3195
    %3197 = vdwg.mxu0
    %v3198 = vmax.f32 %v3196, 0.0
    %v3200 = vsel %vm358, %v3198, 0
    %3202 = vmatpush.msra.mxu0 0.0
    %3203 = vmatpush.msra.mxu0 0.0
    %3204 = vmatpush.msra.mxu0 0.0
    %3205 = vmatpush.msra.mxu0 0.0
    %3206 = vmatpush.msra.mxu0 0.0
    %3207 = vmatpush.msra.mxu0 0.0
    %3208 = vmatpush.msra.mxu0 0.0
    %3209 = vmatpush.msra.mxu0 0.0
    %3210 = vmatpush.msra.mxu0 0.0
    %3211 = vmatpush.msra.mxu0 0.0
    %3212 = vmatpush.msra.mxu0 0.0
    %3213 = vmatpush.msra.mxu0 0.0
    %3214 = vmatpush.msra.mxu0 0.0
    %3215 = vmatpush.msra.mxu0 0.0
    %3216 = vmatpush.msra.mxu0 %v91
    %3217 = vmatpush.msra.mxu0 %v90
    %3218 = vmatmul.f32.gmra.mxu0 %v3200
    %v3219 = vpop.f32.mrf.mxu0
    %v3220 = vadd.f32 %v106, %v3219
    %3221 = vdwg.mxu0
    %v3222 = vtanh.pop %v3220
    %3224 = vrot.lane.b32.xlu0 %v2912, 48
    %v3225 = vpop.permute.xlu0 %3224
    %v3227 = vsel %vm375, %v3174, %v3225
    %v3229 = vsel %vm498, %v3227, 0
    %3231 = vmatpush.msra.mxu0 0.0
    %3232 = vmatpush.msra.mxu0 0.0
    %3233 = vmatpush.msra.mxu0 0.0
    %3234 = vmatpush.msra.mxu0 0.0
    %3235 = vmatpush.msra.mxu0 0.0
    %3236 = vmatpush.msra.mxu0 0.0
    %3237 = vmatpush.msra.mxu0 0.0
    %3238 = vmatpush.msra.mxu0 0.0
    %3239 = vmatpush.msra.mxu0 0.0
    %3240 = vmatpush.msra.mxu0 %v98
    %3241 = vmatpush.msra.mxu0 %v97
    %3242 = vmatpush.msra.mxu0 %v96
    %3243 = vmatpush.msra.mxu0 %v95
    %3244 = vmatpush.msra.mxu0 %v94
    %3245 = vmatpush.msra.mxu0 %v93
    %3246 = vmatpush.msra.mxu0 %v92
    %3247 = vmatmul.f32.gmra.mxu0 %v3229
    %v3248 = vpop.f32.mrf.mxu0
    %v3249 = vadd.f32 %v107, %v3248
    %3250 = vdwg.mxu0
    %v3251 = vmax.f32 %v3249, 0.0
    %v3253 = vsel %vm370, %v3251, 0
    %3255 = vmatpush.msra.mxu0 0.0
    %3256 = vmatpush.msra.mxu0 0.0
    %3257 = vmatpush.msra.mxu0 0.0
    %3258 = vmatpush.msra.mxu0 0.0
    %3259 = vmatpush.msra.mxu0 0.0
    %3260 = vmatpush.msra.mxu0 0.0
    %3261 = vmatpush.msra.mxu0 0.0
    %3262 = vmatpush.msra.mxu0 0.0
    %3263 = vmatpush.msra.mxu0 0.0
    %3264 = vmatpush.msra.mxu0 0.0
    %3265 = vmatpush.msra.mxu0 0.0
    %3266 = vmatpush.msra.mxu0 0.0
    %3267 = vmatpush.msra.mxu0 %v102
    %3268 = vmatpush.msra.mxu0 %v101
    %3269 = vmatpush.msra.mxu0 %v100
    %3270 = vmatpush.msra.mxu0 %v99
    %3271 = vmatmul.f32.gmra.mxu0 %v3253
    %v3272 = vpop.f32.mrf.mxu0
    %v3273 = vadd.f32 %v108, %v3272
    %3274 = vdwg.mxu0
    %v3275 = vxor.u32 %v3273, 2147483648
    %v3276 = vmul.f32 %v3275, 1.442695
    %v3277 = vpow.pop %v3276
    %v3278 = vadd.f32 %v3277, 1.0
    %v3279 = vrcp.pop %v3278
    %v3280 = vmul.f32 %v3278, %v3279
    %v3281 = vsub.f32 1.0, %v3280
    %v3282 = vmul.f32 %v3279, %v3281
    %v3283 = vadd.f32 %v3279, %v3282
    %vm3284 = vweird.f32 %v3278
    %vm3285 = vweird.f32 %v3279
    %vm3286 = vmor %vm3284, %vm3285
    %v3287 = vsel %vm3286, %v3279, %v3283
    %v3288 = vand.u32 2147483647, %v3278
    %vm3289 = vcmp.eq.f32.partialorder %v3288, 8.507059e+37
    %v3290 = vand.u32 %v3278, 2147483648
    %v3291 = vor.u32 1.1754944e-38, %v3290
    %v3292 = vsel %vm3289, %v3291, %v3287
    %v3293 = vmul.f32 1.0, %v3292
    %v3294 = vmul.f32 %v3293, %v2912
    %3296 = vrot.lane.b32.xlu0 %v3222, 8
    %v3297 = vpop.permute.xlu0 %3296
    %v3299 = vmul.f32 %v3293, %v3297
    %3301 = vrot.lane.b32.xlu0 %v3299, 120
    %v3302 = vpop.permute.xlu0 %3301
    %v3304 = vadd.f32 %v3294, %v3302
    %v3305 = vld [vmem:[#allocation7 + $0x438] sm:$0xff]
    %v3306 = vld [vmem:[#allocation7 + $0x450] sm:$0xff]
    %v3307 = vld [vmem:[#allocation7 + $0x468] sm:$0xff]
    %v3308 = vld [vmem:[#allocation7 + $0x480] sm:$0xff]
    %v3309 = vld [vmem:[#allocation7 + $0x498] sm:$0xff]
    %v3310 = vld [vmem:[#allocation7 + $0x4b0] sm:$0xff]
    %v3311 = vld [vmem:[#allocation7 + $0x4c8] ss:$0 sm:$0xff]
    %v3314 = vrot.slane %v3082, 6
    %v3315 = vrot.slane %v3083, 6
    %3316 = vrot.lane.b32.xlu0 %v3314, 40
    %v3317 = vpop.permute.xlu0 %3316
    %3318 = vrot.lane.b32.xlu0 %v3315, 40
    %v3319 = vpop.permute.xlu0 %3318
    %v3320 = vsel %vm582, %v3317, %v3319
    %v3321 = vsel %vm375, %v3320, 0
    %3323 = vmatpush.msra.mxu0 0.0
    %3324 = vmatpush.msra.mxu0 0.0
    %3325 = vmatpush.msra.mxu0 0.0
    %3326 = vmatpush.msra.mxu0 0.0
    %3327 = vmatpush.msra.mxu0 0.0
    %3328 = vmatpush.msra.mxu0 0.0
    %3329 = vmatpush.msra.mxu0 0.0
    %3330 = vmatpush.msra.mxu0 0.0
    %3331 = vmatpush.msra.mxu0 0.0
    %3332 = vmatpush.msra.mxu0 0.0
    %3333 = vmatpush.msra.mxu0 %v3310
    %3334 = vmatpush.msra.mxu0 %v3309
    %3335 = vmatpush.msra.mxu0 %v3308
    %3336 = vmatpush.msra.mxu0 %v3307
    %3337 = vmatpush.msra.mxu0 %v3306
    %3338 = vmatpush.msra.mxu0 %v3305
    %3339 = vmatmul.f32.gmra.mxu0 %v3321
    %v3340 = vpop.f32.mrf.mxu0
    %v3341 = vadd.f32 %v3311, %v3340
    %3342 = vdwg.mxu0
    %v3343 = vld [vmem:[#allocation7 + $0x4e0] sm:$0xff]
    %v3344 = vld [vmem:[#allocation7 + $0x4f8] sm:$0xff]
    %v3345 = vld [vmem:[#allocation7 + $0x510] sm:$0xff]
    %v3346 = vld [vmem:[#allocation7 + $0x528] sm:$0xff]
    %v3347 = vld [vmem:[#allocation7 + $0x540] sm:$0xff]
    %v3348 = vld [vmem:[#allocation7 + $0x558] sm:$0xff]
    %v3349 = vld [vmem:[#allocation7 + $0x570] ss:$0 sm:$0xff]
    %v3351 = vsel %vm375, %v3341, 0
    %3353 = vmatpush.msra.mxu0 0.0
    %3354 = vmatpush.msra.mxu0 0.0
    %3355 = vmatpush.msra.mxu0 0.0
    %3356 = vmatpush.msra.mxu0 0.0
    %3357 = vmatpush.msra.mxu0 0.0
    %3358 = vmatpush.msra.mxu0 0.0
    %3359 = vmatpush.msra.mxu0 0.0
    %3360 = vmatpush.msra.mxu0 0.0
    %3361 = vmatpush.msra.mxu0 0.0
    %3362 = vmatpush.msra.mxu0 0.0
    %3363 = vmatpush.msra.mxu0 %v3348
    %3364 = vmatpush.msra.mxu0 %v3347
    %3365 = vmatpush.msra.mxu0 %v3346
    %3366 = vmatpush.msra.mxu0 %v3345
    %3367 = vmatpush.msra.mxu0 %v3344
    %3368 = vmatpush.msra.mxu0 %v3343
    %3369 = vmatmul.f32.gmra.mxu0 %v3351
    %v3370 = vpop.f32.mrf.mxu0
    %v3371 = vadd.f32 %v3349, %v3370
    %3372 = vdwg.mxu0
    %3373 = vrot.lane.b32.xlu0 %v3083, 120
    %v3374 = vpop.permute.xlu0 %3373
    %v3377 = vrot.slane %v3304, 2
    %3378 = vrot.lane.b32.xlu0 %v3377, 24
    %v3379 = vpop.permute.xlu0 %3378
    %v3381 = vsel %vm373, %v3374, %v3379
    %v3382 = vld [vmem:[#allocation7 + $0x588] sm:$0xff]
    %v3383 = vld [vmem:[#allocation7 + $0x5a0] sm:$0xff]
    %v3384 = vld [vmem:[#allocation7 + $0x5b8] sm:$0xff]
    %v3385 = vld [vmem:[#allocation7 + $0x5d0] sm:$0xff]
    %v3386 = vld [vmem:[#allocation7 + $0x5e8] ss:$0 sm:$0xff]
    %v3388 = vrot.slane %v3381, 6
    %v3389 = vsel %vm370, %v3388, 0
    %3391 = vmatpush.msra.mxu0 0.0
    %3392 = vmatpush.msra.mxu0 0.0
    %3393 = vmatpush.msra.mxu0 0.0
    %3394 = vmatpush.msra.mxu0 0.0
    %3395 = vmatpush.msra.mxu0 0.0
    %3396 = vmatpush.msra.mxu0 0.0
    %3397 = vmatpush.msra.mxu0 0.0
    %3398 = vmatpush.msra.mxu0 0.0
    %3399 = vmatpush.msra.mxu0 0.0
    %3400 = vmatpush.msra.mxu0 0.0
    %3401 = vmatpush.msra.mxu0 0.0
    %3402 = vmatpush.msra.mxu0 0.0
    %3403 = vmatpush.msra.mxu0 %v3385
    %3404 = vmatpush.msra.mxu0 %v3384
    %3405 = vmatpush.msra.mxu0 %v3383
    %3406 = vmatpush.msra.mxu0 %v3382
    %3407 = vmatmul.f32.gmra.mxu0 %v3389
    %v3408 = vpop.f32.mrf.mxu0
    %v3409 = vadd.f32 %v3386, %v3408
    %3410 = vdwg.mxu0
    %v3411 = vadd.f32 %v3371, 1.0
    %v3412 = vmul.f32 %v3371, %v3371
    %3414 = vrot.lane.b32.xlu0 %v3412, 48
    %v3415 = vpop.permute.xlu0 %3414
    %v3417 = vsub.f32 %v3411, %v3415
    %v3418 = vmul.f32 %v3371, 1.442695
    %v3419 = vpow.pop %v3418
    %v3420 = vsub.f32 %v3417, %v3419
    %3422 = vrot.lane.b32.xlu0 %v3420, 80
    %v3423 = vpop.permute.xlu0 %3422
    %v3425 = vsel %vm423, %v3423, 0.0
    %3426 = vadd.xlane.f32.xlu0 %v3425
    %v3427 = vpop.xlane.xlu0 %3426
    %v3428 = vrot.slane %v3427, 4
    %v3429 = vadd.f32 %v3427, %v3428
    %v3430 = vrot.slane %v3429, 2
    %v3431 = vadd.f32 %v3429, %v3430
    %v3432 = vrot.slane %v3431, 1
    %v3433 = vadd.f32 %v3431, %v3432
    %s3434 = vtos %v3433
    %s3435 = smul.f32 %s3434, -0.5
    %v3436 = vadd.f32 %v3409, 1.0
    %v3437 = vmul.f32 %v3409, %v3409
    %3439 = vrot.lane.b32.xlu0 %v3437, 16
    %v3440 = vpop.permute.xlu0 %3439
    %v3442 = vsub.f32 %v3436, %v3440
    %v3443 = vmul.f32 %v3409, 1.442695
    %v3444 = vpow.pop %v3443
    %v3445 = vsub.f32 %v3442, %v3444
    %3447 = vrot.lane.b32.xlu0 %v3445, 112
    %v3448 = vpop.permute.xlu0 %3447
    %vm3450 = vcmask 123904
    %v3451 = vsel %vm3450, %v3448, 0.0
    %3452 = vadd.xlane.f32.xlu0 %v3451
    %v3453 = vpop.xlane.xlu0 %3452
    %v3454 = vrot.slane %v3453, 4
    %v3455 = vadd.f32 %v3453, %v3454
    %v3456 = vrot.slane %v3455, 2
    %v3457 = vadd.f32 %v3455, %v3456
    %v3458 = vrot.slane %v3457, 1
    %v3459 = vadd.f32 %v3457, %v3458
    %s3460 = vtos %v3459
    %s3461 = smul.f32 %s3460, -0.5
    %s3462 = sadd.f32 %s3435, %s3461
    %s3463 = scalar_lea.smem [#allocation12], 0
    %3464 = sst [smem:[%s3463]] %s3462
    %3466 = vrot.lane.b32.xlu0 %v3409, 48
    %v3467 = vpop.permute.xlu0 %3466
    %v3469 = vsel %vm375, %v3371, %v3467
    %v3470 = vld [vmem:[#allocation7 + $0x600] sm:$0xff]
    %v3471 = vld [vmem:[#allocation7 + $0x618] sm:$0xff]
    %v3472 = vld [vmem:[#allocation7 + $0x630] sm:$0xff]
    %v3473 = vld [vmem:[#allocation7 + $0x648] sm:$0xff]
    %v3474 = vld [vmem:[#allocation7 + $0x660] sm:$0xff]
    %v3475 = vld [vmem:[#allocation7 + $0x678] sm:$0xff]
    %v3476 = vld [vmem:[#allocation7 + $0x690] sm:$0xff]
    %v3477 = vld [vmem:[#allocation7 + $0x6a8] sm:$0xff]
    %v3478 = vld [vmem:[#allocation7 + $0x6c0] ss:$0 sm:$0xff]
    %vm3479 = vcmask 523264
    %v3481 = vsel %vm3479, %v3469, 0
    %3483 = vmatpush.msra.mxu0 0.0
    %3484 = vmatpush.msra.mxu0 0.0
    %3485 = vmatpush.msra.mxu0 0.0
    %3486 = vmatpush.msra.mxu0 0.0
    %3487 = vmatpush.msra.mxu0 0.0
    %3488 = vmatpush.msra.mxu0 0.0
    %3489 = vmatpush.msra.mxu0 0.0
    %3490 = vmatpush.msra.mxu0 0.0
    %3491 = vmatpush.msra.mxu0 %v3477
    %3492 = vmatpush.msra.mxu0 %v3476
    %3493 = vmatpush.msra.mxu0 %v3475
    %3494 = vmatpush.msra.mxu0 %v3474
    %3495 = vmatpush.msra.mxu0 %v3473
    %3496 = vmatpush.msra.mxu0 %v3472
    %3497 = vmatpush.msra.mxu0 %v3471
    %3498 = vmatpush.msra.mxu0 %v3470
    %3499 = vmatmul.f32.gmra.mxu0 %v3481
    %v3500 = vpop.f32.mrf.mxu0
    %v3501 = vadd.f32 %v3478, %v3500
    %3502 = vdwg.mxu0
    %v3503 = vmax.f32 %v3501, 0.0
    %v3504 = vld [vmem:[#allocation7 + $0x6d8] sm:$0xff]
    %v3505 = vld [vmem:[#allocation7 + $0x6f0] sm:$0xff]
    %v3506 = vld [vmem:[#allocation7 + $0x708] sm:$0xff]
    %v3507 = vld [vmem:[#allocation7 + $0x720] sm:$0xff]
    %v3508 = vld [vmem:[#allocation7 + $0x738] sm:$0xff]
    %v3509 = vld [vmem:[#allocation7 + $0x750] sm:$0xff]
    %v3510 = vld [vmem:[#allocation7 + $0x768] sm:$0xff]
    %v3511 = vld [vmem:[#allocation7 + $0x780] sm:$0xff]
    %v3512 = vld [vmem:[#allocation7 + $0x798] ss:$0 sm:$0xff]
    %v3514 = vsel %vm3479, %v3503, 0
    %3516 = vmatpush.msra.mxu0 0.0
    %3517 = vmatpush.msra.mxu0 0.0
    %3518 = vmatpush.msra.mxu0 0.0
    %3519 = vmatpush.msra.mxu0 0.0
    %3520 = vmatpush.msra.mxu0 0.0
    %3521 = vmatpush.msra.mxu0 0.0
    %3522 = vmatpush.msra.mxu0 0.0
    %3523 = vmatpush.msra.mxu0 0.0
    %3524 = vmatpush.msra.mxu0 %v3511
    %3525 = vmatpush.msra.mxu0 %v3510
    %3526 = vmatpush.msra.mxu0 %v3509
    %3527 = vmatpush.msra.mxu0 %v3508
    %3528 = vmatpush.msra.mxu0 %v3507
    %3529 = vmatpush.msra.mxu0 %v3506
    %3530 = vmatpush.msra.mxu0 %v3505
    %3531 = vmatpush.msra.mxu0 %v3504
    %3532 = vmatmul.f32.gmra.mxu0 %v3514
    %v3533 = vpop.f32.mrf.mxu0
    %v3534 = vadd.f32 %v3512, %v3533
    %3535 = vdwg.mxu0
    %v3536 = vmax.f32 %v3534, 0.0
    %v3537 = vld [vmem:[#allocation7 + $0x7b0] sm:$0xff]
    %v3538 = vld [vmem:[#allocation7 + $0x7c8] sm:$0xff]
    %v3539 = vld [vmem:[#allocation7 + $0x7e0] ss:$0 sm:$0xff]
    %3541 = vrot.lane.b32.xlu0 %v3536, 80
    %v3542 = vpop.permute.xlu0 %3541
    %v3543 = vsel %vm358, %v3542, 0
    %3545 = vmatpush.msra.mxu0 0.0
    %3546 = vmatpush.msra.mxu0 0.0
    %3547 = vmatpush.msra.mxu0 0.0
    %3548 = vmatpush.msra.mxu0 0.0
    %3549 = vmatpush.msra.mxu0 0.0
    %3550 = vmatpush.msra.mxu0 0.0
    %3551 = vmatpush.msra.mxu0 0.0
    %3552 = vmatpush.msra.mxu0 0.0
    %3553 = vmatpush.msra.mxu0 0.0
    %3554 = vmatpush.msra.mxu0 0.0
    %3555 = vmatpush.msra.mxu0 0.0
    %3556 = vmatpush.msra.mxu0 0.0
    %3557 = vmatpush.msra.mxu0 0.0
    %3558 = vmatpush.msra.mxu0 0.0
    %3559 = vmatpush.msra.mxu0 %v3538
    %3560 = vmatpush.msra.mxu0 %v3537
    %3561 = vmatmul.f32.gmra.mxu0 %v3543
    %v3562 = vpop.f32.mrf.mxu0
    %v3563 = vadd.f32 %v3539, %v3562
    %3564 = vdwg.mxu0
    %v3565 = vmax.f32 %v3563, 0.0
    %v3566 = vld [vmem:[#allocation7 + $0x7f8] sm:$0xff]
    %v3567 = vld [vmem:[#allocation7 + $0x810] sm:$0xff]
    %v3568 = vld [vmem:[#allocation7 + $0x828] ss:$0 sm:$0xff]
    %v3570 = vsel %vm358, %v3565, 0
    %3572 = vmatpush.msra.mxu0 0.0
    %3573 = vmatpush.msra.mxu0 0.0
    %3574 = vmatpush.msra.mxu0 0.0
    %3575 = vmatpush.msra.mxu0 0.0
    %3576 = vmatpush.msra.mxu0 0.0
    %3577 = vmatpush.msra.mxu0 0.0
    %3578 = vmatpush.msra.mxu0 0.0
    %3579 = vmatpush.msra.mxu0 0.0
    %3580 = vmatpush.msra.mxu0 0.0
    %3581 = vmatpush.msra.mxu0 0.0
    %3582 = vmatpush.msra.mxu0 0.0
    %3583 = vmatpush.msra.mxu0 0.0
    %3584 = vmatpush.msra.mxu0 0.0
    %3585 = vmatpush.msra.mxu0 0.0
    %3586 = vmatpush.msra.mxu0 %v3567
    %3587 = vmatpush.msra.mxu0 %v3566
    %3588 = vmatmul.f32.gmra.mxu0 %v3570
    %v3589 = vpop.f32.mrf.mxu0
    %v3590 = vadd.f32 %v3568, %v3589
    %3591 = vdwg.mxu0
    %vm3592 = vcmask 25600
    %3593 = vst.msk [vmem:[#allocation10] sm:$0x3] %vm3592, %v3590
    %3595 = vrot.lane.b32.xlu0 %v3536, 16
    %v3596 = vpop.permute.xlu0 %3595
    %3598 = vrot.lane.b32.xlu0 %v3536, 112
    %v3599 = vpop.permute.xlu0 %3598
    %3601 = vrot.lane.b32.xlu0 %v3536, 32
    %v3602 = vpop.permute.xlu0 %3601
    %3604 = vrot.lane.b32.xlu0 %v3536, 48
    %v3605 = vpop.permute.xlu0 %3604
    %v3607 = vsel %vm358, %v3542, %v3596
    %v3608 = vsel %vm370, %v3607, %v3599
    %v3609 = vsel %vm375, %v3608, %v3602
    %v3610 = vsel %vm3479, %v3609, %v3596
    %vm3611 = vcmask 654336
    %v3612 = vsel %vm3611, %v3610, %v3605
    %v3613 = vld [vmem:[#allocation7 + $0x840] sm:$0xff]
    %v3614 = vld [vmem:[#allocation7 + $0x848] sm:$0xff]
    %v3615 = vld [vmem:[#allocation7 + $0x850] sm:$0xff]
    %v3616 = vld [vmem:[#allocation7 + $0x858] sm:$0xff]
    %v3617 = vld [vmem:[#allocation7 + $0x860] sm:$0xff]
    %v3618 = vld [vmem:[#allocation7 + $0x868] sm:$0xff]
    %v3619 = vld [vmem:[#allocation7 + $0x870] sm:$0xff]
    %v3620 = vld [vmem:[#allocation7 + $0x878] sm:$0xff]
    %v3621 = vld [vmem:[#allocation7 + $0x880] sm:$0xff]
    %v3622 = vld [vmem:[#allocation7 + $0x888] sm:$0xff]
    %v3623 = vld [vmem:[#allocation7 + $0x890] sm:$0xff]
    %v3624 = vld [vmem:[#allocation7 + $0x898] sm:$0xff]
    %v3625 = vld [vmem:[#allocation7 + $0x8a0] sm:$0xff]
    %v3626 = vld [vmem:[#allocation7 + $0x8a8] sm:$0xff]
    %v3627 = vld [vmem:[#allocation7 + $0x8b0] sm:$0xff]
    %v3628 = vld [vmem:[#allocation7 + $0x8b8] sm:$0xff]
    %v3629 = vld [vmem:[#allocation7 + $0x8c0] sm:$0xff]
    %v3630 = vld [vmem:[#allocation7 + $0x8c8] sm:$0xff]
    %v3631 = vld [vmem:[#allocation7 + $0x8d0] sm:$0xff]
    %v3632 = vld [vmem:[#allocation7 + $0x8d8] sm:$0xff]
    %v3633 = vld [vmem:[#allocation7 + $0x8e0] sm:$0xff]
    %v3634 = vld [vmem:[#allocation7 + $0x8e8] sm:$0xff]
    %v3635 = vld [vmem:[#allocation7 + $0x8f0] sm:$0xff]
    %v3636 = vld [vmem:[#allocation7 + $0x8f8] sm:$0xff]
    %v3637 = vld [vmem:[#allocation7 + $0x900] sm:$0xff]
    %v3638 = vld [vmem:[#allocation7 + $0x908] sm:$0xff]
    %v3639 = vld [vmem:[#allocation7 + $0x910] sm:$0xff]
    %v3640 = vld [vmem:[#allocation7 + $0x918] sm:$0xff]
    %v3641 = vld [vmem:[#allocation7 + $0x920] sm:$0xff]
    %v3642 = vld [vmem:[#allocation7 + $0x928] sm:$0xff]
    %v3643 = vld [vmem:[#allocation7 + $0x930] sm:$0xff]
    %v3644 = vld [vmem:[#allocation7 + $0x938] sm:$0xff]
    %v3645 = vld [vmem:[#allocation7 + $0x940] sm:$0xff]
    %v3646 = vld [vmem:[#allocation7 + $0x948] sm:$0xff]
    %v3647 = vld [vmem:[#allocation7 + $0x950] sm:$0xff]
    %v3648 = vld [vmem:[#allocation7 + $0x958] sm:$0xff]
    %v3649 = vld [vmem:[#allocation7 + $0x960] sm:$0xff]
    %v3650 = vld [vmem:[#allocation7 + $0x968] sm:$0xff]
    %v3651 = vld [vmem:[#allocation7 + $0x970] sm:$0xff]
    %v3652 = vld [vmem:[#allocation7 + $0x978] sm:$0xff]
    %v3653 = vld [vmem:[#allocation7 + $0x980] sm:$0xff]
    %v3654 = vld [vmem:[#allocation7 + $0x988] sm:$0xff]
    %v3655 = vld [vmem:[#allocation7 + $0x990] sm:$0xff]
    %v3656 = vld [vmem:[#allocation7 + $0x998] sm:$0xff]
    %v3657 = vld [vmem:[#allocation7 + $0x9a0] sm:$0xff]
    %v3658 = vld [vmem:[#allocation7 + $0x9a8] sm:$0xff]
    %v3659 = vld [vmem:[#allocation7 + $0x9b0] sm:$0xff]
    %v3660 = vld [vmem:[#allocation7 + $0x9b8] sm:$0xff]
    %v3661 = vld [vmem:[#allocation7 + $0x9c0] sm:$0xff]
    %v3662 = vld [vmem:[#allocation7 + $0x9c8] sm:$0xff]
    %v3663 = vld [vmem:[#allocation7 + $0x9d0] sm:$0xff]
    %v3664 = vld [vmem:[#allocation7 + $0x9d8] sm:$0xff]
    %v3665 = vld [vmem:[#allocation7 + $0x9e0] sm:$0xff]
    %v3666 = vld [vmem:[#allocation7 + $0x9e8] sm:$0xff]
    %v3667 = vld [vmem:[#allocation7 + $0x9f0] sm:$0xff]
    %v3668 = vld [vmem:[#allocation7 + $0x9f8] sm:$0xff]
    %v3669 = vld [vmem:[#allocation7 + $0xa00] sm:$0xff]
    %v3670 = vld [vmem:[#allocation7 + $0xa08] sm:$0xff]
    %v3671 = vld [vmem:[#allocation7 + $0xa10] sm:$0xff]
    %v3672 = vld [vmem:[#allocation7 + $0xa18] sm:$0xff]
    %v3673 = vld [vmem:[#allocation7 + $0xa20] sm:$0xff]
    %v3674 = vld [vmem:[#allocation7 + $0xa28] sm:$0xff]
    %v3675 = vld [vmem:[#allocation7 + $0xa30] sm:$0xff]
    %v3676 = vld [vmem:[#allocation7 + $0xa38] sm:$0xff]
    %v3677 = vld [vmem:[#allocation7 + $0xa40] sm:$0xff]
    %v3678 = vld [vmem:[#allocation7 + $0xa48] sm:$0xff]
    %v3679 = vld [vmem:[#allocation7 + $0xa50] sm:$0xff]
    %v3680 = vld [vmem:[#allocation7 + $0xa58] sm:$0xff]
    %v3681 = vld [vmem:[#allocation7 + $0xa60] sm:$0xff]
    %v3682 = vld [vmem:[#allocation7 + $0xa68] sm:$0xff]
    %v3683 = vld [vmem:[#allocation7 + $0xa70] sm:$0xff]
    %v3684 = vld [vmem:[#allocation7 + $0xa78] sm:$0xff]
    %s3685 = scalar_lea.vmem [#allocation7], 2688
    %v3686 = vld [vmem:[%s3685] ss:$8 sm:$0x7]
    %v3688 = vperm.slane %v3686, 0
    %v3689 = vperm.slane %v3686, 1
    %v3690 = vperm.slane %v3686, 2
    %vm3694 = vcmask 785408
    %v3696 = vsel %vm3694, %v3612, 0
    %3698 = vmatpush.msra.mxu0 0.0
    %3699 = vmatpush.msra.mxu0 0.0
    %3700 = vmatpush.msra.mxu0 0.0
    %3701 = vmatpush.msra.mxu0 0.0
    %3702 = vmatpush.msra.mxu0 %v3646
    %3703 = vmatpush.msra.mxu0 %v3643
    %3704 = vmatpush.msra.mxu0 %v3640
    %3705 = vmatpush.msra.mxu0 %v3637
    %3706 = vmatpush.msra.mxu0 %v3634
    %3707 = vmatpush.msra.mxu0 %v3631
    %3708 = vmatpush.msra.mxu0 %v3628
    %3709 = vmatpush.msra.mxu0 %v3625
    %3710 = vmatpush.msra.mxu0 %v3622
    %3711 = vmatpush.msra.mxu0 %v3619
    %3712 = vmatpush.msra.mxu0 %v3616
    %3713 = vmatpush.msra.mxu0 %v3613
    %3714 = vmatmul.f32.gmra.mxu0 %v3696
    %v3715 = vpop.f32.mrf.mxu0
    %v3716 = vadd.f32 %v3688, %v3715
    %3717 = vdwg.mxu0
    %3718 = vmatpush.msra.mxu0 0.0
    %3719 = vmatpush.msra.mxu0 0.0
    %3720 = vmatpush.msra.mxu0 0.0
    %3721 = vmatpush.msra.mxu0 0.0
    %3722 = vmatpush.msra.mxu0 %v3647
    %3723 = vmatpush.msra.mxu0 %v3644
    %3724 = vmatpush.msra.mxu0 %v3641
    %3725 = vmatpush.msra.mxu0 %v3638
    %3726 = vmatpush.msra.mxu0 %v3635
    %3727 = vmatpush.msra.mxu0 %v3632
    %3728 = vmatpush.msra.mxu0 %v3629
    %3729 = vmatpush.msra.mxu0 %v3626
    %3730 = vmatpush.msra.mxu0 %v3623
    %3731 = vmatpush.msra.mxu0 %v3620
    %3732 = vmatpush.msra.mxu0 %v3617
    %3733 = vmatpush.msra.mxu0 %v3614
    %3734 = vmatmul.f32.gmra.mxu0 %v3696
    %v3735 = vpop.f32.mrf.mxu0
    %v3736 = vadd.f32 %v3689, %v3735
    %3737 = vdwg.mxu0
    %3738 = vmatpush.msra.mxu0 0.0
    %3739 = vmatpush.msra.mxu0 0.0
    %3740 = vmatpush.msra.mxu0 0.0
    %3741 = vmatpush.msra.mxu0 0.0
    %3742 = vmatpush.msra.mxu0 %v3648
    %3743 = vmatpush.msra.mxu0 %v3645
    %3744 = vmatpush.msra.mxu0 %v3642
    %3745 = vmatpush.msra.mxu0 %v3639
    %3746 = vmatpush.msra.mxu0 %v3636
    %3747 = vmatpush.msra.mxu0 %v3633
    %3748 = vmatpush.msra.mxu0 %v3630
    %3749 = vmatpush.msra.mxu0 %v3627
    %3750 = vmatpush.msra.mxu0 %v3624
    %3751 = vmatpush.msra.mxu0 %v3621
    %3752 = vmatpush.msra.mxu0 %v3618
    %3753 = vmatpush.msra.mxu0 %v3615
    %3754 = vmatmul.f32.gmra.mxu0 %v3696
    %v3755 = vpop.f32.mrf.mxu0
    %v3756 = vadd.f32 %v3690, %v3755
    %3757 = vdwg.mxu0
    %v3758 = vxor.u32 %v3716, 2147483648
    %v3759 = vmul.f32 %v3758, 1.442695
    %v3760 = vpow.pop %v3759
    %v3761 = vadd.f32 %v3760, 1.0
    %v3762 = vrcp.pop %v3761
    %v3763 = vmul.f32 %v3761, %v3762
    %v3764 = vsub.f32 1.0, %v3763
    %v3765 = vmul.f32 %v3762, %v3764
    %v3766 = vadd.f32 %v3762, %v3765
    %vm3767 = vweird.f32 %v3761
    %vm3768 = vweird.f32 %v3762
    %vm3769 = vmor %vm3767, %vm3768
    %v3770 = vsel %vm3769, %v3762, %v3766
    %v3771 = vand.u32 2147483647, %v3761
    %vm3772 = vcmp.eq.f32.partialorder %v3771, 8.507059e+37
    %v3773 = vand.u32 %v3761, 2147483648
    %v3774 = vor.u32 1.1754944e-38, %v3773
    %v3775 = vsel %vm3772, %v3774, %v3770
    %v3776 = vmul.f32 1.0, %v3775
    %v3777 = vxor.u32 %v3736, 2147483648
    %v3778 = vmul.f32 %v3777, 1.442695
    %v3779 = vpow.pop %v3778
    %v3780 = vadd.f32 %v3779, 1.0
    %v3781 = vrcp.pop %v3780
    %v3782 = vmul.f32 %v3780, %v3781
    %v3783 = vsub.f32 1.0, %v3782
    %v3784 = vmul.f32 %v3781, %v3783
    %v3785 = vadd.f32 %v3781, %v3784
    %vm3786 = vweird.f32 %v3780
    %vm3787 = vweird.f32 %v3781
    %vm3788 = vmor %vm3786, %vm3787
    %v3789 = vsel %vm3788, %v3781, %v3785
    %v3790 = vand.u32 2147483647, %v3780
    %vm3791 = vcmp.eq.f32.partialorder %v3790, 8.507059e+37
    %v3792 = vand.u32 %v3780, 2147483648
    %v3793 = vor.u32 1.1754944e-38, %v3792
    %v3794 = vsel %vm3791, %v3793, %v3789
    %v3795 = vmul.f32 1.0, %v3794
    %v3796 = vtanh.pop %v3736
    %v3797 = vtanh.pop %v3756
    %v3798 = vxor.u32 %v3756, 2147483648
    %v3799 = vmul.f32 %v3798, 1.442695
    %v3800 = vpow.pop %v3799
    %v3801 = vadd.f32 %v3800, 1.0
    %v3802 = vrcp.pop %v3801
    %v3803 = vmul.f32 %v3801, %v3802
    %v3804 = vsub.f32 1.0, %v3803
    %v3805 = vmul.f32 %v3802, %v3804
    %v3806 = vadd.f32 %v3802, %v3805
    %vm3807 = vweird.f32 %v3801
    %vm3808 = vweird.f32 %v3802
    %vm3809 = vmor %vm3807, %vm3808
    %v3810 = vsel %vm3809, %v3802, %v3806
    %v3811 = vand.u32 2147483647, %v3801
    %vm3812 = vcmp.eq.f32.partialorder %v3811, 8.507059e+37
    %v3813 = vand.u32 %v3801, 2147483648
    %v3814 = vor.u32 1.1754944e-38, %v3813
    %v3815 = vsel %vm3812, %v3814, %v3810
    %v3816 = vmul.f32 1.0, %v3815
    %v3817 = vmul.f32 %v3776, 0.0
    %v3818 = vmul.f32 %v3795, 0.0
    %3821 = vrot.lane.b32.xlu0 %v3796, 64
    %v3822 = vpop.permute.xlu0 %3821
    %3823 = vrot.lane.b32.xlu0 %v3797, 64
    %v3824 = vpop.permute.xlu0 %3823
    %v3825 = vsel %vm3479, %v3822, %v3824
    %v3827 = vmul.f32 %v3776, %v3825
    %3829 = vrot.lane.b32.xlu0 %v3827, 96
    %v3830 = vpop.permute.xlu0 %3829
    %v3832 = vadd.f32 %v3817, %v3830
    %v3833 = vadd.f32 %v3818, %v3830
    %v3834 = vtanh.pop %v3832
    %v3835 = vtanh.pop %v3833
    %3838 = vrot.lane.b32.xlu0 %v3834, 64
    %v3839 = vpop.permute.xlu0 %3838
    %3840 = vrot.lane.b32.xlu0 %v3835, 64
    %v3841 = vpop.permute.xlu0 %3840
    %v3842 = vsel %vm3479, %v3839, %v3841
    %v3844 = vmul.f32 %v3816, %v3842
    %3846 = vrot.lane.b32.xlu0 %v3844, 96
    %v3847 = vpop.permute.xlu0 %3846
    %vm3849 = vcmask 779264
    %3850 = vst.msk [vmem:[#allocation2] sm:$0x3] %vm3849, %v3847
    %v3851 = vsel %vm3694, %v3847, 0
    %3853 = vmatpush.msra.mxu0 0.0
    %3854 = vmatpush.msra.mxu0 0.0
    %3855 = vmatpush.msra.mxu0 0.0
    %3856 = vmatpush.msra.mxu0 0.0
    %3857 = vmatpush.msra.mxu0 %v3682
    %3858 = vmatpush.msra.mxu0 %v3679
    %3859 = vmatpush.msra.mxu0 %v3676
    %3860 = vmatpush.msra.mxu0 %v3673
    %3861 = vmatpush.msra.mxu0 %v3670
    %3862 = vmatpush.msra.mxu0 %v3667
    %3863 = vmatpush.msra.mxu0 %v3664
    %3864 = vmatpush.msra.mxu0 %v3661
    %3865 = vmatpush.msra.mxu0 %v3658
    %3866 = vmatpush.msra.mxu0 %v3655
    %3867 = vmatpush.msra.mxu0 %v3652
    %3868 = vmatpush.msra.mxu0 %v3649
    %3869 = vmatmul.f32.gmra.mxu0 %v3851
    %v3870 = vpop.f32.mrf.mxu0
    %v3871 = vadd.f32 %v3688, %v3870
    %3872 = vdwg.mxu0
    %3873 = vmatpush.msra.mxu0 0.0
    %3874 = vmatpush.msra.mxu0 0.0
    %3875 = vmatpush.msra.mxu0 0.0
    %3876 = vmatpush.msra.mxu0 0.0
    %3877 = vmatpush.msra.mxu0 %v3683
    %3878 = vmatpush.msra.mxu0 %v3680
    %3879 = vmatpush.msra.mxu0 %v3677
    %3880 = vmatpush.msra.mxu0 %v3674
    %3881 = vmatpush.msra.mxu0 %v3671
    %3882 = vmatpush.msra.mxu0 %v3668
    %3883 = vmatpush.msra.mxu0 %v3665
    %3884 = vmatpush.msra.mxu0 %v3662
    %3885 = vmatpush.msra.mxu0 %v3659
    %3886 = vmatpush.msra.mxu0 %v3656
    %3887 = vmatpush.msra.mxu0 %v3653
    %3888 = vmatpush.msra.mxu0 %v3650
    %3889 = vmatmul.f32.gmra.mxu0 %v3851
    %v3890 = vpop.f32.mrf.mxu0
    %v3891 = vadd.f32 %v3689, %v3890
    %3892 = vdwg.mxu0
    %3893 = vmatpush.msra.mxu0 0.0
    %3894 = vmatpush.msra.mxu0 0.0
    %3895 = vmatpush.msra.mxu0 0.0
    %3896 = vmatpush.msra.mxu0 0.0
    %3897 = vmatpush.msra.mxu0 %v3684
    %3898 = vmatpush.msra.mxu0 %v3681
    %3899 = vmatpush.msra.mxu0 %v3678
    %3900 = vmatpush.msra.mxu0 %v3675
    %3901 = vmatpush.msra.mxu0 %v3672
    %3902 = vmatpush.msra.mxu0 %v3669
    %3903 = vmatpush.msra.mxu0 %v3666
    %3904 = vmatpush.msra.mxu0 %v3663
    %3905 = vmatpush.msra.mxu0 %v3660
    %3906 = vmatpush.msra.mxu0 %v3657
    %3907 = vmatpush.msra.mxu0 %v3654
    %3908 = vmatpush.msra.mxu0 %v3651
    %3909 = vmatmul.f32.gmra.mxu0 %v3851
    %v3910 = vpop.f32.mrf.mxu0
    %v3911 = vadd.f32 %v3690, %v3910
    %3912 = vdwg.mxu0
    %v3913 = vxor.u32 %v3871, 2147483648
    %v3914 = vmul.f32 %v3913, 1.442695
    %v3915 = vpow.pop %v3914
    %v3916 = vadd.f32 %v3915, 1.0
    %v3917 = vrcp.pop %v3916
    %v3918 = vmul.f32 %v3916, %v3917
    %v3919 = vsub.f32 1.0, %v3918
    %v3920 = vmul.f32 %v3917, %v3919
    %v3921 = vadd.f32 %v3917, %v3920
    %vm3922 = vweird.f32 %v3916
    %vm3923 = vweird.f32 %v3917
    %vm3924 = vmor %vm3922, %vm3923
    %v3925 = vsel %vm3924, %v3917, %v3921
    %v3926 = vand.u32 2147483647, %v3916
    %vm3927 = vcmp.eq.f32.partialorder %v3926, 8.507059e+37
    %v3928 = vand.u32 %v3916, 2147483648
    %v3929 = vor.u32 1.1754944e-38, %v3928
    %v3930 = vsel %vm3927, %v3929, %v3925
    %v3931 = vmul.f32 1.0, %v3930
    %v3932 = vxor.u32 %v3891, 2147483648
    %v3933 = vmul.f32 %v3932, 1.442695
    %v3934 = vpow.pop %v3933
    %v3935 = vadd.f32 %v3934, 1.0
    %v3936 = vrcp.pop %v3935
    %v3937 = vmul.f32 %v3935, %v3936
    %v3938 = vsub.f32 1.0, %v3937
    %v3939 = vmul.f32 %v3936, %v3938
    %v3940 = vadd.f32 %v3936, %v3939
    %vm3941 = vweird.f32 %v3935
    %vm3942 = vweird.f32 %v3936
    %vm3943 = vmor %vm3941, %vm3942
    %v3944 = vsel %vm3943, %v3936, %v3940
    %v3945 = vand.u32 2147483647, %v3935
    %vm3946 = vcmp.eq.f32.partialorder %v3945, 8.507059e+37
    %v3947 = vand.u32 %v3935, 2147483648
    %v3948 = vor.u32 1.1754944e-38, %v3947
    %v3949 = vsel %vm3946, %v3948, %v3944
    %v3950 = vmul.f32 1.0, %v3949
    %v3951 = vtanh.pop %v3891
    %v3952 = vtanh.pop %v3911
    %v3953 = vxor.u32 %v3911, 2147483648
    %v3954 = vmul.f32 %v3953, 1.442695
    %v3955 = vpow.pop %v3954
    %v3956 = vadd.f32 %v3955, 1.0
    %v3957 = vrcp.pop %v3956
    %v3958 = vmul.f32 %v3956, %v3957
    %v3959 = vsub.f32 1.0, %v3958
    %v3960 = vmul.f32 %v3957, %v3959
    %v3961 = vadd.f32 %v3957, %v3960
    %vm3962 = vweird.f32 %v3956
    %vm3963 = vweird.f32 %v3957
    %vm3964 = vmor %vm3962, %vm3963
    %v3965 = vsel %vm3964, %v3957, %v3961
    %v3966 = vand.u32 2147483647, %v3956
    %vm3967 = vcmp.eq.f32.partialorder %v3966, 8.507059e+37
    %v3968 = vand.u32 %v3956, 2147483648
    %v3969 = vor.u32 1.1754944e-38, %v3968
    %v3970 = vsel %vm3967, %v3969, %v3965
    %v3971 = vmul.f32 1.0, %v3970
    %v3972 = vmul.f32 %v3931, %v3832
    %v3973 = vmul.f32 %v3950, %v3833
    %3976 = vrot.lane.b32.xlu0 %v3951, 64
    %v3977 = vpop.permute.xlu0 %3976
    %3978 = vrot.lane.b32.xlu0 %v3952, 64
    %v3979 = vpop.permute.xlu0 %3978
    %v3980 = vsel %vm3479, %v3977, %v3979
    %v3982 = vmul.f32 %v3931, %v3980
    %3984 = vrot.lane.b32.xlu0 %v3982, 96
    %v3985 = vpop.permute.xlu0 %3984
    %v3987 = vadd.f32 %v3972, %v3985
    %v3988 = vadd.f32 %v3973, %v3985
    %v3989 = vtanh.pop %v3987
    %v3990 = vtanh.pop %v3988
    %3993 = vrot.lane.b32.xlu0 %v3989, 64
    %v3994 = vpop.permute.xlu0 %3993
    %3995 = vrot.lane.b32.xlu0 %v3990, 64
    %v3996 = vpop.permute.xlu0 %3995
    %v3997 = vsel %vm3479, %v3994, %v3996
    %v3999 = vmul.f32 %v3971, %v3997
    %4001 = vrot.lane.b32.xlu0 %v3999, 96
    %v4002 = vpop.permute.xlu0 %4001
    %4004 = vst.msk [vmem:[#allocation2 + $0x2] sm:$0x3] %vm3849, %v4002
    %v4005 = vsel %vm3694, %v4002, 0
    %4007 = vmatpush.msra.mxu0 0.0
    %4008 = vmatpush.msra.mxu0 0.0
    %4009 = vmatpush.msra.mxu0 0.0
    %4010 = vmatpush.msra.mxu0 0.0
    %4011 = vmatpush.msra.mxu0 %v3682
    %4012 = vmatpush.msra.mxu0 %v3679
    %4013 = vmatpush.msra.mxu0 %v3676
    %4014 = vmatpush.msra.mxu0 %v3673
    %4015 = vmatpush.msra.mxu0 %v3670
    %4016 = vmatpush.msra.mxu0 %v3667
    %4017 = vmatpush.msra.mxu0 %v3664
    %4018 = vmatpush.msra.mxu0 %v3661
    %4019 = vmatpush.msra.mxu0 %v3658
    %4020 = vmatpush.msra.mxu0 %v3655
    %4021 = vmatpush.msra.mxu0 %v3652
    %4022 = vmatpush.msra.mxu0 %v3649
    %4023 = vmatmul.f32.gmra.mxu0 %v4005
    %v4024 = vpop.f32.mrf.mxu0
    %v4025 = vadd.f32 %v3688, %v4024
    %4026 = vdwg.mxu0
    %4027 = vmatpush.msra.mxu0 0.0
    %4028 = vmatpush.msra.mxu0 0.0
    %4029 = vmatpush.msra.mxu0 0.0
    %4030 = vmatpush.msra.mxu0 0.0
    %4031 = vmatpush.msra.mxu0 %v3683
    %4032 = vmatpush.msra.mxu0 %v3680
    %4033 = vmatpush.msra.mxu0 %v3677
    %4034 = vmatpush.msra.mxu0 %v3674
    %4035 = vmatpush.msra.mxu0 %v3671
    %4036 = vmatpush.msra.mxu0 %v3668
    %4037 = vmatpush.msra.mxu0 %v3665
    %4038 = vmatpush.msra.mxu0 %v3662
    %4039 = vmatpush.msra.mxu0 %v3659
    %4040 = vmatpush.msra.mxu0 %v3656
    %4041 = vmatpush.msra.mxu0 %v3653
    %4042 = vmatpush.msra.mxu0 %v3650
    %4043 = vmatmul.f32.gmra.mxu0 %v4005
    %v4044 = vpop.f32.mrf.mxu0
    %v4045 = vadd.f32 %v3689, %v4044
    %4046 = vdwg.mxu0
    %4047 = vmatpush.msra.mxu0 0.0
    %4048 = vmatpush.msra.mxu0 0.0
    %4049 = vmatpush.msra.mxu0 0.0
    %4050 = vmatpush.msra.mxu0 0.0
    %4051 = vmatpush.msra.mxu0 %v3684
    %4052 = vmatpush.msra.mxu0 %v3681
    %4053 = vmatpush.msra.mxu0 %v3678
    %4054 = vmatpush.msra.mxu0 %v3675
    %4055 = vmatpush.msra.mxu0 %v3672
    %4056 = vmatpush.msra.mxu0 %v3669
    %4057 = vmatpush.msra.mxu0 %v3666
    %4058 = vmatpush.msra.mxu0 %v3663
    %4059 = vmatpush.msra.mxu0 %v3660
    %4060 = vmatpush.msra.mxu0 %v3657
    %4061 = vmatpush.msra.mxu0 %v3654
    %4062 = vmatpush.msra.mxu0 %v3651
    %4063 = vmatmul.f32.gmra.mxu0 %v4005
    %v4064 = vpop.f32.mrf.mxu0
    %v4065 = vadd.f32 %v3690, %v4064
    %4066 = vdwg.mxu0
    %v4067 = vxor.u32 %v4025, 2147483648
    %v4068 = vmul.f32 %v4067, 1.442695
    %v4069 = vpow.pop %v4068
    %v4070 = vadd.f32 %v4069, 1.0
    %v4071 = vrcp.pop %v4070
    %v4072 = vmul.f32 %v4070, %v4071
    %v4073 = vsub.f32 1.0, %v4072
    %v4074 = vmul.f32 %v4071, %v4073
    %v4075 = vadd.f32 %v4071, %v4074
    %vm4076 = vweird.f32 %v4070
    %vm4077 = vweird.f32 %v4071
    %vm4078 = vmor %vm4076, %vm4077
    %v4079 = vsel %vm4078, %v4071, %v4075
    %v4080 = vand.u32 2147483647, %v4070
    %vm4081 = vcmp.eq.f32.partialorder %v4080, 8.507059e+37
    %v4082 = vand.u32 %v4070, 2147483648
    %v4083 = vor.u32 1.1754944e-38, %v4082
    %v4084 = vsel %vm4081, %v4083, %v4079
    %v4085 = vmul.f32 1.0, %v4084
    %v4086 = vxor.u32 %v4045, 2147483648
    %v4087 = vmul.f32 %v4086, 1.442695
    %v4088 = vpow.pop %v4087
    %v4089 = vadd.f32 %v4088, 1.0
    %v4090 = vrcp.pop %v4089
    %v4091 = vmul.f32 %v4089, %v4090
    %v4092 = vsub.f32 1.0, %v4091
    %v4093 = vmul.f32 %v4090, %v4092
    %v4094 = vadd.f32 %v4090, %v4093
    %vm4095 = vweird.f32 %v4089
    %vm4096 = vweird.f32 %v4090
    %vm4097 = vmor %vm4095, %vm4096
    %v4098 = vsel %vm4097, %v4090, %v4094
    %v4099 = vand.u32 2147483647, %v4089
    %vm4100 = vcmp.eq.f32.partialorder %v4099, 8.507059e+37
    %v4101 = vand.u32 %v4089, 2147483648
    %v4102 = vor.u32 1.1754944e-38, %v4101
    %v4103 = vsel %vm4100, %v4102, %v4098
    %v4104 = vmul.f32 1.0, %v4103
    %v4105 = vtanh.pop %v4045
    %v4106 = vtanh.pop %v4065
    %v4107 = vxor.u32 %v4065, 2147483648
    %v4108 = vmul.f32 %v4107, 1.442695
    %v4109 = vpow.pop %v4108
    %v4110 = vadd.f32 %v4109, 1.0
    %v4111 = vrcp.pop %v4110
    %v4112 = vmul.f32 %v4110, %v4111
    %v4113 = vsub.f32 1.0, %v4112
    %v4114 = vmul.f32 %v4111, %v4113
    %v4115 = vadd.f32 %v4111, %v4114
    %vm4116 = vweird.f32 %v4110
    %vm4117 = vweird.f32 %v4111
    %vm4118 = vmor %vm4116, %vm4117
    %v4119 = vsel %vm4118, %v4111, %v4115
    %v4120 = vand.u32 2147483647, %v4110
    %vm4121 = vcmp.eq.f32.partialorder %v4120, 8.507059e+37
    %v4122 = vand.u32 %v4110, 2147483648
    %v4123 = vor.u32 1.1754944e-38, %v4122
    %v4124 = vsel %vm4121, %v4123, %v4119
    %v4125 = vmul.f32 1.0, %v4124
    %v4126 = vmul.f32 %v4085, %v3987
    %v4127 = vmul.f32 %v4104, %v3988
    %4130 = vrot.lane.b32.xlu0 %v4105, 64
    %v4131 = vpop.permute.xlu0 %4130
    %4132 = vrot.lane.b32.xlu0 %v4106, 64
    %v4133 = vpop.permute.xlu0 %4132
    %v4134 = vsel %vm3479, %v4131, %v4133
    %v4136 = vmul.f32 %v4085, %v4134
    %4138 = vrot.lane.b32.xlu0 %v4136, 96
    %v4139 = vpop.permute.xlu0 %4138
    %v4141 = vadd.f32 %v4126, %v4139
    %v4142 = vadd.f32 %v4127, %v4139
    %v4143 = vtanh.pop %v4141
    %v4144 = vtanh.pop %v4142
    %4147 = vrot.lane.b32.xlu0 %v4143, 64
    %v4148 = vpop.permute.xlu0 %4147
    %4149 = vrot.lane.b32.xlu0 %v4144, 64
    %v4150 = vpop.permute.xlu0 %4149
    %v4151 = vsel %vm3479, %v4148, %v4150
    %v4153 = vmul.f32 %v4125, %v4151
    %4155 = vrot.lane.b32.xlu0 %v4153, 96
    %v4156 = vpop.permute.xlu0 %4155
    %4158 = vst.msk [vmem:[#allocation2 + $0x4] sm:$0x3] %vm3849, %v4156
    %v4159 = vsel %vm3694, %v4156, 0
    %4161 = vmatpush.msra.mxu0 0.0
    %4162 = vmatpush.msra.mxu0 0.0
    %4163 = vmatpush.msra.mxu0 0.0
    %4164 = vmatpush.msra.mxu0 0.0
    %4165 = vmatpush.msra.mxu0 %v3682
    %4166 = vmatpush.msra.mxu0 %v3679
    %4167 = vmatpush.msra.mxu0 %v3676
    %4168 = vmatpush.msra.mxu0 %v3673
    %4169 = vmatpush.msra.mxu0 %v3670
    %4170 = vmatpush.msra.mxu0 %v3667
    %4171 = vmatpush.msra.mxu0 %v3664
    %4172 = vmatpush.msra.mxu0 %v3661
    %4173 = vmatpush.msra.mxu0 %v3658
    %4174 = vmatpush.msra.mxu0 %v3655
    %4175 = vmatpush.msra.mxu0 %v3652
    %4176 = vmatpush.msra.mxu0 %v3649
    %4177 = vmatmul.f32.gmra.mxu0 %v4159
    %v4178 = vpop.f32.mrf.mxu0
    %v4179 = vadd.f32 %v3688, %v4178
    %4180 = vdwg.mxu0
    %4181 = vmatpush.msra.mxu0 0.0
    %4182 = vmatpush.msra.mxu0 0.0
    %4183 = vmatpush.msra.mxu0 0.0
    %4184 = vmatpush.msra.mxu0 0.0
    %4185 = vmatpush.msra.mxu0 %v3683
    %4186 = vmatpush.msra.mxu0 %v3680
    %4187 = vmatpush.msra.mxu0 %v3677
    %4188 = vmatpush.msra.mxu0 %v3674
    %4189 = vmatpush.msra.mxu0 %v3671
    %4190 = vmatpush.msra.mxu0 %v3668
    %4191 = vmatpush.msra.mxu0 %v3665
    %4192 = vmatpush.msra.mxu0 %v3662
    %4193 = vmatpush.msra.mxu0 %v3659
    %4194 = vmatpush.msra.mxu0 %v3656
    %4195 = vmatpush.msra.mxu0 %v3653
    %4196 = vmatpush.msra.mxu0 %v3650
    %4197 = vmatmul.f32.gmra.mxu0 %v4159
    %v4198 = vpop.f32.mrf.mxu0
    %v4199 = vadd.f32 %v3689, %v4198
    %4200 = vdwg.mxu0
    %4201 = vmatpush.msra.mxu0 0.0
    %4202 = vmatpush.msra.mxu0 0.0
    %4203 = vmatpush.msra.mxu0 0.0
    %4204 = vmatpush.msra.mxu0 0.0
    %4205 = vmatpush.msra.mxu0 %v3684
    %4206 = vmatpush.msra.mxu0 %v3681
    %4207 = vmatpush.msra.mxu0 %v3678
    %4208 = vmatpush.msra.mxu0 %v3675
    %4209 = vmatpush.msra.mxu0 %v3672
    %4210 = vmatpush.msra.mxu0 %v3669
    %4211 = vmatpush.msra.mxu0 %v3666
    %4212 = vmatpush.msra.mxu0 %v3663
    %4213 = vmatpush.msra.mxu0 %v3660
    %4214 = vmatpush.msra.mxu0 %v3657
    %4215 = vmatpush.msra.mxu0 %v3654
    %4216 = vmatpush.msra.mxu0 %v3651
    %4217 = vmatmul.f32.gmra.mxu0 %v4159
    %v4218 = vpop.f32.mrf.mxu0
    %v4219 = vadd.f32 %v3690, %v4218
    %4220 = vdwg.mxu0
    %v4221 = vxor.u32 %v4179, 2147483648
    %v4222 = vmul.f32 %v4221, 1.442695
    %v4223 = vpow.pop %v4222
    %v4224 = vadd.f32 %v4223, 1.0
    %v4225 = vrcp.pop %v4224
    %v4226 = vmul.f32 %v4224, %v4225
    %v4227 = vsub.f32 1.0, %v4226
    %v4228 = vmul.f32 %v4225, %v4227
    %v4229 = vadd.f32 %v4225, %v4228
    %vm4230 = vweird.f32 %v4224
    %vm4231 = vweird.f32 %v4225
    %vm4232 = vmor %vm4230, %vm4231
    %v4233 = vsel %vm4232, %v4225, %v4229
    %v4234 = vand.u32 2147483647, %v4224
    %vm4235 = vcmp.eq.f32.partialorder %v4234, 8.507059e+37
    %v4236 = vand.u32 %v4224, 2147483648
    %v4237 = vor.u32 1.1754944e-38, %v4236
    %v4238 = vsel %vm4235, %v4237, %v4233
    %v4239 = vmul.f32 1.0, %v4238
    %v4240 = vxor.u32 %v4199, 2147483648
    %v4241 = vmul.f32 %v4240, 1.442695
    %v4242 = vpow.pop %v4241
    %v4243 = vadd.f32 %v4242, 1.0
    %v4244 = vrcp.pop %v4243
    %v4245 = vmul.f32 %v4243, %v4244
    %v4246 = vsub.f32 1.0, %v4245
    %v4247 = vmul.f32 %v4244, %v4246
    %v4248 = vadd.f32 %v4244, %v4247
    %vm4249 = vweird.f32 %v4243
    %vm4250 = vweird.f32 %v4244
    %vm4251 = vmor %vm4249, %vm4250
    %v4252 = vsel %vm4251, %v4244, %v4248
    %v4253 = vand.u32 2147483647, %v4243
    %vm4254 = vcmp.eq.f32.partialorder %v4253, 8.507059e+37
    %v4255 = vand.u32 %v4243, 2147483648
    %v4256 = vor.u32 1.1754944e-38, %v4255
    %v4257 = vsel %vm4254, %v4256, %v4252
    %v4258 = vmul.f32 1.0, %v4257
    %v4259 = vtanh.pop %v4199
    %v4260 = vtanh.pop %v4219
    %v4261 = vxor.u32 %v4219, 2147483648
    %v4262 = vmul.f32 %v4261, 1.442695
    %v4263 = vpow.pop %v4262
    %v4264 = vadd.f32 %v4263, 1.0
    %v4265 = vrcp.pop %v4264
    %v4266 = vmul.f32 %v4264, %v4265
    %v4267 = vsub.f32 1.0, %v4266
    %v4268 = vmul.f32 %v4265, %v4267
    %v4269 = vadd.f32 %v4265, %v4268
    %vm4270 = vweird.f32 %v4264
    %vm4271 = vweird.f32 %v4265
    %vm4272 = vmor %vm4270, %vm4271
    %v4273 = vsel %vm4272, %v4265, %v4269
    %v4274 = vand.u32 2147483647, %v4264
    %vm4275 = vcmp.eq.f32.partialorder %v4274, 8.507059e+37
    %v4276 = vand.u32 %v4264, 2147483648
    %v4277 = vor.u32 1.1754944e-38, %v4276
    %v4278 = vsel %vm4275, %v4277, %v4273
    %v4279 = vmul.f32 1.0, %v4278
    %v4280 = vmul.f32 %v4239, %v4141
    %v4281 = vmul.f32 %v4258, %v4142
    %4284 = vrot.lane.b32.xlu0 %v4259, 64
    %v4285 = vpop.permute.xlu0 %4284
    %4286 = vrot.lane.b32.xlu0 %v4260, 64
    %v4287 = vpop.permute.xlu0 %4286
    %v4288 = vsel %vm3479, %v4285, %v4287
    %v4290 = vmul.f32 %v4239, %v4288
    %4292 = vrot.lane.b32.xlu0 %v4290, 96
    %v4293 = vpop.permute.xlu0 %4292
    %v4295 = vadd.f32 %v4280, %v4293
    %v4296 = vadd.f32 %v4281, %v4293
    %v4297 = vtanh.pop %v4295
    %v4298 = vtanh.pop %v4296
    %4301 = vrot.lane.b32.xlu0 %v4297, 64
    %v4302 = vpop.permute.xlu0 %4301
    %4303 = vrot.lane.b32.xlu0 %v4298, 64
    %v4304 = vpop.permute.xlu0 %4303
    %v4305 = vsel %vm3479, %v4302, %v4304
    %v4307 = vmul.f32 %v4279, %v4305
    %4309 = vrot.lane.b32.xlu0 %v4307, 96
    %v4310 = vpop.permute.xlu0 %4309
    %4312 = vst.msk [vmem:[#allocation2 + $0x6] sm:$0x3] %vm3849, %v4310
    %v4313 = vsel %vm3694, %v4310, 0
    %4315 = vmatpush.msra.mxu0 0.0
    %4316 = vmatpush.msra.mxu0 0.0
    %4317 = vmatpush.msra.mxu0 0.0
    %4318 = vmatpush.msra.mxu0 0.0
    %4319 = vmatpush.msra.mxu0 %v3682
    %4320 = vmatpush.msra.mxu0 %v3679
    %4321 = vmatpush.msra.mxu0 %v3676
    %4322 = vmatpush.msra.mxu0 %v3673
    %4323 = vmatpush.msra.mxu0 %v3670
    %4324 = vmatpush.msra.mxu0 %v3667
    %4325 = vmatpush.msra.mxu0 %v3664
    %4326 = vmatpush.msra.mxu0 %v3661
    %4327 = vmatpush.msra.mxu0 %v3658
    %4328 = vmatpush.msra.mxu0 %v3655
    %4329 = vmatpush.msra.mxu0 %v3652
    %4330 = vmatpush.msra.mxu0 %v3649
    %4331 = vmatmul.f32.gmra.mxu0 %v4313
    %v4332 = vpop.f32.mrf.mxu0
    %v4333 = vadd.f32 %v3688, %v4332
    %4334 = vdwg.mxu0
    %4335 = vmatpush.msra.mxu0 0.0
    %4336 = vmatpush.msra.mxu0 0.0
    %4337 = vmatpush.msra.mxu0 0.0
    %4338 = vmatpush.msra.mxu0 0.0
    %4339 = vmatpush.msra.mxu0 %v3683
    %4340 = vmatpush.msra.mxu0 %v3680
    %4341 = vmatpush.msra.mxu0 %v3677
    %4342 = vmatpush.msra.mxu0 %v3674
    %4343 = vmatpush.msra.mxu0 %v3671
    %4344 = vmatpush.msra.mxu0 %v3668
    %4345 = vmatpush.msra.mxu0 %v3665
    %4346 = vmatpush.msra.mxu0 %v3662
    %4347 = vmatpush.msra.mxu0 %v3659
    %4348 = vmatpush.msra.mxu0 %v3656
    %4349 = vmatpush.msra.mxu0 %v3653
    %4350 = vmatpush.msra.mxu0 %v3650
    %4351 = vmatmul.f32.gmra.mxu0 %v4313
    %v4352 = vpop.f32.mrf.mxu0
    %v4353 = vadd.f32 %v3689, %v4352
    %4354 = vdwg.mxu0
    %4355 = vmatpush.msra.mxu0 0.0
    %4356 = vmatpush.msra.mxu0 0.0
    %4357 = vmatpush.msra.mxu0 0.0
    %4358 = vmatpush.msra.mxu0 0.0
    %4359 = vmatpush.msra.mxu0 %v3684
    %4360 = vmatpush.msra.mxu0 %v3681
    %4361 = vmatpush.msra.mxu0 %v3678
    %4362 = vmatpush.msra.mxu0 %v3675
    %4363 = vmatpush.msra.mxu0 %v3672
    %4364 = vmatpush.msra.mxu0 %v3669
    %4365 = vmatpush.msra.mxu0 %v3666
    %4366 = vmatpush.msra.mxu0 %v3663
    %4367 = vmatpush.msra.mxu0 %v3660
    %4368 = vmatpush.msra.mxu0 %v3657
    %4369 = vmatpush.msra.mxu0 %v3654
    %4370 = vmatpush.msra.mxu0 %v3651
    %4371 = vmatmul.f32.gmra.mxu0 %v4313
    %v4372 = vpop.f32.mrf.mxu0
    %v4373 = vadd.f32 %v3690, %v4372
    %4374 = vdwg.mxu0
    %v4375 = vxor.u32 %v4333, 2147483648
    %v4376 = vmul.f32 %v4375, 1.442695
    %v4377 = vpow.pop %v4376
    %v4378 = vadd.f32 %v4377, 1.0
    %v4379 = vrcp.pop %v4378
    %v4380 = vmul.f32 %v4378, %v4379
    %v4381 = vsub.f32 1.0, %v4380
    %v4382 = vmul.f32 %v4379, %v4381
    %v4383 = vadd.f32 %v4379, %v4382
    %vm4384 = vweird.f32 %v4378
    %vm4385 = vweird.f32 %v4379
    %vm4386 = vmor %vm4384, %vm4385
    %v4387 = vsel %vm4386, %v4379, %v4383
    %v4388 = vand.u32 2147483647, %v4378
    %vm4389 = vcmp.eq.f32.partialorder %v4388, 8.507059e+37
    %v4390 = vand.u32 %v4378, 2147483648
    %v4391 = vor.u32 1.1754944e-38, %v4390
    %v4392 = vsel %vm4389, %v4391, %v4387
    %v4393 = vmul.f32 1.0, %v4392
    %v4394 = vxor.u32 %v4353, 2147483648
    %v4395 = vmul.f32 %v4394, 1.442695
    %v4396 = vpow.pop %v4395
    %v4397 = vadd.f32 %v4396, 1.0
    %v4398 = vrcp.pop %v4397
    %v4399 = vmul.f32 %v4397, %v4398
    %v4400 = vsub.f32 1.0, %v4399
    %v4401 = vmul.f32 %v4398, %v4400
    %v4402 = vadd.f32 %v4398, %v4401
    %vm4403 = vweird.f32 %v4397
    %vm4404 = vweird.f32 %v4398
    %vm4405 = vmor %vm4403, %vm4404
    %v4406 = vsel %vm4405, %v4398, %v4402
    %v4407 = vand.u32 2147483647, %v4397
    %vm4408 = vcmp.eq.f32.partialorder %v4407, 8.507059e+37
    %v4409 = vand.u32 %v4397, 2147483648
    %v4410 = vor.u32 1.1754944e-38, %v4409
    %v4411 = vsel %vm4408, %v4410, %v4406
    %v4412 = vmul.f32 1.0, %v4411
    %v4413 = vtanh.pop %v4353
    %v4414 = vtanh.pop %v4373
    %v4415 = vxor.u32 %v4373, 2147483648
    %v4416 = vmul.f32 %v4415, 1.442695
    %v4417 = vpow.pop %v4416
    %v4418 = vadd.f32 %v4417, 1.0
    %v4419 = vrcp.pop %v4418
    %v4420 = vmul.f32 %v4418, %v4419
    %v4421 = vsub.f32 1.0, %v4420
    %v4422 = vmul.f32 %v4419, %v4421
    %v4423 = vadd.f32 %v4419, %v4422
    %vm4424 = vweird.f32 %v4418
    %vm4425 = vweird.f32 %v4419
    %vm4426 = vmor %vm4424, %vm4425
    %v4427 = vsel %vm4426, %v4419, %v4423
    %v4428 = vand.u32 2147483647, %v4418
    %vm4429 = vcmp.eq.f32.partialorder %v4428, 8.507059e+37
    %v4430 = vand.u32 %v4418, 2147483648
    %v4431 = vor.u32 1.1754944e-38, %v4430
    %v4432 = vsel %vm4429, %v4431, %v4427
    %v4433 = vmul.f32 1.0, %v4432
    %v4434 = vmul.f32 %v4393, %v4295
    %v4435 = vmul.f32 %v4412, %v4296
    %4438 = vrot.lane.b32.xlu0 %v4413, 64
    %v4439 = vpop.permute.xlu0 %4438
    %4440 = vrot.lane.b32.xlu0 %v4414, 64
    %v4441 = vpop.permute.xlu0 %4440
    %v4442 = vsel %vm3479, %v4439, %v4441
    %v4444 = vmul.f32 %v4393, %v4442
    %4446 = vrot.lane.b32.xlu0 %v4444, 96
    %v4447 = vpop.permute.xlu0 %4446
    %v4449 = vadd.f32 %v4434, %v4447
    %v4450 = vadd.f32 %v4435, %v4447
    %v4451 = vtanh.pop %v4449
    %v4452 = vtanh.pop %v4450
    %4455 = vrot.lane.b32.xlu0 %v4451, 64
    %v4456 = vpop.permute.xlu0 %4455
    %4457 = vrot.lane.b32.xlu0 %v4452, 64
    %v4458 = vpop.permute.xlu0 %4457
    %v4459 = vsel %vm3479, %v4456, %v4458
    %v4461 = vmul.f32 %v4433, %v4459
    %4463 = vrot.lane.b32.xlu0 %v4461, 96
    %v4464 = vpop.permute.xlu0 %4463
    %4466 = vst.msk [vmem:[#allocation2 + $0x8] sm:$0x3] %vm3849, %v4464
    %v4467 = vsel %vm3694, %v4464, 0
    %4469 = vmatpush.msra.mxu0 0.0
    %4470 = vmatpush.msra.mxu0 0.0
    %4471 = vmatpush.msra.mxu0 0.0
    %4472 = vmatpush.msra.mxu0 0.0
    %4473 = vmatpush.msra.mxu0 %v3682
    %4474 = vmatpush.msra.mxu0 %v3679
    %4475 = vmatpush.msra.mxu0 %v3676
    %4476 = vmatpush.msra.mxu0 %v3673
    %4477 = vmatpush.msra.mxu0 %v3670
    %4478 = vmatpush.msra.mxu0 %v3667
    %4479 = vmatpush.msra.mxu0 %v3664
    %4480 = vmatpush.msra.mxu0 %v3661
    %4481 = vmatpush.msra.mxu0 %v3658
    %4482 = vmatpush.msra.mxu0 %v3655
    %4483 = vmatpush.msra.mxu0 %v3652
    %4484 = vmatpush.msra.mxu0 %v3649
    %4485 = vmatmul.f32.gmra.mxu0 %v4467
    %v4486 = vpop.f32.mrf.mxu0
    %v4487 = vadd.f32 %v3688, %v4486
    %4488 = vdwg.mxu0
    %4489 = vmatpush.msra.mxu0 0.0
    %4490 = vmatpush.msra.mxu0 0.0
    %4491 = vmatpush.msra.mxu0 0.0
    %4492 = vmatpush.msra.mxu0 0.0
    %4493 = vmatpush.msra.mxu0 %v3683
    %4494 = vmatpush.msra.mxu0 %v3680
    %4495 = vmatpush.msra.mxu0 %v3677
    %4496 = vmatpush.msra.mxu0 %v3674
    %4497 = vmatpush.msra.mxu0 %v3671
    %4498 = vmatpush.msra.mxu0 %v3668
    %4499 = vmatpush.msra.mxu0 %v3665
    %4500 = vmatpush.msra.mxu0 %v3662
    %4501 = vmatpush.msra.mxu0 %v3659
    %4502 = vmatpush.msra.mxu0 %v3656
    %4503 = vmatpush.msra.mxu0 %v3653
    %4504 = vmatpush.msra.mxu0 %v3650
    %4505 = vmatmul.f32.gmra.mxu0 %v4467
    %v4506 = vpop.f32.mrf.mxu0
    %v4507 = vadd.f32 %v3689, %v4506
    %4508 = vdwg.mxu0
    %4509 = vmatpush.msra.mxu0 0.0
    %4510 = vmatpush.msra.mxu0 0.0
    %4511 = vmatpush.msra.mxu0 0.0
    %4512 = vmatpush.msra.mxu0 0.0
    %4513 = vmatpush.msra.mxu0 %v3684
    %4514 = vmatpush.msra.mxu0 %v3681
    %4515 = vmatpush.msra.mxu0 %v3678
    %4516 = vmatpush.msra.mxu0 %v3675
    %4517 = vmatpush.msra.mxu0 %v3672
    %4518 = vmatpush.msra.mxu0 %v3669
    %4519 = vmatpush.msra.mxu0 %v3666
    %4520 = vmatpush.msra.mxu0 %v3663
    %4521 = vmatpush.msra.mxu0 %v3660
    %4522 = vmatpush.msra.mxu0 %v3657
    %4523 = vmatpush.msra.mxu0 %v3654
    %4524 = vmatpush.msra.mxu0 %v3651
    %4525 = vmatmul.f32.gmra.mxu0 %v4467
    %v4526 = vpop.f32.mrf.mxu0
    %v4527 = vadd.f32 %v3690, %v4526
    %4528 = vdwg.mxu0
    %v4529 = vxor.u32 %v4487, 2147483648
    %v4530 = vmul.f32 %v4529, 1.442695
    %v4531 = vpow.pop %v4530
    %v4532 = vadd.f32 %v4531, 1.0
    %v4533 = vrcp.pop %v4532
    %v4534 = vmul.f32 %v4532, %v4533
    %v4535 = vsub.f32 1.0, %v4534
    %v4536 = vmul.f32 %v4533, %v4535
    %v4537 = vadd.f32 %v4533, %v4536
    %vm4538 = vweird.f32 %v4532
    %vm4539 = vweird.f32 %v4533
    %vm4540 = vmor %vm4538, %vm4539
    %v4541 = vsel %vm4540, %v4533, %v4537
    %v4542 = vand.u32 2147483647, %v4532
    %vm4543 = vcmp.eq.f32.partialorder %v4542, 8.507059e+37
    %v4544 = vand.u32 %v4532, 2147483648
    %v4545 = vor.u32 1.1754944e-38, %v4544
    %v4546 = vsel %vm4543, %v4545, %v4541
    %v4547 = vmul.f32 1.0, %v4546
    %v4548 = vxor.u32 %v4507, 2147483648
    %v4549 = vmul.f32 %v4548, 1.442695
    %v4550 = vpow.pop %v4549
    %v4551 = vadd.f32 %v4550, 1.0
    %v4552 = vrcp.pop %v4551
    %v4553 = vmul.f32 %v4551, %v4552
    %v4554 = vsub.f32 1.0, %v4553
    %v4555 = vmul.f32 %v4552, %v4554
    %v4556 = vadd.f32 %v4552, %v4555
    %vm4557 = vweird.f32 %v4551
    %vm4558 = vweird.f32 %v4552
    %vm4559 = vmor %vm4557, %vm4558
    %v4560 = vsel %vm4559, %v4552, %v4556
    %v4561 = vand.u32 2147483647, %v4551
    %vm4562 = vcmp.eq.f32.partialorder %v4561, 8.507059e+37
    %v4563 = vand.u32 %v4551, 2147483648
    %v4564 = vor.u32 1.1754944e-38, %v4563
    %v4565 = vsel %vm4562, %v4564, %v4560
    %v4566 = vmul.f32 1.0, %v4565
    %v4567 = vtanh.pop %v4507
    %v4568 = vtanh.pop %v4527
    %v4569 = vxor.u32 %v4527, 2147483648
    %v4570 = vmul.f32 %v4569, 1.442695
    %v4571 = vpow.pop %v4570
    %v4572 = vadd.f32 %v4571, 1.0
    %v4573 = vrcp.pop %v4572
    %v4574 = vmul.f32 %v4572, %v4573
    %v4575 = vsub.f32 1.0, %v4574
    %v4576 = vmul.f32 %v4573, %v4575
    %v4577 = vadd.f32 %v4573, %v4576
    %vm4578 = vweird.f32 %v4572
    %vm4579 = vweird.f32 %v4573
    %vm4580 = vmor %vm4578, %vm4579
    %v4581 = vsel %vm4580, %v4573, %v4577
    %v4582 = vand.u32 2147483647, %v4572
    %vm4583 = vcmp.eq.f32.partialorder %v4582, 8.507059e+37
    %v4584 = vand.u32 %v4572, 2147483648
    %v4585 = vor.u32 1.1754944e-38, %v4584
    %v4586 = vsel %vm4583, %v4585, %v4581
    %v4587 = vmul.f32 1.0, %v4586
    %v4588 = vmul.f32 %v4547, %v4449
    %v4589 = vmul.f32 %v4566, %v4450
    %4592 = vrot.lane.b32.xlu0 %v4567, 64
    %v4593 = vpop.permute.xlu0 %4592
    %4594 = vrot.lane.b32.xlu0 %v4568, 64
    %v4595 = vpop.permute.xlu0 %4594
    %v4596 = vsel %vm3479, %v4593, %v4595
    %v4598 = vmul.f32 %v4547, %v4596
    %4600 = vrot.lane.b32.xlu0 %v4598, 96
    %v4601 = vpop.permute.xlu0 %4600
    %v4603 = vadd.f32 %v4588, %v4601
    %v4604 = vadd.f32 %v4589, %v4601
    %v4605 = vtanh.pop %v4603
    %v4606 = vtanh.pop %v4604
    %4609 = vrot.lane.b32.xlu0 %v4605, 64
    %v4610 = vpop.permute.xlu0 %4609
    %4611 = vrot.lane.b32.xlu0 %v4606, 64
    %v4612 = vpop.permute.xlu0 %4611
    %v4613 = vsel %vm3479, %v4610, %v4612
    %v4615 = vmul.f32 %v4587, %v4613
    %4617 = vrot.lane.b32.xlu0 %v4615, 96
    %v4618 = vpop.permute.xlu0 %4617
    %4620 = vst.msk [vmem:[#allocation2 + $0xa] sm:$0x3] %vm3849, %v4618
    %v4621 = vsel %vm3694, %v4618, 0
    %4623 = vmatpush.msra.mxu0 0.0
    %4624 = vmatpush.msra.mxu0 0.0
    %4625 = vmatpush.msra.mxu0 0.0
    %4626 = vmatpush.msra.mxu0 0.0
    %4627 = vmatpush.msra.mxu0 %v3682
    %4628 = vmatpush.msra.mxu0 %v3679
    %4629 = vmatpush.msra.mxu0 %v3676
    %4630 = vmatpush.msra.mxu0 %v3673
    %4631 = vmatpush.msra.mxu0 %v3670
    %4632 = vmatpush.msra.mxu0 %v3667
    %4633 = vmatpush.msra.mxu0 %v3664
    %4634 = vmatpush.msra.mxu0 %v3661
    %4635 = vmatpush.msra.mxu0 %v3658
    %4636 = vmatpush.msra.mxu0 %v3655
    %4637 = vmatpush.msra.mxu0 %v3652
    %4638 = vmatpush.msra.mxu0 %v3649
    %4639 = vmatmul.f32.gmra.mxu0 %v4621
    %v4640 = vpop.f32.mrf.mxu0
    %v4641 = vadd.f32 %v3688, %v4640
    %4642 = vdwg.mxu0
    %4643 = vmatpush.msra.mxu0 0.0
    %4644 = vmatpush.msra.mxu0 0.0
    %4645 = vmatpush.msra.mxu0 0.0
    %4646 = vmatpush.msra.mxu0 0.0
    %4647 = vmatpush.msra.mxu0 %v3683
    %4648 = vmatpush.msra.mxu0 %v3680
    %4649 = vmatpush.msra.mxu0 %v3677
    %4650 = vmatpush.msra.mxu0 %v3674
    %4651 = vmatpush.msra.mxu0 %v3671
    %4652 = vmatpush.msra.mxu0 %v3668
    %4653 = vmatpush.msra.mxu0 %v3665
    %4654 = vmatpush.msra.mxu0 %v3662
    %4655 = vmatpush.msra.mxu0 %v3659
    %4656 = vmatpush.msra.mxu0 %v3656
    %4657 = vmatpush.msra.mxu0 %v3653
    %4658 = vmatpush.msra.mxu0 %v3650
    %4659 = vmatmul.f32.gmra.mxu0 %v4621
    %v4660 = vpop.f32.mrf.mxu0
    %v4661 = vadd.f32 %v3689, %v4660
    %4662 = vdwg.mxu0
    %4663 = vmatpush.msra.mxu0 0.0
    %4664 = vmatpush.msra.mxu0 0.0
    %4665 = vmatpush.msra.mxu0 0.0
    %4666 = vmatpush.msra.mxu0 0.0
    %4667 = vmatpush.msra.mxu0 %v3684
    %4668 = vmatpush.msra.mxu0 %v3681
    %4669 = vmatpush.msra.mxu0 %v3678
    %4670 = vmatpush.msra.mxu0 %v3675
    %4671 = vmatpush.msra.mxu0 %v3672
    %4672 = vmatpush.msra.mxu0 %v3669
    %4673 = vmatpush.msra.mxu0 %v3666
    %4674 = vmatpush.msra.mxu0 %v3663
    %4675 = vmatpush.msra.mxu0 %v3660
    %4676 = vmatpush.msra.mxu0 %v3657
    %4677 = vmatpush.msra.mxu0 %v3654
    %4678 = vmatpush.msra.mxu0 %v3651
    %4679 = vmatmul.f32.gmra.mxu0 %v4621
    %v4680 = vpop.f32.mrf.mxu0
    %v4681 = vadd.f32 %v3690, %v4680
    %4682 = vdwg.mxu0
    %v4683 = vxor.u32 %v4641, 2147483648
    %v4684 = vmul.f32 %v4683, 1.442695
    %v4685 = vpow.pop %v4684
    %v4686 = vadd.f32 %v4685, 1.0
    %v4687 = vrcp.pop %v4686
    %v4688 = vmul.f32 %v4686, %v4687
    %v4689 = vsub.f32 1.0, %v4688
    %v4690 = vmul.f32 %v4687, %v4689
    %v4691 = vadd.f32 %v4687, %v4690
    %vm4692 = vweird.f32 %v4686
    %vm4693 = vweird.f32 %v4687
    %vm4694 = vmor %vm4692, %vm4693
    %v4695 = vsel %vm4694, %v4687, %v4691
    %v4696 = vand.u32 2147483647, %v4686
    %vm4697 = vcmp.eq.f32.partialorder %v4696, 8.507059e+37
    %v4698 = vand.u32 %v4686, 2147483648
    %v4699 = vor.u32 1.1754944e-38, %v4698
    %v4700 = vsel %vm4697, %v4699, %v4695
    %v4701 = vmul.f32 1.0, %v4700
    %v4702 = vxor.u32 %v4661, 2147483648
    %v4703 = vmul.f32 %v4702, 1.442695
    %v4704 = vpow.pop %v4703
    %v4705 = vadd.f32 %v4704, 1.0
    %v4706 = vrcp.pop %v4705
    %v4707 = vmul.f32 %v4705, %v4706
    %v4708 = vsub.f32 1.0, %v4707
    %v4709 = vmul.f32 %v4706, %v4708
    %v4710 = vadd.f32 %v4706, %v4709
    %vm4711 = vweird.f32 %v4705
    %vm4712 = vweird.f32 %v4706
    %vm4713 = vmor %vm4711, %vm4712
    %v4714 = vsel %vm4713, %v4706, %v4710
    %v4715 = vand.u32 2147483647, %v4705
    %vm4716 = vcmp.eq.f32.partialorder %v4715, 8.507059e+37
    %v4717 = vand.u32 %v4705, 2147483648
    %v4718 = vor.u32 1.1754944e-38, %v4717
    %v4719 = vsel %vm4716, %v4718, %v4714
    %v4720 = vmul.f32 1.0, %v4719
    %v4721 = vtanh.pop %v4661
    %v4722 = vtanh.pop %v4681
    %v4723 = vxor.u32 %v4681, 2147483648
    %v4724 = vmul.f32 %v4723, 1.442695
    %v4725 = vpow.pop %v4724
    %v4726 = vadd.f32 %v4725, 1.0
    %v4727 = vrcp.pop %v4726
    %v4728 = vmul.f32 %v4726, %v4727
    %v4729 = vsub.f32 1.0, %v4728
    %v4730 = vmul.f32 %v4727, %v4729
    %v4731 = vadd.f32 %v4727, %v4730
    %vm4732 = vweird.f32 %v4726
    %vm4733 = vweird.f32 %v4727
    %vm4734 = vmor %vm4732, %vm4733
    %v4735 = vsel %vm4734, %v4727, %v4731
    %v4736 = vand.u32 2147483647, %v4726
    %vm4737 = vcmp.eq.f32.partialorder %v4736, 8.507059e+37
    %v4738 = vand.u32 %v4726, 2147483648
    %v4739 = vor.u32 1.1754944e-38, %v4738
    %v4740 = vsel %vm4737, %v4739, %v4735
    %v4741 = vmul.f32 1.0, %v4740
    %v4742 = vmul.f32 %v4701, %v4603
    %v4743 = vmul.f32 %v4720, %v4604
    %4746 = vrot.lane.b32.xlu0 %v4721, 64
    %v4747 = vpop.permute.xlu0 %4746
    %4748 = vrot.lane.b32.xlu0 %v4722, 64
    %v4749 = vpop.permute.xlu0 %4748
    %v4750 = vsel %vm3479, %v4747, %v4749
    %v4752 = vmul.f32 %v4701, %v4750
    %4754 = vrot.lane.b32.xlu0 %v4752, 96
    %v4755 = vpop.permute.xlu0 %4754
    %v4757 = vadd.f32 %v4742, %v4755
    %v4758 = vadd.f32 %v4743, %v4755
    %v4759 = vtanh.pop %v4757
    %v4760 = vtanh.pop %v4758
    %4763 = vrot.lane.b32.xlu0 %v4759, 64
    %v4764 = vpop.permute.xlu0 %4763
    %4765 = vrot.lane.b32.xlu0 %v4760, 64
    %v4766 = vpop.permute.xlu0 %4765
    %v4767 = vsel %vm3479, %v4764, %v4766
    %v4769 = vmul.f32 %v4741, %v4767
    %4771 = vrot.lane.b32.xlu0 %v4769, 96
    %v4772 = vpop.permute.xlu0 %4771
    %4774 = vst.msk [vmem:[#allocation2 + $0xc] sm:$0x3] %vm3849, %v4772
    %v4775 = vsel %vm3694, %v4772, 0
    %4777 = vmatpush.msra.mxu0 0.0
    %4778 = vmatpush.msra.mxu0 0.0
    %4779 = vmatpush.msra.mxu0 0.0
    %4780 = vmatpush.msra.mxu0 0.0
    %4781 = vmatpush.msra.mxu0 %v3682
    %4782 = vmatpush.msra.mxu0 %v3679
    %4783 = vmatpush.msra.mxu0 %v3676
    %4784 = vmatpush.msra.mxu0 %v3673
    %4785 = vmatpush.msra.mxu0 %v3670
    %4786 = vmatpush.msra.mxu0 %v3667
    %4787 = vmatpush.msra.mxu0 %v3664
    %4788 = vmatpush.msra.mxu0 %v3661
    %4789 = vmatpush.msra.mxu0 %v3658
    %4790 = vmatpush.msra.mxu0 %v3655
    %4791 = vmatpush.msra.mxu0 %v3652
    %4792 = vmatpush.msra.mxu0 %v3649
    %4793 = vmatmul.f32.gmra.mxu0 %v4775
    %v4794 = vpop.f32.mrf.mxu0
    %v4795 = vadd.f32 %v3688, %v4794
    %4796 = vdwg.mxu0
    %4797 = vmatpush.msra.mxu0 0.0
    %4798 = vmatpush.msra.mxu0 0.0
    %4799 = vmatpush.msra.mxu0 0.0
    %4800 = vmatpush.msra.mxu0 0.0
    %4801 = vmatpush.msra.mxu0 %v3683
    %4802 = vmatpush.msra.mxu0 %v3680
    %4803 = vmatpush.msra.mxu0 %v3677
    %4804 = vmatpush.msra.mxu0 %v3674
    %4805 = vmatpush.msra.mxu0 %v3671
    %4806 = vmatpush.msra.mxu0 %v3668
    %4807 = vmatpush.msra.mxu0 %v3665
    %4808 = vmatpush.msra.mxu0 %v3662
    %4809 = vmatpush.msra.mxu0 %v3659
    %4810 = vmatpush.msra.mxu0 %v3656
    %4811 = vmatpush.msra.mxu0 %v3653
    %4812 = vmatpush.msra.mxu0 %v3650
    %4813 = vmatmul.f32.gmra.mxu0 %v4775
    %v4814 = vpop.f32.mrf.mxu0
    %v4815 = vadd.f32 %v3689, %v4814
    %4816 = vdwg.mxu0
    %4817 = vmatpush.msra.mxu0 0.0
    %4818 = vmatpush.msra.mxu0 0.0
    %4819 = vmatpush.msra.mxu0 0.0
    %4820 = vmatpush.msra.mxu0 0.0
    %4821 = vmatpush.msra.mxu0 %v3684
    %4822 = vmatpush.msra.mxu0 %v3681
    %4823 = vmatpush.msra.mxu0 %v3678
    %4824 = vmatpush.msra.mxu0 %v3675
    %4825 = vmatpush.msra.mxu0 %v3672
    %4826 = vmatpush.msra.mxu0 %v3669
    %4827 = vmatpush.msra.mxu0 %v3666
    %4828 = vmatpush.msra.mxu0 %v3663
    %4829 = vmatpush.msra.mxu0 %v3660
    %4830 = vmatpush.msra.mxu0 %v3657
    %4831 = vmatpush.msra.mxu0 %v3654
    %4832 = vmatpush.msra.mxu0 %v3651
    %4833 = vmatmul.f32.gmra.mxu0 %v4775
    %v4834 = vpop.f32.mrf.mxu0
    %v4835 = vadd.f32 %v3690, %v4834
    %4836 = vdwg.mxu0
    %v4837 = vxor.u32 %v4795, 2147483648
    %v4838 = vmul.f32 %v4837, 1.442695
    %v4839 = vpow.pop %v4838
    %v4840 = vadd.f32 %v4839, 1.0
    %v4841 = vrcp.pop %v4840
    %v4842 = vmul.f32 %v4840, %v4841
    %v4843 = vsub.f32 1.0, %v4842
    %v4844 = vmul.f32 %v4841, %v4843
    %v4845 = vadd.f32 %v4841, %v4844
    %vm4846 = vweird.f32 %v4840
    %vm4847 = vweird.f32 %v4841
    %vm4848 = vmor %vm4846, %vm4847
    %v4849 = vsel %vm4848, %v4841, %v4845
    %v4850 = vand.u32 2147483647, %v4840
    %vm4851 = vcmp.eq.f32.partialorder %v4850, 8.507059e+37
    %v4852 = vand.u32 %v4840, 2147483648
    %v4853 = vor.u32 1.1754944e-38, %v4852
    %v4854 = vsel %vm4851, %v4853, %v4849
    %v4855 = vmul.f32 1.0, %v4854
    %v4856 = vxor.u32 %v4815, 2147483648
    %v4857 = vmul.f32 %v4856, 1.442695
    %v4858 = vpow.pop %v4857
    %v4859 = vadd.f32 %v4858, 1.0
    %v4860 = vrcp.pop %v4859
    %v4861 = vmul.f32 %v4859, %v4860
    %v4862 = vsub.f32 1.0, %v4861
    %v4863 = vmul.f32 %v4860, %v4862
    %v4864 = vadd.f32 %v4860, %v4863
    %vm4865 = vweird.f32 %v4859
    %vm4866 = vweird.f32 %v4860
    %vm4867 = vmor %vm4865, %vm4866
    %v4868 = vsel %vm4867, %v4860, %v4864
    %v4869 = vand.u32 2147483647, %v4859
    %vm4870 = vcmp.eq.f32.partialorder %v4869, 8.507059e+37
    %v4871 = vand.u32 %v4859, 2147483648
    %v4872 = vor.u32 1.1754944e-38, %v4871
    %v4873 = vsel %vm4870, %v4872, %v4868
    %v4874 = vmul.f32 1.0, %v4873
    %v4875 = vtanh.pop %v4815
    %v4876 = vtanh.pop %v4835
    %v4877 = vxor.u32 %v4835, 2147483648
    %v4878 = vmul.f32 %v4877, 1.442695
    %v4879 = vpow.pop %v4878
    %v4880 = vadd.f32 %v4879, 1.0
    %v4881 = vrcp.pop %v4880
    %v4882 = vmul.f32 %v4880, %v4881
    %v4883 = vsub.f32 1.0, %v4882
    %v4884 = vmul.f32 %v4881, %v4883
    %v4885 = vadd.f32 %v4881, %v4884
    %vm4886 = vweird.f32 %v4880
    %vm4887 = vweird.f32 %v4881
    %vm4888 = vmor %vm4886, %vm4887
    %v4889 = vsel %vm4888, %v4881, %v4885
    %v4890 = vand.u32 2147483647, %v4880
    %vm4891 = vcmp.eq.f32.partialorder %v4890, 8.507059e+37
    %v4892 = vand.u32 %v4880, 2147483648
    %v4893 = vor.u32 1.1754944e-38, %v4892
    %v4894 = vsel %vm4891, %v4893, %v4889
    %v4895 = vmul.f32 1.0, %v4894
    %v4896 = vmul.f32 %v4855, %v4757
    %v4897 = vmul.f32 %v4874, %v4758
    %4900 = vrot.lane.b32.xlu0 %v4875, 64
    %v4901 = vpop.permute.xlu0 %4900
    %4902 = vrot.lane.b32.xlu0 %v4876, 64
    %v4903 = vpop.permute.xlu0 %4902
    %v4904 = vsel %vm3479, %v4901, %v4903
    %v4906 = vmul.f32 %v4855, %v4904
    %4908 = vrot.lane.b32.xlu0 %v4906, 96
    %v4909 = vpop.permute.xlu0 %4908
    %v4911 = vadd.f32 %v4896, %v4909
    %v4912 = vadd.f32 %v4897, %v4909
    %v4913 = vtanh.pop %v4911
    %v4914 = vtanh.pop %v4912
    %4917 = vrot.lane.b32.xlu0 %v4913, 64
    %v4918 = vpop.permute.xlu0 %4917
    %4919 = vrot.lane.b32.xlu0 %v4914, 64
    %v4920 = vpop.permute.xlu0 %4919
    %v4921 = vsel %vm3479, %v4918, %v4920
    %v4923 = vmul.f32 %v4895, %v4921
    %4925 = vrot.lane.b32.xlu0 %v4923, 96
    %v4926 = vpop.permute.xlu0 %4925
    %4928 = vst.msk [vmem:[#allocation2 + $0xe] sm:$0x3] %vm3849, %v4926
    %v4929 = vld [vmem:[#allocation2] sm:$0xff]
    %v4930 = vld [vmem:[#allocation2 + $0x8] sm:$0xff]
    %v4931 = vld [vmem:[#allocation7 + $0xa98] sm:$0xff]
    %v4932 = vld [vmem:[#allocation7 + $0xab0] sm:$0xff]
    %v4933 = vld [vmem:[#allocation7 + $0xac8] sm:$0xff]
    %v4934 = vld [vmem:[#allocation7 + $0xae0] sm:$0xff]
    %v4935 = vld [vmem:[#allocation7 + $0xaf8] sm:$0xff]
    %v4936 = vld [vmem:[#allocation7 + $0xb10] sm:$0xff]
    %v4937 = vld [vmem:[#allocation7 + $0xb28] sm:$0xff]
    %v4938 = vld [vmem:[#allocation7 + $0xb40] sm:$0xff]
    %v4939 = vld [vmem:[#allocation7 + $0xb58] sm:$0xff]
    %v4940 = vld [vmem:[#allocation7 + $0xb70] sm:$0xff]
    %v4941 = vld [vmem:[#allocation7 + $0xb88] sm:$0xff]
    %v4942 = vld [vmem:[#allocation7 + $0xba0] sm:$0xff]
    %v4943 = vld [vmem:[#allocation7 + $0xbb8] ss:$0 sm:$0xff]
    %v4945 = vsel %vm3694, %v4929, 0
    %v4948 = vsel %vm3694, %v4930, 0
    %4950 = vmatpush.msra.mxu0 0.0
    %4951 = vmatpush.msra.mxu0 0.0
    %4952 = vmatpush.msra.mxu0 0.0
    %4953 = vmatpush.msra.mxu0 0.0
    %4954 = vmatpush.msra.mxu0 %v4942
    %4955 = vmatpush.msra.mxu0 %v4941
    %4956 = vmatpush.msra.mxu0 %v4940
    %4957 = vmatpush.msra.mxu0 %v4939
    %4958 = vmatpush.msra.mxu0 %v4938
    %4959 = vmatpush.msra.mxu0 %v4937
    %4960 = vmatpush.msra.mxu0 %v4936
    %4961 = vmatpush.msra.mxu0 %v4935
    %4962 = vmatpush.msra.mxu0 %v4934
    %4963 = vmatpush.msra.mxu0 %v4933
    %4964 = vmatpush.msra.mxu0 %v4932
    %4965 = vmatpush.msra.mxu0 %v4931
    %4966 = vmatmul.f32.gmra.mxu0 %v4945
    %v4967 = vpop.f32.mrf.mxu0
    %v4968 = vadd.f32 %v4943, %v4967
    %4969 = vmatmul.f32.gmra.mxu0 %v4948
    %v4970 = vpop.f32.mrf.mxu0
    %v4971 = vadd.f32 %v4943, %v4970
    %4972 = vdwg.mxu0
    %4973 = vst.msk [vmem:[#allocation9] sm:$0xff] %vm126, %v4968
    %4974 = vst.msk [vmem:[#allocation9 + $0x8] sm:$0xff] %vm126, %v4971
    // Predicated region
    $region18: #{tpu_custom_call.1} parent=1 // pred_check
      _
    $region19: #{tpu_custom_call.1} parent=1 // pred_check_branch
      %4976 = sbr.rel (0) target = $region21
    $region20: #{tpu_custom_call.1} parent=1 // pred_region
      %4978 = vsyncadd [#allocation5], 0
      %s4979 = sshll.u32 [#allocation9], 4
      %s4980 = int_to_ptr.vmem [resolvable:$true] %s4979
      %s4981 = sshll.u32 %s2, 4
      %s4982 = int_to_ptr.hbm [resolvable:$true] %s4981
      %4987 = dma.vmem_to_hbm [thread:$0]  %s4980, 256, %s4982, [#allocation5], 128, 128, 8
    $region21: #{tpu_custom_call.1} parent=1 // pred_fallthru
      _
    // Predicated region
    $region22: #{tpu_custom_call.1} parent=1 // pred_check
      _
    $region23: #{tpu_custom_call.1} parent=1 // pred_check_branch
      %4989 = sbr.rel (0) target = $region25
    $region24: #{tpu_custom_call.1} parent=1 // pred_region
      %4991 = vsyncadd [#allocation11], 0
      %s4993 = sshll.u32 [#allocation10], 4
      %s4994 = int_to_ptr.vmem [resolvable:$true] %s4993
      %s4995 = sshll.u32 %s3, 4
      %s4996 = int_to_ptr.hbm [resolvable:$true] %s4995
      %4998 = dma.vmem_to_hbm [thread:$0]  %s4994, 32, %s4996, [#allocation11]
    $region25: #{tpu_custom_call.1} parent=1 // pred_fallthru
      _
    // Predicated region
    $region26: #{tpu_custom_call.1} parent=1 // pred_check
      _
    $region27: #{tpu_custom_call.1} parent=1 // pred_check_branch
      %5000 = sbr.rel (0) target = $region29
    $region28: #{tpu_custom_call.1} parent=1 // pred_region
      %5002 = vsyncadd [#allocation6], 0
      %s5004 = sshll.u32 %s4, 4
      %s5005 = int_to_ptr.hbm [resolvable:$true] %s5004
      %5007 = dma.smem_to_hbm [#allocation12], 16, %s5005, [#allocation6]
    $region29: #{tpu_custom_call.1} parent=1 // pred_fallthru
      _
    // Predicated region
    $region30: #{tpu_custom_call.1} parent=1 // pred_check
      _
    $region31: #{tpu_custom_call.1} parent=1 // pred_check_branch
      %5009 = sbr.rel (0) target = $region33
    $region32: #{tpu_custom_call.1} parent=1 // pred_region
      %5011 = dma.done [#allocation5], 256
    $region33: #{tpu_custom_call.1} parent=1 // pred_fallthru
      _
    // Predicated region
    $region34: #{tpu_custom_call.1} parent=1 // pred_check
      _
    $region35: #{tpu_custom_call.1} parent=1 // pred_check_branch
      %5013 = sbr.rel (0) target = $region37
    $region36: #{tpu_custom_call.1} parent=1 // pred_region
      %5015 = dma.done [#allocation11], 32
    $region37: #{tpu_custom_call.1} parent=1 // pred_fallthru
      _
    // Predicated region
    $region38: #{tpu_custom_call.1} parent=1 // pred_check
      _
    $region39: #{tpu_custom_call.1} parent=1 // pred_check_branch
      %5017 = sbr.rel (0) target = $region41
    $region40: #{tpu_custom_call.1} parent=1 // pred_region
      %5019 = dma.done [#allocation6], 16
    $region41: #{tpu_custom_call.1} parent=1 // pred_fallthru
      _
    %5020 = sfence
    %5021 = vsyncpa [#allocation4], 1
    %5022 = vsyncpa [#allocation8], 1
    %5023 = vsyncpa [#allocation5], 1
    %5024 = vsyncpa [#allocation11], 1
    %5025 = vsyncpa [#allocation6], 1

</llo_original>
